<compile_context>
chip_gen: v7x
topology: tpu7x:2x2x1
jax: 0.10.0
libtpu: 0.0.40
codegen_flags: <defaults>
</compile_context>

<pallas_src>
import jax
import jax.numpy as jnp
import numpy as np
from jax.experimental import pallas as pl
from jax.experimental.pallas import tpu as pltpu

D_MODEL = 40          # nn.TransformerEncoderLayer(d_model=40, nhead=4)
N_HEADS = 4
HEAD_DIM = D_MODEL // N_HEADS
FFN_DIM = 2048        # PyTorch default dim_feedforward
N_LAYERS = 4
LN_EPS = 1e-5
FC_IN = 64            # module declares fc = nn.Linear(64, 4)
FC_OUT = 4


def tinytrans_kernel(x_ref, wqkv_ref, bqkv_ref, wo_ref, bo_ref,
                     ln1w_ref, ln1b_ref, w1_ref, b1_ref, w2_ref, b2_ref,
                     ln2w_ref, ln2b_ref, fcw_ref, fcb_ref, out_ref):
    # One batch element per grid step: x is (S, D) fp32.
    x = x_ref[...]
    S = x.shape[0]

    def wdot(act, w, b):
        # bf16 weights + bf16 activation feed the MXU; accumulate in fp32, fp32 bias.
        return jnp.dot(act.astype(jnp.bfloat16), w,
                       preferred_element_type=jnp.float32) + b

    def layer_norm(v, w, b):
        mu = jnp.mean(v, axis=-1, keepdims=True)
        var = jnp.mean((v - mu) ** 2, axis=-1, keepdims=True)
        return (v - mu) * jax.lax.rsqrt(var + LN_EPS) * w + b

    # Head-selection lane masks (compile-time constants), hoisted out of the layer loop.
    lane = jax.lax.broadcasted_iota(jnp.int32, (1, D_MODEL), 1)
    head_masks = [((lane >= h * HEAD_DIM) & (lane < (h + 1) * HEAD_DIM)).astype(jnp.float32)
                  for h in range(N_HEADS)]

    for l in range(N_LAYERS):
        # ---- multi-head self-attention (post-norm, eval mode => dropout is identity) ----
        # Fused QKV projection; softmax scale is pre-folded into the Q block of wqkv/bqkv.
        qkv = wdot(x, wqkv_ref[l], bqkv_ref[l])          # (S, 3D) fp32
        q = qkv[:, 0 * D_MODEL:1 * D_MODEL]              # (S, D)
        k = qkv[:, 1 * D_MODEL:2 * D_MODEL]
        v = qkv[:, 2 * D_MODEL:3 * D_MODEL]

        # Head-batched scores: stack the lane-masked Q of every head along sublanes so ALL
        # head score matrices come out of a single MXU contraction.
        #   sc[h*S + i, j] = <q_i * mask_h, k_j>
        q_stack = jnp.concatenate([q * mh for mh in head_masks], axis=0)       # (H*S, D)
        sc = jnp.einsum('qd,kd->qk',
                        q_stack.astype(jnp.bfloat16), k.astype(jnp.bfloat16),
                        preferred_element_type=jnp.float32)                    # (H*S, S)
        sc = sc - jnp.max(sc, axis=-1, keepdims=True)
        e = jnp.exp(sc)
        a = e * pl.reciprocal(jnp.sum(e, axis=-1, keepdims=True), approx=True)

        # One (H*S, S)@(S, D) matmul; masking each head's row-block afterwards keeps only
        # that head's lanes, so summing the blocks reproduces the head concatenation with
        # no lane shuffles:  (A_h @ v) * mask_h == A_h @ (v * mask_h).
        ctx_stack = jnp.dot(a.astype(jnp.bfloat16), v.astype(jnp.bfloat16),
                            preferred_element_type=jnp.float32)                # (H*S, D)
        ctx = jnp.zeros_like(q)                                                # (S, D) fp32
        for h in range(N_HEADS):
            ctx = ctx + ctx_stack[h * S:(h + 1) * S, :] * head_masks[h]

        attn_out = wdot(ctx, wo_ref[l], bo_ref[l])
        x = layer_norm(x + attn_out, ln1w_ref[l], ln1b_ref[l])

        # ---- feed-forward (ReLU) ----
        hmid = jnp.maximum(wdot(x, w1_ref[l], b1_ref[l]), 0.0)    # (S, FFN) fp32
        ff = wdot(hmid, w2_ref[l], b2_ref[l])
        x = layer_norm(x + ff, ln2w_ref[l], ln2b_ref[l])

    # ---- mean over sequence + fc ----
    pooled = jnp.mean(x, axis=0, keepdims=True)                    # (1, D)
    out_ref[...] = (jnp.dot(pooled, fcw_ref[...], preferred_element_type=jnp.float32)
                    + fcb_ref[...]).astype(out_ref.dtype)


def pack_params(p):
    """Fold softmax scale into Q, fuse QKV, cast matmul weights to bf16."""
    scale = jnp.float32(1.0 / np.sqrt(HEAD_DIM))
    wqkv = jnp.concatenate([p['wq'] * scale, p['wk'], p['wv']], axis=-1)   # (L, D, 3D)
    bqkv = jnp.concatenate([p['bq'] * scale, p['bk'], p['bv']], axis=-1)   # (L, 1, 3D)
    return {
        'wqkv': wqkv.astype(jnp.bfloat16),
        'bqkv': bqkv.astype(jnp.float32),
        'wo': p['wo'].astype(jnp.bfloat16),
        'bo': p['bo'].astype(jnp.float32),
        'ln1w': p['ln1w'], 'ln1b': p['ln1b'],
        'w1': p['w1'].astype(jnp.bfloat16),
        'b1': p['b1'].astype(jnp.float32),
        'w2': p['w2'].astype(jnp.bfloat16),
        'b2': p['b2'].astype(jnp.float32),
        'ln2w': p['ln2w'], 'ln2b': p['ln2b'],
        # TODO(synk): the original module declares fc = nn.Linear(64, 4) but feeds it a 40-dim
        # feature (the PyTorch forward would raise); use the first 40 input rows, as before.
        'fcw': p['fcw'][:D_MODEL, :].astype(jnp.float32),          # (40, 4)
        'fcb': p['fcb'].astype(jnp.float32),                       # (1, 4)
    }


def tiny_trans_forward(x_nchw, params):
    N, C, H, W = x_nchw.shape
    assert C == 1 and W == D_MODEL, "TinyTrans expects NCHW input (N, 1, H, 40)"
    x = x_nchw.reshape(N, H, W).astype(jnp.float32)                # (B, S, D)
    B, S, D = x.shape

    pk = pack_params(params)
    L = N_LAYERS

    # All weights fit in VMEM (~1.4 MB bf16): load once (constant block index), iterate layers
    # inside the kernel.  Single grid axis = batch, marked parallel (uses both TCs on v7x).
    in_specs = [
        pl.BlockSpec((None, S, D), lambda b: (b, 0, 0)),                       # x
        pl.BlockSpec((L, D_MODEL, 3 * D_MODEL), lambda b: (0, 0, 0)),          # wqkv
        pl.BlockSpec((L, 1, 3 * D_MODEL), lambda b: (0, 0, 0)),                # bqkv
        pl.BlockSpec((L, D_MODEL, D_MODEL), lambda b: (0, 0, 0)),              # wo
        pl.BlockSpec((L, 1, D_MODEL), lambda b: (0, 0, 0)),                    # bo
        pl.BlockSpec((L, 1, D_MODEL), lambda b: (0, 0, 0)),                    # ln1w
        pl.BlockSpec((L, 1, D_MODEL), lambda b: (0, 0, 0)),                    # ln1b
        pl.BlockSpec((L, D_MODEL, FFN_DIM), lambda b: (0, 0, 0)),              # w1
        pl.BlockSpec((L, 1, FFN_DIM), lambda b: (0, 0, 0)),                    # b1
        pl.BlockSpec((L, FFN_DIM, D_MODEL), lambda b: (0, 0, 0)),              # w2
        pl.BlockSpec((L, 1, D_MODEL), lambda b: (0, 0, 0)),                    # b2
        pl.BlockSpec((L, 1, D_MODEL), lambda b: (0, 0, 0)),                    # ln2w
        pl.BlockSpec((L, 1, D_MODEL), lambda b: (0, 0, 0)),                    # ln2b
        pl.BlockSpec((D_MODEL, FC_OUT), lambda b: (0, 0)),                     # fcw
        pl.BlockSpec((1, FC_OUT), lambda b: (0, 0)),                           # fcb
    ]

    out = pl.pallas_call(
        tinytrans_kernel,
        out_shape=jax.ShapeDtypeStruct((B, 1, FC_OUT), jnp.float32),
        grid_spec=pltpu.PrefetchScalarGridSpec(
            num_scalar_prefetch=0,
            grid=(B,),
            in_specs=in_specs,
            out_specs=pl.BlockSpec((None, 1, FC_OUT), lambda b: (b, 0, 0)),
        ),
        compiler_params=pltpu.CompilerParams(dimension_semantics=("parallel",)),
    )(x, pk['wqkv'], pk['bqkv'], pk['wo'], pk['bo'], pk['ln1w'], pk['ln1b'],
      pk['w1'], pk['b1'], pk['w2'], pk['b2'], pk['ln2w'], pk['ln2b'],
      pk['fcw'], pk['fcb'])

    out = out.reshape(B, FC_OUT)
    return out, out   # PyTorch forward returns (out, out)


def init_params(key):
    L = N_LAYERS
    keys = jax.random.split(key, 16)

    def nrm(k, shape, scale=0.05):
        return scale * jax.random.normal(k, shape, jnp.float32)

    p = {
        'wq': nrm(keys[0], (L, D_MODEL, D_MODEL)),
        'wk': nrm(keys[1], (L, D_MODEL, D_MODEL)),
        'wv': nrm(keys[2], (L, D_MODEL, D_MODEL)),
        'bq': nrm(keys[3], (L, 1, D_MODEL)),
        'bk': nrm(keys[4], (L, 1, D_MODEL)),
        'bv': nrm(keys[5], (L, 1, D_MODEL)),
        'wo': nrm(keys[6], (L, D_MODEL, D_MODEL)),
        'bo': nrm(keys[7], (L, 1, D_MODEL)),
        'ln1w': jnp.ones((L, 1, D_MODEL), jnp.float32),
        'ln1b': jnp.zeros((L, 1, D_MODEL), jnp.float32),
        'w1': nrm(keys[8], (L, D_MODEL, FFN_DIM)),
        'b1': nrm(keys[9], (L, 1, FFN_DIM)),
        'w2': nrm(keys[10], (L, FFN_DIM, D_MODEL)),
        'b2': nrm(keys[11], (L, 1, D_MODEL)),
        'ln2w': jnp.ones((L, 1, D_MODEL), jnp.float32),
        'ln2b': jnp.zeros((L, 1, D_MODEL), jnp.float32),
        'fcw': nrm(keys[12], (FC_IN, FC_OUT)),   # Linear(64, 4) weight, stored transposed (in, out)
        'fcb': nrm(keys[13], (1, FC_OUT)),
    }
    return p


def reference_forward(x_nchw, p):
    """Pure-JAX fp32 reference of the same forward (batch-first, identical math)."""
    N, C, H, W = x_nchw.shape
    x = x_nchw.reshape(N, H, W).astype(jnp.float32)              # (B, S, D)
    B, S, D = x.shape
    scale = 1.0 / np.sqrt(HEAD_DIM)

    def ln(v, w, b):
        mu = jnp.mean(v, -1, keepdims=True)
        var = jnp.mean((v - mu) ** 2, -1, keepdims=True)
        return (v - mu) / jnp.sqrt(var + LN_EPS) * w + b

    for l in range(N_LAYERS):
        q = x @ p['wq'][l] + p['bq'][l]
        k = x @ p['wk'][l] + p['bk'][l]
        v = x @ p['wv'][l] + p['bv'][l]
        qh = q.reshape(B, S, N_HEADS, HEAD_DIM).transpose(0, 2, 1, 3)
        kh = k.reshape(B, S, N_HEADS, HEAD_DIM).transpose(0, 2, 1, 3)
        vh = v.reshape(B, S, N_HEADS, HEAD_DIM).transpose(0, 2, 1, 3)
        sc = jnp.einsum('bhqd,bhkd->bhqk', qh, kh) * scale
        a = jax.nn.softmax(sc, axis=-1)
        ctx = jnp.einsum('bhqk,bhkd->bhqd', a, vh).transpose(0, 2, 1, 3).reshape(B, S, D)
        attn_out = ctx @ p['wo'][l] + p['bo'][l]
        x = ln(x + attn_out, p['ln1w'][l], p['ln1b'][l])
        hmid = jnp.maximum(x @ p['w1'][l] + p['b1'][l], 0.0)
        ff = hmid @ p['w2'][l] + p['b2'][l]
        x = ln(x + ff, p['ln2w'][l], p['ln2b'][l])
    pooled = jnp.mean(x, axis=1)
    out = pooled @ p['fcw'][:D_MODEL, :] + p['fcb']
    return out, out


if __name__ == "__main__":
    key = jax.random.PRNGKey(0)
    kx, kp = jax.random.split(key)
    # NCHW input: batch=2, C=1 (required by the reshape in forward), H=16 (seq), W=40 (d_model)
    x = jax.random.normal(kx, (2, 1, 16, D_MODEL), dtype=jnp.float32)
    params = init_params(kp)

    out, out2 = tiny_trans_forward(x, params)
    out = jax.block_until_ready(out)

    ref, _ = reference_forward(x, params)
    np.testing.assert_allclose(np.asarray(out), np.asarray(ref), rtol=2e-2, atol=2e-2)
    assert out.shape == (2, FC_OUT)
    print("KERNEL_OK")
</pallas_src>

<mosaic_0001>
module attributes {stable_mosaic.version = 11 : i64} {
  func.func @tinytrans_kernel(%arg0: i32, %arg1: memref<1x16x40xf32, #tpu.memory_space<vmem>>, %arg2: memref<4x40x120xbf16, #tpu.memory_space<vmem>>, %arg3: memref<4x1x120xf32, #tpu.memory_space<vmem>>, %arg4: memref<4x40x40xbf16, #tpu.memory_space<vmem>>, %arg5: memref<4x1x40xf32, #tpu.memory_space<vmem>>, %arg6: memref<4x1x40xf32, #tpu.memory_space<vmem>>, %arg7: memref<4x1x40xf32, #tpu.memory_space<vmem>>, %arg8: memref<4x40x2048xbf16, #tpu.memory_space<vmem>>, %arg9: memref<4x1x2048xf32, #tpu.memory_space<vmem>>, %arg10: memref<4x2048x40xbf16, #tpu.memory_space<vmem>>, %arg11: memref<4x1x40xf32, #tpu.memory_space<vmem>>, %arg12: memref<4x1x40xf32, #tpu.memory_space<vmem>>, %arg13: memref<4x1x40xf32, #tpu.memory_space<vmem>>, %arg14: memref<40x4xf32, #tpu.memory_space<vmem>>, %arg15: memref<1x4xf32, #tpu.memory_space<vmem>>, %arg16: memref<1x1x4xf32, #tpu.memory_space<vmem>>) attributes {dimension_semantics = [#tpu.dimension_semantics<parallel>], iteration_bounds = array<i64: 2>, scalar_prefetch = 0 : i64, scratch_operands = 0 : i64, tpu.core_type = #tpu.core_type<tc>, window_params = [{transform_indices = @transform_0, window_bounds = array<i64: 1, 16, 40>}, {pipeline_mode = #tpu.pipeline_mode<synchronous>, transform_indices = @transform_1, window_bounds = array<i64: 4, 40, 120>}, {pipeline_mode = #tpu.pipeline_mode<synchronous>, transform_indices = @transform_2, window_bounds = array<i64: 4, 1, 120>}, {pipeline_mode = #tpu.pipeline_mode<synchronous>, transform_indices = @transform_3, window_bounds = array<i64: 4, 40, 40>}, {pipeline_mode = #tpu.pipeline_mode<synchronous>, transform_indices = @transform_4, window_bounds = array<i64: 4, 1, 40>}, {pipeline_mode = #tpu.pipeline_mode<synchronous>, transform_indices = @transform_5, window_bounds = array<i64: 4, 1, 40>}, {pipeline_mode = #tpu.pipeline_mode<synchronous>, transform_indices = @transform_6, window_bounds = array<i64: 4, 1, 40>}, {pipeline_mode = #tpu.pipeline_mode<synchronous>, transform_indices = @transform_7, window_bounds = array<i64: 4, 40, 2048>}, {pipeline_mode = #tpu.pipeline_mode<synchronous>, transform_indices = @transform_8, window_bounds = array<i64: 4, 1, 2048>}, {pipeline_mode = #tpu.pipeline_mode<synchronous>, transform_indices = @transform_9, window_bounds = array<i64: 4, 2048, 40>}, {pipeline_mode = #tpu.pipeline_mode<synchronous>, transform_indices = @transform_10, window_bounds = array<i64: 4, 1, 40>}, {pipeline_mode = #tpu.pipeline_mode<synchronous>, transform_indices = @transform_11, window_bounds = array<i64: 4, 1, 40>}, {pipeline_mode = #tpu.pipeline_mode<synchronous>, transform_indices = @transform_12, window_bounds = array<i64: 4, 1, 40>}, {pipeline_mode = #tpu.pipeline_mode<synchronous>, transform_indices = @transform_13, window_bounds = array<i64: 40, 4>}, {pipeline_mode = #tpu.pipeline_mode<synchronous>, transform_indices = @transform_14, window_bounds = array<i64: 1, 4>}, {transform_indices = @transform_15, window_bounds = array<i64: 1, 1, 4>}]} {
    %c0 = arith.constant 0 : index
    %c0_0 = arith.constant 0 : index
    %c0_1 = arith.constant 0 : index
    %0 = vector.load %arg1[%c0, %c0_0, %c0_1] : memref<1x16x40xf32, #tpu.memory_space<vmem>>, vector<1x16x40xf32>
    %1 = vector.shape_cast %0 : vector<1x16x40xf32> to vector<16x40xf32>
    %2 = tpu.iota {dimensions = array<i32: 1>} : vector<1x40xi32>
    %c0_i32 = arith.constant 0 : i32
    %3 = vector.broadcast %c0_i32 : i32 to vector<1x40xi32>
    %4 = arith.cmpi sge, %2, %3 : vector<1x40xi32>
    %c10_i32 = arith.constant 10 : i32
    %5 = vector.broadcast %c10_i32 : i32 to vector<1x40xi32>
    %6 = arith.cmpi slt, %2, %5 : vector<1x40xi32>
    %7 = arith.andi %4, %6 : vector<1x40xi1>
    %8 = arith.extui %7 : vector<1x40xi1> to vector<1x40xi32>
    %9 = arith.sitofp %8 : vector<1x40xi32> to vector<1x40xf32>
    %c10_i32_2 = arith.constant 10 : i32
    %10 = vector.broadcast %c10_i32_2 : i32 to vector<1x40xi32>
    %11 = arith.cmpi sge, %2, %10 : vector<1x40xi32>
    %c20_i32 = arith.constant 20 : i32
    %12 = vector.broadcast %c20_i32 : i32 to vector<1x40xi32>
    %13 = arith.cmpi slt, %2, %12 : vector<1x40xi32>
    %14 = arith.andi %11, %13 : vector<1x40xi1>
    %15 = arith.extui %14 : vector<1x40xi1> to vector<1x40xi32>
    %16 = arith.sitofp %15 : vector<1x40xi32> to vector<1x40xf32>
    %c20_i32_3 = arith.constant 20 : i32
    %17 = vector.broadcast %c20_i32_3 : i32 to vector<1x40xi32>
    %18 = arith.cmpi sge, %2, %17 : vector<1x40xi32>
    %c30_i32 = arith.constant 30 : i32
    %19 = vector.broadcast %c30_i32 : i32 to vector<1x40xi32>
    %20 = arith.cmpi slt, %2, %19 : vector<1x40xi32>
    %21 = arith.andi %18, %20 : vector<1x40xi1>
    %22 = arith.extui %21 : vector<1x40xi1> to vector<1x40xi32>
    %23 = arith.sitofp %22 : vector<1x40xi32> to vector<1x40xf32>
    %c30_i32_4 = arith.constant 30 : i32
    %24 = vector.broadcast %c30_i32_4 : i32 to vector<1x40xi32>
    %25 = arith.cmpi sge, %2, %24 : vector<1x40xi32>
    %c40_i32 = arith.constant 40 : i32
    %26 = vector.broadcast %c40_i32 : i32 to vector<1x40xi32>
    %27 = arith.cmpi slt, %2, %26 : vector<1x40xi32>
    %28 = arith.andi %25, %27 : vector<1x40xi1>
    %29 = arith.extui %28 : vector<1x40xi1> to vector<1x40xi32>
    %30 = arith.sitofp %29 : vector<1x40xi32> to vector<1x40xf32>
    %c0_5 = arith.constant 0 : index
    %c0_6 = arith.constant 0 : index
    %c0_7 = arith.constant 0 : index
    %31 = vector.load %arg2[%c0_5, %c0_6, %c0_7] : memref<4x40x120xbf16, #tpu.memory_space<vmem>>, vector<1x40x120xbf16>
    %32 = vector.shape_cast %31 : vector<1x40x120xbf16> to vector<40x120xbf16>
    %c0_8 = arith.constant 0 : index
    %c0_9 = arith.constant 0 : index
    %c0_10 = arith.constant 0 : index
    %33 = vector.load %arg3[%c0_8, %c0_9, %c0_10] : memref<4x1x120xf32, #tpu.memory_space<vmem>>, vector<1x1x120xf32>
    %34 = vector.shape_cast %33 : vector<1x1x120xf32> to vector<1x120xf32>
    %35 = arith.truncf %1 : vector<16x40xf32> to vector<16x40xbf16>
    %cst = arith.constant dense<0.000000e+00> : vector<16x120xf32>
    %36 = tpu.matmul %35, %32, %cst {dimension_numbers = #tpu.dot_dimension_numbers<[1], [0], [0], [1], [0, 0, 1, 1], [], []>} : vector<16x40xbf16>, vector<40x120xbf16>, vector<16x120xf32> -> vector<16x120xf32>
    %37 = vector.broadcast %34 : vector<1x120xf32> to vector<16x120xf32>
    %38 = arith.addf %36, %37 : vector<16x120xf32>
    %39 = vector.extract_strided_slice %38 {offsets = [0, 0], sizes = [16, 40], strides = [1, 1]} : vector<16x120xf32> to vector<16x40xf32>
    %40 = vector.extract_strided_slice %38 {offsets = [0, 40], sizes = [16, 40], strides = [1, 1]} : vector<16x120xf32> to vector<16x40xf32>
    %41 = vector.extract_strided_slice %38 {offsets = [0, 80], sizes = [16, 40], strides = [1, 1]} : vector<16x120xf32> to vector<16x40xf32>
    %42 = vector.broadcast %9 : vector<1x40xf32> to vector<16x40xf32>
    %43 = arith.mulf %39, %42 : vector<16x40xf32>
    %44 = vector.broadcast %16 : vector<1x40xf32> to vector<16x40xf32>
    %45 = arith.mulf %39, %44 : vector<16x40xf32>
    %46 = vector.broadcast %23 : vector<1x40xf32> to vector<16x40xf32>
    %47 = arith.mulf %39, %46 : vector<16x40xf32>
    %48 = vector.broadcast %30 : vector<1x40xf32> to vector<16x40xf32>
    %49 = arith.mulf %39, %48 : vector<16x40xf32>
    %50 = tpu.concatenate %43, %45, %47, %49 in 0 : vector<16x40xf32>, vector<16x40xf32>, vector<16x40xf32>, vector<16x40xf32> -> vector<64x40xf32>
    %51 = arith.truncf %50 : vector<64x40xf32> to vector<64x40xbf16>
    %52 = arith.truncf %40 : vector<16x40xf32> to vector<16x40xbf16>
    "tpu.trace_start"() <{level = 10 : i32, message = "qd,kd->qk"}> : () -> ()
    %cst_11 = arith.constant dense<0.000000e+00> : vector<64x16xf32>
    %53 = tpu.matmul %51, %52, %cst_11 {dimension_numbers = #tpu.dot_dimension_numbers<[1], [1], [0], [0], [0, 0, 1, 0], [], []>} : vector<64x40xbf16>, vector<16x40xbf16>, vector<64x16xf32> -> vector<64x16xf32>
    "tpu.trace_stop"() : () -> ()
    %cst_12 = arith.constant dense<0xFF800000> : vector<64xf32>
    %54 = vector.multi_reduction <maximumf>, %53, %cst_12 [1] : vector<64x16xf32> to vector<64xf32>
    %55 = vector.shape_cast %54 : vector<64xf32> to vector<64x1xf32>
    %56 = vector.broadcast %55 : vector<64x1xf32> to vector<64x16xf32>
    %57 = arith.subf %53, %56 : vector<64x16xf32>
    %58 = math.exp %57 : vector<64x16xf32>
    %cst_13 = arith.constant dense<0.000000e+00> : vector<64xf32>
    %59 = vector.multi_reduction <add>, %58, %cst_13 [1] : vector<64x16xf32> to vector<64xf32>
    %60 = vector.shape_cast %59 : vector<64xf32> to vector<64x1xf32>
    %61 = tpu.reciprocal %60 {approx = true} : vector<64x1xf32> -> vector<64x1xf32>
    %62 = vector.broadcast %61 : vector<64x1xf32> to vector<64x16xf32>
    %63 = arith.mulf %58, %62 : vector<64x16xf32>
    %64 = arith.truncf %63 : vector<64x16xf32> to vector<64x16xbf16>
    %65 = arith.truncf %41 : vector<16x40xf32> to vector<16x40xbf16>
    %cst_14 = arith.constant dense<0.000000e+00> : vector<64x40xf32>
    %66 = tpu.matmul %64, %65, %cst_14 {dimension_numbers = #tpu.dot_dimension_numbers<[1], [0], [0], [1], [0, 0, 1, 1], [], []>} : vector<64x16xbf16>, vector<16x40xbf16>, vector<64x40xf32> -> vector<64x40xf32>
    %cst_15 = arith.constant 0.000000e+00 : f32
    %67 = vector.broadcast %cst_15 : f32 to vector<16x40xf32>
    %68 = vector.extract_strided_slice %66 {offsets = [0, 0], sizes = [16, 40], strides = [1, 1]} : vector<64x40xf32> to vector<16x40xf32>
    %69 = vector.broadcast %9 : vector<1x40xf32> to vector<16x40xf32>
    %70 = arith.mulf %68, %69 : vector<16x40xf32>
    %71 = arith.addf %67, %70 : vector<16x40xf32>
    %72 = vector.extract_strided_slice %66 {offsets = [16, 0], sizes = [16, 40], strides = [1, 1]} : vector<64x40xf32> to vector<16x40xf32>
    %73 = vector.broadcast %16 : vector<1x40xf32> to vector<16x40xf32>
    %74 = arith.mulf %72, %73 : vector<16x40xf32>
    %75 = arith.addf %71, %74 : vector<16x40xf32>
    %76 = vector.extract_strided_slice %66 {offsets = [32, 0], sizes = [16, 40], strides = [1, 1]} : vector<64x40xf32> to vector<16x40xf32>
    %77 = vector.broadcast %23 : vector<1x40xf32> to vector<16x40xf32>
    %78 = arith.mulf %76, %77 : vector<16x40xf32>
    %79 = arith.addf %75, %78 : vector<16x40xf32>
    %80 = vector.extract_strided_slice %66 {offsets = [48, 0], sizes = [16, 40], strides = [1, 1]} : vector<64x40xf32> to vector<16x40xf32>
    %81 = vector.broadcast %30 : vector<1x40xf32> to vector<16x40xf32>
    %82 = arith.mulf %80, %81 : vector<16x40xf32>
    %83 = arith.addf %79, %82 : vector<16x40xf32>
    %c0_16 = arith.constant 0 : index
    %c0_17 = arith.constant 0 : index
    %c0_18 = arith.constant 0 : index
    %84 = vector.load %arg4[%c0_16, %c0_17, %c0_18] : memref<4x40x40xbf16, #tpu.memory_space<vmem>>, vector<1x40x40xbf16>
    %85 = vector.shape_cast %84 : vector<1x40x40xbf16> to vector<40x40xbf16>
    %c0_19 = arith.constant 0 : index
    %c0_20 = arith.constant 0 : index
    %c0_21 = arith.constant 0 : index
    %86 = vector.load %arg5[%c0_19, %c0_20, %c0_21] : memref<4x1x40xf32, #tpu.memory_space<vmem>>, vector<1x1x40xf32>
    %87 = vector.shape_cast %86 : vector<1x1x40xf32> to vector<1x40xf32>
    %88 = arith.truncf %83 : vector<16x40xf32> to vector<16x40xbf16>
    %cst_22 = arith.constant dense<0.000000e+00> : vector<16x40xf32>
    %89 = tpu.matmul %88, %85, %cst_22 {dimension_numbers = #tpu.dot_dimension_numbers<[1], [0], [0], [1], [0, 0, 1, 1], [], []>} : vector<16x40xbf16>, vector<40x40xbf16>, vector<16x40xf32> -> vector<16x40xf32>
    %90 = vector.broadcast %87 : vector<1x40xf32> to vector<16x40xf32>
    %91 = arith.addf %89, %90 : vector<16x40xf32>
    %92 = arith.addf %1, %91 : vector<16x40xf32>
    %c0_23 = arith.constant 0 : index
    %c0_24 = arith.constant 0 : index
    %c0_25 = arith.constant 0 : index
    %93 = vector.load %arg6[%c0_23, %c0_24, %c0_25] : memref<4x1x40xf32, #tpu.memory_space<vmem>>, vector<1x1x40xf32>
    %94 = vector.shape_cast %93 : vector<1x1x40xf32> to vector<1x40xf32>
    %c0_26 = arith.constant 0 : index
    %c0_27 = arith.constant 0 : index
    %c0_28 = arith.constant 0 : index
    %95 = vector.load %arg7[%c0_26, %c0_27, %c0_28] : memref<4x1x40xf32, #tpu.memory_space<vmem>>, vector<1x1x40xf32>
    %96 = vector.shape_cast %95 : vector<1x1x40xf32> to vector<1x40xf32>
    %cst_29 = arith.constant dense<0.000000e+00> : vector<16xf32>
    %97 = vector.multi_reduction <add>, %92, %cst_29 [1] : vector<16x40xf32> to vector<16xf32>
    %98 = vector.shape_cast %97 : vector<16xf32> to vector<16x1xf32>
    %cst_30 = arith.constant 4.000000e+01 : f32
    %99 = vector.broadcast %cst_30 : f32 to vector<16x1xf32>
    %100 = arith.divf %98, %99 : vector<16x1xf32>
    %101 = vector.broadcast %100 : vector<16x1xf32> to vector<16x40xf32>
    %102 = arith.subf %92, %101 : vector<16x40xf32>
    %103 = arith.mulf %102, %102 : vector<16x40xf32>
    %cst_31 = arith.constant dense<0.000000e+00> : vector<16xf32>
    %104 = vector.multi_reduction <add>, %103, %cst_31 [1] : vector<16x40xf32> to vector<16xf32>
    %105 = vector.shape_cast %104 : vector<16xf32> to vector<16x1xf32>
    %cst_32 = arith.constant 4.000000e+01 : f32
    %106 = vector.broadcast %cst_32 : f32 to vector<16x1xf32>
    %107 = arith.divf %105, %106 : vector<16x1xf32>
    %108 = vector.broadcast %100 : vector<16x1xf32> to vector<16x40xf32>
    %109 = arith.subf %92, %108 : vector<16x40xf32>
    %cst_33 = arith.constant 9.99999974E-6 : f32
    %110 = vector.broadcast %cst_33 : f32 to vector<16x1xf32>
    %111 = arith.addf %107, %110 : vector<16x1xf32>
    %112 = math.rsqrt %111 : vector<16x1xf32>
    %113 = vector.broadcast %112 : vector<16x1xf32> to vector<16x40xf32>
    %114 = arith.mulf %109, %113 : vector<16x40xf32>
    %115 = vector.broadcast %94 : vector<1x40xf32> to vector<16x40xf32>
    %116 = arith.mulf %114, %115 : vector<16x40xf32>
    %117 = vector.broadcast %96 : vector<1x40xf32> to vector<16x40xf32>
    %118 = arith.addf %116, %117 : vector<16x40xf32>
    %c0_34 = arith.constant 0 : index
    %c0_35 = arith.constant 0 : index
    %c0_36 = arith.constant 0 : index
    %119 = vector.load %arg8[%c0_34, %c0_35, %c0_36] : memref<4x40x2048xbf16, #tpu.memory_space<vmem>>, vector<1x40x2048xbf16>
    %120 = vector.shape_cast %119 : vector<1x40x2048xbf16> to vector<40x2048xbf16>
    %c0_37 = arith.constant 0 : index
    %c0_38 = arith.constant 0 : index
    %c0_39 = arith.constant 0 : index
    %121 = vector.load %arg9[%c0_37, %c0_38, %c0_39] : memref<4x1x2048xf32, #tpu.memory_space<vmem>>, vector<1x1x2048xf32>
    %122 = vector.shape_cast %121 : vector<1x1x2048xf32> to vector<1x2048xf32>
    %123 = arith.truncf %118 : vector<16x40xf32> to vector<16x40xbf16>
    %cst_40 = arith.constant dense<0.000000e+00> : vector<16x2048xf32>
    %124 = tpu.matmul %123, %120, %cst_40 {dimension_numbers = #tpu.dot_dimension_numbers<[1], [0], [0], [1], [0, 0, 1, 1], [], []>} : vector<16x40xbf16>, vector<40x2048xbf16>, vector<16x2048xf32> -> vector<16x2048xf32>
    %125 = vector.broadcast %122 : vector<1x2048xf32> to vector<16x2048xf32>
    %126 = arith.addf %124, %125 : vector<16x2048xf32>
    %cst_41 = arith.constant 0.000000e+00 : f32
    %127 = vector.broadcast %cst_41 : f32 to vector<16x2048xf32>
    %128 = arith.maximumf %126, %127 : vector<16x2048xf32>
    %c0_42 = arith.constant 0 : index
    %c0_43 = arith.constant 0 : index
    %c0_44 = arith.constant 0 : index
    %129 = vector.load %arg10[%c0_42, %c0_43, %c0_44] : memref<4x2048x40xbf16, #tpu.memory_space<vmem>>, vector<1x2048x40xbf16>
    %130 = vector.shape_cast %129 : vector<1x2048x40xbf16> to vector<2048x40xbf16>
    %c0_45 = arith.constant 0 : index
    %c0_46 = arith.constant 0 : index
    %c0_47 = arith.constant 0 : index
    %131 = vector.load %arg11[%c0_45, %c0_46, %c0_47] : memref<4x1x40xf32, #tpu.memory_space<vmem>>, vector<1x1x40xf32>
    %132 = vector.shape_cast %131 : vector<1x1x40xf32> to vector<1x40xf32>
    %133 = arith.truncf %128 : vector<16x2048xf32> to vector<16x2048xbf16>
    %cst_48 = arith.constant dense<0.000000e+00> : vector<16x40xf32>
    %134 = tpu.matmul %133, %130, %cst_48 {dimension_numbers = #tpu.dot_dimension_numbers<[1], [0], [0], [1], [0, 0, 1, 1], [], []>} : vector<16x2048xbf16>, vector<2048x40xbf16>, vector<16x40xf32> -> vector<16x40xf32>
    %135 = vector.broadcast %132 : vector<1x40xf32> to vector<16x40xf32>
    %136 = arith.addf %134, %135 : vector<16x40xf32>
    %137 = arith.addf %118, %136 : vector<16x40xf32>
    %c0_49 = arith.constant 0 : index
    %c0_50 = arith.constant 0 : index
    %c0_51 = arith.constant 0 : index
    %138 = vector.load %arg12[%c0_49, %c0_50, %c0_51] : memref<4x1x40xf32, #tpu.memory_space<vmem>>, vector<1x1x40xf32>
    %139 = vector.shape_cast %138 : vector<1x1x40xf32> to vector<1x40xf32>
    %c0_52 = arith.constant 0 : index
    %c0_53 = arith.constant 0 : index
    %c0_54 = arith.constant 0 : index
    %140 = vector.load %arg13[%c0_52, %c0_53, %c0_54] : memref<4x1x40xf32, #tpu.memory_space<vmem>>, vector<1x1x40xf32>
    %141 = vector.shape_cast %140 : vector<1x1x40xf32> to vector<1x40xf32>
    %cst_55 = arith.constant dense<0.000000e+00> : vector<16xf32>
    %142 = vector.multi_reduction <add>, %137, %cst_55 [1] : vector<16x40xf32> to vector<16xf32>
    %143 = vector.shape_cast %142 : vector<16xf32> to vector<16x1xf32>
    %cst_56 = arith.constant 4.000000e+01 : f32
    %144 = vector.broadcast %cst_56 : f32 to vector<16x1xf32>
    %145 = arith.divf %143, %144 : vector<16x1xf32>
    %146 = vector.broadcast %145 : vector<16x1xf32> to vector<16x40xf32>
    %147 = arith.subf %137, %146 : vector<16x40xf32>
    %148 = arith.mulf %147, %147 : vector<16x40xf32>
    %cst_57 = arith.constant dense<0.000000e+00> : vector<16xf32>
    %149 = vector.multi_reduction <add>, %148, %cst_57 [1] : vector<16x40xf32> to vector<16xf32>
    %150 = vector.shape_cast %149 : vector<16xf32> to vector<16x1xf32>
    %cst_58 = arith.constant 4.000000e+01 : f32
    %151 = vector.broadcast %cst_58 : f32 to vector<16x1xf32>
    %152 = arith.divf %150, %151 : vector<16x1xf32>
    %153 = vector.broadcast %145 : vector<16x1xf32> to vector<16x40xf32>
    %154 = arith.subf %137, %153 : vector<16x40xf32>
    %cst_59 = arith.constant 9.99999974E-6 : f32
    %155 = vector.broadcast %cst_59 : f32 to vector<16x1xf32>
    %156 = arith.addf %152, %155 : vector<16x1xf32>
    %157 = math.rsqrt %156 : vector<16x1xf32>
    %158 = vector.broadcast %157 : vector<16x1xf32> to vector<16x40xf32>
    %159 = arith.mulf %154, %158 : vector<16x40xf32>
    %160 = vector.broadcast %139 : vector<1x40xf32> to vector<16x40xf32>
    %161 = arith.mulf %159, %160 : vector<16x40xf32>
    %162 = vector.broadcast %141 : vector<1x40xf32> to vector<16x40xf32>
    %163 = arith.addf %161, %162 : vector<16x40xf32>
    %c1 = arith.constant 1 : index
    %c0_60 = arith.constant 0 : index
    %c0_61 = arith.constant 0 : index
    %164 = vector.load %arg2[%c1, %c0_60, %c0_61] : memref<4x40x120xbf16, #tpu.memory_space<vmem>>, vector<1x40x120xbf16>
    %165 = vector.shape_cast %164 : vector<1x40x120xbf16> to vector<40x120xbf16>
    %c1_62 = arith.constant 1 : index
    %c0_63 = arith.constant 0 : index
    %c0_64 = arith.constant 0 : index
    %166 = vector.load %arg3[%c1_62, %c0_63, %c0_64] : memref<4x1x120xf32, #tpu.memory_space<vmem>>, vector<1x1x120xf32>
    %167 = vector.shape_cast %166 : vector<1x1x120xf32> to vector<1x120xf32>
    %168 = arith.truncf %163 : vector<16x40xf32> to vector<16x40xbf16>
    %cst_65 = arith.constant dense<0.000000e+00> : vector<16x120xf32>
    %169 = tpu.matmul %168, %165, %cst_65 {dimension_numbers = #tpu.dot_dimension_numbers<[1], [0], [0], [1], [0, 0, 1, 1], [], []>} : vector<16x40xbf16>, vector<40x120xbf16>, vector<16x120xf32> -> vector<16x120xf32>
    %170 = vector.broadcast %167 : vector<1x120xf32> to vector<16x120xf32>
    %171 = arith.addf %169, %170 : vector<16x120xf32>
    %172 = vector.extract_strided_slice %171 {offsets = [0, 0], sizes = [16, 40], strides = [1, 1]} : vector<16x120xf32> to vector<16x40xf32>
    %173 = vector.extract_strided_slice %171 {offsets = [0, 40], sizes = [16, 40], strides = [1, 1]} : vector<16x120xf32> to vector<16x40xf32>
    %174 = vector.extract_strided_slice %171 {offsets = [0, 80], sizes = [16, 40], strides = [1, 1]} : vector<16x120xf32> to vector<16x40xf32>
    %175 = vector.broadcast %9 : vector<1x40xf32> to vector<16x40xf32>
    %176 = arith.mulf %172, %175 : vector<16x40xf32>
    %177 = vector.broadcast %16 : vector<1x40xf32> to vector<16x40xf32>
    %178 = arith.mulf %172, %177 : vector<16x40xf32>
    %179 = vector.broadcast %23 : vector<1x40xf32> to vector<16x40xf32>
    %180 = arith.mulf %172, %179 : vector<16x40xf32>
    %181 = vector.broadcast %30 : vector<1x40xf32> to vector<16x40xf32>
    %182 = arith.mulf %172, %181 : vector<16x40xf32>
    %183 = tpu.concatenate %176, %178, %180, %182 in 0 : vector<16x40xf32>, vector<16x40xf32>, vector<16x40xf32>, vector<16x40xf32> -> vector<64x40xf32>
    %184 = arith.truncf %183 : vector<64x40xf32> to vector<64x40xbf16>
    %185 = arith.truncf %173 : vector<16x40xf32> to vector<16x40xbf16>
    "tpu.trace_start"() <{level = 10 : i32, message = "qd,kd->qk"}> : () -> ()
    %cst_66 = arith.constant dense<0.000000e+00> : vector<64x16xf32>
    %186 = tpu.matmul %184, %185, %cst_66 {dimension_numbers = #tpu.dot_dimension_numbers<[1], [1], [0], [0], [0, 0, 1, 0], [], []>} : vector<64x40xbf16>, vector<16x40xbf16>, vector<64x16xf32> -> vector<64x16xf32>
    "tpu.trace_stop"() : () -> ()
    %cst_67 = arith.constant dense<0xFF800000> : vector<64xf32>
    %187 = vector.multi_reduction <maximumf>, %186, %cst_67 [1] : vector<64x16xf32> to vector<64xf32>
    %188 = vector.shape_cast %187 : vector<64xf32> to vector<64x1xf32>
    %189 = vector.broadcast %188 : vector<64x1xf32> to vector<64x16xf32>
    %190 = arith.subf %186, %189 : vector<64x16xf32>
    %191 = math.exp %190 : vector<64x16xf32>
    %cst_68 = arith.constant dense<0.000000e+00> : vector<64xf32>
    %192 = vector.multi_reduction <add>, %191, %cst_68 [1] : vector<64x16xf32> to vector<64xf32>
    %193 = vector.shape_cast %192 : vector<64xf32> to vector<64x1xf32>
    %194 = tpu.reciprocal %193 {approx = true} : vector<64x1xf32> -> vector<64x1xf32>
    %195 = vector.broadcast %194 : vector<64x1xf32> to vector<64x16xf32>
    %196 = arith.mulf %191, %195 : vector<64x16xf32>
    %197 = arith.truncf %196 : vector<64x16xf32> to vector<64x16xbf16>
    %198 = arith.truncf %174 : vector<16x40xf32> to vector<16x40xbf16>
    %cst_69 = arith.constant dense<0.000000e+00> : vector<64x40xf32>
    %199 = tpu.matmul %197, %198, %cst_69 {dimension_numbers = #tpu.dot_dimension_numbers<[1], [0], [0], [1], [0, 0, 1, 1], [], []>} : vector<64x16xbf16>, vector<16x40xbf16>, vector<64x40xf32> -> vector<64x40xf32>
    %cst_70 = arith.constant 0.000000e+00 : f32
    %200 = vector.broadcast %cst_70 : f32 to vector<16x40xf32>
    %201 = vector.extract_strided_slice %199 {offsets = [0, 0], sizes = [16, 40], strides = [1, 1]} : vector<64x40xf32> to vector<16x40xf32>
    %202 = vector.broadcast %9 : vector<1x40xf32> to vector<16x40xf32>
    %203 = arith.mulf %201, %202 : vector<16x40xf32>
    %204 = arith.addf %200, %203 : vector<16x40xf32>
    %205 = vector.extract_strided_slice %199 {offsets = [16, 0], sizes = [16, 40], strides = [1, 1]} : vector<64x40xf32> to vector<16x40xf32>
    %206 = vector.broadcast %16 : vector<1x40xf32> to vector<16x40xf32>
    %207 = arith.mulf %205, %206 : vector<16x40xf32>
    %208 = arith.addf %204, %207 : vector<16x40xf32>
    %209 = vector.extract_strided_slice %199 {offsets = [32, 0], sizes = [16, 40], strides = [1, 1]} : vector<64x40xf32> to vector<16x40xf32>
    %210 = vector.broadcast %23 : vector<1x40xf32> to vector<16x40xf32>
    %211 = arith.mulf %209, %210 : vector<16x40xf32>
    %212 = arith.addf %208, %211 : vector<16x40xf32>
    %213 = vector.extract_strided_slice %199 {offsets = [48, 0], sizes = [16, 40], strides = [1, 1]} : vector<64x40xf32> to vector<16x40xf32>
    %214 = vector.broadcast %30 : vector<1x40xf32> to vector<16x40xf32>
    %215 = arith.mulf %213, %214 : vector<16x40xf32>
    %216 = arith.addf %212, %215 : vector<16x40xf32>
    %c1_71 = arith.constant 1 : index
    %c0_72 = arith.constant 0 : index
    %c0_73 = arith.constant 0 : index
    %217 = vector.load %arg4[%c1_71, %c0_72, %c0_73] : memref<4x40x40xbf16, #tpu.memory_space<vmem>>, vector<1x40x40xbf16>
    %218 = vector.shape_cast %217 : vector<1x40x40xbf16> to vector<40x40xbf16>
    %c1_74 = arith.constant 1 : index
    %c0_75 = arith.constant 0 : index
    %c0_76 = arith.constant 0 : index
    %219 = vector.load %arg5[%c1_74, %c0_75, %c0_76] : memref<4x1x40xf32, #tpu.memory_space<vmem>>, vector<1x1x40xf32>
    %220 = vector.shape_cast %219 : vector<1x1x40xf32> to vector<1x40xf32>
    %221 = arith.truncf %216 : vector<16x40xf32> to vector<16x40xbf16>
    %cst_77 = arith.constant dense<0.000000e+00> : vector<16x40xf32>
    %222 = tpu.matmul %221, %218, %cst_77 {dimension_numbers = #tpu.dot_dimension_numbers<[1], [0], [0], [1], [0, 0, 1, 1], [], []>} : vector<16x40xbf16>, vector<40x40xbf16>, vector<16x40xf32> -> vector<16x40xf32>
    %223 = vector.broadcast %220 : vector<1x40xf32> to vector<16x40xf32>
    %224 = arith.addf %222, %223 : vector<16x40xf32>
    %225 = arith.addf %163, %224 : vector<16x40xf32>
    %c1_78 = arith.constant 1 : index
    %c0_79 = arith.constant 0 : index
    %c0_80 = arith.constant 0 : index
    %226 = vector.load %arg6[%c1_78, %c0_79, %c0_80] : memref<4x1x40xf32, #tpu.memory_space<vmem>>, vector<1x1x40xf32>
    %227 = vector.shape_cast %226 : vector<1x1x40xf32> to vector<1x40xf32>
    %c1_81 = arith.constant 1 : index
    %c0_82 = arith.constant 0 : index
    %c0_83 = arith.constant 0 : index
    %228 = vector.load %arg7[%c1_81, %c0_82, %c0_83] : memref<4x1x40xf32, #tpu.memory_space<vmem>>, vector<1x1x40xf32>
    %229 = vector.shape_cast %228 : vector<1x1x40xf32> to vector<1x40xf32>
    %cst_84 = arith.constant dense<0.000000e+00> : vector<16xf32>
    %230 = vector.multi_reduction <add>, %225, %cst_84 [1] : vector<16x40xf32> to vector<16xf32>
    %231 = vector.shape_cast %230 : vector<16xf32> to vector<16x1xf32>
    %cst_85 = arith.constant 4.000000e+01 : f32
    %232 = vector.broadcast %cst_85 : f32 to vector<16x1xf32>
    %233 = arith.divf %231, %232 : vector<16x1xf32>
    %234 = vector.broadcast %233 : vector<16x1xf32> to vector<16x40xf32>
    %235 = arith.subf %225, %234 : vector<16x40xf32>
    %236 = arith.mulf %235, %235 : vector<16x40xf32>
    %cst_86 = arith.constant dense<0.000000e+00> : vector<16xf32>
    %237 = vector.multi_reduction <add>, %236, %cst_86 [1] : vector<16x40xf32> to vector<16xf32>
    %238 = vector.shape_cast %237 : vector<16xf32> to vector<16x1xf32>
    %cst_87 = arith.constant 4.000000e+01 : f32
    %239 = vector.broadcast %cst_87 : f32 to vector<16x1xf32>
    %240 = arith.divf %238, %239 : vector<16x1xf32>
    %241 = vector.broadcast %233 : vector<16x1xf32> to vector<16x40xf32>
    %242 = arith.subf %225, %241 : vector<16x40xf32>
    %cst_88 = arith.constant 9.99999974E-6 : f32
    %243 = vector.broadcast %cst_88 : f32 to vector<16x1xf32>
    %244 = arith.addf %240, %243 : vector<16x1xf32>
    %245 = math.rsqrt %244 : vector<16x1xf32>
    %246 = vector.broadcast %245 : vector<16x1xf32> to vector<16x40xf32>
    %247 = arith.mulf %242, %246 : vector<16x40xf32>
    %248 = vector.broadcast %227 : vector<1x40xf32> to vector<16x40xf32>
    %249 = arith.mulf %247, %248 : vector<16x40xf32>
    %250 = vector.broadcast %229 : vector<1x40xf32> to vector<16x40xf32>
    %251 = arith.addf %249, %250 : vector<16x40xf32>
    %c1_89 = arith.constant 1 : index
    %c0_90 = arith.constant 0 : index
    %c0_91 = arith.constant 0 : index
    %252 = vector.load %arg8[%c1_89, %c0_90, %c0_91] : memref<4x40x2048xbf16, #tpu.memory_space<vmem>>, vector<1x40x2048xbf16>
    %253 = vector.shape_cast %252 : vector<1x40x2048xbf16> to vector<40x2048xbf16>
    %c1_92 = arith.constant 1 : index
    %c0_93 = arith.constant 0 : index
    %c0_94 = arith.constant 0 : index
    %254 = vector.load %arg9[%c1_92, %c0_93, %c0_94] : memref<4x1x2048xf32, #tpu.memory_space<vmem>>, vector<1x1x2048xf32>
    %255 = vector.shape_cast %254 : vector<1x1x2048xf32> to vector<1x2048xf32>
    %256 = arith.truncf %251 : vector<16x40xf32> to vector<16x40xbf16>
    %cst_95 = arith.constant dense<0.000000e+00> : vector<16x2048xf32>
    %257 = tpu.matmul %256, %253, %cst_95 {dimension_numbers = #tpu.dot_dimension_numbers<[1], [0], [0], [1], [0, 0, 1, 1], [], []>} : vector<16x40xbf16>, vector<40x2048xbf16>, vector<16x2048xf32> -> vector<16x2048xf32>
    %258 = vector.broadcast %255 : vector<1x2048xf32> to vector<16x2048xf32>
    %259 = arith.addf %257, %258 : vector<16x2048xf32>
    %cst_96 = arith.constant 0.000000e+00 : f32
    %260 = vector.broadcast %cst_96 : f32 to vector<16x2048xf32>
    %261 = arith.maximumf %259, %260 : vector<16x2048xf32>
    %c1_97 = arith.constant 1 : index
    %c0_98 = arith.constant 0 : index
    %c0_99 = arith.constant 0 : index
    %262 = vector.load %arg10[%c1_97, %c0_98, %c0_99] : memref<4x2048x40xbf16, #tpu.memory_space<vmem>>, vector<1x2048x40xbf16>
    %263 = vector.shape_cast %262 : vector<1x2048x40xbf16> to vector<2048x40xbf16>
    %c1_100 = arith.constant 1 : index
    %c0_101 = arith.constant 0 : index
    %c0_102 = arith.constant 0 : index
    %264 = vector.load %arg11[%c1_100, %c0_101, %c0_102] : memref<4x1x40xf32, #tpu.memory_space<vmem>>, vector<1x1x40xf32>
    %265 = vector.shape_cast %264 : vector<1x1x40xf32> to vector<1x40xf32>
    %266 = arith.truncf %261 : vector<16x2048xf32> to vector<16x2048xbf16>
    %cst_103 = arith.constant dense<0.000000e+00> : vector<16x40xf32>
    %267 = tpu.matmul %266, %263, %cst_103 {dimension_numbers = #tpu.dot_dimension_numbers<[1], [0], [0], [1], [0, 0, 1, 1], [], []>} : vector<16x2048xbf16>, vector<2048x40xbf16>, vector<16x40xf32> -> vector<16x40xf32>
    %268 = vector.broadcast %265 : vector<1x40xf32> to vector<16x40xf32>
    %269 = arith.addf %267, %268 : vector<16x40xf32>
    %270 = arith.addf %251, %269 : vector<16x40xf32>
    %c1_104 = arith.constant 1 : index
    %c0_105 = arith.constant 0 : index
    %c0_106 = arith.constant 0 : index
    %271 = vector.load %arg12[%c1_104, %c0_105, %c0_106] : memref<4x1x40xf32, #tpu.memory_space<vmem>>, vector<1x1x40xf32>
    %272 = vector.shape_cast %271 : vector<1x1x40xf32> to vector<1x40xf32>
    %c1_107 = arith.constant 1 : index
    %c0_108 = arith.constant 0 : index
    %c0_109 = arith.constant 0 : index
    %273 = vector.load %arg13[%c1_107, %c0_108, %c0_109] : memref<4x1x40xf32, #tpu.memory_space<vmem>>, vector<1x1x40xf32>
    %274 = vector.shape_cast %273 : vector<1x1x40xf32> to vector<1x40xf32>
    %cst_110 = arith.constant dense<0.000000e+00> : vector<16xf32>
    %275 = vector.multi_reduction <add>, %270, %cst_110 [1] : vector<16x40xf32> to vector<16xf32>
    %276 = vector.shape_cast %275 : vector<16xf32> to vector<16x1xf32>
    %cst_111 = arith.constant 4.000000e+01 : f32
    %277 = vector.broadcast %cst_111 : f32 to vector<16x1xf32>
    %278 = arith.divf %276, %277 : vector<16x1xf32>
    %279 = vector.broadcast %278 : vector<16x1xf32> to vector<16x40xf32>
    %280 = arith.subf %270, %279 : vector<16x40xf32>
    %281 = arith.mulf %280, %280 : vector<16x40xf32>
    %cst_112 = arith.constant dense<0.000000e+00> : vector<16xf32>
    %282 = vector.multi_reduction <add>, %281, %cst_112 [1] : vector<16x40xf32> to vector<16xf32>
    %283 = vector.shape_cast %282 : vector<16xf32> to vector<16x1xf32>
    %cst_113 = arith.constant 4.000000e+01 : f32
    %284 = vector.broadcast %cst_113 : f32 to vector<16x1xf32>
    %285 = arith.divf %283, %284 : vector<16x1xf32>
    %286 = vector.broadcast %278 : vector<16x1xf32> to vector<16x40xf32>
    %287 = arith.subf %270, %286 : vector<16x40xf32>
    %cst_114 = arith.constant 9.99999974E-6 : f32
    %288 = vector.broadcast %cst_114 : f32 to vector<16x1xf32>
    %289 = arith.addf %285, %288 : vector<16x1xf32>
    %290 = math.rsqrt %289 : vector<16x1xf32>
    %291 = vector.broadcast %290 : vector<16x1xf32> to vector<16x40xf32>
    %292 = arith.mulf %287, %291 : vector<16x40xf32>
    %293 = vector.broadcast %272 : vector<1x40xf32> to vector<16x40xf32>
    %294 = arith.mulf %292, %293 : vector<16x40xf32>
    %295 = vector.broadcast %274 : vector<1x40xf32> to vector<16x40xf32>
    %296 = arith.addf %294, %295 : vector<16x40xf32>
    %c2 = arith.constant 2 : index
    %c0_115 = arith.constant 0 : index
    %c0_116 = arith.constant 0 : index
    %297 = vector.load %arg2[%c2, %c0_115, %c0_116] : memref<4x40x120xbf16, #tpu.memory_space<vmem>>, vector<1x40x120xbf16>
    %298 = vector.shape_cast %297 : vector<1x40x120xbf16> to vector<40x120xbf16>
    %c2_117 = arith.constant 2 : index
    %c0_118 = arith.constant 0 : index
    %c0_119 = arith.constant 0 : index
    %299 = vector.load %arg3[%c2_117, %c0_118, %c0_119] : memref<4x1x120xf32, #tpu.memory_space<vmem>>, vector<1x1x120xf32>
    %300 = vector.shape_cast %299 : vector<1x1x120xf32> to vector<1x120xf32>
    %301 = arith.truncf %296 : vector<16x40xf32> to vector<16x40xbf16>
    %cst_120 = arith.constant dense<0.000000e+00> : vector<16x120xf32>
    %302 = tpu.matmul %301, %298, %cst_120 {dimension_numbers = #tpu.dot_dimension_numbers<[1], [0], [0], [1], [0, 0, 1, 1], [], []>} : vector<16x40xbf16>, vector<40x120xbf16>, vector<16x120xf32> -> vector<16x120xf32>
    %303 = vector.broadcast %300 : vector<1x120xf32> to vector<16x120xf32>
    %304 = arith.addf %302, %303 : vector<16x120xf32>
    %305 = vector.extract_strided_slice %304 {offsets = [0, 0], sizes = [16, 40], strides = [1, 1]} : vector<16x120xf32> to vector<16x40xf32>
    %306 = vector.extract_strided_slice %304 {offsets = [0, 40], sizes = [16, 40], strides = [1, 1]} : vector<16x120xf32> to vector<16x40xf32>
    %307 = vector.extract_strided_slice %304 {offsets = [0, 80], sizes = [16, 40], strides = [1, 1]} : vector<16x120xf32> to vector<16x40xf32>
    %308 = vector.broadcast %9 : vector<1x40xf32> to vector<16x40xf32>
    %309 = arith.mulf %305, %308 : vector<16x40xf32>
    %310 = vector.broadcast %16 : vector<1x40xf32> to vector<16x40xf32>
    %311 = arith.mulf %305, %310 : vector<16x40xf32>
    %312 = vector.broadcast %23 : vector<1x40xf32> to vector<16x40xf32>
    %313 = arith.mulf %305, %312 : vector<16x40xf32>
    %314 = vector.broadcast %30 : vector<1x40xf32> to vector<16x40xf32>
    %315 = arith.mulf %305, %314 : vector<16x40xf32>
    %316 = tpu.concatenate %309, %311, %313, %315 in 0 : vector<16x40xf32>, vector<16x40xf32>, vector<16x40xf32>, vector<16x40xf32> -> vector<64x40xf32>
    %317 = arith.truncf %316 : vector<64x40xf32> to vector<64x40xbf16>
    %318 = arith.truncf %306 : vector<16x40xf32> to vector<16x40xbf16>
    "tpu.trace_start"() <{level = 10 : i32, message = "qd,kd->qk"}> : () -> ()
    %cst_121 = arith.constant dense<0.000000e+00> : vector<64x16xf32>
    %319 = tpu.matmul %317, %318, %cst_121 {dimension_numbers = #tpu.dot_dimension_numbers<[1], [1], [0], [0], [0, 0, 1, 0], [], []>} : vector<64x40xbf16>, vector<16x40xbf16>, vector<64x16xf32> -> vector<64x16xf32>
    "tpu.trace_stop"() : () -> ()
    %cst_122 = arith.constant dense<0xFF800000> : vector<64xf32>
    %320 = vector.multi_reduction <maximumf>, %319, %cst_122 [1] : vector<64x16xf32> to vector<64xf32>
    %321 = vector.shape_cast %320 : vector<64xf32> to vector<64x1xf32>
    %322 = vector.broadcast %321 : vector<64x1xf32> to vector<64x16xf32>
    %323 = arith.subf %319, %322 : vector<64x16xf32>
    %324 = math.exp %323 : vector<64x16xf32>
    %cst_123 = arith.constant dense<0.000000e+00> : vector<64xf32>
    %325 = vector.multi_reduction <add>, %324, %cst_123 [1] : vector<64x16xf32> to vector<64xf32>
    %326 = vector.shape_cast %325 : vector<64xf32> to vector<64x1xf32>
    %327 = tpu.reciprocal %326 {approx = true} : vector<64x1xf32> -> vector<64x1xf32>
    %328 = vector.broadcast %327 : vector<64x1xf32> to vector<64x16xf32>
    %329 = arith.mulf %324, %328 : vector<64x16xf32>
    %330 = arith.truncf %329 : vector<64x16xf32> to vector<64x16xbf16>
    %331 = arith.truncf %307 : vector<16x40xf32> to vector<16x40xbf16>
    %cst_124 = arith.constant dense<0.000000e+00> : vector<64x40xf32>
    %332 = tpu.matmul %330, %331, %cst_124 {dimension_numbers = #tpu.dot_dimension_numbers<[1], [0], [0], [1], [0, 0, 1, 1], [], []>} : vector<64x16xbf16>, vector<16x40xbf16>, vector<64x40xf32> -> vector<64x40xf32>
    %cst_125 = arith.constant 0.000000e+00 : f32
    %333 = vector.broadcast %cst_125 : f32 to vector<16x40xf32>
    %334 = vector.extract_strided_slice %332 {offsets = [0, 0], sizes = [16, 40], strides = [1, 1]} : vector<64x40xf32> to vector<16x40xf32>
    %335 = vector.broadcast %9 : vector<1x40xf32> to vector<16x40xf32>
    %336 = arith.mulf %334, %335 : vector<16x40xf32>
    %337 = arith.addf %333, %336 : vector<16x40xf32>
    %338 = vector.extract_strided_slice %332 {offsets = [16, 0], sizes = [16, 40], strides = [1, 1]} : vector<64x40xf32> to vector<16x40xf32>
    %339 = vector.broadcast %16 : vector<1x40xf32> to vector<16x40xf32>
    %340 = arith.mulf %338, %339 : vector<16x40xf32>
    %341 = arith.addf %337, %340 : vector<16x40xf32>
    %342 = vector.extract_strided_slice %332 {offsets = [32, 0], sizes = [16, 40], strides = [1, 1]} : vector<64x40xf32> to vector<16x40xf32>
    %343 = vector.broadcast %23 : vector<1x40xf32> to vector<16x40xf32>
    %344 = arith.mulf %342, %343 : vector<16x40xf32>
    %345 = arith.addf %341, %344 : vector<16x40xf32>
    %346 = vector.extract_strided_slice %332 {offsets = [48, 0], sizes = [16, 40], strides = [1, 1]} : vector<64x40xf32> to vector<16x40xf32>
    %347 = vector.broadcast %30 : vector<1x40xf32> to vector<16x40xf32>
    %348 = arith.mulf %346, %347 : vector<16x40xf32>
    %349 = arith.addf %345, %348 : vector<16x40xf32>
    %c2_126 = arith.constant 2 : index
    %c0_127 = arith.constant 0 : index
    %c0_128 = arith.constant 0 : index
    %350 = vector.load %arg4[%c2_126, %c0_127, %c0_128] : memref<4x40x40xbf16, #tpu.memory_space<vmem>>, vector<1x40x40xbf16>
    %351 = vector.shape_cast %350 : vector<1x40x40xbf16> to vector<40x40xbf16>
    %c2_129 = arith.constant 2 : index
    %c0_130 = arith.constant 0 : index
    %c0_131 = arith.constant 0 : index
    %352 = vector.load %arg5[%c2_129, %c0_130, %c0_131] : memref<4x1x40xf32, #tpu.memory_space<vmem>>, vector<1x1x40xf32>
    %353 = vector.shape_cast %352 : vector<1x1x40xf32> to vector<1x40xf32>
    %354 = arith.truncf %349 : vector<16x40xf32> to vector<16x40xbf16>
    %cst_132 = arith.constant dense<0.000000e+00> : vector<16x40xf32>
    %355 = tpu.matmul %354, %351, %cst_132 {dimension_numbers = #tpu.dot_dimension_numbers<[1], [0], [0], [1], [0, 0, 1, 1], [], []>} : vector<16x40xbf16>, vector<40x40xbf16>, vector<16x40xf32> -> vector<16x40xf32>
    %356 = vector.broadcast %353 : vector<1x40xf32> to vector<16x40xf32>
    %357 = arith.addf %355, %356 : vector<16x40xf32>
    %358 = arith.addf %296, %357 : vector<16x40xf32>
    %c2_133 = arith.constant 2 : index
    %c0_134 = arith.constant 0 : index
    %c0_135 = arith.constant 0 : index
    %359 = vector.load %arg6[%c2_133, %c0_134, %c0_135] : memref<4x1x40xf32, #tpu.memory_space<vmem>>, vector<1x1x40xf32>
    %360 = vector.shape_cast %359 : vector<1x1x40xf32> to vector<1x40xf32>
    %c2_136 = arith.constant 2 : index
    %c0_137 = arith.constant 0 : index
    %c0_138 = arith.constant 0 : index
    %361 = vector.load %arg7[%c2_136, %c0_137, %c0_138] : memref<4x1x40xf32, #tpu.memory_space<vmem>>, vector<1x1x40xf32>
    %362 = vector.shape_cast %361 : vector<1x1x40xf32> to vector<1x40xf32>
    %cst_139 = arith.constant dense<0.000000e+00> : vector<16xf32>
    %363 = vector.multi_reduction <add>, %358, %cst_139 [1] : vector<16x40xf32> to vector<16xf32>
    %364 = vector.shape_cast %363 : vector<16xf32> to vector<16x1xf32>
    %cst_140 = arith.constant 4.000000e+01 : f32
    %365 = vector.broadcast %cst_140 : f32 to vector<16x1xf32>
    %366 = arith.divf %364, %365 : vector<16x1xf32>
    %367 = vector.broadcast %366 : vector<16x1xf32> to vector<16x40xf32>
    %368 = arith.subf %358, %367 : vector<16x40xf32>
    %369 = arith.mulf %368, %368 : vector<16x40xf32>
    %cst_141 = arith.constant dense<0.000000e+00> : vector<16xf32>
    %370 = vector.multi_reduction <add>, %369, %cst_141 [1] : vector<16x40xf32> to vector<16xf32>
    %371 = vector.shape_cast %370 : vector<16xf32> to vector<16x1xf32>
    %cst_142 = arith.constant 4.000000e+01 : f32
    %372 = vector.broadcast %cst_142 : f32 to vector<16x1xf32>
    %373 = arith.divf %371, %372 : vector<16x1xf32>
    %374 = vector.broadcast %366 : vector<16x1xf32> to vector<16x40xf32>
    %375 = arith.subf %358, %374 : vector<16x40xf32>
    %cst_143 = arith.constant 9.99999974E-6 : f32
    %376 = vector.broadcast %cst_143 : f32 to vector<16x1xf32>
    %377 = arith.addf %373, %376 : vector<16x1xf32>
    %378 = math.rsqrt %377 : vector<16x1xf32>
    %379 = vector.broadcast %378 : vector<16x1xf32> to vector<16x40xf32>
    %380 = arith.mulf %375, %379 : vector<16x40xf32>
    %381 = vector.broadcast %360 : vector<1x40xf32> to vector<16x40xf32>
    %382 = arith.mulf %380, %381 : vector<16x40xf32>
    %383 = vector.broadcast %362 : vector<1x40xf32> to vector<16x40xf32>
    %384 = arith.addf %382, %383 : vector<16x40xf32>
    %c2_144 = arith.constant 2 : index
    %c0_145 = arith.constant 0 : index
    %c0_146 = arith.constant 0 : index
    %385 = vector.load %arg8[%c2_144, %c0_145, %c0_146] : memref<4x40x2048xbf16, #tpu.memory_space<vmem>>, vector<1x40x2048xbf16>
    %386 = vector.shape_cast %385 : vector<1x40x2048xbf16> to vector<40x2048xbf16>
    %c2_147 = arith.constant 2 : index
    %c0_148 = arith.constant 0 : index
    %c0_149 = arith.constant 0 : index
    %387 = vector.load %arg9[%c2_147, %c0_148, %c0_149] : memref<4x1x2048xf32, #tpu.memory_space<vmem>>, vector<1x1x2048xf32>
    %388 = vector.shape_cast %387 : vector<1x1x2048xf32> to vector<1x2048xf32>
    %389 = arith.truncf %384 : vector<16x40xf32> to vector<16x40xbf16>
    %cst_150 = arith.constant dense<0.000000e+00> : vector<16x2048xf32>
    %390 = tpu.matmul %389, %386, %cst_150 {dimension_numbers = #tpu.dot_dimension_numbers<[1], [0], [0], [1], [0, 0, 1, 1], [], []>} : vector<16x40xbf16>, vector<40x2048xbf16>, vector<16x2048xf32> -> vector<16x2048xf32>
    %391 = vector.broadcast %388 : vector<1x2048xf32> to vector<16x2048xf32>
    %392 = arith.addf %390, %391 : vector<16x2048xf32>
    %cst_151 = arith.constant 0.000000e+00 : f32
    %393 = vector.broadcast %cst_151 : f32 to vector<16x2048xf32>
    %394 = arith.maximumf %392, %393 : vector<16x2048xf32>
    %c2_152 = arith.constant 2 : index
    %c0_153 = arith.constant 0 : index
    %c0_154 = arith.constant 0 : index
    %395 = vector.load %arg10[%c2_152, %c0_153, %c0_154] : memref<4x2048x40xbf16, #tpu.memory_space<vmem>>, vector<1x2048x40xbf16>
    %396 = vector.shape_cast %395 : vector<1x2048x40xbf16> to vector<2048x40xbf16>
    %c2_155 = arith.constant 2 : index
    %c0_156 = arith.constant 0 : index
    %c0_157 = arith.constant 0 : index
    %397 = vector.load %arg11[%c2_155, %c0_156, %c0_157] : memref<4x1x40xf32, #tpu.memory_space<vmem>>, vector<1x1x40xf32>
    %398 = vector.shape_cast %397 : vector<1x1x40xf32> to vector<1x40xf32>
    %399 = arith.truncf %394 : vector<16x2048xf32> to vector<16x2048xbf16>
    %cst_158 = arith.constant dense<0.000000e+00> : vector<16x40xf32>
    %400 = tpu.matmul %399, %396, %cst_158 {dimension_numbers = #tpu.dot_dimension_numbers<[1], [0], [0], [1], [0, 0, 1, 1], [], []>} : vector<16x2048xbf16>, vector<2048x40xbf16>, vector<16x40xf32> -> vector<16x40xf32>
    %401 = vector.broadcast %398 : vector<1x40xf32> to vector<16x40xf32>
    %402 = arith.addf %400, %401 : vector<16x40xf32>
    %403 = arith.addf %384, %402 : vector<16x40xf32>
    %c2_159 = arith.constant 2 : index
    %c0_160 = arith.constant 0 : index
    %c0_161 = arith.constant 0 : index
    %404 = vector.load %arg12[%c2_159, %c0_160, %c0_161] : memref<4x1x40xf32, #tpu.memory_space<vmem>>, vector<1x1x40xf32>
    %405 = vector.shape_cast %404 : vector<1x1x40xf32> to vector<1x40xf32>
    %c2_162 = arith.constant 2 : index
    %c0_163 = arith.constant 0 : index
    %c0_164 = arith.constant 0 : index
    %406 = vector.load %arg13[%c2_162, %c0_163, %c0_164] : memref<4x1x40xf32, #tpu.memory_space<vmem>>, vector<1x1x40xf32>
    %407 = vector.shape_cast %406 : vector<1x1x40xf32> to vector<1x40xf32>
    %cst_165 = arith.constant dense<0.000000e+00> : vector<16xf32>
    %408 = vector.multi_reduction <add>, %403, %cst_165 [1] : vector<16x40xf32> to vector<16xf32>
    %409 = vector.shape_cast %408 : vector<16xf32> to vector<16x1xf32>
    %cst_166 = arith.constant 4.000000e+01 : f32
    %410 = vector.broadcast %cst_166 : f32 to vector<16x1xf32>
    %411 = arith.divf %409, %410 : vector<16x1xf32>
    %412 = vector.broadcast %411 : vector<16x1xf32> to vector<16x40xf32>
    %413 = arith.subf %403, %412 : vector<16x40xf32>
    %414 = arith.mulf %413, %413 : vector<16x40xf32>
    %cst_167 = arith.constant dense<0.000000e+00> : vector<16xf32>
    %415 = vector.multi_reduction <add>, %414, %cst_167 [1] : vector<16x40xf32> to vector<16xf32>
    %416 = vector.shape_cast %415 : vector<16xf32> to vector<16x1xf32>
    %cst_168 = arith.constant 4.000000e+01 : f32
    %417 = vector.broadcast %cst_168 : f32 to vector<16x1xf32>
    %418 = arith.divf %416, %417 : vector<16x1xf32>
    %419 = vector.broadcast %411 : vector<16x1xf32> to vector<16x40xf32>
    %420 = arith.subf %403, %419 : vector<16x40xf32>
    %cst_169 = arith.constant 9.99999974E-6 : f32
    %421 = vector.broadcast %cst_169 : f32 to vector<16x1xf32>
    %422 = arith.addf %418, %421 : vector<16x1xf32>
    %423 = math.rsqrt %422 : vector<16x1xf32>
    %424 = vector.broadcast %423 : vector<16x1xf32> to vector<16x40xf32>
    %425 = arith.mulf %420, %424 : vector<16x40xf32>
    %426 = vector.broadcast %405 : vector<1x40xf32> to vector<16x40xf32>
    %427 = arith.mulf %425, %426 : vector<16x40xf32>
    %428 = vector.broadcast %407 : vector<1x40xf32> to vector<16x40xf32>
    %429 = arith.addf %427, %428 : vector<16x40xf32>
    %c3 = arith.constant 3 : index
    %c0_170 = arith.constant 0 : index
    %c0_171 = arith.constant 0 : index
    %430 = vector.load %arg2[%c3, %c0_170, %c0_171] : memref<4x40x120xbf16, #tpu.memory_space<vmem>>, vector<1x40x120xbf16>
    %431 = vector.shape_cast %430 : vector<1x40x120xbf16> to vector<40x120xbf16>
    %c3_172 = arith.constant 3 : index
    %c0_173 = arith.constant 0 : index
    %c0_174 = arith.constant 0 : index
    %432 = vector.load %arg3[%c3_172, %c0_173, %c0_174] : memref<4x1x120xf32, #tpu.memory_space<vmem>>, vector<1x1x120xf32>
    %433 = vector.shape_cast %432 : vector<1x1x120xf32> to vector<1x120xf32>
    %434 = arith.truncf %429 : vector<16x40xf32> to vector<16x40xbf16>
    %cst_175 = arith.constant dense<0.000000e+00> : vector<16x120xf32>
    %435 = tpu.matmul %434, %431, %cst_175 {dimension_numbers = #tpu.dot_dimension_numbers<[1], [0], [0], [1], [0, 0, 1, 1], [], []>} : vector<16x40xbf16>, vector<40x120xbf16>, vector<16x120xf32> -> vector<16x120xf32>
    %436 = vector.broadcast %433 : vector<1x120xf32> to vector<16x120xf32>
    %437 = arith.addf %435, %436 : vector<16x120xf32>
    %438 = vector.extract_strided_slice %437 {offsets = [0, 0], sizes = [16, 40], strides = [1, 1]} : vector<16x120xf32> to vector<16x40xf32>
    %439 = vector.extract_strided_slice %437 {offsets = [0, 40], sizes = [16, 40], strides = [1, 1]} : vector<16x120xf32> to vector<16x40xf32>
    %440 = vector.extract_strided_slice %437 {offsets = [0, 80], sizes = [16, 40], strides = [1, 1]} : vector<16x120xf32> to vector<16x40xf32>
    %441 = vector.broadcast %9 : vector<1x40xf32> to vector<16x40xf32>
    %442 = arith.mulf %438, %441 : vector<16x40xf32>
    %443 = vector.broadcast %16 : vector<1x40xf32> to vector<16x40xf32>
    %444 = arith.mulf %438, %443 : vector<16x40xf32>
    %445 = vector.broadcast %23 : vector<1x40xf32> to vector<16x40xf32>
    %446 = arith.mulf %438, %445 : vector<16x40xf32>
    %447 = vector.broadcast %30 : vector<1x40xf32> to vector<16x40xf32>
    %448 = arith.mulf %438, %447 : vector<16x40xf32>
    %449 = tpu.concatenate %442, %444, %446, %448 in 0 : vector<16x40xf32>, vector<16x40xf32>, vector<16x40xf32>, vector<16x40xf32> -> vector<64x40xf32>
    %450 = arith.truncf %449 : vector<64x40xf32> to vector<64x40xbf16>
    %451 = arith.truncf %439 : vector<16x40xf32> to vector<16x40xbf16>
    "tpu.trace_start"() <{level = 10 : i32, message = "qd,kd->qk"}> : () -> ()
    %cst_176 = arith.constant dense<0.000000e+00> : vector<64x16xf32>
    %452 = tpu.matmul %450, %451, %cst_176 {dimension_numbers = #tpu.dot_dimension_numbers<[1], [1], [0], [0], [0, 0, 1, 0], [], []>} : vector<64x40xbf16>, vector<16x40xbf16>, vector<64x16xf32> -> vector<64x16xf32>
    "tpu.trace_stop"() : () -> ()
    %cst_177 = arith.constant dense<0xFF800000> : vector<64xf32>
    %453 = vector.multi_reduction <maximumf>, %452, %cst_177 [1] : vector<64x16xf32> to vector<64xf32>
    %454 = vector.shape_cast %453 : vector<64xf32> to vector<64x1xf32>
    %455 = vector.broadcast %454 : vector<64x1xf32> to vector<64x16xf32>
    %456 = arith.subf %452, %455 : vector<64x16xf32>
    %457 = math.exp %456 : vector<64x16xf32>
    %cst_178 = arith.constant dense<0.000000e+00> : vector<64xf32>
    %458 = vector.multi_reduction <add>, %457, %cst_178 [1] : vector<64x16xf32> to vector<64xf32>
    %459 = vector.shape_cast %458 : vector<64xf32> to vector<64x1xf32>
    %460 = tpu.reciprocal %459 {approx = true} : vector<64x1xf32> -> vector<64x1xf32>
    %461 = vector.broadcast %460 : vector<64x1xf32> to vector<64x16xf32>
    %462 = arith.mulf %457, %461 : vector<64x16xf32>
    %463 = arith.truncf %462 : vector<64x16xf32> to vector<64x16xbf16>
    %464 = arith.truncf %440 : vector<16x40xf32> to vector<16x40xbf16>
    %cst_179 = arith.constant dense<0.000000e+00> : vector<64x40xf32>
    %465 = tpu.matmul %463, %464, %cst_179 {dimension_numbers = #tpu.dot_dimension_numbers<[1], [0], [0], [1], [0, 0, 1, 1], [], []>} : vector<64x16xbf16>, vector<16x40xbf16>, vector<64x40xf32> -> vector<64x40xf32>
    %cst_180 = arith.constant 0.000000e+00 : f32
    %466 = vector.broadcast %cst_180 : f32 to vector<16x40xf32>
    %467 = vector.extract_strided_slice %465 {offsets = [0, 0], sizes = [16, 40], strides = [1, 1]} : vector<64x40xf32> to vector<16x40xf32>
    %468 = vector.broadcast %9 : vector<1x40xf32> to vector<16x40xf32>
    %469 = arith.mulf %467, %468 : vector<16x40xf32>
    %470 = arith.addf %466, %469 : vector<16x40xf32>
    %471 = vector.extract_strided_slice %465 {offsets = [16, 0], sizes = [16, 40], strides = [1, 1]} : vector<64x40xf32> to vector<16x40xf32>
    %472 = vector.broadcast %16 : vector<1x40xf32> to vector<16x40xf32>
    %473 = arith.mulf %471, %472 : vector<16x40xf32>
    %474 = arith.addf %470, %473 : vector<16x40xf32>
    %475 = vector.extract_strided_slice %465 {offsets = [32, 0], sizes = [16, 40], strides = [1, 1]} : vector<64x40xf32> to vector<16x40xf32>
    %476 = vector.broadcast %23 : vector<1x40xf32> to vector<16x40xf32>
    %477 = arith.mulf %475, %476 : vector<16x40xf32>
    %478 = arith.addf %474, %477 : vector<16x40xf32>
    %479 = vector.extract_strided_slice %465 {offsets = [48, 0], sizes = [16, 40], strides = [1, 1]} : vector<64x40xf32> to vector<16x40xf32>
    %480 = vector.broadcast %30 : vector<1x40xf32> to vector<16x40xf32>
    %481 = arith.mulf %479, %480 : vector<16x40xf32>
    %482 = arith.addf %478, %481 : vector<16x40xf32>
    %c3_181 = arith.constant 3 : index
    %c0_182 = arith.constant 0 : index
    %c0_183 = arith.constant 0 : index
    %483 = vector.load %arg4[%c3_181, %c0_182, %c0_183] : memref<4x40x40xbf16, #tpu.memory_space<vmem>>, vector<1x40x40xbf16>
    %484 = vector.shape_cast %483 : vector<1x40x40xbf16> to vector<40x40xbf16>
    %c3_184 = arith.constant 3 : index
    %c0_185 = arith.constant 0 : index
    %c0_186 = arith.constant 0 : index
    %485 = vector.load %arg5[%c3_184, %c0_185, %c0_186] : memref<4x1x40xf32, #tpu.memory_space<vmem>>, vector<1x1x40xf32>
    %486 = vector.shape_cast %485 : vector<1x1x40xf32> to vector<1x40xf32>
    %487 = arith.truncf %482 : vector<16x40xf32> to vector<16x40xbf16>
    %cst_187 = arith.constant dense<0.000000e+00> : vector<16x40xf32>
    %488 = tpu.matmul %487, %484, %cst_187 {dimension_numbers = #tpu.dot_dimension_numbers<[1], [0], [0], [1], [0, 0, 1, 1], [], []>} : vector<16x40xbf16>, vector<40x40xbf16>, vector<16x40xf32> -> vector<16x40xf32>
    %489 = vector.broadcast %486 : vector<1x40xf32> to vector<16x40xf32>
    %490 = arith.addf %488, %489 : vector<16x40xf32>
    %491 = arith.addf %429, %490 : vector<16x40xf32>
    %c3_188 = arith.constant 3 : index
    %c0_189 = arith.constant 0 : index
    %c0_190 = arith.constant 0 : index
    %492 = vector.load %arg6[%c3_188, %c0_189, %c0_190] : memref<4x1x40xf32, #tpu.memory_space<vmem>>, vector<1x1x40xf32>
    %493 = vector.shape_cast %492 : vector<1x1x40xf32> to vector<1x40xf32>
    %c3_191 = arith.constant 3 : index
    %c0_192 = arith.constant 0 : index
    %c0_193 = arith.constant 0 : index
    %494 = vector.load %arg7[%c3_191, %c0_192, %c0_193] : memref<4x1x40xf32, #tpu.memory_space<vmem>>, vector<1x1x40xf32>
    %495 = vector.shape_cast %494 : vector<1x1x40xf32> to vector<1x40xf32>
    %cst_194 = arith.constant dense<0.000000e+00> : vector<16xf32>
    %496 = vector.multi_reduction <add>, %491, %cst_194 [1] : vector<16x40xf32> to vector<16xf32>
    %497 = vector.shape_cast %496 : vector<16xf32> to vector<16x1xf32>
    %cst_195 = arith.constant 4.000000e+01 : f32
    %498 = vector.broadcast %cst_195 : f32 to vector<16x1xf32>
    %499 = arith.divf %497, %498 : vector<16x1xf32>
    %500 = vector.broadcast %499 : vector<16x1xf32> to vector<16x40xf32>
    %501 = arith.subf %491, %500 : vector<16x40xf32>
    %502 = arith.mulf %501, %501 : vector<16x40xf32>
    %cst_196 = arith.constant dense<0.000000e+00> : vector<16xf32>
    %503 = vector.multi_reduction <add>, %502, %cst_196 [1] : vector<16x40xf32> to vector<16xf32>
    %504 = vector.shape_cast %503 : vector<16xf32> to vector<16x1xf32>
    %cst_197 = arith.constant 4.000000e+01 : f32
    %505 = vector.broadcast %cst_197 : f32 to vector<16x1xf32>
    %506 = arith.divf %504, %505 : vector<16x1xf32>
    %507 = vector.broadcast %499 : vector<16x1xf32> to vector<16x40xf32>
    %508 = arith.subf %491, %507 : vector<16x40xf32>
    %cst_198 = arith.constant 9.99999974E-6 : f32
    %509 = vector.broadcast %cst_198 : f32 to vector<16x1xf32>
    %510 = arith.addf %506, %509 : vector<16x1xf32>
    %511 = math.rsqrt %510 : vector<16x1xf32>
    %512 = vector.broadcast %511 : vector<16x1xf32> to vector<16x40xf32>
    %513 = arith.mulf %508, %512 : vector<16x40xf32>
    %514 = vector.broadcast %493 : vector<1x40xf32> to vector<16x40xf32>
    %515 = arith.mulf %513, %514 : vector<16x40xf32>
    %516 = vector.broadcast %495 : vector<1x40xf32> to vector<16x40xf32>
    %517 = arith.addf %515, %516 : vector<16x40xf32>
    %c3_199 = arith.constant 3 : index
    %c0_200 = arith.constant 0 : index
    %c0_201 = arith.constant 0 : index
    %518 = vector.load %arg8[%c3_199, %c0_200, %c0_201] : memref<4x40x2048xbf16, #tpu.memory_space<vmem>>, vector<1x40x2048xbf16>
    %519 = vector.shape_cast %518 : vector<1x40x2048xbf16> to vector<40x2048xbf16>
    %c3_202 = arith.constant 3 : index
    %c0_203 = arith.constant 0 : index
    %c0_204 = arith.constant 0 : index
    %520 = vector.load %arg9[%c3_202, %c0_203, %c0_204] : memref<4x1x2048xf32, #tpu.memory_space<vmem>>, vector<1x1x2048xf32>
    %521 = vector.shape_cast %520 : vector<1x1x2048xf32> to vector<1x2048xf32>
    %522 = arith.truncf %517 : vector<16x40xf32> to vector<16x40xbf16>
    %cst_205 = arith.constant dense<0.000000e+00> : vector<16x2048xf32>
    %523 = tpu.matmul %522, %519, %cst_205 {dimension_numbers = #tpu.dot_dimension_numbers<[1], [0], [0], [1], [0, 0, 1, 1], [], []>} : vector<16x40xbf16>, vector<40x2048xbf16>, vector<16x2048xf32> -> vector<16x2048xf32>
    %524 = vector.broadcast %521 : vector<1x2048xf32> to vector<16x2048xf32>
    %525 = arith.addf %523, %524 : vector<16x2048xf32>
    %cst_206 = arith.constant 0.000000e+00 : f32
    %526 = vector.broadcast %cst_206 : f32 to vector<16x2048xf32>
    %527 = arith.maximumf %525, %526 : vector<16x2048xf32>
    %c3_207 = arith.constant 3 : index
    %c0_208 = arith.constant 0 : index
    %c0_209 = arith.constant 0 : index
    %528 = vector.load %arg10[%c3_207, %c0_208, %c0_209] : memref<4x2048x40xbf16, #tpu.memory_space<vmem>>, vector<1x2048x40xbf16>
    %529 = vector.shape_cast %528 : vector<1x2048x40xbf16> to vector<2048x40xbf16>
    %c3_210 = arith.constant 3 : index
    %c0_211 = arith.constant 0 : index
    %c0_212 = arith.constant 0 : index
    %530 = vector.load %arg11[%c3_210, %c0_211, %c0_212] : memref<4x1x40xf32, #tpu.memory_space<vmem>>, vector<1x1x40xf32>
    %531 = vector.shape_cast %530 : vector<1x1x40xf32> to vector<1x40xf32>
    %532 = arith.truncf %527 : vector<16x2048xf32> to vector<16x2048xbf16>
    %cst_213 = arith.constant dense<0.000000e+00> : vector<16x40xf32>
    %533 = tpu.matmul %532, %529, %cst_213 {dimension_numbers = #tpu.dot_dimension_numbers<[1], [0], [0], [1], [0, 0, 1, 1], [], []>} : vector<16x2048xbf16>, vector<2048x40xbf16>, vector<16x40xf32> -> vector<16x40xf32>
    %534 = vector.broadcast %531 : vector<1x40xf32> to vector<16x40xf32>
    %535 = arith.addf %533, %534 : vector<16x40xf32>
    %536 = arith.addf %517, %535 : vector<16x40xf32>
    %c3_214 = arith.constant 3 : index
    %c0_215 = arith.constant 0 : index
    %c0_216 = arith.constant 0 : index
    %537 = vector.load %arg12[%c3_214, %c0_215, %c0_216] : memref<4x1x40xf32, #tpu.memory_space<vmem>>, vector<1x1x40xf32>
    %538 = vector.shape_cast %537 : vector<1x1x40xf32> to vector<1x40xf32>
    %c3_217 = arith.constant 3 : index
    %c0_218 = arith.constant 0 : index
    %c0_219 = arith.constant 0 : index
    %539 = vector.load %arg13[%c3_217, %c0_218, %c0_219] : memref<4x1x40xf32, #tpu.memory_space<vmem>>, vector<1x1x40xf32>
    %540 = vector.shape_cast %539 : vector<1x1x40xf32> to vector<1x40xf32>
    %cst_220 = arith.constant dense<0.000000e+00> : vector<16xf32>
    %541 = vector.multi_reduction <add>, %536, %cst_220 [1] : vector<16x40xf32> to vector<16xf32>
    %542 = vector.shape_cast %541 : vector<16xf32> to vector<16x1xf32>
    %cst_221 = arith.constant 4.000000e+01 : f32
    %543 = vector.broadcast %cst_221 : f32 to vector<16x1xf32>
    %544 = arith.divf %542, %543 : vector<16x1xf32>
    %545 = vector.broadcast %544 : vector<16x1xf32> to vector<16x40xf32>
    %546 = arith.subf %536, %545 : vector<16x40xf32>
    %547 = arith.mulf %546, %546 : vector<16x40xf32>
    %cst_222 = arith.constant dense<0.000000e+00> : vector<16xf32>
    %548 = vector.multi_reduction <add>, %547, %cst_222 [1] : vector<16x40xf32> to vector<16xf32>
    %549 = vector.shape_cast %548 : vector<16xf32> to vector<16x1xf32>
    %cst_223 = arith.constant 4.000000e+01 : f32
    %550 = vector.broadcast %cst_223 : f32 to vector<16x1xf32>
    %551 = arith.divf %549, %550 : vector<16x1xf32>
    %552 = vector.broadcast %544 : vector<16x1xf32> to vector<16x40xf32>
    %553 = arith.subf %536, %552 : vector<16x40xf32>
    %cst_224 = arith.constant 9.99999974E-6 : f32
    %554 = vector.broadcast %cst_224 : f32 to vector<16x1xf32>
    %555 = arith.addf %551, %554 : vector<16x1xf32>
    %556 = math.rsqrt %555 : vector<16x1xf32>
    %557 = vector.broadcast %556 : vector<16x1xf32> to vector<16x40xf32>
    %558 = arith.mulf %553, %557 : vector<16x40xf32>
    %559 = vector.broadcast %538 : vector<1x40xf32> to vector<16x40xf32>
    %560 = arith.mulf %558, %559 : vector<16x40xf32>
    %561 = vector.broadcast %540 : vector<1x40xf32> to vector<16x40xf32>
    %562 = arith.addf %560, %561 : vector<16x40xf32>
    %cst_225 = arith.constant dense<0.000000e+00> : vector<40xf32>
    %563 = vector.multi_reduction <add>, %562, %cst_225 [0] : vector<16x40xf32> to vector<40xf32>
    %564 = vector.shape_cast %563 : vector<40xf32> to vector<1x40xf32>
    %cst_226 = arith.constant 1.600000e+01 : f32
    %565 = vector.broadcast %cst_226 : f32 to vector<1x40xf32>
    %566 = arith.divf %564, %565 : vector<1x40xf32>
    %c0_227 = arith.constant 0 : index
    %c0_228 = arith.constant 0 : index
    %567 = vector.load %arg14[%c0_227, %c0_228] : memref<40x4xf32, #tpu.memory_space<vmem>>, vector<40x4xf32>
    %cst_229 = arith.constant dense<0.000000e+00> : vector<1x4xf32>
    %568 = tpu.matmul %566, %567, %cst_229 {dimension_numbers = #tpu.dot_dimension_numbers<[1], [0], [0], [1], [0, 0, 1, 1], [], []>} : vector<1x40xf32>, vector<40x4xf32>, vector<1x4xf32> -> vector<1x4xf32>
    %c0_230 = arith.constant 0 : index
    %c0_231 = arith.constant 0 : index
    %569 = vector.load %arg15[%c0_230, %c0_231] : memref<1x4xf32, #tpu.memory_space<vmem>>, vector<1x4xf32>
    %570 = arith.addf %568, %569 : vector<1x4xf32>
    %c0_232 = arith.constant 0 : index
    %c0_233 = arith.constant 0 : index
    %c0_234 = arith.constant 0 : index
    %571 = vector.load %arg16[%c0_232, %c0_233, %c0_234] : memref<1x1x4xf32, #tpu.memory_space<vmem>>, vector<1x1x4xf32>
    %572 = vector.shape_cast %571 : vector<1x1x4xf32> to vector<1x4xf32>
    %573 = vector.shape_cast %570 : vector<1x4xf32> to vector<1x1x4xf32>
    tpu.vector_store %arg16[%c0_232, %c0_233, %c0_234], %573 {strides = array<i32>} : memref<1x1x4xf32, #tpu.memory_space<vmem>>, vector<1x1x4xf32>,
    return
  }
  func.func @transform_0(%arg0: i32) -> (i32, i32, i32) {
    %c0_i32 = arith.constant 0 : i32
    %c0_i32_0 = arith.constant 0 : i32
    %c0_i32_1 = arith.constant 0 : i32
    return %arg0, %c0_i32, %c0_i32_0 : i32, i32, i32
  }
  func.func @transform_1(%arg0: i32) -> (i32, i32, i32) {
    %c0_i32 = arith.constant 0 : i32
    %c0_i32_0 = arith.constant 0 : i32
    %c0_i32_1 = arith.constant 0 : i32
    %c0_i32_2 = arith.constant 0 : i32
    return %c0_i32, %c0_i32_0, %c0_i32_1 : i32, i32, i32
  }
  func.func @transform_2(%arg0: i32) -> (i32, i32, i32) {
    %c0_i32 = arith.constant 0 : i32
    %c0_i32_0 = arith.constant 0 : i32
    %c0_i32_1 = arith.constant 0 : i32
    %c0_i32_2 = arith.constant 0 : i32
    return %c0_i32, %c0_i32_0, %c0_i32_1 : i32, i32, i32
  }
  func.func @transform_3(%arg0: i32) -> (i32, i32, i32) {
    %c0_i32 = arith.constant 0 : i32
    %c0_i32_0 = arith.constant 0 : i32
    %c0_i32_1 = arith.constant 0 : i32
    %c0_i32_2 = arith.constant 0 : i32
    return %c0_i32, %c0_i32_0, %c0_i32_1 : i32, i32, i32
  }
  func.func @transform_4(%arg0: i32) -> (i32, i32, i32) {
    %c0_i32 = arith.constant 0 : i32
    %c0_i32_0 = arith.constant 0 : i32
    %c0_i32_1 = arith.constant 0 : i32
    %c0_i32_2 = arith.constant 0 : i32
    return %c0_i32, %c0_i32_0, %c0_i32_1 : i32, i32, i32
  }
  func.func @transform_5(%arg0: i32) -> (i32, i32, i32) {
    %c0_i32 = arith.constant 0 : i32
    %c0_i32_0 = arith.constant 0 : i32
    %c0_i32_1 = arith.constant 0 : i32
    %c0_i32_2 = arith.constant 0 : i32
    return %c0_i32, %c0_i32_0, %c0_i32_1 : i32, i32, i32
  }
  func.func @transform_6(%arg0: i32) -> (i32, i32, i32) {
    %c0_i32 = arith.constant 0 : i32
    %c0_i32_0 = arith.constant 0 : i32
    %c0_i32_1 = arith.constant 0 : i32
    %c0_i32_2 = arith.constant 0 : i32
    return %c0_i32, %c0_i32_0, %c0_i32_1 : i32, i32, i32
  }
  func.func @transform_7(%arg0: i32) -> (i32, i32, i32) {
    %c0_i32 = arith.constant 0 : i32
    %c0_i32_0 = arith.constant 0 : i32
    %c0_i32_1 = arith.constant 0 : i32
    %c0_i32_2 = arith.constant 0 : i32
    return %c0_i32, %c0_i32_0, %c0_i32_1 : i32, i32, i32
  }
  func.func @transform_8(%arg0: i32) -> (i32, i32, i32) {
    %c0_i32 = arith.constant 0 : i32
    %c0_i32_0 = arith.constant 0 : i32
    %c0_i32_1 = arith.constant 0 : i32
    %c0_i32_2 = arith.constant 0 : i32
    return %c0_i32, %c0_i32_0, %c0_i32_1 : i32, i32, i32
  }
  func.func @transform_9(%arg0: i32) -> (i32, i32, i32) {
    %c0_i32 = arith.constant 0 : i32
    %c0_i32_0 = arith.constant 0 : i32
    %c0_i32_1 = arith.constant 0 : i32
    %c0_i32_2 = arith.constant 0 : i32
    return %c0_i32, %c0_i32_0, %c0_i32_1 : i32, i32, i32
  }
  func.func @transform_10(%arg0: i32) -> (i32, i32, i32) {
    %c0_i32 = arith.constant 0 : i32
    %c0_i32_0 = arith.constant 0 : i32
    %c0_i32_1 = arith.constant 0 : i32
    %c0_i32_2 = arith.constant 0 : i32
    return %c0_i32, %c0_i32_0, %c0_i32_1 : i32, i32, i32
  }
  func.func @transform_11(%arg0: i32) -> (i32, i32, i32) {
    %c0_i32 = arith.constant 0 : i32
    %c0_i32_0 = arith.constant 0 : i32
    %c0_i32_1 = arith.constant 0 : i32
    %c0_i32_2 = arith.constant 0 : i32
    return %c0_i32, %c0_i32_0, %c0_i32_1 : i32, i32, i32
  }
  func.func @transform_12(%arg0: i32) -> (i32, i32, i32) {
    %c0_i32 = arith.constant 0 : i32
    %c0_i32_0 = arith.constant 0 : i32
    %c0_i32_1 = arith.constant 0 : i32
    %c0_i32_2 = arith.constant 0 : i32
    return %c0_i32, %c0_i32_0, %c0_i32_1 : i32, i32, i32
  }
  func.func @transform_13(%arg0: i32) -> (i32, i32) {
    %c0_i32 = arith.constant 0 : i32
    %c0_i32_0 = arith.constant 0 : i32
    %c0_i32_1 = arith.constant 0 : i32
    return %c0_i32, %c0_i32_0 : i32, i32
  }
  func.func @transform_14(%arg0: i32) -> (i32, i32) {
    %c0_i32 = arith.constant 0 : i32
    %c0_i32_0 = arith.constant 0 : i32
    %c0_i32_1 = arith.constant 0 : i32
    return %c0_i32, %c0_i32_0 : i32, i32
  }
  func.func @transform_15(%arg0: i32) -> (i32, i32, i32) {
    %c0_i32 = arith.constant 0 : i32
    %c0_i32_0 = arith.constant 0 : i32
    %c0_i32_1 = arith.constant 0 : i32
    return %arg0, %c0_i32, %c0_i32_0 : i32, i32, i32
  }
}

</mosaic_0001>

<llo_original>
// kernel: tpu_custom_call.1
$region0: #{tpu_custom_call.1}
  #allocation0 [shape = 'u32[]', space=smem, size = 0x4, offset = 0x4, fixed_abs, tag = 'smem constant byte address 0x4 - core index']
  #allocation1 [shape = 'u32[144,128]{1,0:T(1,128)}', space=vmem, size = 0x12000, scoped, tag = 'internal scratch']
  %s0 = inlined_call_operand.vmem [shape: f32[2,16,40], index: 0, kind: input, shape index: {}]
  %s1 = inlined_call_operand.vmem [shape: bf16[4,40,120], index: 1, kind: input, shape index: {}]
  %s2 = inlined_call_operand.vmem [shape: f32[4,1,120], index: 2, kind: input, shape index: {}]
  %s3 = inlined_call_operand.vmem [shape: bf16[4,40,40], index: 3, kind: input, shape index: {}]
  %s4 = inlined_call_operand.vmem [shape: f32[4,1,40], index: 4, kind: input, shape index: {}]
  %s5 = inlined_call_operand.vmem [shape: f32[4,1,40], index: 5, kind: input, shape index: {}]
  %s6 = inlined_call_operand.vmem [shape: f32[4,1,40], index: 6, kind: input, shape index: {}]
  %s7 = inlined_call_operand.vmem [shape: bf16[4,40,2048], index: 7, kind: input, shape index: {}]
  %s8 = inlined_call_operand.vmem [shape: f32[4,1,2048], index: 8, kind: input, shape index: {}]
  %s9 = inlined_call_operand.vmem [shape: bf16[4,2048,40], index: 9, kind: input, shape index: {}]
  %s10 = inlined_call_operand.vmem [shape: f32[4,1,40], index: 10, kind: input, shape index: {}]
  %s11 = inlined_call_operand.vmem [shape: f32[4,1,40], index: 11, kind: input, shape index: {}]
  %s12 = inlined_call_operand.vmem [shape: f32[4,1,40], index: 12, kind: input, shape index: {}]
  %s13 = inlined_call_operand.vmem [shape: f32[40,4], index: 13, kind: input, shape index: {}]
  %s14 = inlined_call_operand.vmem [shape: f32[1,4], index: 14, kind: input, shape index: {}]
  %s15 = inlined_call_operand.hbm [shape: f32[2,1,4], index: 15, kind: output, shape index: {}]
  %s16 = sld [smem:[#allocation0]]
  $region93: #{tpu_custom_call.1} parent=0
    _
  %s18 = ssub.s32 1, %s16
  %s19 = scalar_select 0, %s18, %s16
  $region1: #{tpu_custom_call.1} parent=0
    #allocation2 [shape = 'u8[1024]{0}', space=vmem, size = 0x400, scoped, tag = 'output window, operand 0']
    #allocation3 [shape = 's32[2]{0}', space=sflag, size = 0x8, scoped, tag = 'scoped memory for tpu_custom_call.1']
    %20 = vsyncpa [#allocation3], 0
    %s21 = scalar_lea.sflag [#allocation3], 1
    %22 = vsyncpa %s21, 0
    loop: start=0, step=1, limit=4
    $region2: #{tpu_custom_call.1} parent=1 // loop_pre_header
      _
    $region3: #{tpu_custom_call.1} parent=1 // loop_header
      %s24 = sphi 0, %s28
      %p25 = scmp.ge.s32.totalorder %s24, 4
      %s34 = sphi 0, %s36
      %s37 = sphi 0, %s34
      %s38 = sphi 0, %s37
      %s54 = sphi 0, %s38
      %s58 = sphi 0, %s58
      %s60 = sphi 0, %s58
      %s61 = sphi 0, %s60
      %s75 = sphi 0, %s61
      %s79 = sphi 0, %s79
      %s81 = sphi 0, %s79
      %s82 = sphi 0, %s81
      %s96 = sphi 0, %s82
      %s100 = sphi 0, %s100
      %s102 = sphi 0, %s100
      %s103 = sphi 0, %s102
      %s117 = sphi 0, %s103
      %s121 = sphi 0, %s121
      %s123 = sphi 0, %s121
      %s124 = sphi 0, %s123
      %s138 = sphi 0, %s124
      %s142 = sphi 0, %s142
      %s144 = sphi 0, %s142
      %s145 = sphi 0, %s144
      %s159 = sphi 0, %s145
      %s163 = sphi 0, %s163
      %s165 = sphi 0, %s163
      %s166 = sphi 0, %s165
      %s180 = sphi 0, %s166
      %s184 = sphi 0, %s184
      %s186 = sphi 0, %s184
      %s187 = sphi 0, %s186
      %s201 = sphi 0, %s187
      %s205 = sphi 0, %s205
      %s207 = sphi 0, %s205
      %s208 = sphi 0, %s207
      %s222 = sphi 0, %s208
      %s226 = sphi 0, %s226
      %s228 = sphi 0, %s226
      %s229 = sphi 0, %s228
      %s243 = sphi 0, %s229
      %s247 = sphi 0, %s247
      %s249 = sphi 0, %s247
      %s250 = sphi 0, %s249
      %s264 = sphi 0, %s250
      %s268 = sphi 0, %s268
      %s270 = sphi 0, %s268
      %s271 = sphi 0, %s270
      %s285 = sphi 0, %s271
      %s289 = sphi 0, %s289
      %s291 = sphi 0, %s289
      %s292 = sphi 0, %s291
      %s306 = sphi 0, %s292
      %s310 = sphi 0, %s310
      %s312 = sphi 0, %s310
      %s313 = sphi 0, %s312
      %s327 = sphi 0, %s313
      %s331 = sphi 0, %s331
      %s333 = sphi 0, %s331
      %s334 = sphi 0, %s333
      %s348 = sphi 0, %s334
      %s354 = sphi 0, %s356
      %s357 = sphi 0, %s354
      %s358 = sphi 0, %s357
      %s374 = sphi 0, %s358
    $region4: #{tpu_custom_call.1} parent=1 // loop_header_branch
      %27 = sbr.rel (%p25) target = $region8
    $region5: #{tpu_custom_call.1} parent=1 // loop_body
      %s29 = ssub.s32 %s24, 1
      %s30 = ssub.s32 %s24, 2
      %s31 = sadd.s32 %s24, 1
      %s32 = ssub.s32 %s24, %s31
      %p33 = scmp.eq.s32.totalorder %s32, 0
      %s35 = sadd.s32 %s34, 1
      %s36 = scalar_select %p33, %s34, %s35
      %p39 = pneg %p33
      %p40 = scmp.eq.s32.totalorder %s24, 1
      %p41 = por %p39, %p40
      %p42 = scmp.ne.s32.totalorder %s34, %s37
      %p43 = scmp.eq.s32.totalorder %s24, 0
      %p44 = por %p42, %p43
      %p45 = scmp.ne.s32.totalorder %s34, %s37
      %p46 = scmp.eq.s32.totalorder %s29, 1
      %p47 = por %p45, %p46
      %p48 = scmp.ne.s32.totalorder %s37, %s38
      %p49 = scmp.eq.s32.totalorder %s29, 0
      %p50 = por %p48, %p49
      %p51 = scmp.ne.s32.totalorder %s37, %s38
      %p52 = scmp.eq.s32.totalorder %s30, 1
      %p53 = por %p51, %p52
      %p55 = scmp.ne.s32.totalorder %s38, %s54
      %p56 = scmp.eq.s32.totalorder %s30, 0
      %p57 = por %p55, %p56
      %s59 = sadd.s32 %s58, 1
      %p62 = scmp.eq.s32.totalorder %s24, 1
      %p63 = scmp.ne.s32.totalorder %s58, %s60
      %p64 = scmp.eq.s32.totalorder %s24, 0
      %p65 = por %p63, %p64
      %p66 = scmp.ne.s32.totalorder %s58, %s60
      %p67 = scmp.eq.s32.totalorder %s29, 1
      %p68 = por %p66, %p67
      %p69 = scmp.ne.s32.totalorder %s60, %s61
      %p70 = scmp.eq.s32.totalorder %s29, 0
      %p71 = por %p69, %p70
      %p72 = scmp.ne.s32.totalorder %s60, %s61
      %p73 = scmp.eq.s32.totalorder %s30, 1
      %p74 = por %p72, %p73
      %p76 = scmp.ne.s32.totalorder %s61, %s75
      %p77 = scmp.eq.s32.totalorder %s30, 0
      %p78 = por %p76, %p77
      %s80 = sadd.s32 %s79, 1
      %p83 = scmp.eq.s32.totalorder %s24, 1
      %p84 = scmp.ne.s32.totalorder %s79, %s81
      %p85 = scmp.eq.s32.totalorder %s24, 0
      %p86 = por %p84, %p85
      %p87 = scmp.ne.s32.totalorder %s79, %s81
      %p88 = scmp.eq.s32.totalorder %s29, 1
      %p89 = por %p87, %p88
      %p90 = scmp.ne.s32.totalorder %s81, %s82
      %p91 = scmp.eq.s32.totalorder %s29, 0
      %p92 = por %p90, %p91
      %p93 = scmp.ne.s32.totalorder %s81, %s82
      %p94 = scmp.eq.s32.totalorder %s30, 1
      %p95 = por %p93, %p94
      %p97 = scmp.ne.s32.totalorder %s82, %s96
      %p98 = scmp.eq.s32.totalorder %s30, 0
      %p99 = por %p97, %p98
      %s101 = sadd.s32 %s100, 1
      %p104 = scmp.eq.s32.totalorder %s24, 1
      %p105 = scmp.ne.s32.totalorder %s100, %s102
      %p106 = scmp.eq.s32.totalorder %s24, 0
      %p107 = por %p105, %p106
      %p108 = scmp.ne.s32.totalorder %s100, %s102
      %p109 = scmp.eq.s32.totalorder %s29, 1
      %p110 = por %p108, %p109
      %p111 = scmp.ne.s32.totalorder %s102, %s103
      %p112 = scmp.eq.s32.totalorder %s29, 0
      %p113 = por %p111, %p112
      %p114 = scmp.ne.s32.totalorder %s102, %s103
      %p115 = scmp.eq.s32.totalorder %s30, 1
      %p116 = por %p114, %p115
      %p118 = scmp.ne.s32.totalorder %s103, %s117
      %p119 = scmp.eq.s32.totalorder %s30, 0
      %p120 = por %p118, %p119
      %s122 = sadd.s32 %s121, 1
      %p125 = scmp.eq.s32.totalorder %s24, 1
      %p126 = scmp.ne.s32.totalorder %s121, %s123
      %p127 = scmp.eq.s32.totalorder %s24, 0
      %p128 = por %p126, %p127
      %p129 = scmp.ne.s32.totalorder %s121, %s123
      %p130 = scmp.eq.s32.totalorder %s29, 1
      %p131 = por %p129, %p130
      %p132 = scmp.ne.s32.totalorder %s123, %s124
      %p133 = scmp.eq.s32.totalorder %s29, 0
      %p134 = por %p132, %p133
      %p135 = scmp.ne.s32.totalorder %s123, %s124
      %p136 = scmp.eq.s32.totalorder %s30, 1
      %p137 = por %p135, %p136
      %p139 = scmp.ne.s32.totalorder %s124, %s138
      %p140 = scmp.eq.s32.totalorder %s30, 0
      %p141 = por %p139, %p140
      %s143 = sadd.s32 %s142, 1
      %p146 = scmp.eq.s32.totalorder %s24, 1
      %p147 = scmp.ne.s32.totalorder %s142, %s144
      %p148 = scmp.eq.s32.totalorder %s24, 0
      %p149 = por %p147, %p148
      %p150 = scmp.ne.s32.totalorder %s142, %s144
      %p151 = scmp.eq.s32.totalorder %s29, 1
      %p152 = por %p150, %p151
      %p153 = scmp.ne.s32.totalorder %s144, %s145
      %p154 = scmp.eq.s32.totalorder %s29, 0
      %p155 = por %p153, %p154
      %p156 = scmp.ne.s32.totalorder %s144, %s145
      %p157 = scmp.eq.s32.totalorder %s30, 1
      %p158 = por %p156, %p157
      %p160 = scmp.ne.s32.totalorder %s145, %s159
      %p161 = scmp.eq.s32.totalorder %s30, 0
      %p162 = por %p160, %p161
      %s164 = sadd.s32 %s163, 1
      %p167 = scmp.eq.s32.totalorder %s24, 1
      %p168 = scmp.ne.s32.totalorder %s163, %s165
      %p169 = scmp.eq.s32.totalorder %s24, 0
      %p170 = por %p168, %p169
      %p171 = scmp.ne.s32.totalorder %s163, %s165
      %p172 = scmp.eq.s32.totalorder %s29, 1
      %p173 = por %p171, %p172
      %p174 = scmp.ne.s32.totalorder %s165, %s166
      %p175 = scmp.eq.s32.totalorder %s29, 0
      %p176 = por %p174, %p175
      %p177 = scmp.ne.s32.totalorder %s165, %s166
      %p178 = scmp.eq.s32.totalorder %s30, 1
      %p179 = por %p177, %p178
      %p181 = scmp.ne.s32.totalorder %s166, %s180
      %p182 = scmp.eq.s32.totalorder %s30, 0
      %p183 = por %p181, %p182
      %s185 = sadd.s32 %s184, 1
      %p188 = scmp.eq.s32.totalorder %s24, 1
      %p189 = scmp.ne.s32.totalorder %s184, %s186
      %p190 = scmp.eq.s32.totalorder %s24, 0
      %p191 = por %p189, %p190
      %p192 = scmp.ne.s32.totalorder %s184, %s186
      %p193 = scmp.eq.s32.totalorder %s29, 1
      %p194 = por %p192, %p193
      %p195 = scmp.ne.s32.totalorder %s186, %s187
      %p196 = scmp.eq.s32.totalorder %s29, 0
      %p197 = por %p195, %p196
      %p198 = scmp.ne.s32.totalorder %s186, %s187
      %p199 = scmp.eq.s32.totalorder %s30, 1
      %p200 = por %p198, %p199
      %p202 = scmp.ne.s32.totalorder %s187, %s201
      %p203 = scmp.eq.s32.totalorder %s30, 0
      %p204 = por %p202, %p203
      %s206 = sadd.s32 %s205, 1
      %p209 = scmp.eq.s32.totalorder %s24, 1
      %p210 = scmp.ne.s32.totalorder %s205, %s207
      %p211 = scmp.eq.s32.totalorder %s24, 0
      %p212 = por %p210, %p211
      %p213 = scmp.ne.s32.totalorder %s205, %s207
      %p214 = scmp.eq.s32.totalorder %s29, 1
      %p215 = por %p213, %p214
      %p216 = scmp.ne.s32.totalorder %s207, %s208
      %p217 = scmp.eq.s32.totalorder %s29, 0
      %p218 = por %p216, %p217
      %p219 = scmp.ne.s32.totalorder %s207, %s208
      %p220 = scmp.eq.s32.totalorder %s30, 1
      %p221 = por %p219, %p220
      %p223 = scmp.ne.s32.totalorder %s208, %s222
      %p224 = scmp.eq.s32.totalorder %s30, 0
      %p225 = por %p223, %p224
      %s227 = sadd.s32 %s226, 1
      %p230 = scmp.eq.s32.totalorder %s24, 1
      %p231 = scmp.ne.s32.totalorder %s226, %s228
      %p232 = scmp.eq.s32.totalorder %s24, 0
      %p233 = por %p231, %p232
      %p234 = scmp.ne.s32.totalorder %s226, %s228
      %p235 = scmp.eq.s32.totalorder %s29, 1
      %p236 = por %p234, %p235
      %p237 = scmp.ne.s32.totalorder %s228, %s229
      %p238 = scmp.eq.s32.totalorder %s29, 0
      %p239 = por %p237, %p238
      %p240 = scmp.ne.s32.totalorder %s228, %s229
      %p241 = scmp.eq.s32.totalorder %s30, 1
      %p242 = por %p240, %p241
      %p244 = scmp.ne.s32.totalorder %s229, %s243
      %p245 = scmp.eq.s32.totalorder %s30, 0
      %p246 = por %p244, %p245
      %s248 = sadd.s32 %s247, 1
      %p251 = scmp.eq.s32.totalorder %s24, 1
      %p252 = scmp.ne.s32.totalorder %s247, %s249
      %p253 = scmp.eq.s32.totalorder %s24, 0
      %p254 = por %p252, %p253
      %p255 = scmp.ne.s32.totalorder %s247, %s249
      %p256 = scmp.eq.s32.totalorder %s29, 1
      %p257 = por %p255, %p256
      %p258 = scmp.ne.s32.totalorder %s249, %s250
      %p259 = scmp.eq.s32.totalorder %s29, 0
      %p260 = por %p258, %p259
      %p261 = scmp.ne.s32.totalorder %s249, %s250
      %p262 = scmp.eq.s32.totalorder %s30, 1
      %p263 = por %p261, %p262
      %p265 = scmp.ne.s32.totalorder %s250, %s264
      %p266 = scmp.eq.s32.totalorder %s30, 0
      %p267 = por %p265, %p266
      %s269 = sadd.s32 %s268, 1
      %p272 = scmp.eq.s32.totalorder %s24, 1
      %p273 = scmp.ne.s32.totalorder %s268, %s270
      %p274 = scmp.eq.s32.totalorder %s24, 0
      %p275 = por %p273, %p274
      %p276 = scmp.ne.s32.totalorder %s268, %s270
      %p277 = scmp.eq.s32.totalorder %s29, 1
      %p278 = por %p276, %p277
      %p279 = scmp.ne.s32.totalorder %s270, %s271
      %p280 = scmp.eq.s32.totalorder %s29, 0
      %p281 = por %p279, %p280
      %p282 = scmp.ne.s32.totalorder %s270, %s271
      %p283 = scmp.eq.s32.totalorder %s30, 1
      %p284 = por %p282, %p283
      %p286 = scmp.ne.s32.totalorder %s271, %s285
      %p287 = scmp.eq.s32.totalorder %s30, 0
      %p288 = por %p286, %p287
      %s290 = sadd.s32 %s289, 1
      %p293 = scmp.eq.s32.totalorder %s24, 1
      %p294 = scmp.ne.s32.totalorder %s289, %s291
      %p295 = scmp.eq.s32.totalorder %s24, 0
      %p296 = por %p294, %p295
      %p297 = scmp.ne.s32.totalorder %s289, %s291
      %p298 = scmp.eq.s32.totalorder %s29, 1
      %p299 = por %p297, %p298
      %p300 = scmp.ne.s32.totalorder %s291, %s292
      %p301 = scmp.eq.s32.totalorder %s29, 0
      %p302 = por %p300, %p301
      %p303 = scmp.ne.s32.totalorder %s291, %s292
      %p304 = scmp.eq.s32.totalorder %s30, 1
      %p305 = por %p303, %p304
      %p307 = scmp.ne.s32.totalorder %s292, %s306
      %p308 = scmp.eq.s32.totalorder %s30, 0
      %p309 = por %p307, %p308
      %s311 = sadd.s32 %s310, 1
      %p314 = scmp.eq.s32.totalorder %s24, 1
      %p315 = scmp.ne.s32.totalorder %s310, %s312
      %p316 = scmp.eq.s32.totalorder %s24, 0
      %p317 = por %p315, %p316
      %p318 = scmp.ne.s32.totalorder %s310, %s312
      %p319 = scmp.eq.s32.totalorder %s29, 1
      %p320 = por %p318, %p319
      %p321 = scmp.ne.s32.totalorder %s312, %s313
      %p322 = scmp.eq.s32.totalorder %s29, 0
      %p323 = por %p321, %p322
      %p324 = scmp.ne.s32.totalorder %s312, %s313
      %p325 = scmp.eq.s32.totalorder %s30, 1
      %p326 = por %p324, %p325
      %p328 = scmp.ne.s32.totalorder %s313, %s327
      %p329 = scmp.eq.s32.totalorder %s30, 0
      %p330 = por %p328, %p329
      %s332 = sadd.s32 %s331, 1
      %p335 = scmp.eq.s32.totalorder %s24, 1
      %p336 = scmp.ne.s32.totalorder %s331, %s333
      %p337 = scmp.eq.s32.totalorder %s24, 0
      %p338 = por %p336, %p337
      %p339 = scmp.ne.s32.totalorder %s331, %s333
      %p340 = scmp.eq.s32.totalorder %s29, 1
      %p341 = por %p339, %p340
      %p342 = scmp.ne.s32.totalorder %s333, %s334
      %p343 = scmp.eq.s32.totalorder %s29, 0
      %p344 = por %p342, %p343
      %p345 = scmp.ne.s32.totalorder %s333, %s334
      %p346 = scmp.eq.s32.totalorder %s30, 1
      %p347 = por %p345, %p346
      %p349 = scmp.ne.s32.totalorder %s334, %s348
      %p350 = scmp.eq.s32.totalorder %s30, 0
      %p351 = por %p349, %p350
      %s352 = ssub.s32 %s24, %s31
      %p353 = scmp.eq.s32.totalorder %s352, 0
      %s355 = sadd.s32 %s354, 1
      %s356 = scalar_select %p353, %s354, %s355
      %p359 = pneg %p353
      %p360 = scmp.eq.s32.totalorder %s24, 1
      %p361 = por %p359, %p360
      %p362 = scmp.ne.s32.totalorder %s354, %s357
      %p363 = scmp.eq.s32.totalorder %s24, 0
      %p364 = por %p362, %p363
      %p365 = scmp.ne.s32.totalorder %s354, %s357
      %p366 = scmp.eq.s32.totalorder %s29, 1
      %p367 = por %p365, %p366
      %p368 = scmp.ne.s32.totalorder %s357, %s358
      %p369 = scmp.eq.s32.totalorder %s29, 0
      %p370 = por %p368, %p369
      %p371 = scmp.ne.s32.totalorder %s357, %s358
      %p372 = scmp.eq.s32.totalorder %s30, 1
      %p373 = por %p371, %p372
      %p375 = scmp.ne.s32.totalorder %s358, %s374
      %p376 = scmp.eq.s32.totalorder %s30, 0
      %p377 = por %p375, %p376
      %p378 = scmp.le.s32.totalorder 1, %s24
      %p379 = scmp.lt.s32.totalorder %s24, 3
      %p380 = pnand %p378, %p379
      %p381 = pneg %p380
      // Predicated region
      $region9: #{tpu_custom_call.1} parent=5 // pred_check
        _
      $region10: #{tpu_custom_call.1} parent=5 // pred_check_branch
        %383 = sbr.rel (%p380) target = $region12
      $region11: #{tpu_custom_call.1} parent=5 // pred_region
        %s384 = ssub.s32 %s24, 1
        // Predicated region
        $region13: #{tpu_custom_call.1} parent=11 // pred_check
          %p385 = pneg %p71
        $region14: #{tpu_custom_call.1} parent=11 // pred_check_branch
          %387 = sbr.rel (%p385) target = $region16
        $region15: #{tpu_custom_call.1} parent=11 // pred_region
          _
        $region16: #{tpu_custom_call.1} parent=11 // pred_fallthru
          _
        // Predicated region
        $region17: #{tpu_custom_call.1} parent=11 // pred_check
          %p388 = pneg %p92
        $region18: #{tpu_custom_call.1} parent=11 // pred_check_branch
          %390 = sbr.rel (%p388) target = $region20
        $region19: #{tpu_custom_call.1} parent=11 // pred_region
          _
        $region20: #{tpu_custom_call.1} parent=11 // pred_fallthru
          _
        // Predicated region
        $region21: #{tpu_custom_call.1} parent=11 // pred_check
          %p391 = pneg %p113
        $region22: #{tpu_custom_call.1} parent=11 // pred_check_branch
          %393 = sbr.rel (%p391) target = $region24
        $region23: #{tpu_custom_call.1} parent=11 // pred_region
          _
        $region24: #{tpu_custom_call.1} parent=11 // pred_fallthru
          _
        // Predicated region
        $region25: #{tpu_custom_call.1} parent=11 // pred_check
          %p394 = pneg %p134
        $region26: #{tpu_custom_call.1} parent=11 // pred_check_branch
          %396 = sbr.rel (%p394) target = $region28
        $region27: #{tpu_custom_call.1} parent=11 // pred_region
          _
        $region28: #{tpu_custom_call.1} parent=11 // pred_fallthru
          _
        // Predicated region
        $region29: #{tpu_custom_call.1} parent=11 // pred_check
          %p397 = pneg %p155
        $region30: #{tpu_custom_call.1} parent=11 // pred_check_branch
          %399 = sbr.rel (%p397) target = $region32
        $region31: #{tpu_custom_call.1} parent=11 // pred_region
          _
        $region32: #{tpu_custom_call.1} parent=11 // pred_fallthru
          _
        // Predicated region
        $region33: #{tpu_custom_call.1} parent=11 // pred_check
          %p400 = pneg %p176
        $region34: #{tpu_custom_call.1} parent=11 // pred_check_branch
          %402 = sbr.rel (%p400) target = $region36
        $region35: #{tpu_custom_call.1} parent=11 // pred_region
          _
        $region36: #{tpu_custom_call.1} parent=11 // pred_fallthru
          _
        // Predicated region
        $region37: #{tpu_custom_call.1} parent=11 // pred_check
          %p403 = pneg %p197
        $region38: #{tpu_custom_call.1} parent=11 // pred_check_branch
          %405 = sbr.rel (%p403) target = $region40
        $region39: #{tpu_custom_call.1} parent=11 // pred_region
          _
        $region40: #{tpu_custom_call.1} parent=11 // pred_fallthru
          _
        // Predicated region
        $region41: #{tpu_custom_call.1} parent=11 // pred_check
          %p406 = pneg %p218
        $region42: #{tpu_custom_call.1} parent=11 // pred_check_branch
          %408 = sbr.rel (%p406) target = $region44
        $region43: #{tpu_custom_call.1} parent=11 // pred_region
          _
        $region44: #{tpu_custom_call.1} parent=11 // pred_fallthru
          _
        // Predicated region
        $region45: #{tpu_custom_call.1} parent=11 // pred_check
          %p409 = pneg %p239
        $region46: #{tpu_custom_call.1} parent=11 // pred_check_branch
          %411 = sbr.rel (%p409) target = $region48
        $region47: #{tpu_custom_call.1} parent=11 // pred_region
          _
        $region48: #{tpu_custom_call.1} parent=11 // pred_fallthru
          _
        // Predicated region
        $region49: #{tpu_custom_call.1} parent=11 // pred_check
          %p412 = pneg %p260
        $region50: #{tpu_custom_call.1} parent=11 // pred_check_branch
          %414 = sbr.rel (%p412) target = $region52
        $region51: #{tpu_custom_call.1} parent=11 // pred_region
          _
        $region52: #{tpu_custom_call.1} parent=11 // pred_fallthru
          _
        // Predicated region
        $region53: #{tpu_custom_call.1} parent=11 // pred_check
          %p415 = pneg %p281
        $region54: #{tpu_custom_call.1} parent=11 // pred_check_branch
          %417 = sbr.rel (%p415) target = $region56
        $region55: #{tpu_custom_call.1} parent=11 // pred_region
          _
        $region56: #{tpu_custom_call.1} parent=11 // pred_fallthru
          _
        // Predicated region
        $region57: #{tpu_custom_call.1} parent=11 // pred_check
          %p418 = pneg %p302
        $region58: #{tpu_custom_call.1} parent=11 // pred_check_branch
          %420 = sbr.rel (%p418) target = $region60
        $region59: #{tpu_custom_call.1} parent=11 // pred_region
          _
        $region60: #{tpu_custom_call.1} parent=11 // pred_fallthru
          _
        // Predicated region
        $region61: #{tpu_custom_call.1} parent=11 // pred_check
          %p421 = pneg %p323
        $region62: #{tpu_custom_call.1} parent=11 // pred_check_branch
          %423 = sbr.rel (%p421) target = $region64
        $region63: #{tpu_custom_call.1} parent=11 // pred_region
          _
        $region64: #{tpu_custom_call.1} parent=11 // pred_fallthru
          _
        // Predicated region
        $region65: #{tpu_custom_call.1} parent=11 // pred_check
          %p424 = pneg %p344
        $region66: #{tpu_custom_call.1} parent=11 // pred_check_branch
          %426 = sbr.rel (%p424) target = $region68
        $region67: #{tpu_custom_call.1} parent=11 // pred_region
          _
        $region68: #{tpu_custom_call.1} parent=11 // pred_fallthru
          _
      $region12: #{tpu_custom_call.1} parent=5 // pred_fallthru
        _
      %p427 = scmp.lt.s32.totalorder %s24, 2
      // Predicated region
      $region69: #{tpu_custom_call.1} parent=5 // pred_check
        %p428 = pneg %p427
      $region70: #{tpu_custom_call.1} parent=5 // pred_check_branch
        %430 = sbr.rel (%p428) target = $region72
      $region71: #{tpu_custom_call.1} parent=5 // pred_region
        // Predicated region
        $region73: #{tpu_custom_call.1} parent=71 // pred_check
          %p431 = pneg %p44
        $region74: #{tpu_custom_call.1} parent=71 // pred_check_branch
          %433 = sbr.rel (%p431) target = $region76
        $region75: #{tpu_custom_call.1} parent=71 // pred_region
          %p434 = scmp.lt.s32.totalorder %s24, 1
          %s435 = scalar_select %p434, %s24, 1
          %s436 = smul.addr %s435, 2
          %s437 = smul.addr %s436, 8
          %s438 = scalar_lea.vmem %s0, %s437
        $region76: #{tpu_custom_call.1} parent=71 // pred_fallthru
          _
      $region72: #{tpu_custom_call.1} parent=5 // pred_fallthru
        _
      %p439 = scmp.le.s32.totalorder 1, %s24
      %p440 = scmp.lt.s32.totalorder %s24, 3
      %p441 = pnand %p439, %p440
      %p442 = pneg %p441
      // Predicated region
      $region77: #{tpu_custom_call.1} parent=5 // pred_check
        _
      $region78: #{tpu_custom_call.1} parent=5 // pred_check_branch
        %444 = sbr.rel (%p441) target = $region80
      $region79: #{tpu_custom_call.1} parent=5 // pred_region
        %s445 = ssub.s32 %s24, 1
        %p446 = scmp.lt.s32.totalorder %s29, 1
        %s447 = scalar_select %p446, %s29, 1
        %s448 = smul.addr %s447, 2
        %s449 = smul.addr %s448, 8
        %s450 = scalar_lea.vmem %s0, %s449
        %p451 = pneg %p50
        %p452 = pneg %p47
        %p453 = pneg %p71
        %p454 = pneg %p68
        %p455 = pneg %p92
        %p456 = pneg %p89
        %p457 = pneg %p113
        %p458 = pneg %p110
        %p459 = pneg %p134
        %p460 = pneg %p131
        %p461 = pneg %p155
        %p462 = pneg %p152
        %p463 = pneg %p176
        %p464 = pneg %p173
        %p465 = pneg %p197
        %p466 = pneg %p194
        %p467 = pneg %p218
        %p468 = pneg %p215
        %p469 = pneg %p239
        %p470 = pneg %p236
        %p471 = pneg %p260
        %p472 = pneg %p257
        %p473 = pneg %p281
        %p474 = pneg %p278
        %p475 = pneg %p302
        %p476 = pneg %p299
        %p477 = pneg %p323
        %p478 = pneg %p320
        %p479 = pneg %p344
        %p480 = pneg %p341
        %p481 = pneg %p370
        %p482 = pneg %p367
        %s483 = sand.u32 %s357, 1
        %s484 = scalar_lea.sflag [#allocation3], %s483
        %s485 = sand.u32 %s357, 1
        %s486 = scalar_lea.vmem [#allocation2], %s485
        %p487 = scmp.lt.s32.totalorder %s29, 1
        %s488 = scalar_select %p487, %s29, 1
        %s489 = smul.addr %s488, 2
        %s490 = smul.addr %s489, 8
        %s491 = scalar_lea.vmem %s0, %s490
        %v493 = vld [vmem:[%s491] sm:$0xff]
        %v494 = vld [vmem:[%s491 + $0x8] sm:$0xff]
        %v495 = vlaneseq
        %v496 = vand.u32 %v495, 127
        %vm497 = vcmp.ge.s32.totalorder %v496, 0
        %vm498 = vcmp.lt.s32.totalorder %v496, 10
        %vm499 = vmand %vm497, %vm498
        %v500 = vsel %vm499, 1, 0
        %v501 = vcvt.s32.f32 %v500
        %vm502 = vcmp.ge.s32.totalorder %v496, 10
        %vm503 = vcmp.lt.s32.totalorder %v496, 20
        %vm504 = vmand %vm502, %vm503
        %v505 = vsel %vm504, 1, 0
        %v506 = vcvt.s32.f32 %v505
        %vm507 = vcmp.ge.s32.totalorder %v496, 20
        %vm508 = vcmp.lt.s32.totalorder %v496, 30
        %vm509 = vmand %vm507, %vm508
        %v510 = vsel %vm509, 1, 0
        %v511 = vcvt.s32.f32 %v510
        %vm512 = vcmp.ge.s32.totalorder %v496, 30
        %vm513 = vcmp.lt.s32.totalorder %v496, 40
        %vm514 = vmand %vm512, %vm513
        %v515 = vsel %vm514, 1, 0
        %v516 = vcvt.s32.f32 %v515
        %v517 = vld [vmem:[%s1] sm:$0xf]
        %v518 = vld [vmem:[%s1 + $0x4] sm:$0xf]
        %v519 = vld [vmem:[%s1 + $0x8] sm:$0xf]
        %v520 = vld [vmem:[%s1 + $0xc] sm:$0xf]
        %v521 = vld [vmem:[%s1 + $0x10] sm:$0xf]
        %v522 = vld [vmem:[%s2] sm:$0x1]
        %v523 = vpack.c.bf16 %v494, %v493
        %v525 = vlaneseq
        %v526 = vshrl.u32 %v525, 7
        %v527 = vsub.s32 0, %v526
        %v528 = vrot.slane %v522, %v527
        %v535 = vunpack.c.l.b16 %v517
        %v536 = vunpack.c.l.b16 %v518
        %v537 = vunpack.c.l.b16 %v519
        %v538 = vunpack.c.l.b16 %v520
        %v539 = vunpack.c.l.b16 %v521
        %v540 = vpack.c.b16 %v536, %v535
        %v541 = vpack.c.b16 %v538, %v537
        %v542 = vpack.c.b16 %v539, %v539
        %vm545 = vcmask 326656
        %v547 = vsel %vm545, %v523, 0
        %vm549 = vcmask 1043456
        %v551 = vsel %vm549, %v542, 0
        %553 = vmatprep.subr.bf16.mxu0 0
        %554 = vmatpush1.bf16.msra.mxu0 %v540
        %555 = vmatprep.subr.bf16.mxu0 0
        %556 = vmatpush1.bf16.msra.mxu0 %v541
        %557 = vmatprep.subr.bf16.mxu0 0
        %558 = vmatpush1.bf16.msra.mxu0 %v551
        %559 = vmatprep.subr.bf16.mxu0 0
        %560 = vmatpush1.bf16.msra.mxu0 0
        %561 = vmatprep.subr.bf16.mxu0 0
        %562 = vmatpush1.bf16.msra.mxu0 0
        %563 = vmatprep.subr.bf16.mxu0 0
        %564 = vmatpush1.bf16.msra.mxu0 0
        %565 = vmatprep.subr.bf16.mxu0 0
        %566 = vmatpush1.bf16.msra.mxu0 0
        %567 = vmatprep.subr.bf16.mxu0 0
        %568 = vmatpush1.bf16.msra.mxu0 0
        %569 = vmatprep.subr.bf16.mxu0 0
        %570 = vmatpush1.bf16.msra.mxu0 0
        %571 = vmatprep.subr.bf16.mxu0 0
        %572 = vmatpush1.bf16.msra.mxu0 0
        %573 = vmatprep.subr.bf16.mxu0 0
        %574 = vmatpush1.bf16.msra.mxu0 0
        %575 = vmatprep.subr.bf16.mxu0 0
        %576 = vmatpush1.bf16.msra.mxu0 0
        %577 = vmatprep.subr.bf16.mxu0 0
        %578 = vmatpush1.bf16.msra.mxu0 0
        %579 = vmatprep.subr.bf16.mxu0 0
        %580 = vmatpush1.bf16.msra.mxu0 0
        %581 = vmatprep.subr.bf16.mxu0 0
        %582 = vmatpush1.bf16.msra.mxu0 0
        %583 = vmatprep.subr.bf16.mxu0 0
        %584 = vmatpush1.bf16.msra.mxu0 0
        %585 = vmatprep.mubr.bf16.mxu0 0
        %586 = vmatmul.mubr.bf16.gmra.mrb[0].mxu0 %v547
        %v587 = vpop.f32.mrb[0].mxu0
        %v588 = vadd.f32 %v528, %v587
        %v589 = vpop.f32.mrb[0].mxu0
        %v590 = vpop.f32.mrb[0].mxu0
        %v591 = vadd.f32 %v528, %v590
        %v592 = vpop.f32.mrb[0].mxu0
        %593 = vdwg.mxu0
        %v594 = vmul.f32 %v588, %v501
        %v595 = vmul.f32 %v591, %v501
        %v596 = vmul.f32 %v588, %v506
        %v597 = vmul.f32 %v591, %v506
        %v598 = vmul.f32 %v588, %v511
        %v599 = vmul.f32 %v591, %v511
        %v600 = vmul.f32 %v588, %v516
        %v601 = vmul.f32 %v591, %v516
        %v602 = vpack.c.bf16 %v595, %v594
        %v603 = vpack.c.bf16 %v597, %v596
        %v604 = vpack.c.bf16 %v599, %v598
        %v605 = vpack.c.bf16 %v601, %v600
        %v606 = vpack.c.bf16 %v591, %v588
        %608 = vrot.lane.b32.xlu0 %v606, 88
        %v609 = vpop.permute.xlu0 %608
        %v611 = vsel %vm545, %v602, 0
        %v614 = vsel %vm545, %v603, 0
        %v617 = vsel %vm545, %v604, 0
        %v620 = vsel %vm545, %v605, 0
        %v623 = vsel %vm545, %v609, 0
        %625 = vmatprep.subr.bf16.mxu0 0
        %626 = vmatpush1.bf16.xpose.msra.mxu0 %v623
        %627 = vmatprep.subr.bf16.mxu0 0
        %628 = vmatpush1.bf16.xpose.msra.mxu0 0
        %629 = vmatprep.subr.bf16.mxu0 0
        %630 = vmatpush1.bf16.xpose.msra.mxu0 0
        %631 = vmatprep.subr.bf16.mxu0 0
        %632 = vmatpush1.bf16.xpose.msra.mxu0 0
        %633 = vmatprep.subr.bf16.mxu0 0
        %634 = vmatpush1.bf16.xpose.msra.mxu0 0
        %635 = vmatprep.subr.bf16.mxu0 0
        %636 = vmatpush1.bf16.xpose.msra.mxu0 0
        %637 = vmatprep.subr.bf16.mxu0 0
        %638 = vmatpush1.bf16.xpose.msra.mxu0 0
        %639 = vmatprep.subr.bf16.mxu0 0
        %640 = vmatpush1.bf16.xpose.msra.mxu0 0
        %641 = vmatprep.subr.bf16.mxu0 0
        %642 = vmatpush1.bf16.xpose.msra.mxu0 0
        %643 = vmatprep.subr.bf16.mxu0 0
        %644 = vmatpush1.bf16.xpose.msra.mxu0 0
        %645 = vmatprep.subr.bf16.mxu0 0
        %646 = vmatpush1.bf16.xpose.msra.mxu0 0
        %647 = vmatprep.subr.bf16.mxu0 0
        %648 = vmatpush1.bf16.xpose.msra.mxu0 0
        %649 = vmatprep.subr.bf16.mxu0 0
        %650 = vmatpush1.bf16.xpose.msra.mxu0 0
        %651 = vmatprep.subr.bf16.mxu0 0
        %652 = vmatpush1.bf16.xpose.msra.mxu0 0
        %653 = vmatprep.subr.bf16.mxu0 0
        %654 = vmatpush1.bf16.xpose.msra.mxu0 0
        %655 = vmatprep.subr.bf16.mxu0 0
        %656 = vmatpush1.bf16.xpose.msra.mxu0 0
        %657 = vmatprep.mubr.bf16.mxu0 0
        %658 = vmatmul.mubr.bf16.gmra.mrb[0].mxu0 %v611
        %v659 = vpop.f32.mrb[0].mxu0
        %v660 = vadd.f32 0.0, %v659
        %v661 = vpop.f32.mrb[0].mxu0
        %v662 = vpop.f32.mrb[0].mxu0
        %v663 = vadd.f32 0.0, %v662
        %v664 = vpop.f32.mrb[0].mxu0
        %665 = vmatprep.mubr.bf16.mxu0 0
        %666 = vmatmul.mubr.bf16.gmra.mrb[0].mxu0 %v614
        %v667 = vpop.f32.mrb[0].mxu0
        %v668 = vadd.f32 0.0, %v667
        %v669 = vpop.f32.mrb[0].mxu0
        %v670 = vpop.f32.mrb[0].mxu0
        %v671 = vadd.f32 0.0, %v670
        %v672 = vpop.f32.mrb[0].mxu0
        %673 = vmatprep.mubr.bf16.mxu0 0
        %674 = vmatmul.mubr.bf16.gmra.mrb[0].mxu0 %v617
        %v675 = vpop.f32.mrb[0].mxu0
        %v676 = vadd.f32 0.0, %v675
        %v677 = vpop.f32.mrb[0].mxu0
        %v678 = vpop.f32.mrb[0].mxu0
        %v679 = vadd.f32 0.0, %v678
        %v680 = vpop.f32.mrb[0].mxu0
        %681 = vmatprep.mubr.bf16.mxu0 0
        %682 = vmatmul.mubr.bf16.gmra.mrb[0].mxu0 %v620
        %v683 = vpop.f32.mrb[0].mxu0
        %v684 = vadd.f32 0.0, %v683
        %v685 = vpop.f32.mrb[0].mxu0
        %v686 = vpop.f32.mrb[0].mxu0
        %v687 = vadd.f32 0.0, %v686
        %v688 = vpop.f32.mrb[0].mxu0
        %689 = vdwg.mxu0
        %vm690 = vcmask 130048
        %v691 = vsel %vm690, %v660, -inf
        %692 = vmax.xlane.f32.xlu0 %v691
        %v693 = vpop.xlane.xlu0 %692
        %v694 = vsel %vm690, %v663, -inf
        %695 = vmax.xlane.f32.xlu0 %v694
        %v696 = vpop.xlane.xlu0 %695
        %v697 = vsel %vm690, %v668, -inf
        %698 = vmax.xlane.f32.xlu0 %v697
        %v699 = vpop.xlane.xlu0 %698
        %v700 = vsel %vm690, %v671, -inf
        %701 = vmax.xlane.f32.xlu0 %v700
        %v702 = vpop.xlane.xlu0 %701
        %v703 = vsel %vm690, %v676, -inf
        %704 = vmax.xlane.f32.xlu0 %v703
        %v705 = vpop.xlane.xlu0 %704
        %v706 = vsel %vm690, %v679, -inf
        %707 = vmax.xlane.f32.xlu0 %v706
        %v708 = vpop.xlane.xlu0 %707
        %v709 = vsel %vm690, %v684, -inf
        %710 = vmax.xlane.f32.xlu0 %v709
        %v711 = vpop.xlane.xlu0 %710
        %v712 = vsel %vm690, %v687, -inf
        %713 = vmax.xlane.f32.xlu0 %v712
        %v714 = vpop.xlane.xlu0 %713
        %v715 = vsub.f32 %v660, %v693
        %v716 = vsub.f32 %v663, %v696
        %v717 = vsub.f32 %v668, %v699
        %v718 = vsub.f32 %v671, %v702
        %v719 = vsub.f32 %v676, %v705
        %v720 = vsub.f32 %v679, %v708
        %v721 = vsub.f32 %v684, %v711
        %v722 = vsub.f32 %v687, %v714
        %v723 = vmul.f32 %v715, 1.442695
        %v724 = vpow.pop %v723
        %v725 = vmul.f32 %v716, 1.442695
        %v726 = vpow.pop %v725
        %v727 = vmul.f32 %v717, 1.442695
        %v728 = vpow.pop %v727
        %v729 = vmul.f32 %v718, 1.442695
        %v730 = vpow.pop %v729
        %v731 = vmul.f32 %v719, 1.442695
        %v732 = vpow.pop %v731
        %v733 = vmul.f32 %v720, 1.442695
        %v734 = vpow.pop %v733
        %v735 = vmul.f32 %v721, 1.442695
        %v736 = vpow.pop %v735
        %v737 = vmul.f32 %v722, 1.442695
        %v738 = vpow.pop %v737
        %v739 = vsel %vm690, %v724, 0.0
        %740 = vadd.xlane.f32.xlu0 %v739
        %v741 = vpop.xlane.xlu0 %740
        %v742 = vsel %vm690, %v726, 0.0
        %743 = vadd.xlane.f32.xlu0 %v742
        %v744 = vpop.xlane.xlu0 %743
        %v745 = vsel %vm690, %v728, 0.0
        %746 = vadd.xlane.f32.xlu0 %v745
        %v747 = vpop.xlane.xlu0 %746
        %v748 = vsel %vm690, %v730, 0.0
        %749 = vadd.xlane.f32.xlu0 %v748
        %v750 = vpop.xlane.xlu0 %749
        %v751 = vsel %vm690, %v732, 0.0
        %752 = vadd.xlane.f32.xlu0 %v751
        %v753 = vpop.xlane.xlu0 %752
        %v754 = vsel %vm690, %v734, 0.0
        %755 = vadd.xlane.f32.xlu0 %v754
        %v756 = vpop.xlane.xlu0 %755
        %v757 = vsel %vm690, %v736, 0.0
        %758 = vadd.xlane.f32.xlu0 %v757
        %v759 = vpop.xlane.xlu0 %758
        %v760 = vsel %vm690, %v738, 0.0
        %761 = vadd.xlane.f32.xlu0 %v760
        %v762 = vpop.xlane.xlu0 %761
        %v763 = vrcp.pop %v741
        %v764 = vrcp.pop %v744
        %v765 = vrcp.pop %v747
        %v766 = vrcp.pop %v750
        %v767 = vrcp.pop %v753
        %v768 = vrcp.pop %v756
        %v769 = vrcp.pop %v759
        %v770 = vrcp.pop %v762
        %v771 = vmul.f32 %v724, %v763
        %v772 = vmul.f32 %v726, %v764
        %v773 = vmul.f32 %v728, %v765
        %v774 = vmul.f32 %v730, %v766
        %v775 = vmul.f32 %v732, %v767
        %v776 = vmul.f32 %v734, %v768
        %v777 = vmul.f32 %v736, %v769
        %v778 = vmul.f32 %v738, %v770
        %v779 = vpack.c.bf16 %v772, %v771
        %v780 = vpack.c.bf16 %v774, %v773
        %v781 = vpack.c.bf16 %v776, %v775
        %v782 = vpack.c.bf16 %v778, %v777
        %783 = vrot.lane.b32.xlu0 %v606, 48
        %v784 = vpop.permute.xlu0 %783
        %v787 = vsel %vm690, %v779, 0
        %v790 = vsel %vm690, %v780, 0
        %v793 = vsel %vm690, %v781, 0
        %v796 = vsel %vm690, %v782, 0
        %798 = vmatprep.subr.bf16.mxu0 0
        %799 = vmatpush1.bf16.msra.mxu0 %v784
        %800 = vmatprep.subr.bf16.mxu0 0
        %801 = vmatpush1.bf16.msra.mxu0 0
        %802 = vmatprep.subr.bf16.mxu0 0
        %803 = vmatpush1.bf16.msra.mxu0 0
        %804 = vmatprep.subr.bf16.mxu0 0
        %805 = vmatpush1.bf16.msra.mxu0 0
        %806 = vmatprep.subr.bf16.mxu0 0
        %807 = vmatpush1.bf16.msra.mxu0 0
        %808 = vmatprep.subr.bf16.mxu0 0
        %809 = vmatpush1.bf16.msra.mxu0 0
        %810 = vmatprep.subr.bf16.mxu0 0
        %811 = vmatpush1.bf16.msra.mxu0 0
        %812 = vmatprep.subr.bf16.mxu0 0
        %813 = vmatpush1.bf16.msra.mxu0 0
        %814 = vmatprep.subr.bf16.mxu0 0
        %815 = vmatpush1.bf16.msra.mxu0 0
        %816 = vmatprep.subr.bf16.mxu0 0
        %817 = vmatpush1.bf16.msra.mxu0 0
        %818 = vmatprep.subr.bf16.mxu0 0
        %819 = vmatpush1.bf16.msra.mxu0 0
        %820 = vmatprep.subr.bf16.mxu0 0
        %821 = vmatpush1.bf16.msra.mxu0 0
        %822 = vmatprep.subr.bf16.mxu0 0
        %823 = vmatpush1.bf16.msra.mxu0 0
        %824 = vmatprep.subr.bf16.mxu0 0
        %825 = vmatpush1.bf16.msra.mxu0 0
        %826 = vmatprep.subr.bf16.mxu0 0
        %827 = vmatpush1.bf16.msra.mxu0 0
        %828 = vmatprep.subr.bf16.mxu0 0
        %829 = vmatpush1.bf16.msra.mxu0 0
        %830 = vmatprep.mubr.bf16.mxu0 0
        %831 = vmatmul.mubr.bf16.gmra.mrb[0].mxu0 %v787
        %v832 = vpop.f32.mrb[0].mxu0
        %v833 = vadd.f32 0.0, %v832
        %v834 = vpop.f32.mrb[0].mxu0
        %v835 = vpop.f32.mrb[0].mxu0
        %v836 = vadd.f32 0.0, %v835
        %v837 = vpop.f32.mrb[0].mxu0
        %838 = vmatprep.mubr.bf16.mxu0 0
        %839 = vmatmul.mubr.bf16.gmra.mrb[0].mxu0 %v790
        %v840 = vpop.f32.mrb[0].mxu0
        %v841 = vadd.f32 0.0, %v840
        %v842 = vpop.f32.mrb[0].mxu0
        %v843 = vpop.f32.mrb[0].mxu0
        %v844 = vadd.f32 0.0, %v843
        %v845 = vpop.f32.mrb[0].mxu0
        %846 = vmatprep.mubr.bf16.mxu0 0
        %847 = vmatmul.mubr.bf16.gmra.mrb[0].mxu0 %v793
        %v848 = vpop.f32.mrb[0].mxu0
        %v849 = vadd.f32 0.0, %v848
        %v850 = vpop.f32.mrb[0].mxu0
        %v851 = vpop.f32.mrb[0].mxu0
        %v852 = vadd.f32 0.0, %v851
        %v853 = vpop.f32.mrb[0].mxu0
        %854 = vmatprep.mubr.bf16.mxu0 0
        %855 = vmatmul.mubr.bf16.gmra.mrb[0].mxu0 %v796
        %v856 = vpop.f32.mrb[0].mxu0
        %v857 = vadd.f32 0.0, %v856
        %v858 = vpop.f32.mrb[0].mxu0
        %v859 = vpop.f32.mrb[0].mxu0
        %v860 = vadd.f32 0.0, %v859
        %v861 = vpop.f32.mrb[0].mxu0
        %862 = vdwg.mxu0
        %v863 = vmul.f32 %v833, %v501
        %v864 = vmul.f32 %v836, %v501
        %v865 = vadd.f32 %v863, 0.0
        %v866 = vadd.f32 %v864, 0.0
        %v867 = vmul.f32 %v841, %v506
        %v868 = vmul.f32 %v844, %v506
        %v869 = vadd.f32 %v865, %v867
        %v870 = vadd.f32 %v866, %v868
        %v871 = vmul.f32 %v849, %v511
        %v872 = vmul.f32 %v852, %v511
        %v873 = vadd.f32 %v869, %v871
        %v874 = vadd.f32 %v870, %v872
        %v875 = vmul.f32 %v857, %v516
        %v876 = vmul.f32 %v860, %v516
        %v877 = vadd.f32 %v873, %v875
        %v878 = vadd.f32 %v874, %v876
        %v879 = vld [vmem:[%s3] sm:$0xf]
        %v880 = vld [vmem:[%s3 + $0x4] sm:$0xf]
        %v881 = vld [vmem:[%s3 + $0x8] sm:$0xf]
        %v882 = vld [vmem:[%s3 + $0xc] sm:$0xf]
        %v883 = vld [vmem:[%s3 + $0x10] sm:$0xf]
        %v884 = vld [vmem:[%s4] sm:$0x1]
        %v885 = vpack.c.bf16 %v878, %v877
        %v887 = vlaneseq
        %v888 = vshrl.u32 %v887, 7
        %v889 = vsub.s32 0, %v888
        %v890 = vrot.slane %v884, %v889
        %v897 = vunpack.c.l.b16 %v879
        %v898 = vunpack.c.l.b16 %v880
        %v899 = vunpack.c.l.b16 %v881
        %v900 = vunpack.c.l.b16 %v882
        %v901 = vunpack.c.l.b16 %v883
        %v902 = vpack.c.b16 %v898, %v897
        %v903 = vpack.c.b16 %v900, %v899
        %v904 = vpack.c.b16 %v901, %v901
        %v908 = vsel %vm545, %v885, 0
        %v911 = vsel %vm549, %v904, 0
        %913 = vmatprep.subr.bf16.mxu0 0
        %914 = vmatpush1.bf16.msra.mxu0 %v902
        %915 = vmatprep.subr.bf16.mxu0 0
        %916 = vmatpush1.bf16.msra.mxu0 %v903
        %917 = vmatprep.subr.bf16.mxu0 0
        %918 = vmatpush1.bf16.msra.mxu0 %v911
        %919 = vmatprep.subr.bf16.mxu0 0
        %920 = vmatpush1.bf16.msra.mxu0 0
        %921 = vmatprep.subr.bf16.mxu0 0
        %922 = vmatpush1.bf16.msra.mxu0 0
        %923 = vmatprep.subr.bf16.mxu0 0
        %924 = vmatpush1.bf16.msra.mxu0 0
        %925 = vmatprep.subr.bf16.mxu0 0
        %926 = vmatpush1.bf16.msra.mxu0 0
        %927 = vmatprep.subr.bf16.mxu0 0
        %928 = vmatpush1.bf16.msra.mxu0 0
        %929 = vmatprep.subr.bf16.mxu0 0
        %930 = vmatpush1.bf16.msra.mxu0 0
        %931 = vmatprep.subr.bf16.mxu0 0
        %932 = vmatpush1.bf16.msra.mxu0 0
        %933 = vmatprep.subr.bf16.mxu0 0
        %934 = vmatpush1.bf16.msra.mxu0 0
        %935 = vmatprep.subr.bf16.mxu0 0
        %936 = vmatpush1.bf16.msra.mxu0 0
        %937 = vmatprep.subr.bf16.mxu0 0
        %938 = vmatpush1.bf16.msra.mxu0 0
        %939 = vmatprep.subr.bf16.mxu0 0
        %940 = vmatpush1.bf16.msra.mxu0 0
        %941 = vmatprep.subr.bf16.mxu0 0
        %942 = vmatpush1.bf16.msra.mxu0 0
        %943 = vmatprep.subr.bf16.mxu0 0
        %944 = vmatpush1.bf16.msra.mxu0 0
        %945 = vmatprep.mubr.bf16.mxu0 0
        %946 = vmatmul.mubr.bf16.gmra.mrb[0].mxu0 %v908
        %v947 = vpop.f32.mrb[0].mxu0
        %v948 = vadd.f32 %v890, %v947
        %v949 = vpop.f32.mrb[0].mxu0
        %v950 = vpop.f32.mrb[0].mxu0
        %v951 = vadd.f32 %v890, %v950
        %v952 = vpop.f32.mrb[0].mxu0
        %953 = vdwg.mxu0
        %v954 = vadd.f32 %v493, %v948
        %v955 = vadd.f32 %v494, %v951
        %v956 = vld [vmem:[%s5] sm:$0x1]
        %v957 = vld [vmem:[%s6] sm:$0x1]
        %v958 = vsel %vm545, %v954, 0.0
        %959 = vadd.xlane.f32.xlu0 %v958
        %v960 = vpop.xlane.xlu0 %959
        %v961 = vsel %vm545, %v955, 0.0
        %962 = vadd.xlane.f32.xlu0 %v961
        %v963 = vpop.xlane.xlu0 %962
        %v964 = vrcp.pop 40.0
        %v965 = vmul.f32 %v960, %v964
        %v966 = vmul.f32 %v963, %v964
        %v967 = vsub.f32 %v954, %v965
        %v968 = vsub.f32 %v955, %v966
        %v969 = vmul.f32 %v967, %v967
        %v970 = vmul.f32 %v968, %v968
        %v971 = vsel %vm545, %v969, 0.0
        %972 = vadd.xlane.f32.xlu0 %v971
        %v973 = vpop.xlane.xlu0 %972
        %v974 = vsel %vm545, %v970, 0.0
        %975 = vadd.xlane.f32.xlu0 %v974
        %v976 = vpop.xlane.xlu0 %975
        %v977 = vmul.f32 %v973, %v964
        %v978 = vmul.f32 %v976, %v964
        %v979 = vadd.f32 %v977, 1e-05
        %v980 = vadd.f32 %v978, 1e-05
        %v981 = vrsqrt.pop %v979
        %v982 = vrsqrt.pop %v980
        %v983 = vmul.f32 %v967, %v981
        %v984 = vmul.f32 %v968, %v982
        %v986 = vlaneseq
        %v987 = vshrl.u32 %v986, 7
        %v988 = vsub.s32 0, %v987
        %v989 = vrot.slane %v956, %v988
        %v991 = vmul.f32 %v983, %v989
        %v992 = vmul.f32 %v984, %v989
        %v994 = vlaneseq
        %v995 = vshrl.u32 %v994, 7
        %v996 = vsub.s32 0, %v995
        %v997 = vrot.slane %v957, %v996
        %v999 = vadd.f32 %v991, %v997
        %v1000 = vadd.f32 %v992, %v997
        %v1001 = vld [vmem:[%s7] sm:$0xff]
        %v1002 = vld [vmem:[%s7 + $0x8] sm:$0xff]
        %v1003 = vld [vmem:[%s7 + $0x10] sm:$0xff]
        %v1004 = vld [vmem:[%s7 + $0x18] sm:$0xff]
        %v1005 = vld [vmem:[%s7 + $0x20] sm:$0xff]
        %v1006 = vld [vmem:[%s7 + $0x28] sm:$0xff]
        %v1007 = vld [vmem:[%s7 + $0x30] sm:$0xff]
        %v1008 = vld [vmem:[%s7 + $0x38] sm:$0xff]
        %v1009 = vld [vmem:[%s7 + $0x40] sm:$0xff]
        %v1010 = vld [vmem:[%s7 + $0x48] sm:$0xff]
        %v1011 = vld [vmem:[%s7 + $0x50] sm:$0xff]
        %v1012 = vld [vmem:[%s7 + $0x58] sm:$0xff]
        %v1013 = vld [vmem:[%s7 + $0x60] sm:$0xff]
        %v1014 = vld [vmem:[%s7 + $0x68] sm:$0xff]
        %v1015 = vld [vmem:[%s7 + $0x70] sm:$0xff]
        %v1016 = vld [vmem:[%s7 + $0x78] sm:$0xff]
        %v1017 = vld [vmem:[%s7 + $0x80] sm:$0xff]
        %v1018 = vld [vmem:[%s7 + $0x88] sm:$0xff]
        %v1019 = vld [vmem:[%s7 + $0x90] sm:$0xff]
        %v1020 = vld [vmem:[%s7 + $0x98] sm:$0xff]
        %v1021 = vld [vmem:[%s7 + $0xa0] sm:$0xff]
        %v1022 = vld [vmem:[%s7 + $0xa8] sm:$0xff]
        %v1023 = vld [vmem:[%s7 + $0xb0] sm:$0xff]
        %v1024 = vld [vmem:[%s7 + $0xb8] sm:$0xff]
        %v1025 = vld [vmem:[%s7 + $0xc0] sm:$0xff]
        %v1026 = vld [vmem:[%s7 + $0xc8] sm:$0xff]
        %v1027 = vld [vmem:[%s7 + $0xd0] sm:$0xff]
        %v1028 = vld [vmem:[%s7 + $0xd8] sm:$0xff]
        %v1029 = vld [vmem:[%s7 + $0xe0] sm:$0xff]
        %v1030 = vld [vmem:[%s7 + $0xe8] sm:$0xff]
        %v1031 = vld [vmem:[%s7 + $0xf0] sm:$0xff]
        %v1032 = vld [vmem:[%s7 + $0xf8] sm:$0xff]
        %v1033 = vld [vmem:[%s7 + $0x100] sm:$0xff]
        %v1034 = vld [vmem:[%s7 + $0x108] sm:$0xff]
        %v1035 = vld [vmem:[%s7 + $0x110] sm:$0xff]
        %v1036 = vld [vmem:[%s7 + $0x118] sm:$0xff]
        %v1037 = vld [vmem:[%s7 + $0x120] sm:$0xff]
        %v1038 = vld [vmem:[%s7 + $0x128] sm:$0xff]
        %v1039 = vld [vmem:[%s7 + $0x130] sm:$0xff]
        %v1040 = vld [vmem:[%s7 + $0x138] sm:$0xff]
        %v1041 = vld [vmem:[%s8] sm:$0xff]
        %v1042 = vld [vmem:[%s8 + $0x8] sm:$0xff]
        %v1043 = vpack.c.bf16 %v1000, %v999
        %v1046 = vlaneseq
        %v1047 = vshrl.u32 %v1046, 7
        %v1048 = vsub.s32 0, %v1047
        %v1049 = vrot.slane %v1041, %v1048
        %v1050 = vlaneseq
        %v1051 = vshrl.u32 %v1050, 7
        %v1052 = vsub.s32 1, %v1051
        %v1053 = vrot.slane %v1041, %v1052
        %v1054 = vlaneseq
        %v1055 = vshrl.u32 %v1054, 7
        %v1056 = vsub.s32 2, %v1055
        %v1057 = vrot.slane %v1041, %v1056
        %v1058 = vlaneseq
        %v1059 = vshrl.u32 %v1058, 7
        %v1060 = vsub.s32 3, %v1059
        %v1061 = vrot.slane %v1041, %v1060
        %v1062 = vlaneseq
        %v1063 = vshrl.u32 %v1062, 7
        %v1064 = vsub.s32 4, %v1063
        %v1065 = vrot.slane %v1041, %v1064
        %v1066 = vlaneseq
        %v1067 = vshrl.u32 %v1066, 7
        %v1068 = vsub.s32 5, %v1067
        %v1069 = vrot.slane %v1041, %v1068
        %v1070 = vlaneseq
        %v1071 = vshrl.u32 %v1070, 7
        %v1072 = vsub.s32 6, %v1071
        %v1073 = vrot.slane %v1041, %v1072
        %v1074 = vlaneseq
        %v1075 = vshrl.u32 %v1074, 7
        %v1076 = vsub.s32 7, %v1075
        %v1077 = vrot.slane %v1041, %v1076
        %v1078 = vlaneseq
        %v1079 = vshrl.u32 %v1078, 7
        %v1080 = vsub.s32 0, %v1079
        %v1081 = vrot.slane %v1042, %v1080
        %v1082 = vlaneseq
        %v1083 = vshrl.u32 %v1082, 7
        %v1084 = vsub.s32 1, %v1083
        %v1085 = vrot.slane %v1042, %v1084
        %v1086 = vlaneseq
        %v1087 = vshrl.u32 %v1086, 7
        %v1088 = vsub.s32 2, %v1087
        %v1089 = vrot.slane %v1042, %v1088
        %v1090 = vlaneseq
        %v1091 = vshrl.u32 %v1090, 7
        %v1092 = vsub.s32 3, %v1091
        %v1093 = vrot.slane %v1042, %v1092
        %v1094 = vlaneseq
        %v1095 = vshrl.u32 %v1094, 7
        %v1096 = vsub.s32 4, %v1095
        %v1097 = vrot.slane %v1042, %v1096
        %v1098 = vlaneseq
        %v1099 = vshrl.u32 %v1098, 7
        %v1100 = vsub.s32 5, %v1099
        %v1101 = vrot.slane %v1042, %v1100
        %v1102 = vlaneseq
        %v1103 = vshrl.u32 %v1102, 7
        %v1104 = vsub.s32 6, %v1103
        %v1105 = vrot.slane %v1042, %v1104
        %v1106 = vlaneseq
        %v1107 = vshrl.u32 %v1106, 7
        %v1108 = vsub.s32 7, %v1107
        %v1109 = vrot.slane %v1042, %v1108
        %v1166 = vunpack.c.l.b16 %v1001
        %v1167 = vunpack.c.h.b16 %v1001
        %v1168 = vunpack.c.l.b16 %v1002
        %v1169 = vunpack.c.h.b16 %v1002
        %v1170 = vunpack.c.l.b16 %v1003
        %v1171 = vunpack.c.h.b16 %v1003
        %v1172 = vunpack.c.l.b16 %v1004
        %v1173 = vunpack.c.h.b16 %v1004
        %v1174 = vunpack.c.l.b16 %v1005
        %v1175 = vunpack.c.h.b16 %v1005
        %v1176 = vunpack.c.l.b16 %v1006
        %v1177 = vunpack.c.h.b16 %v1006
        %v1178 = vunpack.c.l.b16 %v1007
        %v1179 = vunpack.c.h.b16 %v1007
        %v1180 = vunpack.c.l.b16 %v1008
        %v1181 = vunpack.c.h.b16 %v1008
        %v1182 = vunpack.c.l.b16 %v1009
        %v1183 = vunpack.c.h.b16 %v1009
        %v1184 = vunpack.c.l.b16 %v1010
        %v1185 = vunpack.c.h.b16 %v1010
        %v1186 = vunpack.c.l.b16 %v1011
        %v1187 = vunpack.c.h.b16 %v1011
        %v1188 = vunpack.c.l.b16 %v1012
        %v1189 = vunpack.c.h.b16 %v1012
        %v1190 = vunpack.c.l.b16 %v1013
        %v1191 = vunpack.c.h.b16 %v1013
        %v1192 = vunpack.c.l.b16 %v1014
        %v1193 = vunpack.c.h.b16 %v1014
        %v1194 = vunpack.c.l.b16 %v1015
        %v1195 = vunpack.c.h.b16 %v1015
        %v1196 = vunpack.c.l.b16 %v1016
        %v1197 = vunpack.c.h.b16 %v1016
        %v1198 = vunpack.c.l.b16 %v1017
        %v1199 = vunpack.c.h.b16 %v1017
        %v1200 = vunpack.c.l.b16 %v1018
        %v1201 = vunpack.c.h.b16 %v1018
        %v1202 = vunpack.c.l.b16 %v1019
        %v1203 = vunpack.c.h.b16 %v1019
        %v1204 = vunpack.c.l.b16 %v1020
        %v1205 = vunpack.c.h.b16 %v1020
        %v1206 = vunpack.c.l.b16 %v1021
        %v1207 = vunpack.c.h.b16 %v1021
        %v1208 = vunpack.c.l.b16 %v1022
        %v1209 = vunpack.c.h.b16 %v1022
        %v1210 = vunpack.c.l.b16 %v1023
        %v1211 = vunpack.c.h.b16 %v1023
        %v1212 = vunpack.c.l.b16 %v1024
        %v1213 = vunpack.c.h.b16 %v1024
        %v1214 = vunpack.c.l.b16 %v1025
        %v1215 = vunpack.c.h.b16 %v1025
        %v1216 = vunpack.c.l.b16 %v1026
        %v1217 = vunpack.c.h.b16 %v1026
        %v1218 = vunpack.c.l.b16 %v1027
        %v1219 = vunpack.c.h.b16 %v1027
        %v1220 = vunpack.c.l.b16 %v1028
        %v1221 = vunpack.c.h.b16 %v1028
        %v1222 = vunpack.c.l.b16 %v1029
        %v1223 = vunpack.c.h.b16 %v1029
        %v1224 = vunpack.c.l.b16 %v1030
        %v1225 = vunpack.c.h.b16 %v1030
        %v1226 = vunpack.c.l.b16 %v1031
        %v1227 = vunpack.c.h.b16 %v1031
        %v1228 = vunpack.c.l.b16 %v1032
        %v1229 = vunpack.c.h.b16 %v1032
        %v1230 = vunpack.c.l.b16 %v1033
        %v1231 = vunpack.c.h.b16 %v1033
        %v1232 = vunpack.c.l.b16 %v1034
        %v1233 = vunpack.c.h.b16 %v1034
        %v1234 = vunpack.c.l.b16 %v1035
        %v1235 = vunpack.c.h.b16 %v1035
        %v1236 = vunpack.c.l.b16 %v1036
        %v1237 = vunpack.c.h.b16 %v1036
        %v1238 = vunpack.c.l.b16 %v1037
        %v1239 = vunpack.c.h.b16 %v1037
        %v1240 = vunpack.c.l.b16 %v1038
        %v1241 = vunpack.c.h.b16 %v1038
        %v1242 = vunpack.c.l.b16 %v1039
        %v1243 = vunpack.c.h.b16 %v1039
        %v1244 = vunpack.c.l.b16 %v1040
        %v1245 = vunpack.c.h.b16 %v1040
        %v1246 = vpack.c.b16 %v1182, %v1166
        %v1247 = vpack.c.b16 %v1183, %v1167
        %v1248 = vpack.c.b16 %v1184, %v1168
        %v1249 = vpack.c.b16 %v1185, %v1169
        %v1250 = vpack.c.b16 %v1186, %v1170
        %v1251 = vpack.c.b16 %v1187, %v1171
        %v1252 = vpack.c.b16 %v1188, %v1172
        %v1253 = vpack.c.b16 %v1189, %v1173
        %v1254 = vpack.c.b16 %v1190, %v1174
        %v1255 = vpack.c.b16 %v1191, %v1175
        %v1256 = vpack.c.b16 %v1192, %v1176
        %v1257 = vpack.c.b16 %v1193, %v1177
        %v1258 = vpack.c.b16 %v1194, %v1178
        %v1259 = vpack.c.b16 %v1195, %v1179
        %v1260 = vpack.c.b16 %v1196, %v1180
        %v1261 = vpack.c.b16 %v1197, %v1181
        %v1262 = vpack.c.b16 %v1214, %v1198
        %v1263 = vpack.c.b16 %v1215, %v1199
        %v1264 = vpack.c.b16 %v1216, %v1200
        %v1265 = vpack.c.b16 %v1217, %v1201
        %v1266 = vpack.c.b16 %v1218, %v1202
        %v1267 = vpack.c.b16 %v1219, %v1203
        %v1268 = vpack.c.b16 %v1220, %v1204
        %v1269 = vpack.c.b16 %v1221, %v1205
        %v1270 = vpack.c.b16 %v1222, %v1206
        %v1271 = vpack.c.b16 %v1223, %v1207
        %v1272 = vpack.c.b16 %v1224, %v1208
        %v1273 = vpack.c.b16 %v1225, %v1209
        %v1274 = vpack.c.b16 %v1226, %v1210
        %v1275 = vpack.c.b16 %v1227, %v1211
        %v1276 = vpack.c.b16 %v1228, %v1212
        %v1277 = vpack.c.b16 %v1229, %v1213
        %v1278 = vpack.c.b16 %v1230, %v1230
        %v1279 = vpack.c.b16 %v1231, %v1231
        %v1280 = vpack.c.b16 %v1232, %v1232
        %v1281 = vpack.c.b16 %v1233, %v1233
        %v1282 = vpack.c.b16 %v1234, %v1234
        %v1283 = vpack.c.b16 %v1235, %v1235
        %v1284 = vpack.c.b16 %v1236, %v1236
        %v1285 = vpack.c.b16 %v1237, %v1237
        %v1286 = vpack.c.b16 %v1238, %v1238
        %v1287 = vpack.c.b16 %v1239, %v1239
        %v1288 = vpack.c.b16 %v1240, %v1240
        %v1289 = vpack.c.b16 %v1241, %v1241
        %v1290 = vpack.c.b16 %v1242, %v1242
        %v1291 = vpack.c.b16 %v1243, %v1243
        %v1292 = vpack.c.b16 %v1244, %v1244
        %v1293 = vpack.c.b16 %v1245, %v1245
        %v1327 = vsel %vm545, %v1043, 0
        %v1330 = vsel %vm549, %v1278, 0
        %v1333 = vsel %vm549, %v1279, 0
        %v1336 = vsel %vm549, %v1280, 0
        %v1339 = vsel %vm549, %v1281, 0
        %v1342 = vsel %vm549, %v1282, 0
        %v1345 = vsel %vm549, %v1283, 0
        %v1348 = vsel %vm549, %v1284, 0
        %v1351 = vsel %vm549, %v1285, 0
        %v1354 = vsel %vm549, %v1286, 0
        %v1357 = vsel %vm549, %v1287, 0
        %v1360 = vsel %vm549, %v1288, 0
        %v1363 = vsel %vm549, %v1289, 0
        %v1366 = vsel %vm549, %v1290, 0
        %v1369 = vsel %vm549, %v1291, 0
        %v1372 = vsel %vm549, %v1292, 0
        %v1375 = vsel %vm549, %v1293, 0
        %1377 = vmatprep.subr.bf16.mxu0 %v1247
        %1378 = vmatpush1.bf16.msra.mxu0 %v1246
        %1379 = vmatprep.subr.bf16.mxu0 %v1263
        %1380 = vmatpush1.bf16.msra.mxu0 %v1262
        %1381 = vmatprep.subr.bf16.mxu0 %v1333
        %1382 = vmatpush1.bf16.msra.mxu0 %v1330
        %1383 = vmatprep.subr.bf16.mxu0 0
        %1384 = vmatpush1.bf16.msra.mxu0 0
        %1385 = vmatprep.subr.bf16.mxu0 0
        %1386 = vmatpush1.bf16.msra.mxu0 0
        %1387 = vmatprep.subr.bf16.mxu0 0
        %1388 = vmatpush1.bf16.msra.mxu0 0
        %1389 = vmatprep.subr.bf16.mxu0 0
        %1390 = vmatpush1.bf16.msra.mxu0 0
        %1391 = vmatprep.subr.bf16.mxu0 0
        %1392 = vmatpush1.bf16.msra.mxu0 0
        %1393 = vmatprep.subr.bf16.mxu0 0
        %1394 = vmatpush1.bf16.msra.mxu0 0
        %1395 = vmatprep.subr.bf16.mxu0 0
        %1396 = vmatpush1.bf16.msra.mxu0 0
        %1397 = vmatprep.subr.bf16.mxu0 0
        %1398 = vmatpush1.bf16.msra.mxu0 0
        %1399 = vmatprep.subr.bf16.mxu0 0
        %1400 = vmatpush1.bf16.msra.mxu0 0
        %1401 = vmatprep.subr.bf16.mxu0 0
        %1402 = vmatpush1.bf16.msra.mxu0 0
        %1403 = vmatprep.subr.bf16.mxu0 0
        %1404 = vmatpush1.bf16.msra.mxu0 0
        %1405 = vmatprep.subr.bf16.mxu0 0
        %1406 = vmatpush1.bf16.msra.mxu0 0
        %1407 = vmatprep.subr.bf16.mxu0 0
        %1408 = vmatpush1.bf16.msra.mxu0 0
        %1409 = vmatprep.mubr.bf16.mxu0 0
        %1410 = vmatmul.mubr.bf16.gmra.mrb[0].mxu0 %v1327
        %v1411 = vpop.f32.mrb[0].mxu0
        %v1412 = vadd.f32 %v1049, %v1411
        %v1413 = vpop.f32.mrb[0].mxu0
        %v1414 = vadd.f32 %v1053, %v1413
        %v1415 = vpop.f32.mrb[0].mxu0
        %v1416 = vadd.f32 %v1049, %v1415
        %v1417 = vpop.f32.mrb[0].mxu0
        %v1418 = vadd.f32 %v1053, %v1417
        %1419 = vdwg.mxu0
        %1420 = vmatprep.subr.bf16.mxu0 %v1249
        %1421 = vmatpush1.bf16.msra.mxu0 %v1248
        %1422 = vmatprep.subr.bf16.mxu0 %v1265
        %1423 = vmatpush1.bf16.msra.mxu0 %v1264
        %1424 = vmatprep.subr.bf16.mxu0 %v1339
        %1425 = vmatpush1.bf16.msra.mxu0 %v1336
        %1426 = vmatprep.subr.bf16.mxu0 0
        %1427 = vmatpush1.bf16.msra.mxu0 0
        %1428 = vmatprep.subr.bf16.mxu0 0
        %1429 = vmatpush1.bf16.msra.mxu0 0
        %1430 = vmatprep.subr.bf16.mxu0 0
        %1431 = vmatpush1.bf16.msra.mxu0 0
        %1432 = vmatprep.subr.bf16.mxu0 0
        %1433 = vmatpush1.bf16.msra.mxu0 0
        %1434 = vmatprep.subr.bf16.mxu0 0
        %1435 = vmatpush1.bf16.msra.mxu0 0
        %1436 = vmatprep.subr.bf16.mxu0 0
        %1437 = vmatpush1.bf16.msra.mxu0 0
        %1438 = vmatprep.subr.bf16.mxu0 0
        %1439 = vmatpush1.bf16.msra.mxu0 0
        %1440 = vmatprep.subr.bf16.mxu0 0
        %1441 = vmatpush1.bf16.msra.mxu0 0
        %1442 = vmatprep.subr.bf16.mxu0 0
        %1443 = vmatpush1.bf16.msra.mxu0 0
        %1444 = vmatprep.subr.bf16.mxu0 0
        %1445 = vmatpush1.bf16.msra.mxu0 0
        %1446 = vmatprep.subr.bf16.mxu0 0
        %1447 = vmatpush1.bf16.msra.mxu0 0
        %1448 = vmatprep.subr.bf16.mxu0 0
        %1449 = vmatpush1.bf16.msra.mxu0 0
        %1450 = vmatprep.subr.bf16.mxu0 0
        %1451 = vmatpush1.bf16.msra.mxu0 0
        %1452 = vmatprep.mubr.bf16.mxu0 0
        %1453 = vmatmul.mubr.bf16.gmra.mrb[0].mxu0 %v1327
        %v1454 = vpop.f32.mrb[0].mxu0
        %v1455 = vadd.f32 %v1057, %v1454
        %v1456 = vpop.f32.mrb[0].mxu0
        %v1457 = vadd.f32 %v1061, %v1456
        %v1458 = vpop.f32.mrb[0].mxu0
        %v1459 = vadd.f32 %v1057, %v1458
        %v1460 = vpop.f32.mrb[0].mxu0
        %v1461 = vadd.f32 %v1061, %v1460
        %1462 = vdwg.mxu0
        %1463 = vmatprep.subr.bf16.mxu0 %v1251
        %1464 = vmatpush1.bf16.msra.mxu0 %v1250
        %1465 = vmatprep.subr.bf16.mxu0 %v1267
        %1466 = vmatpush1.bf16.msra.mxu0 %v1266
        %1467 = vmatprep.subr.bf16.mxu0 %v1345
        %1468 = vmatpush1.bf16.msra.mxu0 %v1342
        %1469 = vmatprep.subr.bf16.mxu0 0
        %1470 = vmatpush1.bf16.msra.mxu0 0
        %1471 = vmatprep.subr.bf16.mxu0 0
        %1472 = vmatpush1.bf16.msra.mxu0 0
        %1473 = vmatprep.subr.bf16.mxu0 0
        %1474 = vmatpush1.bf16.msra.mxu0 0
        %1475 = vmatprep.subr.bf16.mxu0 0
        %1476 = vmatpush1.bf16.msra.mxu0 0
        %1477 = vmatprep.subr.bf16.mxu0 0
        %1478 = vmatpush1.bf16.msra.mxu0 0
        %1479 = vmatprep.subr.bf16.mxu0 0
        %1480 = vmatpush1.bf16.msra.mxu0 0
        %1481 = vmatprep.subr.bf16.mxu0 0
        %1482 = vmatpush1.bf16.msra.mxu0 0
        %1483 = vmatprep.subr.bf16.mxu0 0
        %1484 = vmatpush1.bf16.msra.mxu0 0
        %1485 = vmatprep.subr.bf16.mxu0 0
        %1486 = vmatpush1.bf16.msra.mxu0 0
        %1487 = vmatprep.subr.bf16.mxu0 0
        %1488 = vmatpush1.bf16.msra.mxu0 0
        %1489 = vmatprep.subr.bf16.mxu0 0
        %1490 = vmatpush1.bf16.msra.mxu0 0
        %1491 = vmatprep.subr.bf16.mxu0 0
        %1492 = vmatpush1.bf16.msra.mxu0 0
        %1493 = vmatprep.subr.bf16.mxu0 0
        %1494 = vmatpush1.bf16.msra.mxu0 0
        %1495 = vmatprep.mubr.bf16.mxu0 0
        %1496 = vmatmul.mubr.bf16.gmra.mrb[0].mxu0 %v1327
        %v1497 = vpop.f32.mrb[0].mxu0
        %v1498 = vadd.f32 %v1065, %v1497
        %v1499 = vpop.f32.mrb[0].mxu0
        %v1500 = vadd.f32 %v1069, %v1499
        %v1501 = vpop.f32.mrb[0].mxu0
        %v1502 = vadd.f32 %v1065, %v1501
        %v1503 = vpop.f32.mrb[0].mxu0
        %v1504 = vadd.f32 %v1069, %v1503
        %1505 = vdwg.mxu0
        %1506 = vmatprep.subr.bf16.mxu0 %v1253
        %1507 = vmatpush1.bf16.msra.mxu0 %v1252
        %1508 = vmatprep.subr.bf16.mxu0 %v1269
        %1509 = vmatpush1.bf16.msra.mxu0 %v1268
        %1510 = vmatprep.subr.bf16.mxu0 %v1351
        %1511 = vmatpush1.bf16.msra.mxu0 %v1348
        %1512 = vmatprep.subr.bf16.mxu0 0
        %1513 = vmatpush1.bf16.msra.mxu0 0
        %1514 = vmatprep.subr.bf16.mxu0 0
        %1515 = vmatpush1.bf16.msra.mxu0 0
        %1516 = vmatprep.subr.bf16.mxu0 0
        %1517 = vmatpush1.bf16.msra.mxu0 0
        %1518 = vmatprep.subr.bf16.mxu0 0
        %1519 = vmatpush1.bf16.msra.mxu0 0
        %1520 = vmatprep.subr.bf16.mxu0 0
        %1521 = vmatpush1.bf16.msra.mxu0 0
        %1522 = vmatprep.subr.bf16.mxu0 0
        %1523 = vmatpush1.bf16.msra.mxu0 0
        %1524 = vmatprep.subr.bf16.mxu0 0
        %1525 = vmatpush1.bf16.msra.mxu0 0
        %1526 = vmatprep.subr.bf16.mxu0 0
        %1527 = vmatpush1.bf16.msra.mxu0 0
        %1528 = vmatprep.subr.bf16.mxu0 0
        %1529 = vmatpush1.bf16.msra.mxu0 0
        %1530 = vmatprep.subr.bf16.mxu0 0
        %1531 = vmatpush1.bf16.msra.mxu0 0
        %1532 = vmatprep.subr.bf16.mxu0 0
        %1533 = vmatpush1.bf16.msra.mxu0 0
        %1534 = vmatprep.subr.bf16.mxu0 0
        %1535 = vmatpush1.bf16.msra.mxu0 0
        %1536 = vmatprep.subr.bf16.mxu0 0
        %1537 = vmatpush1.bf16.msra.mxu0 0
        %1538 = vmatprep.mubr.bf16.mxu0 0
        %1539 = vmatmul.mubr.bf16.gmra.mrb[0].mxu0 %v1327
        %v1540 = vpop.f32.mrb[0].mxu0
        %v1541 = vadd.f32 %v1073, %v1540
        %v1542 = vpop.f32.mrb[0].mxu0
        %v1543 = vadd.f32 %v1077, %v1542
        %v1544 = vpop.f32.mrb[0].mxu0
        %v1545 = vadd.f32 %v1073, %v1544
        %v1546 = vpop.f32.mrb[0].mxu0
        %v1547 = vadd.f32 %v1077, %v1546
        %1548 = vdwg.mxu0
        %1549 = vmatprep.subr.bf16.mxu0 %v1255
        %1550 = vmatpush1.bf16.msra.mxu0 %v1254
        %1551 = vmatprep.subr.bf16.mxu0 %v1271
        %1552 = vmatpush1.bf16.msra.mxu0 %v1270
        %1553 = vmatprep.subr.bf16.mxu0 %v1357
        %1554 = vmatpush1.bf16.msra.mxu0 %v1354
        %1555 = vmatprep.subr.bf16.mxu0 0
        %1556 = vmatpush1.bf16.msra.mxu0 0
        %1557 = vmatprep.subr.bf16.mxu0 0
        %1558 = vmatpush1.bf16.msra.mxu0 0
        %1559 = vmatprep.subr.bf16.mxu0 0
        %1560 = vmatpush1.bf16.msra.mxu0 0
        %1561 = vmatprep.subr.bf16.mxu0 0
        %1562 = vmatpush1.bf16.msra.mxu0 0
        %1563 = vmatprep.subr.bf16.mxu0 0
        %1564 = vmatpush1.bf16.msra.mxu0 0
        %1565 = vmatprep.subr.bf16.mxu0 0
        %1566 = vmatpush1.bf16.msra.mxu0 0
        %1567 = vmatprep.subr.bf16.mxu0 0
        %1568 = vmatpush1.bf16.msra.mxu0 0
        %1569 = vmatprep.subr.bf16.mxu0 0
        %1570 = vmatpush1.bf16.msra.mxu0 0
        %1571 = vmatprep.subr.bf16.mxu0 0
        %1572 = vmatpush1.bf16.msra.mxu0 0
        %1573 = vmatprep.subr.bf16.mxu0 0
        %1574 = vmatpush1.bf16.msra.mxu0 0
        %1575 = vmatprep.subr.bf16.mxu0 0
        %1576 = vmatpush1.bf16.msra.mxu0 0
        %1577 = vmatprep.subr.bf16.mxu0 0
        %1578 = vmatpush1.bf16.msra.mxu0 0
        %1579 = vmatprep.subr.bf16.mxu0 0
        %1580 = vmatpush1.bf16.msra.mxu0 0
        %1581 = vmatprep.mubr.bf16.mxu0 0
        %1582 = vmatmul.mubr.bf16.gmra.mrb[0].mxu0 %v1327
        %v1583 = vpop.f32.mrb[0].mxu0
        %v1584 = vadd.f32 %v1081, %v1583
        %v1585 = vpop.f32.mrb[0].mxu0
        %v1586 = vadd.f32 %v1085, %v1585
        %v1587 = vpop.f32.mrb[0].mxu0
        %v1588 = vadd.f32 %v1081, %v1587
        %v1589 = vpop.f32.mrb[0].mxu0
        %v1590 = vadd.f32 %v1085, %v1589
        %1591 = vdwg.mxu0
        %1592 = vmatprep.subr.bf16.mxu0 %v1257
        %1593 = vmatpush1.bf16.msra.mxu0 %v1256
        %1594 = vmatprep.subr.bf16.mxu0 %v1273
        %1595 = vmatpush1.bf16.msra.mxu0 %v1272
        %1596 = vmatprep.subr.bf16.mxu0 %v1363
        %1597 = vmatpush1.bf16.msra.mxu0 %v1360
        %1598 = vmatprep.subr.bf16.mxu0 0
        %1599 = vmatpush1.bf16.msra.mxu0 0
        %1600 = vmatprep.subr.bf16.mxu0 0
        %1601 = vmatpush1.bf16.msra.mxu0 0
        %1602 = vmatprep.subr.bf16.mxu0 0
        %1603 = vmatpush1.bf16.msra.mxu0 0
        %1604 = vmatprep.subr.bf16.mxu0 0
        %1605 = vmatpush1.bf16.msra.mxu0 0
        %1606 = vmatprep.subr.bf16.mxu0 0
        %1607 = vmatpush1.bf16.msra.mxu0 0
        %1608 = vmatprep.subr.bf16.mxu0 0
        %1609 = vmatpush1.bf16.msra.mxu0 0
        %1610 = vmatprep.subr.bf16.mxu0 0
        %1611 = vmatpush1.bf16.msra.mxu0 0
        %1612 = vmatprep.subr.bf16.mxu0 0
        %1613 = vmatpush1.bf16.msra.mxu0 0
        %1614 = vmatprep.subr.bf16.mxu0 0
        %1615 = vmatpush1.bf16.msra.mxu0 0
        %1616 = vmatprep.subr.bf16.mxu0 0
        %1617 = vmatpush1.bf16.msra.mxu0 0
        %1618 = vmatprep.subr.bf16.mxu0 0
        %1619 = vmatpush1.bf16.msra.mxu0 0
        %1620 = vmatprep.subr.bf16.mxu0 0
        %1621 = vmatpush1.bf16.msra.mxu0 0
        %1622 = vmatprep.subr.bf16.mxu0 0
        %1623 = vmatpush1.bf16.msra.mxu0 0
        %1624 = vmatprep.mubr.bf16.mxu0 0
        %1625 = vmatmul.mubr.bf16.gmra.mrb[0].mxu0 %v1327
        %v1626 = vpop.f32.mrb[0].mxu0
        %v1627 = vadd.f32 %v1089, %v1626
        %v1628 = vpop.f32.mrb[0].mxu0
        %v1629 = vadd.f32 %v1093, %v1628
        %v1630 = vpop.f32.mrb[0].mxu0
        %v1631 = vadd.f32 %v1089, %v1630
        %v1632 = vpop.f32.mrb[0].mxu0
        %v1633 = vadd.f32 %v1093, %v1632
        %1634 = vdwg.mxu0
        %1635 = vmatprep.subr.bf16.mxu0 %v1259
        %1636 = vmatpush1.bf16.msra.mxu0 %v1258
        %1637 = vmatprep.subr.bf16.mxu0 %v1275
        %1638 = vmatpush1.bf16.msra.mxu0 %v1274
        %1639 = vmatprep.subr.bf16.mxu0 %v1369
        %1640 = vmatpush1.bf16.msra.mxu0 %v1366
        %1641 = vmatprep.subr.bf16.mxu0 0
        %1642 = vmatpush1.bf16.msra.mxu0 0
        %1643 = vmatprep.subr.bf16.mxu0 0
        %1644 = vmatpush1.bf16.msra.mxu0 0
        %1645 = vmatprep.subr.bf16.mxu0 0
        %1646 = vmatpush1.bf16.msra.mxu0 0
        %1647 = vmatprep.subr.bf16.mxu0 0
        %1648 = vmatpush1.bf16.msra.mxu0 0
        %1649 = vmatprep.subr.bf16.mxu0 0
        %1650 = vmatpush1.bf16.msra.mxu0 0
        %1651 = vmatprep.subr.bf16.mxu0 0
        %1652 = vmatpush1.bf16.msra.mxu0 0
        %1653 = vmatprep.subr.bf16.mxu0 0
        %1654 = vmatpush1.bf16.msra.mxu0 0
        %1655 = vmatprep.subr.bf16.mxu0 0
        %1656 = vmatpush1.bf16.msra.mxu0 0
        %1657 = vmatprep.subr.bf16.mxu0 0
        %1658 = vmatpush1.bf16.msra.mxu0 0
        %1659 = vmatprep.subr.bf16.mxu0 0
        %1660 = vmatpush1.bf16.msra.mxu0 0
        %1661 = vmatprep.subr.bf16.mxu0 0
        %1662 = vmatpush1.bf16.msra.mxu0 0
        %1663 = vmatprep.subr.bf16.mxu0 0
        %1664 = vmatpush1.bf16.msra.mxu0 0
        %1665 = vmatprep.subr.bf16.mxu0 0
        %1666 = vmatpush1.bf16.msra.mxu0 0
        %1667 = vmatprep.mubr.bf16.mxu0 0
        %1668 = vmatmul.mubr.bf16.gmra.mrb[0].mxu0 %v1327
        %v1669 = vpop.f32.mrb[0].mxu0
        %v1670 = vadd.f32 %v1097, %v1669
        %v1671 = vpop.f32.mrb[0].mxu0
        %v1672 = vadd.f32 %v1101, %v1671
        %v1673 = vpop.f32.mrb[0].mxu0
        %v1674 = vadd.f32 %v1097, %v1673
        %v1675 = vpop.f32.mrb[0].mxu0
        %v1676 = vadd.f32 %v1101, %v1675
        %1677 = vdwg.mxu0
        %1678 = vmatprep.subr.bf16.mxu0 %v1261
        %1679 = vmatpush1.bf16.msra.mxu0 %v1260
        %1680 = vmatprep.subr.bf16.mxu0 %v1277
        %1681 = vmatpush1.bf16.msra.mxu0 %v1276
        %1682 = vmatprep.subr.bf16.mxu0 %v1375
        %1683 = vmatpush1.bf16.msra.mxu0 %v1372
        %1684 = vmatprep.subr.bf16.mxu0 0
        %1685 = vmatpush1.bf16.msra.mxu0 0
        %1686 = vmatprep.subr.bf16.mxu0 0
        %1687 = vmatpush1.bf16.msra.mxu0 0
        %1688 = vmatprep.subr.bf16.mxu0 0
        %1689 = vmatpush1.bf16.msra.mxu0 0
        %1690 = vmatprep.subr.bf16.mxu0 0
        %1691 = vmatpush1.bf16.msra.mxu0 0
        %1692 = vmatprep.subr.bf16.mxu0 0
        %1693 = vmatpush1.bf16.msra.mxu0 0
        %1694 = vmatprep.subr.bf16.mxu0 0
        %1695 = vmatpush1.bf16.msra.mxu0 0
        %1696 = vmatprep.subr.bf16.mxu0 0
        %1697 = vmatpush1.bf16.msra.mxu0 0
        %1698 = vmatprep.subr.bf16.mxu0 0
        %1699 = vmatpush1.bf16.msra.mxu0 0
        %1700 = vmatprep.subr.bf16.mxu0 0
        %1701 = vmatpush1.bf16.msra.mxu0 0
        %1702 = vmatprep.subr.bf16.mxu0 0
        %1703 = vmatpush1.bf16.msra.mxu0 0
        %1704 = vmatprep.subr.bf16.mxu0 0
        %1705 = vmatpush1.bf16.msra.mxu0 0
        %1706 = vmatprep.subr.bf16.mxu0 0
        %1707 = vmatpush1.bf16.msra.mxu0 0
        %1708 = vmatprep.subr.bf16.mxu0 0
        %1709 = vmatpush1.bf16.msra.mxu0 0
        %1710 = vmatprep.mubr.bf16.mxu0 0
        %1711 = vmatmul.mubr.bf16.gmra.mrb[0].mxu0 %v1327
        %v1712 = vpop.f32.mrb[0].mxu0
        %v1713 = vadd.f32 %v1105, %v1712
        %v1714 = vpop.f32.mrb[0].mxu0
        %v1715 = vadd.f32 %v1109, %v1714
        %v1716 = vpop.f32.mrb[0].mxu0
        %v1717 = vadd.f32 %v1105, %v1716
        %v1718 = vpop.f32.mrb[0].mxu0
        %v1719 = vadd.f32 %v1109, %v1718
        %1720 = vdwg.mxu0
        %v1721 = vmax.f32 %v1412, 0.0
        %v1722 = vmax.f32 %v1414, 0.0
        %v1723 = vmax.f32 %v1455, 0.0
        %v1724 = vmax.f32 %v1457, 0.0
        %v1725 = vmax.f32 %v1498, 0.0
        %v1726 = vmax.f32 %v1500, 0.0
        %v1727 = vmax.f32 %v1541, 0.0
        %v1728 = vmax.f32 %v1543, 0.0
        %v1729 = vmax.f32 %v1584, 0.0
        %v1730 = vmax.f32 %v1586, 0.0
        %v1731 = vmax.f32 %v1627, 0.0
        %v1732 = vmax.f32 %v1629, 0.0
        %v1733 = vmax.f32 %v1670, 0.0
        %v1734 = vmax.f32 %v1672, 0.0
        %v1735 = vmax.f32 %v1713, 0.0
        %v1736 = vmax.f32 %v1715, 0.0
        %v1737 = vmax.f32 %v1416, 0.0
        %v1738 = vmax.f32 %v1418, 0.0
        %v1739 = vmax.f32 %v1459, 0.0
        %v1740 = vmax.f32 %v1461, 0.0
        %v1741 = vmax.f32 %v1502, 0.0
        %v1742 = vmax.f32 %v1504, 0.0
        %v1743 = vmax.f32 %v1545, 0.0
        %v1744 = vmax.f32 %v1547, 0.0
        %v1745 = vmax.f32 %v1588, 0.0
        %v1746 = vmax.f32 %v1590, 0.0
        %v1747 = vmax.f32 %v1631, 0.0
        %v1748 = vmax.f32 %v1633, 0.0
        %v1749 = vmax.f32 %v1674, 0.0
        %v1750 = vmax.f32 %v1676, 0.0
        %v1751 = vmax.f32 %v1717, 0.0
        %v1752 = vmax.f32 %v1719, 0.0
        %v1753 = vld [vmem:[%s9] sm:$0xf]
        %v1754 = vld [vmem:[%s9 + $0x4] sm:$0xf]
        %v1755 = vld [vmem:[%s9 + $0x8] sm:$0xf]
        %v1756 = vld [vmem:[%s9 + $0xc] sm:$0xf]
        %v1757 = vld [vmem:[%s9 + $0x10] sm:$0xf]
        %v1758 = vld [vmem:[%s9 + $0x14] sm:$0xf]
        %v1759 = vld [vmem:[%s9 + $0x18] sm:$0xf]
        %v1760 = vld [vmem:[%s9 + $0x1c] sm:$0xf]
        %v1761 = vld [vmem:[%s9 + $0x20] sm:$0xf]
        %v1762 = vld [vmem:[%s9 + $0x24] sm:$0xf]
        %v1763 = vld [vmem:[%s9 + $0x28] sm:$0xf]
        %v1764 = vld [vmem:[%s9 + $0x2c] sm:$0xf]
        %v1765 = vld [vmem:[%s9 + $0x30] sm:$0xf]
        %v1766 = vld [vmem:[%s9 + $0x34] sm:$0xf]
        %v1767 = vld [vmem:[%s9 + $0x38] sm:$0xf]
        %v1768 = vld [vmem:[%s9 + $0x3c] sm:$0xf]
        %v1769 = vld [vmem:[%s9 + $0x40] sm:$0xf]
        %v1770 = vld [vmem:[%s9 + $0x44] sm:$0xf]
        %v1771 = vld [vmem:[%s9 + $0x48] sm:$0xf]
        %v1772 = vld [vmem:[%s9 + $0x4c] sm:$0xf]
        %v1773 = vld [vmem:[%s9 + $0x50] sm:$0xf]
        %v1774 = vld [vmem:[%s9 + $0x54] sm:$0xf]
        %v1775 = vld [vmem:[%s9 + $0x58] sm:$0xf]
        %v1776 = vld [vmem:[%s9 + $0x5c] sm:$0xf]
        %v1777 = vld [vmem:[%s9 + $0x60] sm:$0xf]
        %v1778 = vld [vmem:[%s9 + $0x64] sm:$0xf]
        %v1779 = vld [vmem:[%s9 + $0x68] sm:$0xf]
        %v1780 = vld [vmem:[%s9 + $0x6c] sm:$0xf]
        %v1781 = vld [vmem:[%s9 + $0x70] sm:$0xf]
        %v1782 = vld [vmem:[%s9 + $0x74] sm:$0xf]
        %v1783 = vld [vmem:[%s9 + $0x78] sm:$0xf]
        %v1784 = vld [vmem:[%s9 + $0x7c] sm:$0xf]
        %v1785 = vld [vmem:[%s9 + $0x80] sm:$0xf]
        %v1786 = vld [vmem:[%s9 + $0x84] sm:$0xf]
        %v1787 = vld [vmem:[%s9 + $0x88] sm:$0xf]
        %v1788 = vld [vmem:[%s9 + $0x8c] sm:$0xf]
        %v1789 = vld [vmem:[%s9 + $0x90] sm:$0xf]
        %v1790 = vld [vmem:[%s9 + $0x94] sm:$0xf]
        %v1791 = vld [vmem:[%s9 + $0x98] sm:$0xf]
        %v1792 = vld [vmem:[%s9 + $0x9c] sm:$0xf]
        %v1793 = vld [vmem:[%s9 + $0xa0] sm:$0xf]
        %v1794 = vld [vmem:[%s9 + $0xa4] sm:$0xf]
        %v1795 = vld [vmem:[%s9 + $0xa8] sm:$0xf]
        %v1796 = vld [vmem:[%s9 + $0xac] sm:$0xf]
        %v1797 = vld [vmem:[%s9 + $0xb0] sm:$0xf]
        %v1798 = vld [vmem:[%s9 + $0xb4] sm:$0xf]
        %v1799 = vld [vmem:[%s9 + $0xb8] sm:$0xf]
        %v1800 = vld [vmem:[%s9 + $0xbc] sm:$0xf]
        %v1801 = vld [vmem:[%s9 + $0xc0] sm:$0xf]
        %v1802 = vld [vmem:[%s9 + $0xc4] sm:$0xf]
        %v1803 = vld [vmem:[%s9 + $0xc8] sm:$0xf]
        %v1804 = vld [vmem:[%s9 + $0xcc] sm:$0xf]
        %v1805 = vld [vmem:[%s9 + $0xd0] sm:$0xf]
        %v1806 = vld [vmem:[%s9 + $0xd4] sm:$0xf]
        %v1807 = vld [vmem:[%s9 + $0xd8] sm:$0xf]
        %v1808 = vld [vmem:[%s9 + $0xdc] sm:$0xf]
        %v1809 = vld [vmem:[%s9 + $0xe0] sm:$0xf]
        %v1810 = vld [vmem:[%s9 + $0xe4] sm:$0xf]
        %v1811 = vld [vmem:[%s9 + $0xe8] sm:$0xf]
        %v1812 = vld [vmem:[%s9 + $0xec] sm:$0xf]
        %v1813 = vld [vmem:[%s9 + $0xf0] sm:$0xf]
        %v1814 = vld [vmem:[%s9 + $0xf4] sm:$0xf]
        %v1815 = vld [vmem:[%s9 + $0xf8] sm:$0xf]
        %v1816 = vld [vmem:[%s9 + $0xfc] sm:$0xf]
        %v1817 = vld [vmem:[%s9 + $0x100] sm:$0xf]
        %v1818 = vld [vmem:[%s9 + $0x104] sm:$0xf]
        %v1819 = vld [vmem:[%s9 + $0x108] sm:$0xf]
        %v1820 = vld [vmem:[%s9 + $0x10c] sm:$0xf]
        %v1821 = vld [vmem:[%s9 + $0x110] sm:$0xf]
        %v1822 = vld [vmem:[%s9 + $0x114] sm:$0xf]
        %v1823 = vld [vmem:[%s9 + $0x118] sm:$0xf]
        %v1824 = vld [vmem:[%s9 + $0x11c] sm:$0xf]
        %v1825 = vld [vmem:[%s9 + $0x120] sm:$0xf]
        %v1826 = vld [vmem:[%s9 + $0x124] sm:$0xf]
        %v1827 = vld [vmem:[%s9 + $0x128] sm:$0xf]
        %v1828 = vld [vmem:[%s9 + $0x12c] sm:$0xf]
        %v1829 = vld [vmem:[%s9 + $0x130] sm:$0xf]
        %v1830 = vld [vmem:[%s9 + $0x134] sm:$0xf]
        %v1831 = vld [vmem:[%s9 + $0x138] sm:$0xf]
        %v1832 = vld [vmem:[%s9 + $0x13c] sm:$0xf]
        %v1833 = vld [vmem:[%s9 + $0x140] sm:$0xf]
        %v1834 = vld [vmem:[%s9 + $0x144] sm:$0xf]
        %v1835 = vld [vmem:[%s9 + $0x148] sm:$0xf]
        %v1836 = vld [vmem:[%s9 + $0x14c] sm:$0xf]
        %v1837 = vld [vmem:[%s9 + $0x150] sm:$0xf]
        %v1838 = vld [vmem:[%s9 + $0x154] sm:$0xf]
        %v1839 = vld [vmem:[%s9 + $0x158] sm:$0xf]
        %v1840 = vld [vmem:[%s9 + $0x15c] sm:$0xf]
        %v1841 = vld [vmem:[%s9 + $0x160] sm:$0xf]
        %v1842 = vld [vmem:[%s9 + $0x164] sm:$0xf]
        %v1843 = vld [vmem:[%s9 + $0x168] sm:$0xf]
        %v1844 = vld [vmem:[%s9 + $0x16c] sm:$0xf]
        %v1845 = vld [vmem:[%s9 + $0x170] sm:$0xf]
        %v1846 = vld [vmem:[%s9 + $0x174] sm:$0xf]
        %v1847 = vld [vmem:[%s9 + $0x178] sm:$0xf]
        %v1848 = vld [vmem:[%s9 + $0x17c] sm:$0xf]
        %v1849 = vld [vmem:[%s9 + $0x180] sm:$0xf]
        %v1850 = vld [vmem:[%s9 + $0x184] sm:$0xf]
        %v1851 = vld [vmem:[%s9 + $0x188] sm:$0xf]
        %v1852 = vld [vmem:[%s9 + $0x18c] sm:$0xf]
        %v1853 = vld [vmem:[%s9 + $0x190] sm:$0xf]
        %v1854 = vld [vmem:[%s9 + $0x194] sm:$0xf]
        %v1855 = vld [vmem:[%s9 + $0x198] sm:$0xf]
        %v1856 = vld [vmem:[%s9 + $0x19c] sm:$0xf]
        %v1857 = vld [vmem:[%s9 + $0x1a0] sm:$0xf]
        %v1858 = vld [vmem:[%s9 + $0x1a4] sm:$0xf]
        %v1859 = vld [vmem:[%s9 + $0x1a8] sm:$0xf]
        %v1860 = vld [vmem:[%s9 + $0x1ac] sm:$0xf]
        %v1861 = vld [vmem:[%s9 + $0x1b0] sm:$0xf]
        %v1862 = vld [vmem:[%s9 + $0x1b4] sm:$0xf]
        %v1863 = vld [vmem:[%s9 + $0x1b8] sm:$0xf]
        %v1864 = vld [vmem:[%s9 + $0x1bc] sm:$0xf]
        %v1865 = vld [vmem:[%s9 + $0x1c0] sm:$0xf]
        %v1866 = vld [vmem:[%s9 + $0x1c4] sm:$0xf]
        %v1867 = vld [vmem:[%s9 + $0x1c8] sm:$0xf]
        %v1868 = vld [vmem:[%s9 + $0x1cc] sm:$0xf]
        %v1869 = vld [vmem:[%s9 + $0x1d0] sm:$0xf]
        %v1870 = vld [vmem:[%s9 + $0x1d4] sm:$0xf]
        %v1871 = vld [vmem:[%s9 + $0x1d8] sm:$0xf]
        %v1872 = vld [vmem:[%s9 + $0x1dc] sm:$0xf]
        %v1873 = vld [vmem:[%s9 + $0x1e0] sm:$0xf]
        %v1874 = vld [vmem:[%s9 + $0x1e4] sm:$0xf]
        %v1875 = vld [vmem:[%s9 + $0x1e8] sm:$0xf]
        %v1876 = vld [vmem:[%s9 + $0x1ec] sm:$0xf]
        %v1877 = vld [vmem:[%s9 + $0x1f0] sm:$0xf]
        %v1878 = vld [vmem:[%s9 + $0x1f4] sm:$0xf]
        %v1879 = vld [vmem:[%s9 + $0x1f8] sm:$0xf]
        %v1880 = vld [vmem:[%s9 + $0x1fc] sm:$0xf]
        %v1881 = vld [vmem:[%s9 + $0x200] sm:$0xf]
        %v1882 = vld [vmem:[%s9 + $0x204] sm:$0xf]
        %v1883 = vld [vmem:[%s9 + $0x208] sm:$0xf]
        %v1884 = vld [vmem:[%s9 + $0x20c] sm:$0xf]
        %v1885 = vld [vmem:[%s9 + $0x210] sm:$0xf]
        %v1886 = vld [vmem:[%s9 + $0x214] sm:$0xf]
        %v1887 = vld [vmem:[%s9 + $0x218] sm:$0xf]
        %v1888 = vld [vmem:[%s9 + $0x21c] sm:$0xf]
        %v1889 = vld [vmem:[%s9 + $0x220] sm:$0xf]
        %v1890 = vld [vmem:[%s9 + $0x224] sm:$0xf]
        %v1891 = vld [vmem:[%s9 + $0x228] sm:$0xf]
        %v1892 = vld [vmem:[%s9 + $0x22c] sm:$0xf]
        %v1893 = vld [vmem:[%s9 + $0x230] sm:$0xf]
        %v1894 = vld [vmem:[%s9 + $0x234] sm:$0xf]
        %v1895 = vld [vmem:[%s9 + $0x238] sm:$0xf]
        %v1896 = vld [vmem:[%s9 + $0x23c] sm:$0xf]
        %v1897 = vld [vmem:[%s9 + $0x240] sm:$0xf]
        %v1898 = vld [vmem:[%s9 + $0x244] sm:$0xf]
        %v1899 = vld [vmem:[%s9 + $0x248] sm:$0xf]
        %v1900 = vld [vmem:[%s9 + $0x24c] sm:$0xf]
        %v1901 = vld [vmem:[%s9 + $0x250] sm:$0xf]
        %v1902 = vld [vmem:[%s9 + $0x254] sm:$0xf]
        %v1903 = vld [vmem:[%s9 + $0x258] sm:$0xf]
        %v1904 = vld [vmem:[%s9 + $0x25c] sm:$0xf]
        %v1905 = vld [vmem:[%s9 + $0x260] sm:$0xf]
        %v1906 = vld [vmem:[%s9 + $0x264] sm:$0xf]
        %v1907 = vld [vmem:[%s9 + $0x268] sm:$0xf]
        %v1908 = vld [vmem:[%s9 + $0x26c] sm:$0xf]
        %v1909 = vld [vmem:[%s9 + $0x270] sm:$0xf]
        %v1910 = vld [vmem:[%s9 + $0x274] sm:$0xf]
        %v1911 = vld [vmem:[%s9 + $0x278] sm:$0xf]
        %v1912 = vld [vmem:[%s9 + $0x27c] sm:$0xf]
        %v1913 = vld [vmem:[%s9 + $0x280] sm:$0xf]
        %v1914 = vld [vmem:[%s9 + $0x284] sm:$0xf]
        %v1915 = vld [vmem:[%s9 + $0x288] sm:$0xf]
        %v1916 = vld [vmem:[%s9 + $0x28c] sm:$0xf]
        %v1917 = vld [vmem:[%s9 + $0x290] sm:$0xf]
        %v1918 = vld [vmem:[%s9 + $0x294] sm:$0xf]
        %v1919 = vld [vmem:[%s9 + $0x298] sm:$0xf]
        %v1920 = vld [vmem:[%s9 + $0x29c] sm:$0xf]
        %v1921 = vld [vmem:[%s9 + $0x2a0] sm:$0xf]
        %v1922 = vld [vmem:[%s9 + $0x2a4] sm:$0xf]
        %v1923 = vld [vmem:[%s9 + $0x2a8] sm:$0xf]
        %v1924 = vld [vmem:[%s9 + $0x2ac] sm:$0xf]
        %v1925 = vld [vmem:[%s9 + $0x2b0] sm:$0xf]
        %v1926 = vld [vmem:[%s9 + $0x2b4] sm:$0xf]
        %v1927 = vld [vmem:[%s9 + $0x2b8] sm:$0xf]
        %v1928 = vld [vmem:[%s9 + $0x2bc] sm:$0xf]
        %v1929 = vld [vmem:[%s9 + $0x2c0] sm:$0xf]
        %v1930 = vld [vmem:[%s9 + $0x2c4] sm:$0xf]
        %v1931 = vld [vmem:[%s9 + $0x2c8] sm:$0xf]
        %v1932 = vld [vmem:[%s9 + $0x2cc] sm:$0xf]
        %v1933 = vld [vmem:[%s9 + $0x2d0] sm:$0xf]
        %v1934 = vld [vmem:[%s9 + $0x2d4] sm:$0xf]
        %v1935 = vld [vmem:[%s9 + $0x2d8] sm:$0xf]
        %v1936 = vld [vmem:[%s9 + $0x2dc] sm:$0xf]
        %v1937 = vld [vmem:[%s9 + $0x2e0] sm:$0xf]
        %v1938 = vld [vmem:[%s9 + $0x2e4] sm:$0xf]
        %v1939 = vld [vmem:[%s9 + $0x2e8] sm:$0xf]
        %v1940 = vld [vmem:[%s9 + $0x2ec] sm:$0xf]
        %v1941 = vld [vmem:[%s9 + $0x2f0] sm:$0xf]
        %v1942 = vld [vmem:[%s9 + $0x2f4] sm:$0xf]
        %v1943 = vld [vmem:[%s9 + $0x2f8] sm:$0xf]
        %v1944 = vld [vmem:[%s9 + $0x2fc] sm:$0xf]
        %v1945 = vld [vmem:[%s9 + $0x300] sm:$0xf]
        %v1946 = vld [vmem:[%s9 + $0x304] sm:$0xf]
        %v1947 = vld [vmem:[%s9 + $0x308] sm:$0xf]
        %v1948 = vld [vmem:[%s9 + $0x30c] sm:$0xf]
        %v1949 = vld [vmem:[%s9 + $0x310] sm:$0xf]
        %v1950 = vld [vmem:[%s9 + $0x314] sm:$0xf]
        %v1951 = vld [vmem:[%s9 + $0x318] sm:$0xf]
        %v1952 = vld [vmem:[%s9 + $0x31c] sm:$0xf]
        %v1953 = vld [vmem:[%s9 + $0x320] sm:$0xf]
        %v1954 = vld [vmem:[%s9 + $0x324] sm:$0xf]
        %v1955 = vld [vmem:[%s9 + $0x328] sm:$0xf]
        %v1956 = vld [vmem:[%s9 + $0x32c] sm:$0xf]
        %v1957 = vld [vmem:[%s9 + $0x330] sm:$0xf]
        %v1958 = vld [vmem:[%s9 + $0x334] sm:$0xf]
        %v1959 = vld [vmem:[%s9 + $0x338] sm:$0xf]
        %v1960 = vld [vmem:[%s9 + $0x33c] sm:$0xf]
        %v1961 = vld [vmem:[%s9 + $0x340] sm:$0xf]
        %v1962 = vld [vmem:[%s9 + $0x344] sm:$0xf]
        %v1963 = vld [vmem:[%s9 + $0x348] sm:$0xf]
        %v1964 = vld [vmem:[%s9 + $0x34c] sm:$0xf]
        %v1965 = vld [vmem:[%s9 + $0x350] sm:$0xf]
        %v1966 = vld [vmem:[%s9 + $0x354] sm:$0xf]
        %v1967 = vld [vmem:[%s9 + $0x358] sm:$0xf]
        %v1968 = vld [vmem:[%s9 + $0x35c] sm:$0xf]
        %v1969 = vld [vmem:[%s9 + $0x360] sm:$0xf]
        %v1970 = vld [vmem:[%s9 + $0x364] sm:$0xf]
        %v1971 = vld [vmem:[%s9 + $0x368] sm:$0xf]
        %v1972 = vld [vmem:[%s9 + $0x36c] sm:$0xf]
        %v1973 = vld [vmem:[%s9 + $0x370] sm:$0xf]
        %v1974 = vld [vmem:[%s9 + $0x374] sm:$0xf]
        %v1975 = vld [vmem:[%s9 + $0x378] sm:$0xf]
        %v1976 = vld [vmem:[%s9 + $0x37c] sm:$0xf]
        %v1977 = vld [vmem:[%s9 + $0x380] sm:$0xf]
        %v1978 = vld [vmem:[%s9 + $0x384] sm:$0xf]
        %v1979 = vld [vmem:[%s9 + $0x388] sm:$0xf]
        %v1980 = vld [vmem:[%s9 + $0x38c] sm:$0xf]
        %v1981 = vld [vmem:[%s9 + $0x390] sm:$0xf]
        %v1982 = vld [vmem:[%s9 + $0x394] sm:$0xf]
        %v1983 = vld [vmem:[%s9 + $0x398] sm:$0xf]
        %v1984 = vld [vmem:[%s9 + $0x39c] sm:$0xf]
        %v1985 = vld [vmem:[%s9 + $0x3a0] sm:$0xf]
        %v1986 = vld [vmem:[%s9 + $0x3a4] sm:$0xf]
        %v1987 = vld [vmem:[%s9 + $0x3a8] sm:$0xf]
        %v1988 = vld [vmem:[%s9 + $0x3ac] sm:$0xf]
        %v1989 = vld [vmem:[%s9 + $0x3b0] sm:$0xf]
        %v1990 = vld [vmem:[%s9 + $0x3b4] sm:$0xf]
        %v1991 = vld [vmem:[%s9 + $0x3b8] sm:$0xf]
        %v1992 = vld [vmem:[%s9 + $0x3bc] sm:$0xf]
        %v1993 = vld [vmem:[%s9 + $0x3c0] sm:$0xf]
        %v1994 = vld [vmem:[%s9 + $0x3c4] sm:$0xf]
        %v1995 = vld [vmem:[%s9 + $0x3c8] sm:$0xf]
        %v1996 = vld [vmem:[%s9 + $0x3cc] sm:$0xf]
        %v1997 = vld [vmem:[%s9 + $0x3d0] sm:$0xf]
        %v1998 = vld [vmem:[%s9 + $0x3d4] sm:$0xf]
        %v1999 = vld [vmem:[%s9 + $0x3d8] sm:$0xf]
        %v2000 = vld [vmem:[%s9 + $0x3dc] sm:$0xf]
        %v2001 = vld [vmem:[%s9 + $0x3e0] sm:$0xf]
        %v2002 = vld [vmem:[%s9 + $0x3e4] sm:$0xf]
        %v2003 = vld [vmem:[%s9 + $0x3e8] sm:$0xf]
        %v2004 = vld [vmem:[%s9 + $0x3ec] sm:$0xf]
        %v2005 = vld [vmem:[%s9 + $0x3f0] sm:$0xf]
        %v2006 = vld [vmem:[%s9 + $0x3f4] sm:$0xf]
        %v2007 = vld [vmem:[%s9 + $0x3f8] sm:$0xf]
        %v2008 = vld [vmem:[%s9 + $0x3fc] sm:$0xf]
        %v2009 = vld [vmem:[%s10] sm:$0x1]
        %v2010 = vpack.c.bf16 %v1737, %v1721
        %v2011 = vpack.c.bf16 %v1738, %v1722
        %v2012 = vpack.c.bf16 %v1739, %v1723
        %v2013 = vpack.c.bf16 %v1740, %v1724
        %v2014 = vpack.c.bf16 %v1741, %v1725
        %v2015 = vpack.c.bf16 %v1742, %v1726
        %v2016 = vpack.c.bf16 %v1743, %v1727
        %v2017 = vpack.c.bf16 %v1744, %v1728
        %v2018 = vpack.c.bf16 %v1745, %v1729
        %v2019 = vpack.c.bf16 %v1746, %v1730
        %v2020 = vpack.c.bf16 %v1747, %v1731
        %v2021 = vpack.c.bf16 %v1748, %v1732
        %v2022 = vpack.c.bf16 %v1749, %v1733
        %v2023 = vpack.c.bf16 %v1750, %v1734
        %v2024 = vpack.c.bf16 %v1751, %v1735
        %v2025 = vpack.c.bf16 %v1752, %v1736
        %v2027 = vlaneseq
        %v2028 = vshrl.u32 %v2027, 7
        %v2029 = vsub.s32 0, %v2028
        %v2030 = vrot.slane %v2009, %v2029
        %v2288 = vunpack.c.l.b16 %v1753
        %v2289 = vunpack.c.l.b16 %v1754
        %v2290 = vunpack.c.l.b16 %v1755
        %v2291 = vunpack.c.l.b16 %v1756
        %v2292 = vunpack.c.l.b16 %v1757
        %v2293 = vunpack.c.l.b16 %v1758
        %v2294 = vunpack.c.l.b16 %v1759
        %v2295 = vunpack.c.l.b16 %v1760
        %v2296 = vunpack.c.l.b16 %v1761
        %v2297 = vunpack.c.l.b16 %v1762
        %v2298 = vunpack.c.l.b16 %v1763
        %v2299 = vunpack.c.l.b16 %v1764
        %v2300 = vunpack.c.l.b16 %v1765
        %v2301 = vunpack.c.l.b16 %v1766
        %v2302 = vunpack.c.l.b16 %v1767
        %v2303 = vunpack.c.l.b16 %v1768
        %v2304 = vunpack.c.l.b16 %v1769
        %v2305 = vunpack.c.l.b16 %v1770
        %v2306 = vunpack.c.l.b16 %v1771
        %v2307 = vunpack.c.l.b16 %v1772
        %v2308 = vunpack.c.l.b16 %v1773
        %v2309 = vunpack.c.l.b16 %v1774
        %v2310 = vunpack.c.l.b16 %v1775
        %v2311 = vunpack.c.l.b16 %v1776
        %v2312 = vunpack.c.l.b16 %v1777
        %v2313 = vunpack.c.l.b16 %v1778
        %v2314 = vunpack.c.l.b16 %v1779
        %v2315 = vunpack.c.l.b16 %v1780
        %v2316 = vunpack.c.l.b16 %v1781
        %v2317 = vunpack.c.l.b16 %v1782
        %v2318 = vunpack.c.l.b16 %v1783
        %v2319 = vunpack.c.l.b16 %v1784
        %v2320 = vunpack.c.l.b16 %v1785
        %v2321 = vunpack.c.l.b16 %v1786
        %v2322 = vunpack.c.l.b16 %v1787
        %v2323 = vunpack.c.l.b16 %v1788
        %v2324 = vunpack.c.l.b16 %v1789
        %v2325 = vunpack.c.l.b16 %v1790
        %v2326 = vunpack.c.l.b16 %v1791
        %v2327 = vunpack.c.l.b16 %v1792
        %v2328 = vunpack.c.l.b16 %v1793
        %v2329 = vunpack.c.l.b16 %v1794
        %v2330 = vunpack.c.l.b16 %v1795
        %v2331 = vunpack.c.l.b16 %v1796
        %v2332 = vunpack.c.l.b16 %v1797
        %v2333 = vunpack.c.l.b16 %v1798
        %v2334 = vunpack.c.l.b16 %v1799
        %v2335 = vunpack.c.l.b16 %v1800
        %v2336 = vunpack.c.l.b16 %v1801
        %v2337 = vunpack.c.l.b16 %v1802
        %v2338 = vunpack.c.l.b16 %v1803
        %v2339 = vunpack.c.l.b16 %v1804
        %v2340 = vunpack.c.l.b16 %v1805
        %v2341 = vunpack.c.l.b16 %v1806
        %v2342 = vunpack.c.l.b16 %v1807
        %v2343 = vunpack.c.l.b16 %v1808
        %v2344 = vunpack.c.l.b16 %v1809
        %v2345 = vunpack.c.l.b16 %v1810
        %v2346 = vunpack.c.l.b16 %v1811
        %v2347 = vunpack.c.l.b16 %v1812
        %v2348 = vunpack.c.l.b16 %v1813
        %v2349 = vunpack.c.l.b16 %v1814
        %v2350 = vunpack.c.l.b16 %v1815
        %v2351 = vunpack.c.l.b16 %v1816
        %v2352 = vunpack.c.l.b16 %v1817
        %v2353 = vunpack.c.l.b16 %v1818
        %v2354 = vunpack.c.l.b16 %v1819
        %v2355 = vunpack.c.l.b16 %v1820
        %v2356 = vunpack.c.l.b16 %v1821
        %v2357 = vunpack.c.l.b16 %v1822
        %v2358 = vunpack.c.l.b16 %v1823
        %v2359 = vunpack.c.l.b16 %v1824
        %v2360 = vunpack.c.l.b16 %v1825
        %v2361 = vunpack.c.l.b16 %v1826
        %v2362 = vunpack.c.l.b16 %v1827
        %v2363 = vunpack.c.l.b16 %v1828
        %v2364 = vunpack.c.l.b16 %v1829
        %v2365 = vunpack.c.l.b16 %v1830
        %v2366 = vunpack.c.l.b16 %v1831
        %v2367 = vunpack.c.l.b16 %v1832
        %v2368 = vunpack.c.l.b16 %v1833
        %v2369 = vunpack.c.l.b16 %v1834
        %v2370 = vunpack.c.l.b16 %v1835
        %v2371 = vunpack.c.l.b16 %v1836
        %v2372 = vunpack.c.l.b16 %v1837
        %v2373 = vunpack.c.l.b16 %v1838
        %v2374 = vunpack.c.l.b16 %v1839
        %v2375 = vunpack.c.l.b16 %v1840
        %v2376 = vunpack.c.l.b16 %v1841
        %v2377 = vunpack.c.l.b16 %v1842
        %v2378 = vunpack.c.l.b16 %v1843
        %v2379 = vunpack.c.l.b16 %v1844
        %v2380 = vunpack.c.l.b16 %v1845
        %v2381 = vunpack.c.l.b16 %v1846
        %v2382 = vunpack.c.l.b16 %v1847
        %v2383 = vunpack.c.l.b16 %v1848
        %v2384 = vunpack.c.l.b16 %v1849
        %v2385 = vunpack.c.l.b16 %v1850
        %v2386 = vunpack.c.l.b16 %v1851
        %v2387 = vunpack.c.l.b16 %v1852
        %v2388 = vunpack.c.l.b16 %v1853
        %v2389 = vunpack.c.l.b16 %v1854
        %v2390 = vunpack.c.l.b16 %v1855
        %v2391 = vunpack.c.l.b16 %v1856
        %v2392 = vunpack.c.l.b16 %v1857
        %v2393 = vunpack.c.l.b16 %v1858
        %v2394 = vunpack.c.l.b16 %v1859
        %v2395 = vunpack.c.l.b16 %v1860
        %v2396 = vunpack.c.l.b16 %v1861
        %v2397 = vunpack.c.l.b16 %v1862
        %v2398 = vunpack.c.l.b16 %v1863
        %v2399 = vunpack.c.l.b16 %v1864
        %v2400 = vunpack.c.l.b16 %v1865
        %v2401 = vunpack.c.l.b16 %v1866
        %v2402 = vunpack.c.l.b16 %v1867
        %v2403 = vunpack.c.l.b16 %v1868
        %v2404 = vunpack.c.l.b16 %v1869
        %v2405 = vunpack.c.l.b16 %v1870
        %v2406 = vunpack.c.l.b16 %v1871
        %v2407 = vunpack.c.l.b16 %v1872
        %v2408 = vunpack.c.l.b16 %v1873
        %v2409 = vunpack.c.l.b16 %v1874
        %v2410 = vunpack.c.l.b16 %v1875
        %v2411 = vunpack.c.l.b16 %v1876
        %v2412 = vunpack.c.l.b16 %v1877
        %v2413 = vunpack.c.l.b16 %v1878
        %v2414 = vunpack.c.l.b16 %v1879
        %v2415 = vunpack.c.l.b16 %v1880
        %v2416 = vunpack.c.l.b16 %v1881
        %v2417 = vunpack.c.l.b16 %v1882
        %v2418 = vunpack.c.l.b16 %v1883
        %v2419 = vunpack.c.l.b16 %v1884
        %v2420 = vunpack.c.l.b16 %v1885
        %v2421 = vunpack.c.l.b16 %v1886
        %v2422 = vunpack.c.l.b16 %v1887
        %v2423 = vunpack.c.l.b16 %v1888
        %v2424 = vunpack.c.l.b16 %v1889
        %v2425 = vunpack.c.l.b16 %v1890
        %v2426 = vunpack.c.l.b16 %v1891
        %v2427 = vunpack.c.l.b16 %v1892
        %v2428 = vunpack.c.l.b16 %v1893
        %v2429 = vunpack.c.l.b16 %v1894
        %v2430 = vunpack.c.l.b16 %v1895
        %v2431 = vunpack.c.l.b16 %v1896
        %v2432 = vunpack.c.l.b16 %v1897
        %v2433 = vunpack.c.l.b16 %v1898
        %v2434 = vunpack.c.l.b16 %v1899
        %v2435 = vunpack.c.l.b16 %v1900
        %v2436 = vunpack.c.l.b16 %v1901
        %v2437 = vunpack.c.l.b16 %v1902
        %v2438 = vunpack.c.l.b16 %v1903
        %v2439 = vunpack.c.l.b16 %v1904
        %v2440 = vunpack.c.l.b16 %v1905
        %v2441 = vunpack.c.l.b16 %v1906
        %v2442 = vunpack.c.l.b16 %v1907
        %v2443 = vunpack.c.l.b16 %v1908
        %v2444 = vunpack.c.l.b16 %v1909
        %v2445 = vunpack.c.l.b16 %v1910
        %v2446 = vunpack.c.l.b16 %v1911
        %v2447 = vunpack.c.l.b16 %v1912
        %v2448 = vunpack.c.l.b16 %v1913
        %v2449 = vunpack.c.l.b16 %v1914
        %v2450 = vunpack.c.l.b16 %v1915
        %v2451 = vunpack.c.l.b16 %v1916
        %v2452 = vunpack.c.l.b16 %v1917
        %v2453 = vunpack.c.l.b16 %v1918
        %v2454 = vunpack.c.l.b16 %v1919
        %v2455 = vunpack.c.l.b16 %v1920
        %v2456 = vunpack.c.l.b16 %v1921
        %v2457 = vunpack.c.l.b16 %v1922
        %v2458 = vunpack.c.l.b16 %v1923
        %v2459 = vunpack.c.l.b16 %v1924
        %v2460 = vunpack.c.l.b16 %v1925
        %v2461 = vunpack.c.l.b16 %v1926
        %v2462 = vunpack.c.l.b16 %v1927
        %v2463 = vunpack.c.l.b16 %v1928
        %v2464 = vunpack.c.l.b16 %v1929
        %v2465 = vunpack.c.l.b16 %v1930
        %v2466 = vunpack.c.l.b16 %v1931
        %v2467 = vunpack.c.l.b16 %v1932
        %v2468 = vunpack.c.l.b16 %v1933
        %v2469 = vunpack.c.l.b16 %v1934
        %v2470 = vunpack.c.l.b16 %v1935
        %v2471 = vunpack.c.l.b16 %v1936
        %v2472 = vunpack.c.l.b16 %v1937
        %v2473 = vunpack.c.l.b16 %v1938
        %v2474 = vunpack.c.l.b16 %v1939
        %v2475 = vunpack.c.l.b16 %v1940
        %v2476 = vunpack.c.l.b16 %v1941
        %v2477 = vunpack.c.l.b16 %v1942
        %v2478 = vunpack.c.l.b16 %v1943
        %v2479 = vunpack.c.l.b16 %v1944
        %v2480 = vunpack.c.l.b16 %v1945
        %v2481 = vunpack.c.l.b16 %v1946
        %v2482 = vunpack.c.l.b16 %v1947
        %v2483 = vunpack.c.l.b16 %v1948
        %v2484 = vunpack.c.l.b16 %v1949
        %v2485 = vunpack.c.l.b16 %v1950
        %v2486 = vunpack.c.l.b16 %v1951
        %v2487 = vunpack.c.l.b16 %v1952
        %v2488 = vunpack.c.l.b16 %v1953
        %v2489 = vunpack.c.l.b16 %v1954
        %v2490 = vunpack.c.l.b16 %v1955
        %v2491 = vunpack.c.l.b16 %v1956
        %v2492 = vunpack.c.l.b16 %v1957
        %v2493 = vunpack.c.l.b16 %v1958
        %v2494 = vunpack.c.l.b16 %v1959
        %v2495 = vunpack.c.l.b16 %v1960
        %v2496 = vunpack.c.l.b16 %v1961
        %v2497 = vunpack.c.l.b16 %v1962
        %v2498 = vunpack.c.l.b16 %v1963
        %v2499 = vunpack.c.l.b16 %v1964
        %v2500 = vunpack.c.l.b16 %v1965
        %v2501 = vunpack.c.l.b16 %v1966
        %v2502 = vunpack.c.l.b16 %v1967
        %v2503 = vunpack.c.l.b16 %v1968
        %v2504 = vunpack.c.l.b16 %v1969
        %v2505 = vunpack.c.l.b16 %v1970
        %v2506 = vunpack.c.l.b16 %v1971
        %v2507 = vunpack.c.l.b16 %v1972
        %v2508 = vunpack.c.l.b16 %v1973
        %v2509 = vunpack.c.l.b16 %v1974
        %v2510 = vunpack.c.l.b16 %v1975
        %v2511 = vunpack.c.l.b16 %v1976
        %v2512 = vunpack.c.l.b16 %v1977
        %v2513 = vunpack.c.l.b16 %v1978
        %v2514 = vunpack.c.l.b16 %v1979
        %v2515 = vunpack.c.l.b16 %v1980
        %v2516 = vunpack.c.l.b16 %v1981
        %v2517 = vunpack.c.l.b16 %v1982
        %v2518 = vunpack.c.l.b16 %v1983
        %v2519 = vunpack.c.l.b16 %v1984
        %v2520 = vunpack.c.l.b16 %v1985
        %v2521 = vunpack.c.l.b16 %v1986
        %v2522 = vunpack.c.l.b16 %v1987
        %v2523 = vunpack.c.l.b16 %v1988
        %v2524 = vunpack.c.l.b16 %v1989
        %v2525 = vunpack.c.l.b16 %v1990
        %v2526 = vunpack.c.l.b16 %v1991
        %v2527 = vunpack.c.l.b16 %v1992
        %v2528 = vunpack.c.l.b16 %v1993
        %v2529 = vunpack.c.l.b16 %v1994
        %v2530 = vunpack.c.l.b16 %v1995
        %v2531 = vunpack.c.l.b16 %v1996
        %v2532 = vunpack.c.l.b16 %v1997
        %v2533 = vunpack.c.l.b16 %v1998
        %v2534 = vunpack.c.l.b16 %v1999
        %v2535 = vunpack.c.l.b16 %v2000
        %v2536 = vunpack.c.l.b16 %v2001
        %v2537 = vunpack.c.l.b16 %v2002
        %v2538 = vunpack.c.l.b16 %v2003
        %v2539 = vunpack.c.l.b16 %v2004
        %v2540 = vunpack.c.l.b16 %v2005
        %v2541 = vunpack.c.l.b16 %v2006
        %v2542 = vunpack.c.l.b16 %v2007
        %v2543 = vunpack.c.l.b16 %v2008
        %v2544 = vpack.c.b16 %v2289, %v2288
        %v2545 = vpack.c.b16 %v2291, %v2290
        %v2546 = vpack.c.b16 %v2293, %v2292
        %v2547 = vpack.c.b16 %v2295, %v2294
        %v2548 = vpack.c.b16 %v2297, %v2296
        %v2549 = vpack.c.b16 %v2299, %v2298
        %v2550 = vpack.c.b16 %v2301, %v2300
        %v2551 = vpack.c.b16 %v2303, %v2302
        %v2552 = vpack.c.b16 %v2305, %v2304
        %v2553 = vpack.c.b16 %v2307, %v2306
        %v2554 = vpack.c.b16 %v2309, %v2308
        %v2555 = vpack.c.b16 %v2311, %v2310
        %v2556 = vpack.c.b16 %v2313, %v2312
        %v2557 = vpack.c.b16 %v2315, %v2314
        %v2558 = vpack.c.b16 %v2317, %v2316
        %v2559 = vpack.c.b16 %v2319, %v2318
        %v2560 = vpack.c.b16 %v2321, %v2320
        %v2561 = vpack.c.b16 %v2323, %v2322
        %v2562 = vpack.c.b16 %v2325, %v2324
        %v2563 = vpack.c.b16 %v2327, %v2326
        %v2564 = vpack.c.b16 %v2329, %v2328
        %v2565 = vpack.c.b16 %v2331, %v2330
        %v2566 = vpack.c.b16 %v2333, %v2332
        %v2567 = vpack.c.b16 %v2335, %v2334
        %v2568 = vpack.c.b16 %v2337, %v2336
        %v2569 = vpack.c.b16 %v2339, %v2338
        %v2570 = vpack.c.b16 %v2341, %v2340
        %v2571 = vpack.c.b16 %v2343, %v2342
        %v2572 = vpack.c.b16 %v2345, %v2344
        %v2573 = vpack.c.b16 %v2347, %v2346
        %v2574 = vpack.c.b16 %v2349, %v2348
        %v2575 = vpack.c.b16 %v2351, %v2350
        %v2576 = vpack.c.b16 %v2353, %v2352
        %v2577 = vpack.c.b16 %v2355, %v2354
        %v2578 = vpack.c.b16 %v2357, %v2356
        %v2579 = vpack.c.b16 %v2359, %v2358
        %v2580 = vpack.c.b16 %v2361, %v2360
        %v2581 = vpack.c.b16 %v2363, %v2362
        %v2582 = vpack.c.b16 %v2365, %v2364
        %v2583 = vpack.c.b16 %v2367, %v2366
        %v2584 = vpack.c.b16 %v2369, %v2368
        %v2585 = vpack.c.b16 %v2371, %v2370
        %v2586 = vpack.c.b16 %v2373, %v2372
        %v2587 = vpack.c.b16 %v2375, %v2374
        %v2588 = vpack.c.b16 %v2377, %v2376
        %v2589 = vpack.c.b16 %v2379, %v2378
        %v2590 = vpack.c.b16 %v2381, %v2380
        %v2591 = vpack.c.b16 %v2383, %v2382
        %v2592 = vpack.c.b16 %v2385, %v2384
        %v2593 = vpack.c.b16 %v2387, %v2386
        %v2594 = vpack.c.b16 %v2389, %v2388
        %v2595 = vpack.c.b16 %v2391, %v2390
        %v2596 = vpack.c.b16 %v2393, %v2392
        %v2597 = vpack.c.b16 %v2395, %v2394
        %v2598 = vpack.c.b16 %v2397, %v2396
        %v2599 = vpack.c.b16 %v2399, %v2398
        %v2600 = vpack.c.b16 %v2401, %v2400
        %v2601 = vpack.c.b16 %v2403, %v2402
        %v2602 = vpack.c.b16 %v2405, %v2404
        %v2603 = vpack.c.b16 %v2407, %v2406
        %v2604 = vpack.c.b16 %v2409, %v2408
        %v2605 = vpack.c.b16 %v2411, %v2410
        %v2606 = vpack.c.b16 %v2413, %v2412
        %v2607 = vpack.c.b16 %v2415, %v2414
        %v2608 = vpack.c.b16 %v2417, %v2416
        %v2609 = vpack.c.b16 %v2419, %v2418
        %v2610 = vpack.c.b16 %v2421, %v2420
        %v2611 = vpack.c.b16 %v2423, %v2422
        %v2612 = vpack.c.b16 %v2425, %v2424
        %v2613 = vpack.c.b16 %v2427, %v2426
        %v2614 = vpack.c.b16 %v2429, %v2428
        %v2615 = vpack.c.b16 %v2431, %v2430
        %v2616 = vpack.c.b16 %v2433, %v2432
        %v2617 = vpack.c.b16 %v2435, %v2434
        %v2618 = vpack.c.b16 %v2437, %v2436
        %v2619 = vpack.c.b16 %v2439, %v2438
        %v2620 = vpack.c.b16 %v2441, %v2440
        %v2621 = vpack.c.b16 %v2443, %v2442
        %v2622 = vpack.c.b16 %v2445, %v2444
        %v2623 = vpack.c.b16 %v2447, %v2446
        %v2624 = vpack.c.b16 %v2449, %v2448
        %v2625 = vpack.c.b16 %v2451, %v2450
        %v2626 = vpack.c.b16 %v2453, %v2452
        %v2627 = vpack.c.b16 %v2455, %v2454
        %v2628 = vpack.c.b16 %v2457, %v2456
        %v2629 = vpack.c.b16 %v2459, %v2458
        %v2630 = vpack.c.b16 %v2461, %v2460
        %v2631 = vpack.c.b16 %v2463, %v2462
        %v2632 = vpack.c.b16 %v2465, %v2464
        %v2633 = vpack.c.b16 %v2467, %v2466
        %v2634 = vpack.c.b16 %v2469, %v2468
        %v2635 = vpack.c.b16 %v2471, %v2470
        %v2636 = vpack.c.b16 %v2473, %v2472
        %v2637 = vpack.c.b16 %v2475, %v2474
        %v2638 = vpack.c.b16 %v2477, %v2476
        %v2639 = vpack.c.b16 %v2479, %v2478
        %v2640 = vpack.c.b16 %v2481, %v2480
        %v2641 = vpack.c.b16 %v2483, %v2482
        %v2642 = vpack.c.b16 %v2485, %v2484
        %v2643 = vpack.c.b16 %v2487, %v2486
        %v2644 = vpack.c.b16 %v2489, %v2488
        %v2645 = vpack.c.b16 %v2491, %v2490
        %v2646 = vpack.c.b16 %v2493, %v2492
        %v2647 = vpack.c.b16 %v2495, %v2494
        %v2648 = vpack.c.b16 %v2497, %v2496
        %v2649 = vpack.c.b16 %v2499, %v2498
        %v2650 = vpack.c.b16 %v2501, %v2500
        %v2651 = vpack.c.b16 %v2503, %v2502
        %v2652 = vpack.c.b16 %v2505, %v2504
        %v2653 = vpack.c.b16 %v2507, %v2506
        %v2654 = vpack.c.b16 %v2509, %v2508
        %v2655 = vpack.c.b16 %v2511, %v2510
        %v2656 = vpack.c.b16 %v2513, %v2512
        %v2657 = vpack.c.b16 %v2515, %v2514
        %v2658 = vpack.c.b16 %v2517, %v2516
        %v2659 = vpack.c.b16 %v2519, %v2518
        %v2660 = vpack.c.b16 %v2521, %v2520
        %v2661 = vpack.c.b16 %v2523, %v2522
        %v2662 = vpack.c.b16 %v2525, %v2524
        %v2663 = vpack.c.b16 %v2527, %v2526
        %v2664 = vpack.c.b16 %v2529, %v2528
        %v2665 = vpack.c.b16 %v2531, %v2530
        %v2666 = vpack.c.b16 %v2533, %v2532
        %v2667 = vpack.c.b16 %v2535, %v2534
        %v2668 = vpack.c.b16 %v2537, %v2536
        %v2669 = vpack.c.b16 %v2539, %v2538
        %v2670 = vpack.c.b16 %v2541, %v2540
        %v2671 = vpack.c.b16 %v2543, %v2542
        %2800 = vmatprep.subr.bf16.mxu0 0
        %2801 = vmatpush1.bf16.msra.mxu0 %v2544
        %2802 = vmatprep.subr.bf16.mxu0 0
        %2803 = vmatpush1.bf16.msra.mxu0 %v2545
        %2804 = vmatprep.subr.bf16.mxu0 0
        %2805 = vmatpush1.bf16.msra.mxu0 %v2546
        %2806 = vmatprep.subr.bf16.mxu0 0
        %2807 = vmatpush1.bf16.msra.mxu0 %v2547
        %2808 = vmatprep.subr.bf16.mxu0 0
        %2809 = vmatpush1.bf16.msra.mxu0 %v2548
        %2810 = vmatprep.subr.bf16.mxu0 0
        %2811 = vmatpush1.bf16.msra.mxu0 %v2549
        %2812 = vmatprep.subr.bf16.mxu0 0
        %2813 = vmatpush1.bf16.msra.mxu0 %v2550
        %2814 = vmatprep.subr.bf16.mxu0 0
        %2815 = vmatpush1.bf16.msra.mxu0 %v2551
        %2816 = vmatprep.subr.bf16.mxu0 0
        %2817 = vmatpush1.bf16.msra.mxu0 %v2552
        %2818 = vmatprep.subr.bf16.mxu0 0
        %2819 = vmatpush1.bf16.msra.mxu0 %v2553
        %2820 = vmatprep.subr.bf16.mxu0 0
        %2821 = vmatpush1.bf16.msra.mxu0 %v2554
        %2822 = vmatprep.subr.bf16.mxu0 0
        %2823 = vmatpush1.bf16.msra.mxu0 %v2555
        %2824 = vmatprep.subr.bf16.mxu0 0
        %2825 = vmatpush1.bf16.msra.mxu0 %v2556
        %2826 = vmatprep.subr.bf16.mxu0 0
        %2827 = vmatpush1.bf16.msra.mxu0 %v2557
        %2828 = vmatprep.subr.bf16.mxu0 0
        %2829 = vmatpush1.bf16.msra.mxu0 %v2558
        %2830 = vmatprep.subr.bf16.mxu0 0
        %2831 = vmatpush1.bf16.msra.mxu0 %v2559
        %2832 = vmatprep.mubr.bf16.mxu0 %v2011
        %2833 = vmatmul.mubr.bf16.gmra.mrb[0].mxu0 %v2010
        %v2834 = vpop.f32.mrb[0].mxu0
        %v2835 = vadd.f32 %v2030, %v2834
        %v2836 = vpop.f32.mrb[0].mxu0
        %v2837 = vpop.f32.mrb[0].mxu0
        %v2838 = vadd.f32 %v2030, %v2837
        %v2839 = vpop.f32.mrb[0].mxu0
        %2840 = vdwg.mxu0
        %2841 = vmatprep.subr.bf16.mxu0 0
        %2842 = vmatpush1.bf16.msra.mxu0 %v2560
        %2843 = vmatprep.subr.bf16.mxu0 0
        %2844 = vmatpush1.bf16.msra.mxu0 %v2561
        %2845 = vmatprep.subr.bf16.mxu0 0
        %2846 = vmatpush1.bf16.msra.mxu0 %v2562
        %2847 = vmatprep.subr.bf16.mxu0 0
        %2848 = vmatpush1.bf16.msra.mxu0 %v2563
        %2849 = vmatprep.subr.bf16.mxu0 0
        %2850 = vmatpush1.bf16.msra.mxu0 %v2564
        %2851 = vmatprep.subr.bf16.mxu0 0
        %2852 = vmatpush1.bf16.msra.mxu0 %v2565
        %2853 = vmatprep.subr.bf16.mxu0 0
        %2854 = vmatpush1.bf16.msra.mxu0 %v2566
        %2855 = vmatprep.subr.bf16.mxu0 0
        %2856 = vmatpush1.bf16.msra.mxu0 %v2567
        %2857 = vmatprep.subr.bf16.mxu0 0
        %2858 = vmatpush1.bf16.msra.mxu0 %v2568
        %2859 = vmatprep.subr.bf16.mxu0 0
        %2860 = vmatpush1.bf16.msra.mxu0 %v2569
        %2861 = vmatprep.subr.bf16.mxu0 0
        %2862 = vmatpush1.bf16.msra.mxu0 %v2570
        %2863 = vmatprep.subr.bf16.mxu0 0
        %2864 = vmatpush1.bf16.msra.mxu0 %v2571
        %2865 = vmatprep.subr.bf16.mxu0 0
        %2866 = vmatpush1.bf16.msra.mxu0 %v2572
        %2867 = vmatprep.subr.bf16.mxu0 0
        %2868 = vmatpush1.bf16.msra.mxu0 %v2573
        %2869 = vmatprep.subr.bf16.mxu0 0
        %2870 = vmatpush1.bf16.msra.mxu0 %v2574
        %2871 = vmatprep.subr.bf16.mxu0 0
        %2872 = vmatpush1.bf16.msra.mxu0 %v2575
        %2873 = vmatprep.mubr.bf16.mxu0 %v2013
        %2874 = vmatmul.mubr.bf16.gmra.mrb[0].mxu0 %v2012
        %v2875 = vpop.f32.mrb[0].mxu0
        %v2876 = vadd.f32 %v2835, %v2875
        %v2877 = vpop.f32.mrb[0].mxu0
        %v2878 = vpop.f32.mrb[0].mxu0
        %v2879 = vadd.f32 %v2838, %v2878
        %v2880 = vpop.f32.mrb[0].mxu0
        %2881 = vdwg.mxu0
        %2882 = vmatprep.subr.bf16.mxu0 0
        %2883 = vmatpush1.bf16.msra.mxu0 %v2576
        %2884 = vmatprep.subr.bf16.mxu0 0
        %2885 = vmatpush1.bf16.msra.mxu0 %v2577
        %2886 = vmatprep.subr.bf16.mxu0 0
        %2887 = vmatpush1.bf16.msra.mxu0 %v2578
        %2888 = vmatprep.subr.bf16.mxu0 0
        %2889 = vmatpush1.bf16.msra.mxu0 %v2579
        %2890 = vmatprep.subr.bf16.mxu0 0
        %2891 = vmatpush1.bf16.msra.mxu0 %v2580
        %2892 = vmatprep.subr.bf16.mxu0 0
        %2893 = vmatpush1.bf16.msra.mxu0 %v2581
        %2894 = vmatprep.subr.bf16.mxu0 0
        %2895 = vmatpush1.bf16.msra.mxu0 %v2582
        %2896 = vmatprep.subr.bf16.mxu0 0
        %2897 = vmatpush1.bf16.msra.mxu0 %v2583
        %2898 = vmatprep.subr.bf16.mxu0 0
        %2899 = vmatpush1.bf16.msra.mxu0 %v2584
        %2900 = vmatprep.subr.bf16.mxu0 0
        %2901 = vmatpush1.bf16.msra.mxu0 %v2585
        %2902 = vmatprep.subr.bf16.mxu0 0
        %2903 = vmatpush1.bf16.msra.mxu0 %v2586
        %2904 = vmatprep.subr.bf16.mxu0 0
        %2905 = vmatpush1.bf16.msra.mxu0 %v2587
        %2906 = vmatprep.subr.bf16.mxu0 0
        %2907 = vmatpush1.bf16.msra.mxu0 %v2588
        %2908 = vmatprep.subr.bf16.mxu0 0
        %2909 = vmatpush1.bf16.msra.mxu0 %v2589
        %2910 = vmatprep.subr.bf16.mxu0 0
        %2911 = vmatpush1.bf16.msra.mxu0 %v2590
        %2912 = vmatprep.subr.bf16.mxu0 0
        %2913 = vmatpush1.bf16.msra.mxu0 %v2591
        %2914 = vmatprep.mubr.bf16.mxu0 %v2015
        %2915 = vmatmul.mubr.bf16.gmra.mrb[0].mxu0 %v2014
        %v2916 = vpop.f32.mrb[0].mxu0
        %v2917 = vadd.f32 %v2876, %v2916
        %v2918 = vpop.f32.mrb[0].mxu0
        %v2919 = vpop.f32.mrb[0].mxu0
        %v2920 = vadd.f32 %v2879, %v2919
        %v2921 = vpop.f32.mrb[0].mxu0
        %2922 = vdwg.mxu0
        %2923 = vmatprep.subr.bf16.mxu0 0
        %2924 = vmatpush1.bf16.msra.mxu0 %v2592
        %2925 = vmatprep.subr.bf16.mxu0 0
        %2926 = vmatpush1.bf16.msra.mxu0 %v2593
        %2927 = vmatprep.subr.bf16.mxu0 0
        %2928 = vmatpush1.bf16.msra.mxu0 %v2594
        %2929 = vmatprep.subr.bf16.mxu0 0
        %2930 = vmatpush1.bf16.msra.mxu0 %v2595
        %2931 = vmatprep.subr.bf16.mxu0 0
        %2932 = vmatpush1.bf16.msra.mxu0 %v2596
        %2933 = vmatprep.subr.bf16.mxu0 0
        %2934 = vmatpush1.bf16.msra.mxu0 %v2597
        %2935 = vmatprep.subr.bf16.mxu0 0
        %2936 = vmatpush1.bf16.msra.mxu0 %v2598
        %2937 = vmatprep.subr.bf16.mxu0 0
        %2938 = vmatpush1.bf16.msra.mxu0 %v2599
        %2939 = vmatprep.subr.bf16.mxu0 0
        %2940 = vmatpush1.bf16.msra.mxu0 %v2600
        %2941 = vmatprep.subr.bf16.mxu0 0
        %2942 = vmatpush1.bf16.msra.mxu0 %v2601
        %2943 = vmatprep.subr.bf16.mxu0 0
        %2944 = vmatpush1.bf16.msra.mxu0 %v2602
        %2945 = vmatprep.subr.bf16.mxu0 0
        %2946 = vmatpush1.bf16.msra.mxu0 %v2603
        %2947 = vmatprep.subr.bf16.mxu0 0
        %2948 = vmatpush1.bf16.msra.mxu0 %v2604
        %2949 = vmatprep.subr.bf16.mxu0 0
        %2950 = vmatpush1.bf16.msra.mxu0 %v2605
        %2951 = vmatprep.subr.bf16.mxu0 0
        %2952 = vmatpush1.bf16.msra.mxu0 %v2606
        %2953 = vmatprep.subr.bf16.mxu0 0
        %2954 = vmatpush1.bf16.msra.mxu0 %v2607
        %2955 = vmatprep.mubr.bf16.mxu0 %v2017
        %2956 = vmatmul.mubr.bf16.gmra.mrb[0].mxu0 %v2016
        %v2957 = vpop.f32.mrb[0].mxu0
        %v2958 = vadd.f32 %v2917, %v2957
        %v2959 = vpop.f32.mrb[0].mxu0
        %v2960 = vpop.f32.mrb[0].mxu0
        %v2961 = vadd.f32 %v2920, %v2960
        %v2962 = vpop.f32.mrb[0].mxu0
        %2963 = vdwg.mxu0
        %2964 = vmatprep.subr.bf16.mxu0 0
        %2965 = vmatpush1.bf16.msra.mxu0 %v2608
        %2966 = vmatprep.subr.bf16.mxu0 0
        %2967 = vmatpush1.bf16.msra.mxu0 %v2609
        %2968 = vmatprep.subr.bf16.mxu0 0
        %2969 = vmatpush1.bf16.msra.mxu0 %v2610
        %2970 = vmatprep.subr.bf16.mxu0 0
        %2971 = vmatpush1.bf16.msra.mxu0 %v2611
        %2972 = vmatprep.subr.bf16.mxu0 0
        %2973 = vmatpush1.bf16.msra.mxu0 %v2612
        %2974 = vmatprep.subr.bf16.mxu0 0
        %2975 = vmatpush1.bf16.msra.mxu0 %v2613
        %2976 = vmatprep.subr.bf16.mxu0 0
        %2977 = vmatpush1.bf16.msra.mxu0 %v2614
        %2978 = vmatprep.subr.bf16.mxu0 0
        %2979 = vmatpush1.bf16.msra.mxu0 %v2615
        %2980 = vmatprep.subr.bf16.mxu0 0
        %2981 = vmatpush1.bf16.msra.mxu0 %v2616
        %2982 = vmatprep.subr.bf16.mxu0 0
        %2983 = vmatpush1.bf16.msra.mxu0 %v2617
        %2984 = vmatprep.subr.bf16.mxu0 0
        %2985 = vmatpush1.bf16.msra.mxu0 %v2618
        %2986 = vmatprep.subr.bf16.mxu0 0
        %2987 = vmatpush1.bf16.msra.mxu0 %v2619
        %2988 = vmatprep.subr.bf16.mxu0 0
        %2989 = vmatpush1.bf16.msra.mxu0 %v2620
        %2990 = vmatprep.subr.bf16.mxu0 0
        %2991 = vmatpush1.bf16.msra.mxu0 %v2621
        %2992 = vmatprep.subr.bf16.mxu0 0
        %2993 = vmatpush1.bf16.msra.mxu0 %v2622
        %2994 = vmatprep.subr.bf16.mxu0 0
        %2995 = vmatpush1.bf16.msra.mxu0 %v2623
        %2996 = vmatprep.mubr.bf16.mxu0 %v2019
        %2997 = vmatmul.mubr.bf16.gmra.mrb[0].mxu0 %v2018
        %v2998 = vpop.f32.mrb[0].mxu0
        %v2999 = vadd.f32 %v2958, %v2998
        %v3000 = vpop.f32.mrb[0].mxu0
        %v3001 = vpop.f32.mrb[0].mxu0
        %v3002 = vadd.f32 %v2961, %v3001
        %v3003 = vpop.f32.mrb[0].mxu0
        %3004 = vdwg.mxu0
        %3005 = vmatprep.subr.bf16.mxu0 0
        %3006 = vmatpush1.bf16.msra.mxu0 %v2624
        %3007 = vmatprep.subr.bf16.mxu0 0
        %3008 = vmatpush1.bf16.msra.mxu0 %v2625
        %3009 = vmatprep.subr.bf16.mxu0 0
        %3010 = vmatpush1.bf16.msra.mxu0 %v2626
        %3011 = vmatprep.subr.bf16.mxu0 0
        %3012 = vmatpush1.bf16.msra.mxu0 %v2627
        %3013 = vmatprep.subr.bf16.mxu0 0
        %3014 = vmatpush1.bf16.msra.mxu0 %v2628
        %3015 = vmatprep.subr.bf16.mxu0 0
        %3016 = vmatpush1.bf16.msra.mxu0 %v2629
        %3017 = vmatprep.subr.bf16.mxu0 0
        %3018 = vmatpush1.bf16.msra.mxu0 %v2630
        %3019 = vmatprep.subr.bf16.mxu0 0
        %3020 = vmatpush1.bf16.msra.mxu0 %v2631
        %3021 = vmatprep.subr.bf16.mxu0 0
        %3022 = vmatpush1.bf16.msra.mxu0 %v2632
        %3023 = vmatprep.subr.bf16.mxu0 0
        %3024 = vmatpush1.bf16.msra.mxu0 %v2633
        %3025 = vmatprep.subr.bf16.mxu0 0
        %3026 = vmatpush1.bf16.msra.mxu0 %v2634
        %3027 = vmatprep.subr.bf16.mxu0 0
        %3028 = vmatpush1.bf16.msra.mxu0 %v2635
        %3029 = vmatprep.subr.bf16.mxu0 0
        %3030 = vmatpush1.bf16.msra.mxu0 %v2636
        %3031 = vmatprep.subr.bf16.mxu0 0
        %3032 = vmatpush1.bf16.msra.mxu0 %v2637
        %3033 = vmatprep.subr.bf16.mxu0 0
        %3034 = vmatpush1.bf16.msra.mxu0 %v2638
        %3035 = vmatprep.subr.bf16.mxu0 0
        %3036 = vmatpush1.bf16.msra.mxu0 %v2639
        %3037 = vmatprep.mubr.bf16.mxu0 %v2021
        %3038 = vmatmul.mubr.bf16.gmra.mrb[0].mxu0 %v2020
        %v3039 = vpop.f32.mrb[0].mxu0
        %v3040 = vadd.f32 %v2999, %v3039
        %v3041 = vpop.f32.mrb[0].mxu0
        %v3042 = vpop.f32.mrb[0].mxu0
        %v3043 = vadd.f32 %v3002, %v3042
        %v3044 = vpop.f32.mrb[0].mxu0
        %3045 = vdwg.mxu0
        %3046 = vmatprep.subr.bf16.mxu0 0
        %3047 = vmatpush1.bf16.msra.mxu0 %v2640
        %3048 = vmatprep.subr.bf16.mxu0 0
        %3049 = vmatpush1.bf16.msra.mxu0 %v2641
        %3050 = vmatprep.subr.bf16.mxu0 0
        %3051 = vmatpush1.bf16.msra.mxu0 %v2642
        %3052 = vmatprep.subr.bf16.mxu0 0
        %3053 = vmatpush1.bf16.msra.mxu0 %v2643
        %3054 = vmatprep.subr.bf16.mxu0 0
        %3055 = vmatpush1.bf16.msra.mxu0 %v2644
        %3056 = vmatprep.subr.bf16.mxu0 0
        %3057 = vmatpush1.bf16.msra.mxu0 %v2645
        %3058 = vmatprep.subr.bf16.mxu0 0
        %3059 = vmatpush1.bf16.msra.mxu0 %v2646
        %3060 = vmatprep.subr.bf16.mxu0 0
        %3061 = vmatpush1.bf16.msra.mxu0 %v2647
        %3062 = vmatprep.subr.bf16.mxu0 0
        %3063 = vmatpush1.bf16.msra.mxu0 %v2648
        %3064 = vmatprep.subr.bf16.mxu0 0
        %3065 = vmatpush1.bf16.msra.mxu0 %v2649
        %3066 = vmatprep.subr.bf16.mxu0 0
        %3067 = vmatpush1.bf16.msra.mxu0 %v2650
        %3068 = vmatprep.subr.bf16.mxu0 0
        %3069 = vmatpush1.bf16.msra.mxu0 %v2651
        %3070 = vmatprep.subr.bf16.mxu0 0
        %3071 = vmatpush1.bf16.msra.mxu0 %v2652
        %3072 = vmatprep.subr.bf16.mxu0 0
        %3073 = vmatpush1.bf16.msra.mxu0 %v2653
        %3074 = vmatprep.subr.bf16.mxu0 0
        %3075 = vmatpush1.bf16.msra.mxu0 %v2654
        %3076 = vmatprep.subr.bf16.mxu0 0
        %3077 = vmatpush1.bf16.msra.mxu0 %v2655
        %3078 = vmatprep.mubr.bf16.mxu0 %v2023
        %3079 = vmatmul.mubr.bf16.gmra.mrb[0].mxu0 %v2022
        %v3080 = vpop.f32.mrb[0].mxu0
        %v3081 = vadd.f32 %v3040, %v3080
        %v3082 = vpop.f32.mrb[0].mxu0
        %v3083 = vpop.f32.mrb[0].mxu0
        %v3084 = vadd.f32 %v3043, %v3083
        %v3085 = vpop.f32.mrb[0].mxu0
        %3086 = vdwg.mxu0
        %3087 = vmatprep.subr.bf16.mxu0 0
        %3088 = vmatpush1.bf16.msra.mxu0 %v2656
        %3089 = vmatprep.subr.bf16.mxu0 0
        %3090 = vmatpush1.bf16.msra.mxu0 %v2657
        %3091 = vmatprep.subr.bf16.mxu0 0
        %3092 = vmatpush1.bf16.msra.mxu0 %v2658
        %3093 = vmatprep.subr.bf16.mxu0 0
        %3094 = vmatpush1.bf16.msra.mxu0 %v2659
        %3095 = vmatprep.subr.bf16.mxu0 0
        %3096 = vmatpush1.bf16.msra.mxu0 %v2660
        %3097 = vmatprep.subr.bf16.mxu0 0
        %3098 = vmatpush1.bf16.msra.mxu0 %v2661
        %3099 = vmatprep.subr.bf16.mxu0 0
        %3100 = vmatpush1.bf16.msra.mxu0 %v2662
        %3101 = vmatprep.subr.bf16.mxu0 0
        %3102 = vmatpush1.bf16.msra.mxu0 %v2663
        %3103 = vmatprep.subr.bf16.mxu0 0
        %3104 = vmatpush1.bf16.msra.mxu0 %v2664
        %3105 = vmatprep.subr.bf16.mxu0 0
        %3106 = vmatpush1.bf16.msra.mxu0 %v2665
        %3107 = vmatprep.subr.bf16.mxu0 0
        %3108 = vmatpush1.bf16.msra.mxu0 %v2666
        %3109 = vmatprep.subr.bf16.mxu0 0
        %3110 = vmatpush1.bf16.msra.mxu0 %v2667
        %3111 = vmatprep.subr.bf16.mxu0 0
        %3112 = vmatpush1.bf16.msra.mxu0 %v2668
        %3113 = vmatprep.subr.bf16.mxu0 0
        %3114 = vmatpush1.bf16.msra.mxu0 %v2669
        %3115 = vmatprep.subr.bf16.mxu0 0
        %3116 = vmatpush1.bf16.msra.mxu0 %v2670
        %3117 = vmatprep.subr.bf16.mxu0 0
        %3118 = vmatpush1.bf16.msra.mxu0 %v2671
        %3119 = vmatprep.mubr.bf16.mxu0 %v2025
        %3120 = vmatmul.mubr.bf16.gmra.mrb[0].mxu0 %v2024
        %v3121 = vpop.f32.mrb[0].mxu0
        %v3122 = vadd.f32 %v3081, %v3121
        %v3123 = vpop.f32.mrb[0].mxu0
        %v3124 = vpop.f32.mrb[0].mxu0
        %v3125 = vadd.f32 %v3084, %v3124
        %v3126 = vpop.f32.mrb[0].mxu0
        %3127 = vdwg.mxu0
        %v3128 = vadd.f32 %v999, %v3122
        %v3129 = vadd.f32 %v1000, %v3125
        %v3130 = vld [vmem:[%s11] sm:$0x1]
        %v3131 = vld [vmem:[%s12] sm:$0x1]
        %v3132 = vsel %vm545, %v3128, 0.0
        %3133 = vadd.xlane.f32.xlu0 %v3132
        %v3134 = vpop.xlane.xlu0 %3133
        %v3135 = vsel %vm545, %v3129, 0.0
        %3136 = vadd.xlane.f32.xlu0 %v3135
        %v3137 = vpop.xlane.xlu0 %3136
        %v3138 = vmul.f32 %v3134, %v964
        %v3139 = vmul.f32 %v3137, %v964
        %v3140 = vsub.f32 %v3128, %v3138
        %v3141 = vsub.f32 %v3129, %v3139
        %v3142 = vmul.f32 %v3140, %v3140
        %v3143 = vmul.f32 %v3141, %v3141
        %v3144 = vsel %vm545, %v3142, 0.0
        %3145 = vadd.xlane.f32.xlu0 %v3144
        %v3146 = vpop.xlane.xlu0 %3145
        %v3147 = vsel %vm545, %v3143, 0.0
        %3148 = vadd.xlane.f32.xlu0 %v3147
        %v3149 = vpop.xlane.xlu0 %3148
        %v3150 = vmul.f32 %v3146, %v964
        %v3151 = vmul.f32 %v3149, %v964
        %v3152 = vadd.f32 %v3150, 1e-05
        %v3153 = vadd.f32 %v3151, 1e-05
        %v3154 = vrsqrt.pop %v3152
        %v3155 = vrsqrt.pop %v3153
        %v3156 = vmul.f32 %v3140, %v3154
        %v3157 = vmul.f32 %v3141, %v3155
        %v3159 = vlaneseq
        %v3160 = vshrl.u32 %v3159, 7
        %v3161 = vsub.s32 0, %v3160
        %v3162 = vrot.slane %v3130, %v3161
        %v3164 = vmul.f32 %v3156, %v3162
        %v3165 = vmul.f32 %v3157, %v3162
        %v3167 = vlaneseq
        %v3168 = vshrl.u32 %v3167, 7
        %v3169 = vsub.s32 0, %v3168
        %v3170 = vrot.slane %v3131, %v3169
        %v3172 = vadd.f32 %v3164, %v3170
        %v3173 = vadd.f32 %v3165, %v3170
        %s3174 = scalar_lea.vmem %s1, 20
        %v3175 = vld [vmem:[%s3174] sm:$0xf]
        %v3176 = vld [vmem:[%s3174 + $0x4] sm:$0xf]
        %v3177 = vld [vmem:[%s3174 + $0x8] sm:$0xf]
        %v3178 = vld [vmem:[%s3174 + $0xc] sm:$0xf]
        %v3179 = vld [vmem:[%s3174 + $0x10] sm:$0xf]
        %s3180 = scalar_lea.vmem %s2, 1
        %v3181 = vld [vmem:[%s3180] sm:$0x1]
        %v3182 = vpack.c.bf16 %v3173, %v3172
        %v3184 = vlaneseq
        %v3185 = vshrl.u32 %v3184, 7
        %v3186 = vsub.s32 0, %v3185
        %v3187 = vrot.slane %v3181, %v3186
        %v3194 = vunpack.c.l.b16 %v3175
        %v3195 = vunpack.c.l.b16 %v3176
        %v3196 = vunpack.c.l.b16 %v3177
        %v3197 = vunpack.c.l.b16 %v3178
        %v3198 = vunpack.c.l.b16 %v3179
        %v3199 = vpack.c.b16 %v3195, %v3194
        %v3200 = vpack.c.b16 %v3197, %v3196
        %v3201 = vpack.c.b16 %v3198, %v3198
        %v3205 = vsel %vm545, %v3182, 0
        %v3208 = vsel %vm549, %v3201, 0
        %3210 = vmatprep.subr.bf16.mxu0 0
        %3211 = vmatpush1.bf16.msra.mxu0 %v3199
        %3212 = vmatprep.subr.bf16.mxu0 0
        %3213 = vmatpush1.bf16.msra.mxu0 %v3200
        %3214 = vmatprep.subr.bf16.mxu0 0
        %3215 = vmatpush1.bf16.msra.mxu0 %v3208
        %3216 = vmatprep.subr.bf16.mxu0 0
        %3217 = vmatpush1.bf16.msra.mxu0 0
        %3218 = vmatprep.subr.bf16.mxu0 0
        %3219 = vmatpush1.bf16.msra.mxu0 0
        %3220 = vmatprep.subr.bf16.mxu0 0
        %3221 = vmatpush1.bf16.msra.mxu0 0
        %3222 = vmatprep.subr.bf16.mxu0 0
        %3223 = vmatpush1.bf16.msra.mxu0 0
        %3224 = vmatprep.subr.bf16.mxu0 0
        %3225 = vmatpush1.bf16.msra.mxu0 0
        %3226 = vmatprep.subr.bf16.mxu0 0
        %3227 = vmatpush1.bf16.msra.mxu0 0
        %3228 = vmatprep.subr.bf16.mxu0 0
        %3229 = vmatpush1.bf16.msra.mxu0 0
        %3230 = vmatprep.subr.bf16.mxu0 0
        %3231 = vmatpush1.bf16.msra.mxu0 0
        %3232 = vmatprep.subr.bf16.mxu0 0
        %3233 = vmatpush1.bf16.msra.mxu0 0
        %3234 = vmatprep.subr.bf16.mxu0 0
        %3235 = vmatpush1.bf16.msra.mxu0 0
        %3236 = vmatprep.subr.bf16.mxu0 0
        %3237 = vmatpush1.bf16.msra.mxu0 0
        %3238 = vmatprep.subr.bf16.mxu0 0
        %3239 = vmatpush1.bf16.msra.mxu0 0
        %3240 = vmatprep.subr.bf16.mxu0 0
        %3241 = vmatpush1.bf16.msra.mxu0 0
        %3242 = vmatprep.mubr.bf16.mxu0 0
        %3243 = vmatmul.mubr.bf16.gmra.mrb[0].mxu0 %v3205
        %v3244 = vpop.f32.mrb[0].mxu0
        %v3245 = vadd.f32 %v3187, %v3244
        %v3246 = vpop.f32.mrb[0].mxu0
        %v3247 = vpop.f32.mrb[0].mxu0
        %v3248 = vadd.f32 %v3187, %v3247
        %v3249 = vpop.f32.mrb[0].mxu0
        %3250 = vdwg.mxu0
        %v3251 = vmul.f32 %v3245, %v501
        %v3252 = vmul.f32 %v3248, %v501
        %v3253 = vmul.f32 %v3245, %v506
        %v3254 = vmul.f32 %v3248, %v506
        %v3255 = vmul.f32 %v3245, %v511
        %v3256 = vmul.f32 %v3248, %v511
        %v3257 = vmul.f32 %v3245, %v516
        %v3258 = vmul.f32 %v3248, %v516
        %v3259 = vpack.c.bf16 %v3252, %v3251
        %v3260 = vpack.c.bf16 %v3254, %v3253
        %v3261 = vpack.c.bf16 %v3256, %v3255
        %v3262 = vpack.c.bf16 %v3258, %v3257
        %v3263 = vpack.c.bf16 %v3248, %v3245
        %3265 = vrot.lane.b32.xlu0 %v3263, 88
        %v3266 = vpop.permute.xlu0 %3265
        %v3268 = vsel %vm545, %v3259, 0
        %v3271 = vsel %vm545, %v3260, 0
        %v3274 = vsel %vm545, %v3261, 0
        %v3277 = vsel %vm545, %v3262, 0
        %v3280 = vsel %vm545, %v3266, 0
        %3282 = vmatprep.subr.bf16.mxu0 0
        %3283 = vmatpush1.bf16.xpose.msra.mxu0 %v3280
        %3284 = vmatprep.subr.bf16.mxu0 0
        %3285 = vmatpush1.bf16.xpose.msra.mxu0 0
        %3286 = vmatprep.subr.bf16.mxu0 0
        %3287 = vmatpush1.bf16.xpose.msra.mxu0 0
        %3288 = vmatprep.subr.bf16.mxu0 0
        %3289 = vmatpush1.bf16.xpose.msra.mxu0 0
        %3290 = vmatprep.subr.bf16.mxu0 0
        %3291 = vmatpush1.bf16.xpose.msra.mxu0 0
        %3292 = vmatprep.subr.bf16.mxu0 0
        %3293 = vmatpush1.bf16.xpose.msra.mxu0 0
        %3294 = vmatprep.subr.bf16.mxu0 0
        %3295 = vmatpush1.bf16.xpose.msra.mxu0 0
        %3296 = vmatprep.subr.bf16.mxu0 0
        %3297 = vmatpush1.bf16.xpose.msra.mxu0 0
        %3298 = vmatprep.subr.bf16.mxu0 0
        %3299 = vmatpush1.bf16.xpose.msra.mxu0 0
        %3300 = vmatprep.subr.bf16.mxu0 0
        %3301 = vmatpush1.bf16.xpose.msra.mxu0 0
        %3302 = vmatprep.subr.bf16.mxu0 0
        %3303 = vmatpush1.bf16.xpose.msra.mxu0 0
        %3304 = vmatprep.subr.bf16.mxu0 0
        %3305 = vmatpush1.bf16.xpose.msra.mxu0 0
        %3306 = vmatprep.subr.bf16.mxu0 0
        %3307 = vmatpush1.bf16.xpose.msra.mxu0 0
        %3308 = vmatprep.subr.bf16.mxu0 0
        %3309 = vmatpush1.bf16.xpose.msra.mxu0 0
        %3310 = vmatprep.subr.bf16.mxu0 0
        %3311 = vmatpush1.bf16.xpose.msra.mxu0 0
        %3312 = vmatprep.subr.bf16.mxu0 0
        %3313 = vmatpush1.bf16.xpose.msra.mxu0 0
        %3314 = vmatprep.mubr.bf16.mxu0 0
        %3315 = vmatmul.mubr.bf16.gmra.mrb[0].mxu0 %v3268
        %v3316 = vpop.f32.mrb[0].mxu0
        %v3317 = vadd.f32 0.0, %v3316
        %v3318 = vpop.f32.mrb[0].mxu0
        %v3319 = vpop.f32.mrb[0].mxu0
        %v3320 = vadd.f32 0.0, %v3319
        %v3321 = vpop.f32.mrb[0].mxu0
        %3322 = vmatprep.mubr.bf16.mxu0 0
        %3323 = vmatmul.mubr.bf16.gmra.mrb[0].mxu0 %v3271
        %v3324 = vpop.f32.mrb[0].mxu0
        %v3325 = vadd.f32 0.0, %v3324
        %v3326 = vpop.f32.mrb[0].mxu0
        %v3327 = vpop.f32.mrb[0].mxu0
        %v3328 = vadd.f32 0.0, %v3327
        %v3329 = vpop.f32.mrb[0].mxu0
        %3330 = vmatprep.mubr.bf16.mxu0 0
        %3331 = vmatmul.mubr.bf16.gmra.mrb[0].mxu0 %v3274
        %v3332 = vpop.f32.mrb[0].mxu0
        %v3333 = vadd.f32 0.0, %v3332
        %v3334 = vpop.f32.mrb[0].mxu0
        %v3335 = vpop.f32.mrb[0].mxu0
        %v3336 = vadd.f32 0.0, %v3335
        %v3337 = vpop.f32.mrb[0].mxu0
        %3338 = vmatprep.mubr.bf16.mxu0 0
        %3339 = vmatmul.mubr.bf16.gmra.mrb[0].mxu0 %v3277
        %v3340 = vpop.f32.mrb[0].mxu0
        %v3341 = vadd.f32 0.0, %v3340
        %v3342 = vpop.f32.mrb[0].mxu0
        %v3343 = vpop.f32.mrb[0].mxu0
        %v3344 = vadd.f32 0.0, %v3343
        %v3345 = vpop.f32.mrb[0].mxu0
        %3346 = vdwg.mxu0
        %v3347 = vsel %vm690, %v3317, -inf
        %3348 = vmax.xlane.f32.xlu0 %v3347
        %v3349 = vpop.xlane.xlu0 %3348
        %v3350 = vsel %vm690, %v3320, -inf
        %3351 = vmax.xlane.f32.xlu0 %v3350
        %v3352 = vpop.xlane.xlu0 %3351
        %v3353 = vsel %vm690, %v3325, -inf
        %3354 = vmax.xlane.f32.xlu0 %v3353
        %v3355 = vpop.xlane.xlu0 %3354
        %v3356 = vsel %vm690, %v3328, -inf
        %3357 = vmax.xlane.f32.xlu0 %v3356
        %v3358 = vpop.xlane.xlu0 %3357
        %v3359 = vsel %vm690, %v3333, -inf
        %3360 = vmax.xlane.f32.xlu0 %v3359
        %v3361 = vpop.xlane.xlu0 %3360
        %v3362 = vsel %vm690, %v3336, -inf
        %3363 = vmax.xlane.f32.xlu0 %v3362
        %v3364 = vpop.xlane.xlu0 %3363
        %v3365 = vsel %vm690, %v3341, -inf
        %3366 = vmax.xlane.f32.xlu0 %v3365
        %v3367 = vpop.xlane.xlu0 %3366
        %v3368 = vsel %vm690, %v3344, -inf
        %3369 = vmax.xlane.f32.xlu0 %v3368
        %v3370 = vpop.xlane.xlu0 %3369
        %v3371 = vsub.f32 %v3317, %v3349
        %v3372 = vsub.f32 %v3320, %v3352
        %v3373 = vsub.f32 %v3325, %v3355
        %v3374 = vsub.f32 %v3328, %v3358
        %v3375 = vsub.f32 %v3333, %v3361
        %v3376 = vsub.f32 %v3336, %v3364
        %v3377 = vsub.f32 %v3341, %v3367
        %v3378 = vsub.f32 %v3344, %v3370
        %v3379 = vmul.f32 %v3371, 1.442695
        %v3380 = vpow.pop %v3379
        %v3381 = vmul.f32 %v3372, 1.442695
        %v3382 = vpow.pop %v3381
        %v3383 = vmul.f32 %v3373, 1.442695
        %v3384 = vpow.pop %v3383
        %v3385 = vmul.f32 %v3374, 1.442695
        %v3386 = vpow.pop %v3385
        %v3387 = vmul.f32 %v3375, 1.442695
        %v3388 = vpow.pop %v3387
        %v3389 = vmul.f32 %v3376, 1.442695
        %v3390 = vpow.pop %v3389
        %v3391 = vmul.f32 %v3377, 1.442695
        %v3392 = vpow.pop %v3391
        %v3393 = vmul.f32 %v3378, 1.442695
        %v3394 = vpow.pop %v3393
        %v3395 = vsel %vm690, %v3380, 0.0
        %3396 = vadd.xlane.f32.xlu0 %v3395
        %v3397 = vpop.xlane.xlu0 %3396
        %v3398 = vsel %vm690, %v3382, 0.0
        %3399 = vadd.xlane.f32.xlu0 %v3398
        %v3400 = vpop.xlane.xlu0 %3399
        %v3401 = vsel %vm690, %v3384, 0.0
        %3402 = vadd.xlane.f32.xlu0 %v3401
        %v3403 = vpop.xlane.xlu0 %3402
        %v3404 = vsel %vm690, %v3386, 0.0
        %3405 = vadd.xlane.f32.xlu0 %v3404
        %v3406 = vpop.xlane.xlu0 %3405
        %v3407 = vsel %vm690, %v3388, 0.0
        %3408 = vadd.xlane.f32.xlu0 %v3407
        %v3409 = vpop.xlane.xlu0 %3408
        %v3410 = vsel %vm690, %v3390, 0.0
        %3411 = vadd.xlane.f32.xlu0 %v3410
        %v3412 = vpop.xlane.xlu0 %3411
        %v3413 = vsel %vm690, %v3392, 0.0
        %3414 = vadd.xlane.f32.xlu0 %v3413
        %v3415 = vpop.xlane.xlu0 %3414
        %v3416 = vsel %vm690, %v3394, 0.0
        %3417 = vadd.xlane.f32.xlu0 %v3416
        %v3418 = vpop.xlane.xlu0 %3417
        %v3419 = vrcp.pop %v3397
        %v3420 = vrcp.pop %v3400
        %v3421 = vrcp.pop %v3403
        %v3422 = vrcp.pop %v3406
        %v3423 = vrcp.pop %v3409
        %v3424 = vrcp.pop %v3412
        %v3425 = vrcp.pop %v3415
        %v3426 = vrcp.pop %v3418
        %v3427 = vmul.f32 %v3380, %v3419
        %v3428 = vmul.f32 %v3382, %v3420
        %v3429 = vmul.f32 %v3384, %v3421
        %v3430 = vmul.f32 %v3386, %v3422
        %v3431 = vmul.f32 %v3388, %v3423
        %v3432 = vmul.f32 %v3390, %v3424
        %v3433 = vmul.f32 %v3392, %v3425
        %v3434 = vmul.f32 %v3394, %v3426
        %v3435 = vpack.c.bf16 %v3428, %v3427
        %v3436 = vpack.c.bf16 %v3430, %v3429
        %v3437 = vpack.c.bf16 %v3432, %v3431
        %v3438 = vpack.c.bf16 %v3434, %v3433
        %3439 = vrot.lane.b32.xlu0 %v3263, 48
        %v3440 = vpop.permute.xlu0 %3439
        %v3443 = vsel %vm690, %v3435, 0
        %v3446 = vsel %vm690, %v3436, 0
        %v3449 = vsel %vm690, %v3437, 0
        %v3452 = vsel %vm690, %v3438, 0
        %3454 = vmatprep.subr.bf16.mxu0 0
        %3455 = vmatpush1.bf16.msra.mxu0 %v3440
        %3456 = vmatprep.subr.bf16.mxu0 0
        %3457 = vmatpush1.bf16.msra.mxu0 0
        %3458 = vmatprep.subr.bf16.mxu0 0
        %3459 = vmatpush1.bf16.msra.mxu0 0
        %3460 = vmatprep.subr.bf16.mxu0 0
        %3461 = vmatpush1.bf16.msra.mxu0 0
        %3462 = vmatprep.subr.bf16.mxu0 0
        %3463 = vmatpush1.bf16.msra.mxu0 0
        %3464 = vmatprep.subr.bf16.mxu0 0
        %3465 = vmatpush1.bf16.msra.mxu0 0
        %3466 = vmatprep.subr.bf16.mxu0 0
        %3467 = vmatpush1.bf16.msra.mxu0 0
        %3468 = vmatprep.subr.bf16.mxu0 0
        %3469 = vmatpush1.bf16.msra.mxu0 0
        %3470 = vmatprep.subr.bf16.mxu0 0
        %3471 = vmatpush1.bf16.msra.mxu0 0
        %3472 = vmatprep.subr.bf16.mxu0 0
        %3473 = vmatpush1.bf16.msra.mxu0 0
        %3474 = vmatprep.subr.bf16.mxu0 0
        %3475 = vmatpush1.bf16.msra.mxu0 0
        %3476 = vmatprep.subr.bf16.mxu0 0
        %3477 = vmatpush1.bf16.msra.mxu0 0
        %3478 = vmatprep.subr.bf16.mxu0 0
        %3479 = vmatpush1.bf16.msra.mxu0 0
        %3480 = vmatprep.subr.bf16.mxu0 0
        %3481 = vmatpush1.bf16.msra.mxu0 0
        %3482 = vmatprep.subr.bf16.mxu0 0
        %3483 = vmatpush1.bf16.msra.mxu0 0
        %3484 = vmatprep.subr.bf16.mxu0 0
        %3485 = vmatpush1.bf16.msra.mxu0 0
        %3486 = vmatprep.mubr.bf16.mxu0 0
        %3487 = vmatmul.mubr.bf16.gmra.mrb[0].mxu0 %v3443
        %v3488 = vpop.f32.mrb[0].mxu0
        %v3489 = vadd.f32 0.0, %v3488
        %v3490 = vpop.f32.mrb[0].mxu0
        %v3491 = vpop.f32.mrb[0].mxu0
        %v3492 = vadd.f32 0.0, %v3491
        %v3493 = vpop.f32.mrb[0].mxu0
        %3494 = vmatprep.mubr.bf16.mxu0 0
        %3495 = vmatmul.mubr.bf16.gmra.mrb[0].mxu0 %v3446
        %v3496 = vpop.f32.mrb[0].mxu0
        %v3497 = vadd.f32 0.0, %v3496
        %v3498 = vpop.f32.mrb[0].mxu0
        %v3499 = vpop.f32.mrb[0].mxu0
        %v3500 = vadd.f32 0.0, %v3499
        %v3501 = vpop.f32.mrb[0].mxu0
        %3502 = vmatprep.mubr.bf16.mxu0 0
        %3503 = vmatmul.mubr.bf16.gmra.mrb[0].mxu0 %v3449
        %v3504 = vpop.f32.mrb[0].mxu0
        %v3505 = vadd.f32 0.0, %v3504
        %v3506 = vpop.f32.mrb[0].mxu0
        %v3507 = vpop.f32.mrb[0].mxu0
        %v3508 = vadd.f32 0.0, %v3507
        %v3509 = vpop.f32.mrb[0].mxu0
        %3510 = vmatprep.mubr.bf16.mxu0 0
        %3511 = vmatmul.mubr.bf16.gmra.mrb[0].mxu0 %v3452
        %v3512 = vpop.f32.mrb[0].mxu0
        %v3513 = vadd.f32 0.0, %v3512
        %v3514 = vpop.f32.mrb[0].mxu0
        %v3515 = vpop.f32.mrb[0].mxu0
        %v3516 = vadd.f32 0.0, %v3515
        %v3517 = vpop.f32.mrb[0].mxu0
        %3518 = vdwg.mxu0
        %v3519 = vmul.f32 %v3489, %v501
        %v3520 = vmul.f32 %v3492, %v501
        %v3521 = vadd.f32 %v3519, 0.0
        %v3522 = vadd.f32 %v3520, 0.0
        %v3523 = vmul.f32 %v3497, %v506
        %v3524 = vmul.f32 %v3500, %v506
        %v3525 = vadd.f32 %v3521, %v3523
        %v3526 = vadd.f32 %v3522, %v3524
        %v3527 = vmul.f32 %v3505, %v511
        %v3528 = vmul.f32 %v3508, %v511
        %v3529 = vadd.f32 %v3525, %v3527
        %v3530 = vadd.f32 %v3526, %v3528
        %v3531 = vmul.f32 %v3513, %v516
        %v3532 = vmul.f32 %v3516, %v516
        %v3533 = vadd.f32 %v3529, %v3531
        %v3534 = vadd.f32 %v3530, %v3532
        %s3535 = scalar_lea.vmem %s3, 20
        %v3536 = vld [vmem:[%s3535] sm:$0xf]
        %v3537 = vld [vmem:[%s3535 + $0x4] sm:$0xf]
        %v3538 = vld [vmem:[%s3535 + $0x8] sm:$0xf]
        %v3539 = vld [vmem:[%s3535 + $0xc] sm:$0xf]
        %v3540 = vld [vmem:[%s3535 + $0x10] sm:$0xf]
        %s3541 = scalar_lea.vmem %s4, 1
        %v3542 = vld [vmem:[%s3541] sm:$0x1]
        %v3543 = vpack.c.bf16 %v3534, %v3533
        %v3545 = vlaneseq
        %v3546 = vshrl.u32 %v3545, 7
        %v3547 = vsub.s32 0, %v3546
        %v3548 = vrot.slane %v3542, %v3547
        %v3555 = vunpack.c.l.b16 %v3536
        %v3556 = vunpack.c.l.b16 %v3537
        %v3557 = vunpack.c.l.b16 %v3538
        %v3558 = vunpack.c.l.b16 %v3539
        %v3559 = vunpack.c.l.b16 %v3540
        %v3560 = vpack.c.b16 %v3556, %v3555
        %v3561 = vpack.c.b16 %v3558, %v3557
        %v3562 = vpack.c.b16 %v3559, %v3559
        %v3566 = vsel %vm545, %v3543, 0
        %v3569 = vsel %vm549, %v3562, 0
        %3571 = vmatprep.subr.bf16.mxu0 0
        %3572 = vmatpush1.bf16.msra.mxu0 %v3560
        %3573 = vmatprep.subr.bf16.mxu0 0
        %3574 = vmatpush1.bf16.msra.mxu0 %v3561
        %3575 = vmatprep.subr.bf16.mxu0 0
        %3576 = vmatpush1.bf16.msra.mxu0 %v3569
        %3577 = vmatprep.subr.bf16.mxu0 0
        %3578 = vmatpush1.bf16.msra.mxu0 0
        %3579 = vmatprep.subr.bf16.mxu0 0
        %3580 = vmatpush1.bf16.msra.mxu0 0
        %3581 = vmatprep.subr.bf16.mxu0 0
        %3582 = vmatpush1.bf16.msra.mxu0 0
        %3583 = vmatprep.subr.bf16.mxu0 0
        %3584 = vmatpush1.bf16.msra.mxu0 0
        %3585 = vmatprep.subr.bf16.mxu0 0
        %3586 = vmatpush1.bf16.msra.mxu0 0
        %3587 = vmatprep.subr.bf16.mxu0 0
        %3588 = vmatpush1.bf16.msra.mxu0 0
        %3589 = vmatprep.subr.bf16.mxu0 0
        %3590 = vmatpush1.bf16.msra.mxu0 0
        %3591 = vmatprep.subr.bf16.mxu0 0
        %3592 = vmatpush1.bf16.msra.mxu0 0
        %3593 = vmatprep.subr.bf16.mxu0 0
        %3594 = vmatpush1.bf16.msra.mxu0 0
        %3595 = vmatprep.subr.bf16.mxu0 0
        %3596 = vmatpush1.bf16.msra.mxu0 0
        %3597 = vmatprep.subr.bf16.mxu0 0
        %3598 = vmatpush1.bf16.msra.mxu0 0
        %3599 = vmatprep.subr.bf16.mxu0 0
        %3600 = vmatpush1.bf16.msra.mxu0 0
        %3601 = vmatprep.subr.bf16.mxu0 0
        %3602 = vmatpush1.bf16.msra.mxu0 0
        %3603 = vmatprep.mubr.bf16.mxu0 0
        %3604 = vmatmul.mubr.bf16.gmra.mrb[0].mxu0 %v3566
        %v3605 = vpop.f32.mrb[0].mxu0
        %v3606 = vadd.f32 %v3548, %v3605
        %v3607 = vpop.f32.mrb[0].mxu0
        %v3608 = vpop.f32.mrb[0].mxu0
        %v3609 = vadd.f32 %v3548, %v3608
        %v3610 = vpop.f32.mrb[0].mxu0
        %3611 = vdwg.mxu0
        %v3612 = vadd.f32 %v3172, %v3606
        %v3613 = vadd.f32 %v3173, %v3609
        %s3614 = scalar_lea.vmem %s5, 1
        %v3615 = vld [vmem:[%s3614] sm:$0x1]
        %s3616 = scalar_lea.vmem %s6, 1
        %v3617 = vld [vmem:[%s3616] sm:$0x1]
        %v3618 = vsel %vm545, %v3612, 0.0
        %3619 = vadd.xlane.f32.xlu0 %v3618
        %v3620 = vpop.xlane.xlu0 %3619
        %v3621 = vsel %vm545, %v3613, 0.0
        %3622 = vadd.xlane.f32.xlu0 %v3621
        %v3623 = vpop.xlane.xlu0 %3622
        %v3624 = vmul.f32 %v3620, %v964
        %v3625 = vmul.f32 %v3623, %v964
        %v3626 = vsub.f32 %v3612, %v3624
        %v3627 = vsub.f32 %v3613, %v3625
        %v3628 = vmul.f32 %v3626, %v3626
        %v3629 = vmul.f32 %v3627, %v3627
        %v3630 = vsel %vm545, %v3628, 0.0
        %3631 = vadd.xlane.f32.xlu0 %v3630
        %v3632 = vpop.xlane.xlu0 %3631
        %v3633 = vsel %vm545, %v3629, 0.0
        %3634 = vadd.xlane.f32.xlu0 %v3633
        %v3635 = vpop.xlane.xlu0 %3634
        %v3636 = vmul.f32 %v3632, %v964
        %v3637 = vmul.f32 %v3635, %v964
        %v3638 = vadd.f32 %v3636, 1e-05
        %v3639 = vadd.f32 %v3637, 1e-05
        %v3640 = vrsqrt.pop %v3638
        %v3641 = vrsqrt.pop %v3639
        %v3642 = vmul.f32 %v3626, %v3640
        %v3643 = vmul.f32 %v3627, %v3641
        %v3645 = vlaneseq
        %v3646 = vshrl.u32 %v3645, 7
        %v3647 = vsub.s32 0, %v3646
        %v3648 = vrot.slane %v3615, %v3647
        %v3650 = vmul.f32 %v3642, %v3648
        %v3651 = vmul.f32 %v3643, %v3648
        %v3653 = vlaneseq
        %v3654 = vshrl.u32 %v3653, 7
        %v3655 = vsub.s32 0, %v3654
        %v3656 = vrot.slane %v3617, %v3655
        %v3658 = vadd.f32 %v3650, %v3656
        %v3659 = vadd.f32 %v3651, %v3656
        %s3660 = scalar_lea.vmem %s7, 320
        %v3661 = vld [vmem:[%s3660] sm:$0xff]
        %v3662 = vld [vmem:[%s3660 + $0x8] sm:$0xff]
        %v3663 = vld [vmem:[%s3660 + $0x10] sm:$0xff]
        %v3664 = vld [vmem:[%s3660 + $0x18] sm:$0xff]
        %v3665 = vld [vmem:[%s3660 + $0x20] sm:$0xff]
        %v3666 = vld [vmem:[%s3660 + $0x28] sm:$0xff]
        %v3667 = vld [vmem:[%s3660 + $0x30] sm:$0xff]
        %v3668 = vld [vmem:[%s3660 + $0x38] sm:$0xff]
        %v3669 = vld [vmem:[%s3660 + $0x40] sm:$0xff]
        %v3670 = vld [vmem:[%s3660 + $0x48] sm:$0xff]
        %v3671 = vld [vmem:[%s3660 + $0x50] sm:$0xff]
        %v3672 = vld [vmem:[%s3660 + $0x58] sm:$0xff]
        %v3673 = vld [vmem:[%s3660 + $0x60] sm:$0xff]
        %v3674 = vld [vmem:[%s3660 + $0x68] sm:$0xff]
        %v3675 = vld [vmem:[%s3660 + $0x70] sm:$0xff]
        %v3676 = vld [vmem:[%s3660 + $0x78] sm:$0xff]
        %v3677 = vld [vmem:[%s3660 + $0x80] sm:$0xff]
        %v3678 = vld [vmem:[%s3660 + $0x88] sm:$0xff]
        %v3679 = vld [vmem:[%s3660 + $0x90] sm:$0xff]
        %v3680 = vld [vmem:[%s3660 + $0x98] sm:$0xff]
        %v3681 = vld [vmem:[%s3660 + $0xa0] sm:$0xff]
        %v3682 = vld [vmem:[%s3660 + $0xa8] sm:$0xff]
        %v3683 = vld [vmem:[%s3660 + $0xb0] sm:$0xff]
        %v3684 = vld [vmem:[%s3660 + $0xb8] sm:$0xff]
        %v3685 = vld [vmem:[%s3660 + $0xc0] sm:$0xff]
        %v3686 = vld [vmem:[%s3660 + $0xc8] sm:$0xff]
        %v3687 = vld [vmem:[%s3660 + $0xd0] sm:$0xff]
        %v3688 = vld [vmem:[%s3660 + $0xd8] sm:$0xff]
        %v3689 = vld [vmem:[%s3660 + $0xe0] sm:$0xff]
        %v3690 = vld [vmem:[%s3660 + $0xe8] sm:$0xff]
        %v3691 = vld [vmem:[%s3660 + $0xf0] sm:$0xff]
        %v3692 = vld [vmem:[%s3660 + $0xf8] sm:$0xff]
        %v3693 = vld [vmem:[%s3660 + $0x100] sm:$0xff]
        %v3694 = vld [vmem:[%s3660 + $0x108] sm:$0xff]
        %v3695 = vld [vmem:[%s3660 + $0x110] sm:$0xff]
        %v3696 = vld [vmem:[%s3660 + $0x118] sm:$0xff]
        %v3697 = vld [vmem:[%s3660 + $0x120] sm:$0xff]
        %v3698 = vld [vmem:[%s3660 + $0x128] sm:$0xff]
        %v3699 = vld [vmem:[%s3660 + $0x130] sm:$0xff]
        %v3700 = vld [vmem:[%s3660 + $0x138] sm:$0xff]
        %s3701 = scalar_lea.vmem %s8, 16
        %v3702 = vld [vmem:[%s3701] sm:$0xff]
        %v3703 = vld [vmem:[%s3701 + $0x8] sm:$0xff]
        %v3704 = vpack.c.bf16 %v3659, %v3658
        %v3707 = vlaneseq
        %v3708 = vshrl.u32 %v3707, 7
        %v3709 = vsub.s32 0, %v3708
        %v3710 = vrot.slane %v3702, %v3709
        %v3711 = vlaneseq
        %v3712 = vshrl.u32 %v3711, 7
        %v3713 = vsub.s32 1, %v3712
        %v3714 = vrot.slane %v3702, %v3713
        %v3715 = vlaneseq
        %v3716 = vshrl.u32 %v3715, 7
        %v3717 = vsub.s32 2, %v3716
        %v3718 = vrot.slane %v3702, %v3717
        %v3719 = vlaneseq
        %v3720 = vshrl.u32 %v3719, 7
        %v3721 = vsub.s32 3, %v3720
        %v3722 = vrot.slane %v3702, %v3721
        %v3723 = vlaneseq
        %v3724 = vshrl.u32 %v3723, 7
        %v3725 = vsub.s32 4, %v3724
        %v3726 = vrot.slane %v3702, %v3725
        %v3727 = vlaneseq
        %v3728 = vshrl.u32 %v3727, 7
        %v3729 = vsub.s32 5, %v3728
        %v3730 = vrot.slane %v3702, %v3729
        %v3731 = vlaneseq
        %v3732 = vshrl.u32 %v3731, 7
        %v3733 = vsub.s32 6, %v3732
        %v3734 = vrot.slane %v3702, %v3733
        %v3735 = vlaneseq
        %v3736 = vshrl.u32 %v3735, 7
        %v3737 = vsub.s32 7, %v3736
        %v3738 = vrot.slane %v3702, %v3737
        %v3739 = vlaneseq
        %v3740 = vshrl.u32 %v3739, 7
        %v3741 = vsub.s32 0, %v3740
        %v3742 = vrot.slane %v3703, %v3741
        %v3743 = vlaneseq
        %v3744 = vshrl.u32 %v3743, 7
        %v3745 = vsub.s32 1, %v3744
        %v3746 = vrot.slane %v3703, %v3745
        %v3747 = vlaneseq
        %v3748 = vshrl.u32 %v3747, 7
        %v3749 = vsub.s32 2, %v3748
        %v3750 = vrot.slane %v3703, %v3749
        %v3751 = vlaneseq
        %v3752 = vshrl.u32 %v3751, 7
        %v3753 = vsub.s32 3, %v3752
        %v3754 = vrot.slane %v3703, %v3753
        %v3755 = vlaneseq
        %v3756 = vshrl.u32 %v3755, 7
        %v3757 = vsub.s32 4, %v3756
        %v3758 = vrot.slane %v3703, %v3757
        %v3759 = vlaneseq
        %v3760 = vshrl.u32 %v3759, 7
        %v3761 = vsub.s32 5, %v3760
        %v3762 = vrot.slane %v3703, %v3761
        %v3763 = vlaneseq
        %v3764 = vshrl.u32 %v3763, 7
        %v3765 = vsub.s32 6, %v3764
        %v3766 = vrot.slane %v3703, %v3765
        %v3767 = vlaneseq
        %v3768 = vshrl.u32 %v3767, 7
        %v3769 = vsub.s32 7, %v3768
        %v3770 = vrot.slane %v3703, %v3769
        %v3827 = vunpack.c.l.b16 %v3661
        %v3828 = vunpack.c.h.b16 %v3661
        %v3829 = vunpack.c.l.b16 %v3662
        %v3830 = vunpack.c.h.b16 %v3662
        %v3831 = vunpack.c.l.b16 %v3663
        %v3832 = vunpack.c.h.b16 %v3663
        %v3833 = vunpack.c.l.b16 %v3664
        %v3834 = vunpack.c.h.b16 %v3664
        %v3835 = vunpack.c.l.b16 %v3665
        %v3836 = vunpack.c.h.b16 %v3665
        %v3837 = vunpack.c.l.b16 %v3666
        %v3838 = vunpack.c.h.b16 %v3666
        %v3839 = vunpack.c.l.b16 %v3667
        %v3840 = vunpack.c.h.b16 %v3667
        %v3841 = vunpack.c.l.b16 %v3668
        %v3842 = vunpack.c.h.b16 %v3668
        %v3843 = vunpack.c.l.b16 %v3669
        %v3844 = vunpack.c.h.b16 %v3669
        %v3845 = vunpack.c.l.b16 %v3670
        %v3846 = vunpack.c.h.b16 %v3670
        %v3847 = vunpack.c.l.b16 %v3671
        %v3848 = vunpack.c.h.b16 %v3671
        %v3849 = vunpack.c.l.b16 %v3672
        %v3850 = vunpack.c.h.b16 %v3672
        %v3851 = vunpack.c.l.b16 %v3673
        %v3852 = vunpack.c.h.b16 %v3673
        %v3853 = vunpack.c.l.b16 %v3674
        %v3854 = vunpack.c.h.b16 %v3674
        %v3855 = vunpack.c.l.b16 %v3675
        %v3856 = vunpack.c.h.b16 %v3675
        %v3857 = vunpack.c.l.b16 %v3676
        %v3858 = vunpack.c.h.b16 %v3676
        %v3859 = vunpack.c.l.b16 %v3677
        %v3860 = vunpack.c.h.b16 %v3677
        %v3861 = vunpack.c.l.b16 %v3678
        %v3862 = vunpack.c.h.b16 %v3678
        %v3863 = vunpack.c.l.b16 %v3679
        %v3864 = vunpack.c.h.b16 %v3679
        %v3865 = vunpack.c.l.b16 %v3680
        %v3866 = vunpack.c.h.b16 %v3680
        %v3867 = vunpack.c.l.b16 %v3681
        %v3868 = vunpack.c.h.b16 %v3681
        %v3869 = vunpack.c.l.b16 %v3682
        %v3870 = vunpack.c.h.b16 %v3682
        %v3871 = vunpack.c.l.b16 %v3683
        %v3872 = vunpack.c.h.b16 %v3683
        %v3873 = vunpack.c.l.b16 %v3684
        %v3874 = vunpack.c.h.b16 %v3684
        %v3875 = vunpack.c.l.b16 %v3685
        %v3876 = vunpack.c.h.b16 %v3685
        %v3877 = vunpack.c.l.b16 %v3686
        %v3878 = vunpack.c.h.b16 %v3686
        %v3879 = vunpack.c.l.b16 %v3687
        %v3880 = vunpack.c.h.b16 %v3687
        %v3881 = vunpack.c.l.b16 %v3688
        %v3882 = vunpack.c.h.b16 %v3688
        %v3883 = vunpack.c.l.b16 %v3689
        %v3884 = vunpack.c.h.b16 %v3689
        %v3885 = vunpack.c.l.b16 %v3690
        %v3886 = vunpack.c.h.b16 %v3690
        %v3887 = vunpack.c.l.b16 %v3691
        %v3888 = vunpack.c.h.b16 %v3691
        %v3889 = vunpack.c.l.b16 %v3692
        %v3890 = vunpack.c.h.b16 %v3692
        %v3891 = vunpack.c.l.b16 %v3693
        %v3892 = vunpack.c.h.b16 %v3693
        %v3893 = vunpack.c.l.b16 %v3694
        %v3894 = vunpack.c.h.b16 %v3694
        %v3895 = vunpack.c.l.b16 %v3695
        %v3896 = vunpack.c.h.b16 %v3695
        %v3897 = vunpack.c.l.b16 %v3696
        %v3898 = vunpack.c.h.b16 %v3696
        %v3899 = vunpack.c.l.b16 %v3697
        %v3900 = vunpack.c.h.b16 %v3697
        %v3901 = vunpack.c.l.b16 %v3698
        %v3902 = vunpack.c.h.b16 %v3698
        %v3903 = vunpack.c.l.b16 %v3699
        %v3904 = vunpack.c.h.b16 %v3699
        %v3905 = vunpack.c.l.b16 %v3700
        %v3906 = vunpack.c.h.b16 %v3700
        %v3907 = vpack.c.b16 %v3843, %v3827
        %v3908 = vpack.c.b16 %v3844, %v3828
        %v3909 = vpack.c.b16 %v3845, %v3829
        %v3910 = vpack.c.b16 %v3846, %v3830
        %v3911 = vpack.c.b16 %v3847, %v3831
        %v3912 = vpack.c.b16 %v3848, %v3832
        %v3913 = vpack.c.b16 %v3849, %v3833
        %v3914 = vpack.c.b16 %v3850, %v3834
        %v3915 = vpack.c.b16 %v3851, %v3835
        %v3916 = vpack.c.b16 %v3852, %v3836
        %v3917 = vpack.c.b16 %v3853, %v3837
        %v3918 = vpack.c.b16 %v3854, %v3838
        %v3919 = vpack.c.b16 %v3855, %v3839
        %v3920 = vpack.c.b16 %v3856, %v3840
        %v3921 = vpack.c.b16 %v3857, %v3841
        %v3922 = vpack.c.b16 %v3858, %v3842
        %v3923 = vpack.c.b16 %v3875, %v3859
        %v3924 = vpack.c.b16 %v3876, %v3860
        %v3925 = vpack.c.b16 %v3877, %v3861
        %v3926 = vpack.c.b16 %v3878, %v3862
        %v3927 = vpack.c.b16 %v3879, %v3863
        %v3928 = vpack.c.b16 %v3880, %v3864
        %v3929 = vpack.c.b16 %v3881, %v3865
        %v3930 = vpack.c.b16 %v3882, %v3866
        %v3931 = vpack.c.b16 %v3883, %v3867
        %v3932 = vpack.c.b16 %v3884, %v3868
        %v3933 = vpack.c.b16 %v3885, %v3869
        %v3934 = vpack.c.b16 %v3886, %v3870
        %v3935 = vpack.c.b16 %v3887, %v3871
        %v3936 = vpack.c.b16 %v3888, %v3872
        %v3937 = vpack.c.b16 %v3889, %v3873
        %v3938 = vpack.c.b16 %v3890, %v3874
        %v3939 = vpack.c.b16 %v3891, %v3891
        %v3940 = vpack.c.b16 %v3892, %v3892
        %v3941 = vpack.c.b16 %v3893, %v3893
        %v3942 = vpack.c.b16 %v3894, %v3894
        %v3943 = vpack.c.b16 %v3895, %v3895
        %v3944 = vpack.c.b16 %v3896, %v3896
        %v3945 = vpack.c.b16 %v3897, %v3897
        %v3946 = vpack.c.b16 %v3898, %v3898
        %v3947 = vpack.c.b16 %v3899, %v3899
        %v3948 = vpack.c.b16 %v3900, %v3900
        %v3949 = vpack.c.b16 %v3901, %v3901
        %v3950 = vpack.c.b16 %v3902, %v3902
        %v3951 = vpack.c.b16 %v3903, %v3903
        %v3952 = vpack.c.b16 %v3904, %v3904
        %v3953 = vpack.c.b16 %v3905, %v3905
        %v3954 = vpack.c.b16 %v3906, %v3906
        %v3988 = vsel %vm545, %v3704, 0
        %v3991 = vsel %vm549, %v3939, 0
        %v3994 = vsel %vm549, %v3940, 0
        %v3997 = vsel %vm549, %v3941, 0
        %v4000 = vsel %vm549, %v3942, 0
        %v4003 = vsel %vm549, %v3943, 0
        %v4006 = vsel %vm549, %v3944, 0
        %v4009 = vsel %vm549, %v3945, 0
        %v4012 = vsel %vm549, %v3946, 0
        %v4015 = vsel %vm549, %v3947, 0
        %v4018 = vsel %vm549, %v3948, 0
        %v4021 = vsel %vm549, %v3949, 0
        %v4024 = vsel %vm549, %v3950, 0
        %v4027 = vsel %vm549, %v3951, 0
        %v4030 = vsel %vm549, %v3952, 0
        %v4033 = vsel %vm549, %v3953, 0
        %v4036 = vsel %vm549, %v3954, 0
        %4038 = vmatprep.subr.bf16.mxu0 %v3908
        %4039 = vmatpush1.bf16.msra.mxu0 %v3907
        %4040 = vmatprep.subr.bf16.mxu0 %v3924
        %4041 = vmatpush1.bf16.msra.mxu0 %v3923
        %4042 = vmatprep.subr.bf16.mxu0 %v3994
        %4043 = vmatpush1.bf16.msra.mxu0 %v3991
        %4044 = vmatprep.subr.bf16.mxu0 0
        %4045 = vmatpush1.bf16.msra.mxu0 0
        %4046 = vmatprep.subr.bf16.mxu0 0
        %4047 = vmatpush1.bf16.msra.mxu0 0
        %4048 = vmatprep.subr.bf16.mxu0 0
        %4049 = vmatpush1.bf16.msra.mxu0 0
        %4050 = vmatprep.subr.bf16.mxu0 0
        %4051 = vmatpush1.bf16.msra.mxu0 0
        %4052 = vmatprep.subr.bf16.mxu0 0
        %4053 = vmatpush1.bf16.msra.mxu0 0
        %4054 = vmatprep.subr.bf16.mxu0 0
        %4055 = vmatpush1.bf16.msra.mxu0 0
        %4056 = vmatprep.subr.bf16.mxu0 0
        %4057 = vmatpush1.bf16.msra.mxu0 0
        %4058 = vmatprep.subr.bf16.mxu0 0
        %4059 = vmatpush1.bf16.msra.mxu0 0
        %4060 = vmatprep.subr.bf16.mxu0 0
        %4061 = vmatpush1.bf16.msra.mxu0 0
        %4062 = vmatprep.subr.bf16.mxu0 0
        %4063 = vmatpush1.bf16.msra.mxu0 0
        %4064 = vmatprep.subr.bf16.mxu0 0
        %4065 = vmatpush1.bf16.msra.mxu0 0
        %4066 = vmatprep.subr.bf16.mxu0 0
        %4067 = vmatpush1.bf16.msra.mxu0 0
        %4068 = vmatprep.subr.bf16.mxu0 0
        %4069 = vmatpush1.bf16.msra.mxu0 0
        %4070 = vmatprep.mubr.bf16.mxu0 0
        %4071 = vmatmul.mubr.bf16.gmra.mrb[0].mxu0 %v3988
        %v4072 = vpop.f32.mrb[0].mxu0
        %v4073 = vadd.f32 %v3710, %v4072
        %v4074 = vpop.f32.mrb[0].mxu0
        %v4075 = vadd.f32 %v3714, %v4074
        %v4076 = vpop.f32.mrb[0].mxu0
        %v4077 = vadd.f32 %v3710, %v4076
        %v4078 = vpop.f32.mrb[0].mxu0
        %v4079 = vadd.f32 %v3714, %v4078
        %4080 = vdwg.mxu0
        %4081 = vmatprep.subr.bf16.mxu0 %v3910
        %4082 = vmatpush1.bf16.msra.mxu0 %v3909
        %4083 = vmatprep.subr.bf16.mxu0 %v3926
        %4084 = vmatpush1.bf16.msra.mxu0 %v3925
        %4085 = vmatprep.subr.bf16.mxu0 %v4000
        %4086 = vmatpush1.bf16.msra.mxu0 %v3997
        %4087 = vmatprep.subr.bf16.mxu0 0
        %4088 = vmatpush1.bf16.msra.mxu0 0
        %4089 = vmatprep.subr.bf16.mxu0 0
        %4090 = vmatpush1.bf16.msra.mxu0 0
        %4091 = vmatprep.subr.bf16.mxu0 0
        %4092 = vmatpush1.bf16.msra.mxu0 0
        %4093 = vmatprep.subr.bf16.mxu0 0
        %4094 = vmatpush1.bf16.msra.mxu0 0
        %4095 = vmatprep.subr.bf16.mxu0 0
        %4096 = vmatpush1.bf16.msra.mxu0 0
        %4097 = vmatprep.subr.bf16.mxu0 0
        %4098 = vmatpush1.bf16.msra.mxu0 0
        %4099 = vmatprep.subr.bf16.mxu0 0
        %4100 = vmatpush1.bf16.msra.mxu0 0
        %4101 = vmatprep.subr.bf16.mxu0 0
        %4102 = vmatpush1.bf16.msra.mxu0 0
        %4103 = vmatprep.subr.bf16.mxu0 0
        %4104 = vmatpush1.bf16.msra.mxu0 0
        %4105 = vmatprep.subr.bf16.mxu0 0
        %4106 = vmatpush1.bf16.msra.mxu0 0
        %4107 = vmatprep.subr.bf16.mxu0 0
        %4108 = vmatpush1.bf16.msra.mxu0 0
        %4109 = vmatprep.subr.bf16.mxu0 0
        %4110 = vmatpush1.bf16.msra.mxu0 0
        %4111 = vmatprep.subr.bf16.mxu0 0
        %4112 = vmatpush1.bf16.msra.mxu0 0
        %4113 = vmatprep.mubr.bf16.mxu0 0
        %4114 = vmatmul.mubr.bf16.gmra.mrb[0].mxu0 %v3988
        %v4115 = vpop.f32.mrb[0].mxu0
        %v4116 = vadd.f32 %v3718, %v4115
        %v4117 = vpop.f32.mrb[0].mxu0
        %v4118 = vadd.f32 %v3722, %v4117
        %v4119 = vpop.f32.mrb[0].mxu0
        %v4120 = vadd.f32 %v3718, %v4119
        %v4121 = vpop.f32.mrb[0].mxu0
        %v4122 = vadd.f32 %v3722, %v4121
        %4123 = vdwg.mxu0
        %4124 = vmatprep.subr.bf16.mxu0 %v3912
        %4125 = vmatpush1.bf16.msra.mxu0 %v3911
        %4126 = vmatprep.subr.bf16.mxu0 %v3928
        %4127 = vmatpush1.bf16.msra.mxu0 %v3927
        %4128 = vmatprep.subr.bf16.mxu0 %v4006
        %4129 = vmatpush1.bf16.msra.mxu0 %v4003
        %4130 = vmatprep.subr.bf16.mxu0 0
        %4131 = vmatpush1.bf16.msra.mxu0 0
        %4132 = vmatprep.subr.bf16.mxu0 0
        %4133 = vmatpush1.bf16.msra.mxu0 0
        %4134 = vmatprep.subr.bf16.mxu0 0
        %4135 = vmatpush1.bf16.msra.mxu0 0
        %4136 = vmatprep.subr.bf16.mxu0 0
        %4137 = vmatpush1.bf16.msra.mxu0 0
        %4138 = vmatprep.subr.bf16.mxu0 0
        %4139 = vmatpush1.bf16.msra.mxu0 0
        %4140 = vmatprep.subr.bf16.mxu0 0
        %4141 = vmatpush1.bf16.msra.mxu0 0
        %4142 = vmatprep.subr.bf16.mxu0 0
        %4143 = vmatpush1.bf16.msra.mxu0 0
        %4144 = vmatprep.subr.bf16.mxu0 0
        %4145 = vmatpush1.bf16.msra.mxu0 0
        %4146 = vmatprep.subr.bf16.mxu0 0
        %4147 = vmatpush1.bf16.msra.mxu0 0
        %4148 = vmatprep.subr.bf16.mxu0 0
        %4149 = vmatpush1.bf16.msra.mxu0 0
        %4150 = vmatprep.subr.bf16.mxu0 0
        %4151 = vmatpush1.bf16.msra.mxu0 0
        %4152 = vmatprep.subr.bf16.mxu0 0
        %4153 = vmatpush1.bf16.msra.mxu0 0
        %4154 = vmatprep.subr.bf16.mxu0 0
        %4155 = vmatpush1.bf16.msra.mxu0 0
        %4156 = vmatprep.mubr.bf16.mxu0 0
        %4157 = vmatmul.mubr.bf16.gmra.mrb[0].mxu0 %v3988
        %v4158 = vpop.f32.mrb[0].mxu0
        %v4159 = vadd.f32 %v3726, %v4158
        %v4160 = vpop.f32.mrb[0].mxu0
        %v4161 = vadd.f32 %v3730, %v4160
        %v4162 = vpop.f32.mrb[0].mxu0
        %v4163 = vadd.f32 %v3726, %v4162
        %v4164 = vpop.f32.mrb[0].mxu0
        %v4165 = vadd.f32 %v3730, %v4164
        %4166 = vdwg.mxu0
        %4167 = vmatprep.subr.bf16.mxu0 %v3914
        %4168 = vmatpush1.bf16.msra.mxu0 %v3913
        %4169 = vmatprep.subr.bf16.mxu0 %v3930
        %4170 = vmatpush1.bf16.msra.mxu0 %v3929
        %4171 = vmatprep.subr.bf16.mxu0 %v4012
        %4172 = vmatpush1.bf16.msra.mxu0 %v4009
        %4173 = vmatprep.subr.bf16.mxu0 0
        %4174 = vmatpush1.bf16.msra.mxu0 0
        %4175 = vmatprep.subr.bf16.mxu0 0
        %4176 = vmatpush1.bf16.msra.mxu0 0
        %4177 = vmatprep.subr.bf16.mxu0 0
        %4178 = vmatpush1.bf16.msra.mxu0 0
        %4179 = vmatprep.subr.bf16.mxu0 0
        %4180 = vmatpush1.bf16.msra.mxu0 0
        %4181 = vmatprep.subr.bf16.mxu0 0
        %4182 = vmatpush1.bf16.msra.mxu0 0
        %4183 = vmatprep.subr.bf16.mxu0 0
        %4184 = vmatpush1.bf16.msra.mxu0 0
        %4185 = vmatprep.subr.bf16.mxu0 0
        %4186 = vmatpush1.bf16.msra.mxu0 0
        %4187 = vmatprep.subr.bf16.mxu0 0
        %4188 = vmatpush1.bf16.msra.mxu0 0
        %4189 = vmatprep.subr.bf16.mxu0 0
        %4190 = vmatpush1.bf16.msra.mxu0 0
        %4191 = vmatprep.subr.bf16.mxu0 0
        %4192 = vmatpush1.bf16.msra.mxu0 0
        %4193 = vmatprep.subr.bf16.mxu0 0
        %4194 = vmatpush1.bf16.msra.mxu0 0
        %4195 = vmatprep.subr.bf16.mxu0 0
        %4196 = vmatpush1.bf16.msra.mxu0 0
        %4197 = vmatprep.subr.bf16.mxu0 0
        %4198 = vmatpush1.bf16.msra.mxu0 0
        %4199 = vmatprep.mubr.bf16.mxu0 0
        %4200 = vmatmul.mubr.bf16.gmra.mrb[0].mxu0 %v3988
        %v4201 = vpop.f32.mrb[0].mxu0
        %v4202 = vadd.f32 %v3734, %v4201
        %v4203 = vpop.f32.mrb[0].mxu0
        %v4204 = vadd.f32 %v3738, %v4203
        %v4205 = vpop.f32.mrb[0].mxu0
        %v4206 = vadd.f32 %v3734, %v4205
        %v4207 = vpop.f32.mrb[0].mxu0
        %v4208 = vadd.f32 %v3738, %v4207
        %4209 = vdwg.mxu0
        %4210 = vmatprep.subr.bf16.mxu0 %v3916
        %4211 = vmatpush1.bf16.msra.mxu0 %v3915
        %4212 = vmatprep.subr.bf16.mxu0 %v3932
        %4213 = vmatpush1.bf16.msra.mxu0 %v3931
        %4214 = vmatprep.subr.bf16.mxu0 %v4018
        %4215 = vmatpush1.bf16.msra.mxu0 %v4015
        %4216 = vmatprep.subr.bf16.mxu0 0
        %4217 = vmatpush1.bf16.msra.mxu0 0
        %4218 = vmatprep.subr.bf16.mxu0 0
        %4219 = vmatpush1.bf16.msra.mxu0 0
        %4220 = vmatprep.subr.bf16.mxu0 0
        %4221 = vmatpush1.bf16.msra.mxu0 0
        %4222 = vmatprep.subr.bf16.mxu0 0
        %4223 = vmatpush1.bf16.msra.mxu0 0
        %4224 = vmatprep.subr.bf16.mxu0 0
        %4225 = vmatpush1.bf16.msra.mxu0 0
        %4226 = vmatprep.subr.bf16.mxu0 0
        %4227 = vmatpush1.bf16.msra.mxu0 0
        %4228 = vmatprep.subr.bf16.mxu0 0
        %4229 = vmatpush1.bf16.msra.mxu0 0
        %4230 = vmatprep.subr.bf16.mxu0 0
        %4231 = vmatpush1.bf16.msra.mxu0 0
        %4232 = vmatprep.subr.bf16.mxu0 0
        %4233 = vmatpush1.bf16.msra.mxu0 0
        %4234 = vmatprep.subr.bf16.mxu0 0
        %4235 = vmatpush1.bf16.msra.mxu0 0
        %4236 = vmatprep.subr.bf16.mxu0 0
        %4237 = vmatpush1.bf16.msra.mxu0 0
        %4238 = vmatprep.subr.bf16.mxu0 0
        %4239 = vmatpush1.bf16.msra.mxu0 0
        %4240 = vmatprep.subr.bf16.mxu0 0
        %4241 = vmatpush1.bf16.msra.mxu0 0
        %4242 = vmatprep.mubr.bf16.mxu0 0
        %4243 = vmatmul.mubr.bf16.gmra.mrb[0].mxu0 %v3988
        %v4244 = vpop.f32.mrb[0].mxu0
        %v4245 = vadd.f32 %v3742, %v4244
        %v4246 = vpop.f32.mrb[0].mxu0
        %v4247 = vadd.f32 %v3746, %v4246
        %v4248 = vpop.f32.mrb[0].mxu0
        %v4249 = vadd.f32 %v3742, %v4248
        %v4250 = vpop.f32.mrb[0].mxu0
        %v4251 = vadd.f32 %v3746, %v4250
        %4252 = vdwg.mxu0
        %4253 = vmatprep.subr.bf16.mxu0 %v3918
        %4254 = vmatpush1.bf16.msra.mxu0 %v3917
        %4255 = vmatprep.subr.bf16.mxu0 %v3934
        %4256 = vmatpush1.bf16.msra.mxu0 %v3933
        %4257 = vmatprep.subr.bf16.mxu0 %v4024
        %4258 = vmatpush1.bf16.msra.mxu0 %v4021
        %4259 = vmatprep.subr.bf16.mxu0 0
        %4260 = vmatpush1.bf16.msra.mxu0 0
        %4261 = vmatprep.subr.bf16.mxu0 0
        %4262 = vmatpush1.bf16.msra.mxu0 0
        %4263 = vmatprep.subr.bf16.mxu0 0
        %4264 = vmatpush1.bf16.msra.mxu0 0
        %4265 = vmatprep.subr.bf16.mxu0 0
        %4266 = vmatpush1.bf16.msra.mxu0 0
        %4267 = vmatprep.subr.bf16.mxu0 0
        %4268 = vmatpush1.bf16.msra.mxu0 0
        %4269 = vmatprep.subr.bf16.mxu0 0
        %4270 = vmatpush1.bf16.msra.mxu0 0
        %4271 = vmatprep.subr.bf16.mxu0 0
        %4272 = vmatpush1.bf16.msra.mxu0 0
        %4273 = vmatprep.subr.bf16.mxu0 0
        %4274 = vmatpush1.bf16.msra.mxu0 0
        %4275 = vmatprep.subr.bf16.mxu0 0
        %4276 = vmatpush1.bf16.msra.mxu0 0
        %4277 = vmatprep.subr.bf16.mxu0 0
        %4278 = vmatpush1.bf16.msra.mxu0 0
        %4279 = vmatprep.subr.bf16.mxu0 0
        %4280 = vmatpush1.bf16.msra.mxu0 0
        %4281 = vmatprep.subr.bf16.mxu0 0
        %4282 = vmatpush1.bf16.msra.mxu0 0
        %4283 = vmatprep.subr.bf16.mxu0 0
        %4284 = vmatpush1.bf16.msra.mxu0 0
        %4285 = vmatprep.mubr.bf16.mxu0 0
        %4286 = vmatmul.mubr.bf16.gmra.mrb[0].mxu0 %v3988
        %v4287 = vpop.f32.mrb[0].mxu0
        %v4288 = vadd.f32 %v3750, %v4287
        %v4289 = vpop.f32.mrb[0].mxu0
        %v4290 = vadd.f32 %v3754, %v4289
        %v4291 = vpop.f32.mrb[0].mxu0
        %v4292 = vadd.f32 %v3750, %v4291
        %v4293 = vpop.f32.mrb[0].mxu0
        %v4294 = vadd.f32 %v3754, %v4293
        %4295 = vdwg.mxu0
        %4296 = vmatprep.subr.bf16.mxu0 %v3920
        %4297 = vmatpush1.bf16.msra.mxu0 %v3919
        %4298 = vmatprep.subr.bf16.mxu0 %v3936
        %4299 = vmatpush1.bf16.msra.mxu0 %v3935
        %4300 = vmatprep.subr.bf16.mxu0 %v4030
        %4301 = vmatpush1.bf16.msra.mxu0 %v4027
        %4302 = vmatprep.subr.bf16.mxu0 0
        %4303 = vmatpush1.bf16.msra.mxu0 0
        %4304 = vmatprep.subr.bf16.mxu0 0
        %4305 = vmatpush1.bf16.msra.mxu0 0
        %4306 = vmatprep.subr.bf16.mxu0 0
        %4307 = vmatpush1.bf16.msra.mxu0 0
        %4308 = vmatprep.subr.bf16.mxu0 0
        %4309 = vmatpush1.bf16.msra.mxu0 0
        %4310 = vmatprep.subr.bf16.mxu0 0
        %4311 = vmatpush1.bf16.msra.mxu0 0
        %4312 = vmatprep.subr.bf16.mxu0 0
        %4313 = vmatpush1.bf16.msra.mxu0 0
        %4314 = vmatprep.subr.bf16.mxu0 0
        %4315 = vmatpush1.bf16.msra.mxu0 0
        %4316 = vmatprep.subr.bf16.mxu0 0
        %4317 = vmatpush1.bf16.msra.mxu0 0
        %4318 = vmatprep.subr.bf16.mxu0 0
        %4319 = vmatpush1.bf16.msra.mxu0 0
        %4320 = vmatprep.subr.bf16.mxu0 0
        %4321 = vmatpush1.bf16.msra.mxu0 0
        %4322 = vmatprep.subr.bf16.mxu0 0
        %4323 = vmatpush1.bf16.msra.mxu0 0
        %4324 = vmatprep.subr.bf16.mxu0 0
        %4325 = vmatpush1.bf16.msra.mxu0 0
        %4326 = vmatprep.subr.bf16.mxu0 0
        %4327 = vmatpush1.bf16.msra.mxu0 0
        %4328 = vmatprep.mubr.bf16.mxu0 0
        %4329 = vmatmul.mubr.bf16.gmra.mrb[0].mxu0 %v3988
        %v4330 = vpop.f32.mrb[0].mxu0
        %v4331 = vadd.f32 %v3758, %v4330
        %v4332 = vpop.f32.mrb[0].mxu0
        %v4333 = vadd.f32 %v3762, %v4332
        %v4334 = vpop.f32.mrb[0].mxu0
        %v4335 = vadd.f32 %v3758, %v4334
        %v4336 = vpop.f32.mrb[0].mxu0
        %v4337 = vadd.f32 %v3762, %v4336
        %4338 = vdwg.mxu0
        %4339 = vmatprep.subr.bf16.mxu0 %v3922
        %4340 = vmatpush1.bf16.msra.mxu0 %v3921
        %4341 = vmatprep.subr.bf16.mxu0 %v3938
        %4342 = vmatpush1.bf16.msra.mxu0 %v3937
        %4343 = vmatprep.subr.bf16.mxu0 %v4036
        %4344 = vmatpush1.bf16.msra.mxu0 %v4033
        %4345 = vmatprep.subr.bf16.mxu0 0
        %4346 = vmatpush1.bf16.msra.mxu0 0
        %4347 = vmatprep.subr.bf16.mxu0 0
        %4348 = vmatpush1.bf16.msra.mxu0 0
        %4349 = vmatprep.subr.bf16.mxu0 0
        %4350 = vmatpush1.bf16.msra.mxu0 0
        %4351 = vmatprep.subr.bf16.mxu0 0
        %4352 = vmatpush1.bf16.msra.mxu0 0
        %4353 = vmatprep.subr.bf16.mxu0 0
        %4354 = vmatpush1.bf16.msra.mxu0 0
        %4355 = vmatprep.subr.bf16.mxu0 0
        %4356 = vmatpush1.bf16.msra.mxu0 0
        %4357 = vmatprep.subr.bf16.mxu0 0
        %4358 = vmatpush1.bf16.msra.mxu0 0
        %4359 = vmatprep.subr.bf16.mxu0 0
        %4360 = vmatpush1.bf16.msra.mxu0 0
        %4361 = vmatprep.subr.bf16.mxu0 0
        %4362 = vmatpush1.bf16.msra.mxu0 0
        %4363 = vmatprep.subr.bf16.mxu0 0
        %4364 = vmatpush1.bf16.msra.mxu0 0
        %4365 = vmatprep.subr.bf16.mxu0 0
        %4366 = vmatpush1.bf16.msra.mxu0 0
        %4367 = vmatprep.subr.bf16.mxu0 0
        %4368 = vmatpush1.bf16.msra.mxu0 0
        %4369 = vmatprep.subr.bf16.mxu0 0
        %4370 = vmatpush1.bf16.msra.mxu0 0
        %4371 = vmatprep.mubr.bf16.mxu0 0
        %4372 = vmatmul.mubr.bf16.gmra.mrb[0].mxu0 %v3988
        %v4373 = vpop.f32.mrb[0].mxu0
        %v4374 = vadd.f32 %v3766, %v4373
        %v4375 = vpop.f32.mrb[0].mxu0
        %v4376 = vadd.f32 %v3770, %v4375
        %v4377 = vpop.f32.mrb[0].mxu0
        %v4378 = vadd.f32 %v3766, %v4377
        %v4379 = vpop.f32.mrb[0].mxu0
        %v4380 = vadd.f32 %v3770, %v4379
        %4381 = vdwg.mxu0
        %v4382 = vmax.f32 %v4073, 0.0
        %v4383 = vmax.f32 %v4075, 0.0
        %v4384 = vmax.f32 %v4116, 0.0
        %v4385 = vmax.f32 %v4118, 0.0
        %v4386 = vmax.f32 %v4159, 0.0
        %v4387 = vmax.f32 %v4161, 0.0
        %v4388 = vmax.f32 %v4202, 0.0
        %v4389 = vmax.f32 %v4204, 0.0
        %v4390 = vmax.f32 %v4245, 0.0
        %v4391 = vmax.f32 %v4247, 0.0
        %v4392 = vmax.f32 %v4288, 0.0
        %v4393 = vmax.f32 %v4290, 0.0
        %v4394 = vmax.f32 %v4331, 0.0
        %v4395 = vmax.f32 %v4333, 0.0
        %v4396 = vmax.f32 %v4374, 0.0
        %v4397 = vmax.f32 %v4376, 0.0
        %v4398 = vmax.f32 %v4077, 0.0
        %v4399 = vmax.f32 %v4079, 0.0
        %v4400 = vmax.f32 %v4120, 0.0
        %v4401 = vmax.f32 %v4122, 0.0
        %v4402 = vmax.f32 %v4163, 0.0
        %v4403 = vmax.f32 %v4165, 0.0
        %v4404 = vmax.f32 %v4206, 0.0
        %v4405 = vmax.f32 %v4208, 0.0
        %v4406 = vmax.f32 %v4249, 0.0
        %v4407 = vmax.f32 %v4251, 0.0
        %v4408 = vmax.f32 %v4292, 0.0
        %v4409 = vmax.f32 %v4294, 0.0
        %v4410 = vmax.f32 %v4335, 0.0
        %v4411 = vmax.f32 %v4337, 0.0
        %v4412 = vmax.f32 %v4378, 0.0
        %v4413 = vmax.f32 %v4380, 0.0
        %s4414 = scalar_lea.vmem %s9, 1024
        %v4415 = vld [vmem:[%s4414] sm:$0xf]
        %v4416 = vld [vmem:[%s4414 + $0x4] sm:$0xf]
        %v4417 = vld [vmem:[%s4414 + $0x8] sm:$0xf]
        %v4418 = vld [vmem:[%s4414 + $0xc] sm:$0xf]
        %v4419 = vld [vmem:[%s4414 + $0x10] sm:$0xf]
        %v4420 = vld [vmem:[%s4414 + $0x14] sm:$0xf]
        %v4421 = vld [vmem:[%s4414 + $0x18] sm:$0xf]
        %v4422 = vld [vmem:[%s4414 + $0x1c] sm:$0xf]
        %v4423 = vld [vmem:[%s4414 + $0x20] sm:$0xf]
        %v4424 = vld [vmem:[%s4414 + $0x24] sm:$0xf]
        %v4425 = vld [vmem:[%s4414 + $0x28] sm:$0xf]
        %v4426 = vld [vmem:[%s4414 + $0x2c] sm:$0xf]
        %v4427 = vld [vmem:[%s4414 + $0x30] sm:$0xf]
        %v4428 = vld [vmem:[%s4414 + $0x34] sm:$0xf]
        %v4429 = vld [vmem:[%s4414 + $0x38] sm:$0xf]
        %v4430 = vld [vmem:[%s4414 + $0x3c] sm:$0xf]
        %v4431 = vld [vmem:[%s4414 + $0x40] sm:$0xf]
        %v4432 = vld [vmem:[%s4414 + $0x44] sm:$0xf]
        %v4433 = vld [vmem:[%s4414 + $0x48] sm:$0xf]
        %v4434 = vld [vmem:[%s4414 + $0x4c] sm:$0xf]
        %v4435 = vld [vmem:[%s4414 + $0x50] sm:$0xf]
        %v4436 = vld [vmem:[%s4414 + $0x54] sm:$0xf]
        %v4437 = vld [vmem:[%s4414 + $0x58] sm:$0xf]
        %v4438 = vld [vmem:[%s4414 + $0x5c] sm:$0xf]
        %v4439 = vld [vmem:[%s4414 + $0x60] sm:$0xf]
        %v4440 = vld [vmem:[%s4414 + $0x64] sm:$0xf]
        %v4441 = vld [vmem:[%s4414 + $0x68] sm:$0xf]
        %v4442 = vld [vmem:[%s4414 + $0x6c] sm:$0xf]
        %v4443 = vld [vmem:[%s4414 + $0x70] sm:$0xf]
        %v4444 = vld [vmem:[%s4414 + $0x74] sm:$0xf]
        %v4445 = vld [vmem:[%s4414 + $0x78] sm:$0xf]
        %v4446 = vld [vmem:[%s4414 + $0x7c] sm:$0xf]
        %v4447 = vld [vmem:[%s4414 + $0x80] sm:$0xf]
        %v4448 = vld [vmem:[%s4414 + $0x84] sm:$0xf]
        %v4449 = vld [vmem:[%s4414 + $0x88] sm:$0xf]
        %v4450 = vld [vmem:[%s4414 + $0x8c] sm:$0xf]
        %v4451 = vld [vmem:[%s4414 + $0x90] sm:$0xf]
        %v4452 = vld [vmem:[%s4414 + $0x94] sm:$0xf]
        %v4453 = vld [vmem:[%s4414 + $0x98] sm:$0xf]
        %v4454 = vld [vmem:[%s4414 + $0x9c] sm:$0xf]
        %v4455 = vld [vmem:[%s4414 + $0xa0] sm:$0xf]
        %v4456 = vld [vmem:[%s4414 + $0xa4] sm:$0xf]
        %v4457 = vld [vmem:[%s4414 + $0xa8] sm:$0xf]
        %v4458 = vld [vmem:[%s4414 + $0xac] sm:$0xf]
        %v4459 = vld [vmem:[%s4414 + $0xb0] sm:$0xf]
        %v4460 = vld [vmem:[%s4414 + $0xb4] sm:$0xf]
        %v4461 = vld [vmem:[%s4414 + $0xb8] sm:$0xf]
        %v4462 = vld [vmem:[%s4414 + $0xbc] sm:$0xf]
        %v4463 = vld [vmem:[%s4414 + $0xc0] sm:$0xf]
        %v4464 = vld [vmem:[%s4414 + $0xc4] sm:$0xf]
        %v4465 = vld [vmem:[%s4414 + $0xc8] sm:$0xf]
        %v4466 = vld [vmem:[%s4414 + $0xcc] sm:$0xf]
        %v4467 = vld [vmem:[%s4414 + $0xd0] sm:$0xf]
        %v4468 = vld [vmem:[%s4414 + $0xd4] sm:$0xf]
        %v4469 = vld [vmem:[%s4414 + $0xd8] sm:$0xf]
        %v4470 = vld [vmem:[%s4414 + $0xdc] sm:$0xf]
        %v4471 = vld [vmem:[%s4414 + $0xe0] sm:$0xf]
        %v4472 = vld [vmem:[%s4414 + $0xe4] sm:$0xf]
        %v4473 = vld [vmem:[%s4414 + $0xe8] sm:$0xf]
        %v4474 = vld [vmem:[%s4414 + $0xec] sm:$0xf]
        %v4475 = vld [vmem:[%s4414 + $0xf0] sm:$0xf]
        %v4476 = vld [vmem:[%s4414 + $0xf4] sm:$0xf]
        %v4477 = vld [vmem:[%s4414 + $0xf8] sm:$0xf]
        %v4478 = vld [vmem:[%s4414 + $0xfc] sm:$0xf]
        %v4479 = vld [vmem:[%s4414 + $0x100] sm:$0xf]
        %v4480 = vld [vmem:[%s4414 + $0x104] sm:$0xf]
        %v4481 = vld [vmem:[%s4414 + $0x108] sm:$0xf]
        %v4482 = vld [vmem:[%s4414 + $0x10c] sm:$0xf]
        %v4483 = vld [vmem:[%s4414 + $0x110] sm:$0xf]
        %v4484 = vld [vmem:[%s4414 + $0x114] sm:$0xf]
        %v4485 = vld [vmem:[%s4414 + $0x118] sm:$0xf]
        %v4486 = vld [vmem:[%s4414 + $0x11c] sm:$0xf]
        %v4487 = vld [vmem:[%s4414 + $0x120] sm:$0xf]
        %v4488 = vld [vmem:[%s4414 + $0x124] sm:$0xf]
        %v4489 = vld [vmem:[%s4414 + $0x128] sm:$0xf]
        %v4490 = vld [vmem:[%s4414 + $0x12c] sm:$0xf]
        %v4491 = vld [vmem:[%s4414 + $0x130] sm:$0xf]
        %v4492 = vld [vmem:[%s4414 + $0x134] sm:$0xf]
        %v4493 = vld [vmem:[%s4414 + $0x138] sm:$0xf]
        %v4494 = vld [vmem:[%s4414 + $0x13c] sm:$0xf]
        %v4495 = vld [vmem:[%s4414 + $0x140] sm:$0xf]
        %v4496 = vld [vmem:[%s4414 + $0x144] sm:$0xf]
        %v4497 = vld [vmem:[%s4414 + $0x148] sm:$0xf]
        %v4498 = vld [vmem:[%s4414 + $0x14c] sm:$0xf]
        %v4499 = vld [vmem:[%s4414 + $0x150] sm:$0xf]
        %v4500 = vld [vmem:[%s4414 + $0x154] sm:$0xf]
        %v4501 = vld [vmem:[%s4414 + $0x158] sm:$0xf]
        %v4502 = vld [vmem:[%s4414 + $0x15c] sm:$0xf]
        %v4503 = vld [vmem:[%s4414 + $0x160] sm:$0xf]
        %v4504 = vld [vmem:[%s4414 + $0x164] sm:$0xf]
        %v4505 = vld [vmem:[%s4414 + $0x168] sm:$0xf]
        %v4506 = vld [vmem:[%s4414 + $0x16c] sm:$0xf]
        %v4507 = vld [vmem:[%s4414 + $0x170] sm:$0xf]
        %v4508 = vld [vmem:[%s4414 + $0x174] sm:$0xf]
        %v4509 = vld [vmem:[%s4414 + $0x178] sm:$0xf]
        %v4510 = vld [vmem:[%s4414 + $0x17c] sm:$0xf]
        %v4511 = vld [vmem:[%s4414 + $0x180] sm:$0xf]
        %v4512 = vld [vmem:[%s4414 + $0x184] sm:$0xf]
        %v4513 = vld [vmem:[%s4414 + $0x188] sm:$0xf]
        %v4514 = vld [vmem:[%s4414 + $0x18c] sm:$0xf]
        %v4515 = vld [vmem:[%s4414 + $0x190] sm:$0xf]
        %v4516 = vld [vmem:[%s4414 + $0x194] sm:$0xf]
        %v4517 = vld [vmem:[%s4414 + $0x198] sm:$0xf]
        %v4518 = vld [vmem:[%s4414 + $0x19c] sm:$0xf]
        %v4519 = vld [vmem:[%s4414 + $0x1a0] sm:$0xf]
        %v4520 = vld [vmem:[%s4414 + $0x1a4] sm:$0xf]
        %v4521 = vld [vmem:[%s4414 + $0x1a8] sm:$0xf]
        %v4522 = vld [vmem:[%s4414 + $0x1ac] sm:$0xf]
        %v4523 = vld [vmem:[%s4414 + $0x1b0] sm:$0xf]
        %v4524 = vld [vmem:[%s4414 + $0x1b4] sm:$0xf]
        %v4525 = vld [vmem:[%s4414 + $0x1b8] sm:$0xf]
        %v4526 = vld [vmem:[%s4414 + $0x1bc] sm:$0xf]
        %v4527 = vld [vmem:[%s4414 + $0x1c0] sm:$0xf]
        %v4528 = vld [vmem:[%s4414 + $0x1c4] sm:$0xf]
        %v4529 = vld [vmem:[%s4414 + $0x1c8] sm:$0xf]
        %v4530 = vld [vmem:[%s4414 + $0x1cc] sm:$0xf]
        %v4531 = vld [vmem:[%s4414 + $0x1d0] sm:$0xf]
        %v4532 = vld [vmem:[%s4414 + $0x1d4] sm:$0xf]
        %v4533 = vld [vmem:[%s4414 + $0x1d8] sm:$0xf]
        %v4534 = vld [vmem:[%s4414 + $0x1dc] sm:$0xf]
        %v4535 = vld [vmem:[%s4414 + $0x1e0] sm:$0xf]
        %v4536 = vld [vmem:[%s4414 + $0x1e4] sm:$0xf]
        %v4537 = vld [vmem:[%s4414 + $0x1e8] sm:$0xf]
        %v4538 = vld [vmem:[%s4414 + $0x1ec] sm:$0xf]
        %v4539 = vld [vmem:[%s4414 + $0x1f0] sm:$0xf]
        %v4540 = vld [vmem:[%s4414 + $0x1f4] sm:$0xf]
        %v4541 = vld [vmem:[%s4414 + $0x1f8] sm:$0xf]
        %v4542 = vld [vmem:[%s4414 + $0x1fc] sm:$0xf]
        %v4543 = vld [vmem:[%s4414 + $0x200] sm:$0xf]
        %v4544 = vld [vmem:[%s4414 + $0x204] sm:$0xf]
        %v4545 = vld [vmem:[%s4414 + $0x208] sm:$0xf]
        %v4546 = vld [vmem:[%s4414 + $0x20c] sm:$0xf]
        %v4547 = vld [vmem:[%s4414 + $0x210] sm:$0xf]
        %v4548 = vld [vmem:[%s4414 + $0x214] sm:$0xf]
        %v4549 = vld [vmem:[%s4414 + $0x218] sm:$0xf]
        %v4550 = vld [vmem:[%s4414 + $0x21c] sm:$0xf]
        %v4551 = vld [vmem:[%s4414 + $0x220] sm:$0xf]
        %v4552 = vld [vmem:[%s4414 + $0x224] sm:$0xf]
        %v4553 = vld [vmem:[%s4414 + $0x228] sm:$0xf]
        %v4554 = vld [vmem:[%s4414 + $0x22c] sm:$0xf]
        %v4555 = vld [vmem:[%s4414 + $0x230] sm:$0xf]
        %v4556 = vld [vmem:[%s4414 + $0x234] sm:$0xf]
        %v4557 = vld [vmem:[%s4414 + $0x238] sm:$0xf]
        %v4558 = vld [vmem:[%s4414 + $0x23c] sm:$0xf]
        %v4559 = vld [vmem:[%s4414 + $0x240] sm:$0xf]
        %v4560 = vld [vmem:[%s4414 + $0x244] sm:$0xf]
        %v4561 = vld [vmem:[%s4414 + $0x248] sm:$0xf]
        %v4562 = vld [vmem:[%s4414 + $0x24c] sm:$0xf]
        %v4563 = vld [vmem:[%s4414 + $0x250] sm:$0xf]
        %v4564 = vld [vmem:[%s4414 + $0x254] sm:$0xf]
        %v4565 = vld [vmem:[%s4414 + $0x258] sm:$0xf]
        %v4566 = vld [vmem:[%s4414 + $0x25c] sm:$0xf]
        %v4567 = vld [vmem:[%s4414 + $0x260] sm:$0xf]
        %v4568 = vld [vmem:[%s4414 + $0x264] sm:$0xf]
        %v4569 = vld [vmem:[%s4414 + $0x268] sm:$0xf]
        %v4570 = vld [vmem:[%s4414 + $0x26c] sm:$0xf]
        %v4571 = vld [vmem:[%s4414 + $0x270] sm:$0xf]
        %v4572 = vld [vmem:[%s4414 + $0x274] sm:$0xf]
        %v4573 = vld [vmem:[%s4414 + $0x278] sm:$0xf]
        %v4574 = vld [vmem:[%s4414 + $0x27c] sm:$0xf]
        %v4575 = vld [vmem:[%s4414 + $0x280] sm:$0xf]
        %v4576 = vld [vmem:[%s4414 + $0x284] sm:$0xf]
        %v4577 = vld [vmem:[%s4414 + $0x288] sm:$0xf]
        %v4578 = vld [vmem:[%s4414 + $0x28c] sm:$0xf]
        %v4579 = vld [vmem:[%s4414 + $0x290] sm:$0xf]
        %v4580 = vld [vmem:[%s4414 + $0x294] sm:$0xf]
        %v4581 = vld [vmem:[%s4414 + $0x298] sm:$0xf]
        %v4582 = vld [vmem:[%s4414 + $0x29c] sm:$0xf]
        %v4583 = vld [vmem:[%s4414 + $0x2a0] sm:$0xf]
        %v4584 = vld [vmem:[%s4414 + $0x2a4] sm:$0xf]
        %v4585 = vld [vmem:[%s4414 + $0x2a8] sm:$0xf]
        %v4586 = vld [vmem:[%s4414 + $0x2ac] sm:$0xf]
        %v4587 = vld [vmem:[%s4414 + $0x2b0] sm:$0xf]
        %v4588 = vld [vmem:[%s4414 + $0x2b4] sm:$0xf]
        %v4589 = vld [vmem:[%s4414 + $0x2b8] sm:$0xf]
        %v4590 = vld [vmem:[%s4414 + $0x2bc] sm:$0xf]
        %v4591 = vld [vmem:[%s4414 + $0x2c0] sm:$0xf]
        %v4592 = vld [vmem:[%s4414 + $0x2c4] sm:$0xf]
        %v4593 = vld [vmem:[%s4414 + $0x2c8] sm:$0xf]
        %v4594 = vld [vmem:[%s4414 + $0x2cc] sm:$0xf]
        %v4595 = vld [vmem:[%s4414 + $0x2d0] sm:$0xf]
        %v4596 = vld [vmem:[%s4414 + $0x2d4] sm:$0xf]
        %v4597 = vld [vmem:[%s4414 + $0x2d8] sm:$0xf]
        %v4598 = vld [vmem:[%s4414 + $0x2dc] sm:$0xf]
        %v4599 = vld [vmem:[%s4414 + $0x2e0] sm:$0xf]
        %v4600 = vld [vmem:[%s4414 + $0x2e4] sm:$0xf]
        %v4601 = vld [vmem:[%s4414 + $0x2e8] sm:$0xf]
        %v4602 = vld [vmem:[%s4414 + $0x2ec] sm:$0xf]
        %v4603 = vld [vmem:[%s4414 + $0x2f0] sm:$0xf]
        %v4604 = vld [vmem:[%s4414 + $0x2f4] sm:$0xf]
        %v4605 = vld [vmem:[%s4414 + $0x2f8] sm:$0xf]
        %v4606 = vld [vmem:[%s4414 + $0x2fc] sm:$0xf]
        %v4607 = vld [vmem:[%s4414 + $0x300] sm:$0xf]
        %v4608 = vld [vmem:[%s4414 + $0x304] sm:$0xf]
        %v4609 = vld [vmem:[%s4414 + $0x308] sm:$0xf]
        %v4610 = vld [vmem:[%s4414 + $0x30c] sm:$0xf]
        %v4611 = vld [vmem:[%s4414 + $0x310] sm:$0xf]
        %v4612 = vld [vmem:[%s4414 + $0x314] sm:$0xf]
        %v4613 = vld [vmem:[%s4414 + $0x318] sm:$0xf]
        %v4614 = vld [vmem:[%s4414 + $0x31c] sm:$0xf]
        %v4615 = vld [vmem:[%s4414 + $0x320] sm:$0xf]
        %v4616 = vld [vmem:[%s4414 + $0x324] sm:$0xf]
        %v4617 = vld [vmem:[%s4414 + $0x328] sm:$0xf]
        %v4618 = vld [vmem:[%s4414 + $0x32c] sm:$0xf]
        %v4619 = vld [vmem:[%s4414 + $0x330] sm:$0xf]
        %v4620 = vld [vmem:[%s4414 + $0x334] sm:$0xf]
        %v4621 = vld [vmem:[%s4414 + $0x338] sm:$0xf]
        %v4622 = vld [vmem:[%s4414 + $0x33c] sm:$0xf]
        %v4623 = vld [vmem:[%s4414 + $0x340] sm:$0xf]
        %v4624 = vld [vmem:[%s4414 + $0x344] sm:$0xf]
        %v4625 = vld [vmem:[%s4414 + $0x348] sm:$0xf]
        %v4626 = vld [vmem:[%s4414 + $0x34c] sm:$0xf]
        %v4627 = vld [vmem:[%s4414 + $0x350] sm:$0xf]
        %v4628 = vld [vmem:[%s4414 + $0x354] sm:$0xf]
        %v4629 = vld [vmem:[%s4414 + $0x358] sm:$0xf]
        %v4630 = vld [vmem:[%s4414 + $0x35c] sm:$0xf]
        %v4631 = vld [vmem:[%s4414 + $0x360] sm:$0xf]
        %v4632 = vld [vmem:[%s4414 + $0x364] sm:$0xf]
        %v4633 = vld [vmem:[%s4414 + $0x368] sm:$0xf]
        %v4634 = vld [vmem:[%s4414 + $0x36c] sm:$0xf]
        %v4635 = vld [vmem:[%s4414 + $0x370] sm:$0xf]
        %v4636 = vld [vmem:[%s4414 + $0x374] sm:$0xf]
        %v4637 = vld [vmem:[%s4414 + $0x378] sm:$0xf]
        %v4638 = vld [vmem:[%s4414 + $0x37c] sm:$0xf]
        %v4639 = vld [vmem:[%s4414 + $0x380] sm:$0xf]
        %v4640 = vld [vmem:[%s4414 + $0x384] sm:$0xf]
        %v4641 = vld [vmem:[%s4414 + $0x388] sm:$0xf]
        %v4642 = vld [vmem:[%s4414 + $0x38c] sm:$0xf]
        %v4643 = vld [vmem:[%s4414 + $0x390] sm:$0xf]
        %v4644 = vld [vmem:[%s4414 + $0x394] sm:$0xf]
        %v4645 = vld [vmem:[%s4414 + $0x398] sm:$0xf]
        %v4646 = vld [vmem:[%s4414 + $0x39c] sm:$0xf]
        %v4647 = vld [vmem:[%s4414 + $0x3a0] sm:$0xf]
        %v4648 = vld [vmem:[%s4414 + $0x3a4] sm:$0xf]
        %v4649 = vld [vmem:[%s4414 + $0x3a8] sm:$0xf]
        %v4650 = vld [vmem:[%s4414 + $0x3ac] sm:$0xf]
        %v4651 = vld [vmem:[%s4414 + $0x3b0] sm:$0xf]
        %v4652 = vld [vmem:[%s4414 + $0x3b4] sm:$0xf]
        %v4653 = vld [vmem:[%s4414 + $0x3b8] sm:$0xf]
        %v4654 = vld [vmem:[%s4414 + $0x3bc] sm:$0xf]
        %v4655 = vld [vmem:[%s4414 + $0x3c0] sm:$0xf]
        %v4656 = vld [vmem:[%s4414 + $0x3c4] sm:$0xf]
        %v4657 = vld [vmem:[%s4414 + $0x3c8] sm:$0xf]
        %v4658 = vld [vmem:[%s4414 + $0x3cc] sm:$0xf]
        %v4659 = vld [vmem:[%s4414 + $0x3d0] sm:$0xf]
        %v4660 = vld [vmem:[%s4414 + $0x3d4] sm:$0xf]
        %v4661 = vld [vmem:[%s4414 + $0x3d8] sm:$0xf]
        %v4662 = vld [vmem:[%s4414 + $0x3dc] sm:$0xf]
        %v4663 = vld [vmem:[%s4414 + $0x3e0] sm:$0xf]
        %v4664 = vld [vmem:[%s4414 + $0x3e4] sm:$0xf]
        %v4665 = vld [vmem:[%s4414 + $0x3e8] sm:$0xf]
        %v4666 = vld [vmem:[%s4414 + $0x3ec] sm:$0xf]
        %v4667 = vld [vmem:[%s4414 + $0x3f0] sm:$0xf]
        %v4668 = vld [vmem:[%s4414 + $0x3f4] sm:$0xf]
        %v4669 = vld [vmem:[%s4414 + $0x3f8] sm:$0xf]
        %v4670 = vld [vmem:[%s4414 + $0x3fc] sm:$0xf]
        %s4671 = scalar_lea.vmem %s10, 1
        %v4672 = vld [vmem:[%s4671] sm:$0x1]
        %v4673 = vpack.c.bf16 %v4398, %v4382
        %v4674 = vpack.c.bf16 %v4399, %v4383
        %v4675 = vpack.c.bf16 %v4400, %v4384
        %v4676 = vpack.c.bf16 %v4401, %v4385
        %v4677 = vpack.c.bf16 %v4402, %v4386
        %v4678 = vpack.c.bf16 %v4403, %v4387
        %v4679 = vpack.c.bf16 %v4404, %v4388
        %v4680 = vpack.c.bf16 %v4405, %v4389
        %v4681 = vpack.c.bf16 %v4406, %v4390
        %v4682 = vpack.c.bf16 %v4407, %v4391
        %v4683 = vpack.c.bf16 %v4408, %v4392
        %v4684 = vpack.c.bf16 %v4409, %v4393
        %v4685 = vpack.c.bf16 %v4410, %v4394
        %v4686 = vpack.c.bf16 %v4411, %v4395
        %v4687 = vpack.c.bf16 %v4412, %v4396
        %v4688 = vpack.c.bf16 %v4413, %v4397
        %v4690 = vlaneseq
        %v4691 = vshrl.u32 %v4690, 7
        %v4692 = vsub.s32 0, %v4691
        %v4693 = vrot.slane %v4672, %v4692
        %v4951 = vunpack.c.l.b16 %v4415
        %v4952 = vunpack.c.l.b16 %v4416
        %v4953 = vunpack.c.l.b16 %v4417
        %v4954 = vunpack.c.l.b16 %v4418
        %v4955 = vunpack.c.l.b16 %v4419
        %v4956 = vunpack.c.l.b16 %v4420
        %v4957 = vunpack.c.l.b16 %v4421
        %v4958 = vunpack.c.l.b16 %v4422
        %v4959 = vunpack.c.l.b16 %v4423
        %v4960 = vunpack.c.l.b16 %v4424
        %v4961 = vunpack.c.l.b16 %v4425
        %v4962 = vunpack.c.l.b16 %v4426
        %v4963 = vunpack.c.l.b16 %v4427
        %v4964 = vunpack.c.l.b16 %v4428
        %v4965 = vunpack.c.l.b16 %v4429
        %v4966 = vunpack.c.l.b16 %v4430
        %v4967 = vunpack.c.l.b16 %v4431
        %v4968 = vunpack.c.l.b16 %v4432
        %v4969 = vunpack.c.l.b16 %v4433
        %v4970 = vunpack.c.l.b16 %v4434
        %v4971 = vunpack.c.l.b16 %v4435
        %v4972 = vunpack.c.l.b16 %v4436
        %v4973 = vunpack.c.l.b16 %v4437
        %v4974 = vunpack.c.l.b16 %v4438
        %v4975 = vunpack.c.l.b16 %v4439
        %v4976 = vunpack.c.l.b16 %v4440
        %v4977 = vunpack.c.l.b16 %v4441
        %v4978 = vunpack.c.l.b16 %v4442
        %v4979 = vunpack.c.l.b16 %v4443
        %v4980 = vunpack.c.l.b16 %v4444
        %v4981 = vunpack.c.l.b16 %v4445
        %v4982 = vunpack.c.l.b16 %v4446
        %v4983 = vunpack.c.l.b16 %v4447
        %v4984 = vunpack.c.l.b16 %v4448
        %v4985 = vunpack.c.l.b16 %v4449
        %v4986 = vunpack.c.l.b16 %v4450
        %v4987 = vunpack.c.l.b16 %v4451
        %v4988 = vunpack.c.l.b16 %v4452
        %v4989 = vunpack.c.l.b16 %v4453
        %v4990 = vunpack.c.l.b16 %v4454
        %v4991 = vunpack.c.l.b16 %v4455
        %v4992 = vunpack.c.l.b16 %v4456
        %v4993 = vunpack.c.l.b16 %v4457
        %v4994 = vunpack.c.l.b16 %v4458
        %v4995 = vunpack.c.l.b16 %v4459
        %v4996 = vunpack.c.l.b16 %v4460
        %v4997 = vunpack.c.l.b16 %v4461
        %v4998 = vunpack.c.l.b16 %v4462
        %v4999 = vunpack.c.l.b16 %v4463
        %v5000 = vunpack.c.l.b16 %v4464
        %v5001 = vunpack.c.l.b16 %v4465
        %v5002 = vunpack.c.l.b16 %v4466
        %v5003 = vunpack.c.l.b16 %v4467
        %v5004 = vunpack.c.l.b16 %v4468
        %v5005 = vunpack.c.l.b16 %v4469
        %v5006 = vunpack.c.l.b16 %v4470
        %v5007 = vunpack.c.l.b16 %v4471
        %v5008 = vunpack.c.l.b16 %v4472
        %v5009 = vunpack.c.l.b16 %v4473
        %v5010 = vunpack.c.l.b16 %v4474
        %v5011 = vunpack.c.l.b16 %v4475
        %v5012 = vunpack.c.l.b16 %v4476
        %v5013 = vunpack.c.l.b16 %v4477
        %v5014 = vunpack.c.l.b16 %v4478
        %v5015 = vunpack.c.l.b16 %v4479
        %v5016 = vunpack.c.l.b16 %v4480
        %v5017 = vunpack.c.l.b16 %v4481
        %v5018 = vunpack.c.l.b16 %v4482
        %v5019 = vunpack.c.l.b16 %v4483
        %v5020 = vunpack.c.l.b16 %v4484
        %v5021 = vunpack.c.l.b16 %v4485
        %v5022 = vunpack.c.l.b16 %v4486
        %v5023 = vunpack.c.l.b16 %v4487
        %v5024 = vunpack.c.l.b16 %v4488
        %v5025 = vunpack.c.l.b16 %v4489
        %v5026 = vunpack.c.l.b16 %v4490
        %v5027 = vunpack.c.l.b16 %v4491
        %v5028 = vunpack.c.l.b16 %v4492
        %v5029 = vunpack.c.l.b16 %v4493
        %v5030 = vunpack.c.l.b16 %v4494
        %v5031 = vunpack.c.l.b16 %v4495
        %v5032 = vunpack.c.l.b16 %v4496
        %v5033 = vunpack.c.l.b16 %v4497
        %v5034 = vunpack.c.l.b16 %v4498
        %v5035 = vunpack.c.l.b16 %v4499
        %v5036 = vunpack.c.l.b16 %v4500
        %v5037 = vunpack.c.l.b16 %v4501
        %v5038 = vunpack.c.l.b16 %v4502
        %v5039 = vunpack.c.l.b16 %v4503
        %v5040 = vunpack.c.l.b16 %v4504
        %v5041 = vunpack.c.l.b16 %v4505
        %v5042 = vunpack.c.l.b16 %v4506
        %v5043 = vunpack.c.l.b16 %v4507
        %v5044 = vunpack.c.l.b16 %v4508
        %v5045 = vunpack.c.l.b16 %v4509
        %v5046 = vunpack.c.l.b16 %v4510
        %v5047 = vunpack.c.l.b16 %v4511
        %v5048 = vunpack.c.l.b16 %v4512
        %v5049 = vunpack.c.l.b16 %v4513
        %v5050 = vunpack.c.l.b16 %v4514
        %v5051 = vunpack.c.l.b16 %v4515
        %v5052 = vunpack.c.l.b16 %v4516
        %v5053 = vunpack.c.l.b16 %v4517
        %v5054 = vunpack.c.l.b16 %v4518
        %v5055 = vunpack.c.l.b16 %v4519
        %v5056 = vunpack.c.l.b16 %v4520
        %v5057 = vunpack.c.l.b16 %v4521
        %v5058 = vunpack.c.l.b16 %v4522
        %v5059 = vunpack.c.l.b16 %v4523
        %v5060 = vunpack.c.l.b16 %v4524
        %v5061 = vunpack.c.l.b16 %v4525
        %v5062 = vunpack.c.l.b16 %v4526
        %v5063 = vunpack.c.l.b16 %v4527
        %v5064 = vunpack.c.l.b16 %v4528
        %v5065 = vunpack.c.l.b16 %v4529
        %v5066 = vunpack.c.l.b16 %v4530
        %v5067 = vunpack.c.l.b16 %v4531
        %v5068 = vunpack.c.l.b16 %v4532
        %v5069 = vunpack.c.l.b16 %v4533
        %v5070 = vunpack.c.l.b16 %v4534
        %v5071 = vunpack.c.l.b16 %v4535
        %v5072 = vunpack.c.l.b16 %v4536
        %v5073 = vunpack.c.l.b16 %v4537
        %v5074 = vunpack.c.l.b16 %v4538
        %v5075 = vunpack.c.l.b16 %v4539
        %v5076 = vunpack.c.l.b16 %v4540
        %v5077 = vunpack.c.l.b16 %v4541
        %v5078 = vunpack.c.l.b16 %v4542
        %v5079 = vunpack.c.l.b16 %v4543
        %v5080 = vunpack.c.l.b16 %v4544
        %v5081 = vunpack.c.l.b16 %v4545
        %v5082 = vunpack.c.l.b16 %v4546
        %v5083 = vunpack.c.l.b16 %v4547
        %v5084 = vunpack.c.l.b16 %v4548
        %v5085 = vunpack.c.l.b16 %v4549
        %v5086 = vunpack.c.l.b16 %v4550
        %v5087 = vunpack.c.l.b16 %v4551
        %v5088 = vunpack.c.l.b16 %v4552
        %v5089 = vunpack.c.l.b16 %v4553
        %v5090 = vunpack.c.l.b16 %v4554
        %v5091 = vunpack.c.l.b16 %v4555
        %v5092 = vunpack.c.l.b16 %v4556
        %v5093 = vunpack.c.l.b16 %v4557
        %v5094 = vunpack.c.l.b16 %v4558
        %v5095 = vunpack.c.l.b16 %v4559
        %v5096 = vunpack.c.l.b16 %v4560
        %v5097 = vunpack.c.l.b16 %v4561
        %v5098 = vunpack.c.l.b16 %v4562
        %v5099 = vunpack.c.l.b16 %v4563
        %v5100 = vunpack.c.l.b16 %v4564
        %v5101 = vunpack.c.l.b16 %v4565
        %v5102 = vunpack.c.l.b16 %v4566
        %v5103 = vunpack.c.l.b16 %v4567
        %v5104 = vunpack.c.l.b16 %v4568
        %v5105 = vunpack.c.l.b16 %v4569
        %v5106 = vunpack.c.l.b16 %v4570
        %v5107 = vunpack.c.l.b16 %v4571
        %v5108 = vunpack.c.l.b16 %v4572
        %v5109 = vunpack.c.l.b16 %v4573
        %v5110 = vunpack.c.l.b16 %v4574
        %v5111 = vunpack.c.l.b16 %v4575
        %v5112 = vunpack.c.l.b16 %v4576
        %v5113 = vunpack.c.l.b16 %v4577
        %v5114 = vunpack.c.l.b16 %v4578
        %v5115 = vunpack.c.l.b16 %v4579
        %v5116 = vunpack.c.l.b16 %v4580
        %v5117 = vunpack.c.l.b16 %v4581
        %v5118 = vunpack.c.l.b16 %v4582
        %v5119 = vunpack.c.l.b16 %v4583
        %v5120 = vunpack.c.l.b16 %v4584
        %v5121 = vunpack.c.l.b16 %v4585
        %v5122 = vunpack.c.l.b16 %v4586
        %v5123 = vunpack.c.l.b16 %v4587
        %v5124 = vunpack.c.l.b16 %v4588
        %v5125 = vunpack.c.l.b16 %v4589
        %v5126 = vunpack.c.l.b16 %v4590
        %v5127 = vunpack.c.l.b16 %v4591
        %v5128 = vunpack.c.l.b16 %v4592
        %v5129 = vunpack.c.l.b16 %v4593
        %v5130 = vunpack.c.l.b16 %v4594
        %v5131 = vunpack.c.l.b16 %v4595
        %v5132 = vunpack.c.l.b16 %v4596
        %v5133 = vunpack.c.l.b16 %v4597
        %v5134 = vunpack.c.l.b16 %v4598
        %v5135 = vunpack.c.l.b16 %v4599
        %v5136 = vunpack.c.l.b16 %v4600
        %v5137 = vunpack.c.l.b16 %v4601
        %v5138 = vunpack.c.l.b16 %v4602
        %v5139 = vunpack.c.l.b16 %v4603
        %v5140 = vunpack.c.l.b16 %v4604
        %v5141 = vunpack.c.l.b16 %v4605
        %v5142 = vunpack.c.l.b16 %v4606
        %v5143 = vunpack.c.l.b16 %v4607
        %v5144 = vunpack.c.l.b16 %v4608
        %v5145 = vunpack.c.l.b16 %v4609
        %v5146 = vunpack.c.l.b16 %v4610
        %v5147 = vunpack.c.l.b16 %v4611
        %v5148 = vunpack.c.l.b16 %v4612
        %v5149 = vunpack.c.l.b16 %v4613
        %v5150 = vunpack.c.l.b16 %v4614
        %v5151 = vunpack.c.l.b16 %v4615
        %v5152 = vunpack.c.l.b16 %v4616
        %v5153 = vunpack.c.l.b16 %v4617
        %v5154 = vunpack.c.l.b16 %v4618
        %v5155 = vunpack.c.l.b16 %v4619
        %v5156 = vunpack.c.l.b16 %v4620
        %v5157 = vunpack.c.l.b16 %v4621
        %v5158 = vunpack.c.l.b16 %v4622
        %v5159 = vunpack.c.l.b16 %v4623
        %v5160 = vunpack.c.l.b16 %v4624
        %v5161 = vunpack.c.l.b16 %v4625
        %v5162 = vunpack.c.l.b16 %v4626
        %v5163 = vunpack.c.l.b16 %v4627
        %v5164 = vunpack.c.l.b16 %v4628
        %v5165 = vunpack.c.l.b16 %v4629
        %v5166 = vunpack.c.l.b16 %v4630
        %v5167 = vunpack.c.l.b16 %v4631
        %v5168 = vunpack.c.l.b16 %v4632
        %v5169 = vunpack.c.l.b16 %v4633
        %v5170 = vunpack.c.l.b16 %v4634
        %v5171 = vunpack.c.l.b16 %v4635
        %v5172 = vunpack.c.l.b16 %v4636
        %v5173 = vunpack.c.l.b16 %v4637
        %v5174 = vunpack.c.l.b16 %v4638
        %v5175 = vunpack.c.l.b16 %v4639
        %v5176 = vunpack.c.l.b16 %v4640
        %v5177 = vunpack.c.l.b16 %v4641
        %v5178 = vunpack.c.l.b16 %v4642
        %v5179 = vunpack.c.l.b16 %v4643
        %v5180 = vunpack.c.l.b16 %v4644
        %v5181 = vunpack.c.l.b16 %v4645
        %v5182 = vunpack.c.l.b16 %v4646
        %v5183 = vunpack.c.l.b16 %v4647
        %v5184 = vunpack.c.l.b16 %v4648
        %v5185 = vunpack.c.l.b16 %v4649
        %v5186 = vunpack.c.l.b16 %v4650
        %v5187 = vunpack.c.l.b16 %v4651
        %v5188 = vunpack.c.l.b16 %v4652
        %v5189 = vunpack.c.l.b16 %v4653
        %v5190 = vunpack.c.l.b16 %v4654
        %v5191 = vunpack.c.l.b16 %v4655
        %v5192 = vunpack.c.l.b16 %v4656
        %v5193 = vunpack.c.l.b16 %v4657
        %v5194 = vunpack.c.l.b16 %v4658
        %v5195 = vunpack.c.l.b16 %v4659
        %v5196 = vunpack.c.l.b16 %v4660
        %v5197 = vunpack.c.l.b16 %v4661
        %v5198 = vunpack.c.l.b16 %v4662
        %v5199 = vunpack.c.l.b16 %v4663
        %v5200 = vunpack.c.l.b16 %v4664
        %v5201 = vunpack.c.l.b16 %v4665
        %v5202 = vunpack.c.l.b16 %v4666
        %v5203 = vunpack.c.l.b16 %v4667
        %v5204 = vunpack.c.l.b16 %v4668
        %v5205 = vunpack.c.l.b16 %v4669
        %v5206 = vunpack.c.l.b16 %v4670
        %v5207 = vpack.c.b16 %v4952, %v4951
        %v5208 = vpack.c.b16 %v4954, %v4953
        %v5209 = vpack.c.b16 %v4956, %v4955
        %v5210 = vpack.c.b16 %v4958, %v4957
        %v5211 = vpack.c.b16 %v4960, %v4959
        %v5212 = vpack.c.b16 %v4962, %v4961
        %v5213 = vpack.c.b16 %v4964, %v4963
        %v5214 = vpack.c.b16 %v4966, %v4965
        %v5215 = vpack.c.b16 %v4968, %v4967
        %v5216 = vpack.c.b16 %v4970, %v4969
        %v5217 = vpack.c.b16 %v4972, %v4971
        %v5218 = vpack.c.b16 %v4974, %v4973
        %v5219 = vpack.c.b16 %v4976, %v4975
        %v5220 = vpack.c.b16 %v4978, %v4977
        %v5221 = vpack.c.b16 %v4980, %v4979
        %v5222 = vpack.c.b16 %v4982, %v4981
        %v5223 = vpack.c.b16 %v4984, %v4983
        %v5224 = vpack.c.b16 %v4986, %v4985
        %v5225 = vpack.c.b16 %v4988, %v4987
        %v5226 = vpack.c.b16 %v4990, %v4989
        %v5227 = vpack.c.b16 %v4992, %v4991
        %v5228 = vpack.c.b16 %v4994, %v4993
        %v5229 = vpack.c.b16 %v4996, %v4995
        %v5230 = vpack.c.b16 %v4998, %v4997
        %v5231 = vpack.c.b16 %v5000, %v4999
        %v5232 = vpack.c.b16 %v5002, %v5001
        %v5233 = vpack.c.b16 %v5004, %v5003
        %v5234 = vpack.c.b16 %v5006, %v5005
        %v5235 = vpack.c.b16 %v5008, %v5007
        %v5236 = vpack.c.b16 %v5010, %v5009
        %v5237 = vpack.c.b16 %v5012, %v5011
        %v5238 = vpack.c.b16 %v5014, %v5013
        %v5239 = vpack.c.b16 %v5016, %v5015
        %v5240 = vpack.c.b16 %v5018, %v5017
        %v5241 = vpack.c.b16 %v5020, %v5019
        %v5242 = vpack.c.b16 %v5022, %v5021
        %v5243 = vpack.c.b16 %v5024, %v5023
        %v5244 = vpack.c.b16 %v5026, %v5025
        %v5245 = vpack.c.b16 %v5028, %v5027
        %v5246 = vpack.c.b16 %v5030, %v5029
        %v5247 = vpack.c.b16 %v5032, %v5031
        %v5248 = vpack.c.b16 %v5034, %v5033
        %v5249 = vpack.c.b16 %v5036, %v5035
        %v5250 = vpack.c.b16 %v5038, %v5037
        %v5251 = vpack.c.b16 %v5040, %v5039
        %v5252 = vpack.c.b16 %v5042, %v5041
        %v5253 = vpack.c.b16 %v5044, %v5043
        %v5254 = vpack.c.b16 %v5046, %v5045
        %v5255 = vpack.c.b16 %v5048, %v5047
        %v5256 = vpack.c.b16 %v5050, %v5049
        %v5257 = vpack.c.b16 %v5052, %v5051
        %v5258 = vpack.c.b16 %v5054, %v5053
        %v5259 = vpack.c.b16 %v5056, %v5055
        %v5260 = vpack.c.b16 %v5058, %v5057
        %v5261 = vpack.c.b16 %v5060, %v5059
        %v5262 = vpack.c.b16 %v5062, %v5061
        %v5263 = vpack.c.b16 %v5064, %v5063
        %v5264 = vpack.c.b16 %v5066, %v5065
        %v5265 = vpack.c.b16 %v5068, %v5067
        %v5266 = vpack.c.b16 %v5070, %v5069
        %v5267 = vpack.c.b16 %v5072, %v5071
        %v5268 = vpack.c.b16 %v5074, %v5073
        %v5269 = vpack.c.b16 %v5076, %v5075
        %v5270 = vpack.c.b16 %v5078, %v5077
        %v5271 = vpack.c.b16 %v5080, %v5079
        %v5272 = vpack.c.b16 %v5082, %v5081
        %v5273 = vpack.c.b16 %v5084, %v5083
        %v5274 = vpack.c.b16 %v5086, %v5085
        %v5275 = vpack.c.b16 %v5088, %v5087
        %v5276 = vpack.c.b16 %v5090, %v5089
        %v5277 = vpack.c.b16 %v5092, %v5091
        %v5278 = vpack.c.b16 %v5094, %v5093
        %v5279 = vpack.c.b16 %v5096, %v5095
        %v5280 = vpack.c.b16 %v5098, %v5097
        %v5281 = vpack.c.b16 %v5100, %v5099
        %v5282 = vpack.c.b16 %v5102, %v5101
        %v5283 = vpack.c.b16 %v5104, %v5103
        %v5284 = vpack.c.b16 %v5106, %v5105
        %v5285 = vpack.c.b16 %v5108, %v5107
        %v5286 = vpack.c.b16 %v5110, %v5109
        %v5287 = vpack.c.b16 %v5112, %v5111
        %v5288 = vpack.c.b16 %v5114, %v5113
        %v5289 = vpack.c.b16 %v5116, %v5115
        %v5290 = vpack.c.b16 %v5118, %v5117
        %v5291 = vpack.c.b16 %v5120, %v5119
        %v5292 = vpack.c.b16 %v5122, %v5121
        %v5293 = vpack.c.b16 %v5124, %v5123
        %v5294 = vpack.c.b16 %v5126, %v5125
        %v5295 = vpack.c.b16 %v5128, %v5127
        %v5296 = vpack.c.b16 %v5130, %v5129
        %v5297 = vpack.c.b16 %v5132, %v5131
        %v5298 = vpack.c.b16 %v5134, %v5133
        %v5299 = vpack.c.b16 %v5136, %v5135
        %v5300 = vpack.c.b16 %v5138, %v5137
        %v5301 = vpack.c.b16 %v5140, %v5139
        %v5302 = vpack.c.b16 %v5142, %v5141
        %v5303 = vpack.c.b16 %v5144, %v5143
        %v5304 = vpack.c.b16 %v5146, %v5145
        %v5305 = vpack.c.b16 %v5148, %v5147
        %v5306 = vpack.c.b16 %v5150, %v5149
        %v5307 = vpack.c.b16 %v5152, %v5151
        %v5308 = vpack.c.b16 %v5154, %v5153
        %v5309 = vpack.c.b16 %v5156, %v5155
        %v5310 = vpack.c.b16 %v5158, %v5157
        %v5311 = vpack.c.b16 %v5160, %v5159
        %v5312 = vpack.c.b16 %v5162, %v5161
        %v5313 = vpack.c.b16 %v5164, %v5163
        %v5314 = vpack.c.b16 %v5166, %v5165
        %v5315 = vpack.c.b16 %v5168, %v5167
        %v5316 = vpack.c.b16 %v5170, %v5169
        %v5317 = vpack.c.b16 %v5172, %v5171
        %v5318 = vpack.c.b16 %v5174, %v5173
        %v5319 = vpack.c.b16 %v5176, %v5175
        %v5320 = vpack.c.b16 %v5178, %v5177
        %v5321 = vpack.c.b16 %v5180, %v5179
        %v5322 = vpack.c.b16 %v5182, %v5181
        %v5323 = vpack.c.b16 %v5184, %v5183
        %v5324 = vpack.c.b16 %v5186, %v5185
        %v5325 = vpack.c.b16 %v5188, %v5187
        %v5326 = vpack.c.b16 %v5190, %v5189
        %v5327 = vpack.c.b16 %v5192, %v5191
        %v5328 = vpack.c.b16 %v5194, %v5193
        %v5329 = vpack.c.b16 %v5196, %v5195
        %v5330 = vpack.c.b16 %v5198, %v5197
        %v5331 = vpack.c.b16 %v5200, %v5199
        %v5332 = vpack.c.b16 %v5202, %v5201
        %v5333 = vpack.c.b16 %v5204, %v5203
        %v5334 = vpack.c.b16 %v5206, %v5205
        %5463 = vmatprep.subr.bf16.mxu0 0
        %5464 = vmatpush1.bf16.msra.mxu0 %v5207
        %5465 = vmatprep.subr.bf16.mxu0 0
        %5466 = vmatpush1.bf16.msra.mxu0 %v5208
        %5467 = vmatprep.subr.bf16.mxu0 0
        %5468 = vmatpush1.bf16.msra.mxu0 %v5209
        %5469 = vmatprep.subr.bf16.mxu0 0
        %5470 = vmatpush1.bf16.msra.mxu0 %v5210
        %5471 = vmatprep.subr.bf16.mxu0 0
        %5472 = vmatpush1.bf16.msra.mxu0 %v5211
        %5473 = vmatprep.subr.bf16.mxu0 0
        %5474 = vmatpush1.bf16.msra.mxu0 %v5212
        %5475 = vmatprep.subr.bf16.mxu0 0
        %5476 = vmatpush1.bf16.msra.mxu0 %v5213
        %5477 = vmatprep.subr.bf16.mxu0 0
        %5478 = vmatpush1.bf16.msra.mxu0 %v5214
        %5479 = vmatprep.subr.bf16.mxu0 0
        %5480 = vmatpush1.bf16.msra.mxu0 %v5215
        %5481 = vmatprep.subr.bf16.mxu0 0
        %5482 = vmatpush1.bf16.msra.mxu0 %v5216
        %5483 = vmatprep.subr.bf16.mxu0 0
        %5484 = vmatpush1.bf16.msra.mxu0 %v5217
        %5485 = vmatprep.subr.bf16.mxu0 0
        %5486 = vmatpush1.bf16.msra.mxu0 %v5218
        %5487 = vmatprep.subr.bf16.mxu0 0
        %5488 = vmatpush1.bf16.msra.mxu0 %v5219
        %5489 = vmatprep.subr.bf16.mxu0 0
        %5490 = vmatpush1.bf16.msra.mxu0 %v5220
        %5491 = vmatprep.subr.bf16.mxu0 0
        %5492 = vmatpush1.bf16.msra.mxu0 %v5221
        %5493 = vmatprep.subr.bf16.mxu0 0
        %5494 = vmatpush1.bf16.msra.mxu0 %v5222
        %5495 = vmatprep.mubr.bf16.mxu0 %v4674
        %5496 = vmatmul.mubr.bf16.gmra.mrb[0].mxu0 %v4673
        %v5497 = vpop.f32.mrb[0].mxu0
        %v5498 = vadd.f32 %v4693, %v5497
        %v5499 = vpop.f32.mrb[0].mxu0
        %v5500 = vpop.f32.mrb[0].mxu0
        %v5501 = vadd.f32 %v4693, %v5500
        %v5502 = vpop.f32.mrb[0].mxu0
        %5503 = vdwg.mxu0
        %5504 = vmatprep.subr.bf16.mxu0 0
        %5505 = vmatpush1.bf16.msra.mxu0 %v5223
        %5506 = vmatprep.subr.bf16.mxu0 0
        %5507 = vmatpush1.bf16.msra.mxu0 %v5224
        %5508 = vmatprep.subr.bf16.mxu0 0
        %5509 = vmatpush1.bf16.msra.mxu0 %v5225
        %5510 = vmatprep.subr.bf16.mxu0 0
        %5511 = vmatpush1.bf16.msra.mxu0 %v5226
        %5512 = vmatprep.subr.bf16.mxu0 0
        %5513 = vmatpush1.bf16.msra.mxu0 %v5227
        %5514 = vmatprep.subr.bf16.mxu0 0
        %5515 = vmatpush1.bf16.msra.mxu0 %v5228
        %5516 = vmatprep.subr.bf16.mxu0 0
        %5517 = vmatpush1.bf16.msra.mxu0 %v5229
        %5518 = vmatprep.subr.bf16.mxu0 0
        %5519 = vmatpush1.bf16.msra.mxu0 %v5230
        %5520 = vmatprep.subr.bf16.mxu0 0
        %5521 = vmatpush1.bf16.msra.mxu0 %v5231
        %5522 = vmatprep.subr.bf16.mxu0 0
        %5523 = vmatpush1.bf16.msra.mxu0 %v5232
        %5524 = vmatprep.subr.bf16.mxu0 0
        %5525 = vmatpush1.bf16.msra.mxu0 %v5233
        %5526 = vmatprep.subr.bf16.mxu0 0
        %5527 = vmatpush1.bf16.msra.mxu0 %v5234
        %5528 = vmatprep.subr.bf16.mxu0 0
        %5529 = vmatpush1.bf16.msra.mxu0 %v5235
        %5530 = vmatprep.subr.bf16.mxu0 0
        %5531 = vmatpush1.bf16.msra.mxu0 %v5236
        %5532 = vmatprep.subr.bf16.mxu0 0
        %5533 = vmatpush1.bf16.msra.mxu0 %v5237
        %5534 = vmatprep.subr.bf16.mxu0 0
        %5535 = vmatpush1.bf16.msra.mxu0 %v5238
        %5536 = vmatprep.mubr.bf16.mxu0 %v4676
        %5537 = vmatmul.mubr.bf16.gmra.mrb[0].mxu0 %v4675
        %v5538 = vpop.f32.mrb[0].mxu0
        %v5539 = vadd.f32 %v5498, %v5538
        %v5540 = vpop.f32.mrb[0].mxu0
        %v5541 = vpop.f32.mrb[0].mxu0
        %v5542 = vadd.f32 %v5501, %v5541
        %v5543 = vpop.f32.mrb[0].mxu0
        %5544 = vdwg.mxu0
        %5545 = vmatprep.subr.bf16.mxu0 0
        %5546 = vmatpush1.bf16.msra.mxu0 %v5239
        %5547 = vmatprep.subr.bf16.mxu0 0
        %5548 = vmatpush1.bf16.msra.mxu0 %v5240
        %5549 = vmatprep.subr.bf16.mxu0 0
        %5550 = vmatpush1.bf16.msra.mxu0 %v5241
        %5551 = vmatprep.subr.bf16.mxu0 0
        %5552 = vmatpush1.bf16.msra.mxu0 %v5242
        %5553 = vmatprep.subr.bf16.mxu0 0
        %5554 = vmatpush1.bf16.msra.mxu0 %v5243
        %5555 = vmatprep.subr.bf16.mxu0 0
        %5556 = vmatpush1.bf16.msra.mxu0 %v5244
        %5557 = vmatprep.subr.bf16.mxu0 0
        %5558 = vmatpush1.bf16.msra.mxu0 %v5245
        %5559 = vmatprep.subr.bf16.mxu0 0
        %5560 = vmatpush1.bf16.msra.mxu0 %v5246
        %5561 = vmatprep.subr.bf16.mxu0 0
        %5562 = vmatpush1.bf16.msra.mxu0 %v5247
        %5563 = vmatprep.subr.bf16.mxu0 0
        %5564 = vmatpush1.bf16.msra.mxu0 %v5248
        %5565 = vmatprep.subr.bf16.mxu0 0
        %5566 = vmatpush1.bf16.msra.mxu0 %v5249
        %5567 = vmatprep.subr.bf16.mxu0 0
        %5568 = vmatpush1.bf16.msra.mxu0 %v5250
        %5569 = vmatprep.subr.bf16.mxu0 0
        %5570 = vmatpush1.bf16.msra.mxu0 %v5251
        %5571 = vmatprep.subr.bf16.mxu0 0
        %5572 = vmatpush1.bf16.msra.mxu0 %v5252
        %5573 = vmatprep.subr.bf16.mxu0 0
        %5574 = vmatpush1.bf16.msra.mxu0 %v5253
        %5575 = vmatprep.subr.bf16.mxu0 0
        %5576 = vmatpush1.bf16.msra.mxu0 %v5254
        %5577 = vmatprep.mubr.bf16.mxu0 %v4678
        %5578 = vmatmul.mubr.bf16.gmra.mrb[0].mxu0 %v4677
        %v5579 = vpop.f32.mrb[0].mxu0
        %v5580 = vadd.f32 %v5539, %v5579
        %v5581 = vpop.f32.mrb[0].mxu0
        %v5582 = vpop.f32.mrb[0].mxu0
        %v5583 = vadd.f32 %v5542, %v5582
        %v5584 = vpop.f32.mrb[0].mxu0
        %5585 = vdwg.mxu0
        %5586 = vmatprep.subr.bf16.mxu0 0
        %5587 = vmatpush1.bf16.msra.mxu0 %v5255
        %5588 = vmatprep.subr.bf16.mxu0 0
        %5589 = vmatpush1.bf16.msra.mxu0 %v5256
        %5590 = vmatprep.subr.bf16.mxu0 0
        %5591 = vmatpush1.bf16.msra.mxu0 %v5257
        %5592 = vmatprep.subr.bf16.mxu0 0
        %5593 = vmatpush1.bf16.msra.mxu0 %v5258
        %5594 = vmatprep.subr.bf16.mxu0 0
        %5595 = vmatpush1.bf16.msra.mxu0 %v5259
        %5596 = vmatprep.subr.bf16.mxu0 0
        %5597 = vmatpush1.bf16.msra.mxu0 %v5260
        %5598 = vmatprep.subr.bf16.mxu0 0
        %5599 = vmatpush1.bf16.msra.mxu0 %v5261
        %5600 = vmatprep.subr.bf16.mxu0 0
        %5601 = vmatpush1.bf16.msra.mxu0 %v5262
        %5602 = vmatprep.subr.bf16.mxu0 0
        %5603 = vmatpush1.bf16.msra.mxu0 %v5263
        %5604 = vmatprep.subr.bf16.mxu0 0
        %5605 = vmatpush1.bf16.msra.mxu0 %v5264
        %5606 = vmatprep.subr.bf16.mxu0 0
        %5607 = vmatpush1.bf16.msra.mxu0 %v5265
        %5608 = vmatprep.subr.bf16.mxu0 0
        %5609 = vmatpush1.bf16.msra.mxu0 %v5266
        %5610 = vmatprep.subr.bf16.mxu0 0
        %5611 = vmatpush1.bf16.msra.mxu0 %v5267
        %5612 = vmatprep.subr.bf16.mxu0 0
        %5613 = vmatpush1.bf16.msra.mxu0 %v5268
        %5614 = vmatprep.subr.bf16.mxu0 0
        %5615 = vmatpush1.bf16.msra.mxu0 %v5269
        %5616 = vmatprep.subr.bf16.mxu0 0
        %5617 = vmatpush1.bf16.msra.mxu0 %v5270
        %5618 = vmatprep.mubr.bf16.mxu0 %v4680
        %5619 = vmatmul.mubr.bf16.gmra.mrb[0].mxu0 %v4679
        %v5620 = vpop.f32.mrb[0].mxu0
        %v5621 = vadd.f32 %v5580, %v5620
        %v5622 = vpop.f32.mrb[0].mxu0
        %v5623 = vpop.f32.mrb[0].mxu0
        %v5624 = vadd.f32 %v5583, %v5623
        %v5625 = vpop.f32.mrb[0].mxu0
        %5626 = vdwg.mxu0
        %5627 = vmatprep.subr.bf16.mxu0 0
        %5628 = vmatpush1.bf16.msra.mxu0 %v5271
        %5629 = vmatprep.subr.bf16.mxu0 0
        %5630 = vmatpush1.bf16.msra.mxu0 %v5272
        %5631 = vmatprep.subr.bf16.mxu0 0
        %5632 = vmatpush1.bf16.msra.mxu0 %v5273
        %5633 = vmatprep.subr.bf16.mxu0 0
        %5634 = vmatpush1.bf16.msra.mxu0 %v5274
        %5635 = vmatprep.subr.bf16.mxu0 0
        %5636 = vmatpush1.bf16.msra.mxu0 %v5275
        %5637 = vmatprep.subr.bf16.mxu0 0
        %5638 = vmatpush1.bf16.msra.mxu0 %v5276
        %5639 = vmatprep.subr.bf16.mxu0 0
        %5640 = vmatpush1.bf16.msra.mxu0 %v5277
        %5641 = vmatprep.subr.bf16.mxu0 0
        %5642 = vmatpush1.bf16.msra.mxu0 %v5278
        %5643 = vmatprep.subr.bf16.mxu0 0
        %5644 = vmatpush1.bf16.msra.mxu0 %v5279
        %5645 = vmatprep.subr.bf16.mxu0 0
        %5646 = vmatpush1.bf16.msra.mxu0 %v5280
        %5647 = vmatprep.subr.bf16.mxu0 0
        %5648 = vmatpush1.bf16.msra.mxu0 %v5281
        %5649 = vmatprep.subr.bf16.mxu0 0
        %5650 = vmatpush1.bf16.msra.mxu0 %v5282
        %5651 = vmatprep.subr.bf16.mxu0 0
        %5652 = vmatpush1.bf16.msra.mxu0 %v5283
        %5653 = vmatprep.subr.bf16.mxu0 0
        %5654 = vmatpush1.bf16.msra.mxu0 %v5284
        %5655 = vmatprep.subr.bf16.mxu0 0
        %5656 = vmatpush1.bf16.msra.mxu0 %v5285
        %5657 = vmatprep.subr.bf16.mxu0 0
        %5658 = vmatpush1.bf16.msra.mxu0 %v5286
        %5659 = vmatprep.mubr.bf16.mxu0 %v4682
        %5660 = vmatmul.mubr.bf16.gmra.mrb[0].mxu0 %v4681
        %v5661 = vpop.f32.mrb[0].mxu0
        %v5662 = vadd.f32 %v5621, %v5661
        %v5663 = vpop.f32.mrb[0].mxu0
        %v5664 = vpop.f32.mrb[0].mxu0
        %v5665 = vadd.f32 %v5624, %v5664
        %v5666 = vpop.f32.mrb[0].mxu0
        %5667 = vdwg.mxu0
        %5668 = vmatprep.subr.bf16.mxu0 0
        %5669 = vmatpush1.bf16.msra.mxu0 %v5287
        %5670 = vmatprep.subr.bf16.mxu0 0
        %5671 = vmatpush1.bf16.msra.mxu0 %v5288
        %5672 = vmatprep.subr.bf16.mxu0 0
        %5673 = vmatpush1.bf16.msra.mxu0 %v5289
        %5674 = vmatprep.subr.bf16.mxu0 0
        %5675 = vmatpush1.bf16.msra.mxu0 %v5290
        %5676 = vmatprep.subr.bf16.mxu0 0
        %5677 = vmatpush1.bf16.msra.mxu0 %v5291
        %5678 = vmatprep.subr.bf16.mxu0 0
        %5679 = vmatpush1.bf16.msra.mxu0 %v5292
        %5680 = vmatprep.subr.bf16.mxu0 0
        %5681 = vmatpush1.bf16.msra.mxu0 %v5293
        %5682 = vmatprep.subr.bf16.mxu0 0
        %5683 = vmatpush1.bf16.msra.mxu0 %v5294
        %5684 = vmatprep.subr.bf16.mxu0 0
        %5685 = vmatpush1.bf16.msra.mxu0 %v5295
        %5686 = vmatprep.subr.bf16.mxu0 0
        %5687 = vmatpush1.bf16.msra.mxu0 %v5296
        %5688 = vmatprep.subr.bf16.mxu0 0
        %5689 = vmatpush1.bf16.msra.mxu0 %v5297
        %5690 = vmatprep.subr.bf16.mxu0 0
        %5691 = vmatpush1.bf16.msra.mxu0 %v5298
        %5692 = vmatprep.subr.bf16.mxu0 0
        %5693 = vmatpush1.bf16.msra.mxu0 %v5299
        %5694 = vmatprep.subr.bf16.mxu0 0
        %5695 = vmatpush1.bf16.msra.mxu0 %v5300
        %5696 = vmatprep.subr.bf16.mxu0 0
        %5697 = vmatpush1.bf16.msra.mxu0 %v5301
        %5698 = vmatprep.subr.bf16.mxu0 0
        %5699 = vmatpush1.bf16.msra.mxu0 %v5302
        %5700 = vmatprep.mubr.bf16.mxu0 %v4684
        %5701 = vmatmul.mubr.bf16.gmra.mrb[0].mxu0 %v4683
        %v5702 = vpop.f32.mrb[0].mxu0
        %v5703 = vadd.f32 %v5662, %v5702
        %v5704 = vpop.f32.mrb[0].mxu0
        %v5705 = vpop.f32.mrb[0].mxu0
        %v5706 = vadd.f32 %v5665, %v5705
        %v5707 = vpop.f32.mrb[0].mxu0
        %5708 = vdwg.mxu0
        %5709 = vmatprep.subr.bf16.mxu0 0
        %5710 = vmatpush1.bf16.msra.mxu0 %v5303
        %5711 = vmatprep.subr.bf16.mxu0 0
        %5712 = vmatpush1.bf16.msra.mxu0 %v5304
        %5713 = vmatprep.subr.bf16.mxu0 0
        %5714 = vmatpush1.bf16.msra.mxu0 %v5305
        %5715 = vmatprep.subr.bf16.mxu0 0
        %5716 = vmatpush1.bf16.msra.mxu0 %v5306
        %5717 = vmatprep.subr.bf16.mxu0 0
        %5718 = vmatpush1.bf16.msra.mxu0 %v5307
        %5719 = vmatprep.subr.bf16.mxu0 0
        %5720 = vmatpush1.bf16.msra.mxu0 %v5308
        %5721 = vmatprep.subr.bf16.mxu0 0
        %5722 = vmatpush1.bf16.msra.mxu0 %v5309
        %5723 = vmatprep.subr.bf16.mxu0 0
        %5724 = vmatpush1.bf16.msra.mxu0 %v5310
        %5725 = vmatprep.subr.bf16.mxu0 0
        %5726 = vmatpush1.bf16.msra.mxu0 %v5311
        %5727 = vmatprep.subr.bf16.mxu0 0
        %5728 = vmatpush1.bf16.msra.mxu0 %v5312
        %5729 = vmatprep.subr.bf16.mxu0 0
        %5730 = vmatpush1.bf16.msra.mxu0 %v5313
        %5731 = vmatprep.subr.bf16.mxu0 0
        %5732 = vmatpush1.bf16.msra.mxu0 %v5314
        %5733 = vmatprep.subr.bf16.mxu0 0
        %5734 = vmatpush1.bf16.msra.mxu0 %v5315
        %5735 = vmatprep.subr.bf16.mxu0 0
        %5736 = vmatpush1.bf16.msra.mxu0 %v5316
        %5737 = vmatprep.subr.bf16.mxu0 0
        %5738 = vmatpush1.bf16.msra.mxu0 %v5317
        %5739 = vmatprep.subr.bf16.mxu0 0
        %5740 = vmatpush1.bf16.msra.mxu0 %v5318
        %5741 = vmatprep.mubr.bf16.mxu0 %v4686
        %5742 = vmatmul.mubr.bf16.gmra.mrb[0].mxu0 %v4685
        %v5743 = vpop.f32.mrb[0].mxu0
        %v5744 = vadd.f32 %v5703, %v5743
        %v5745 = vpop.f32.mrb[0].mxu0
        %v5746 = vpop.f32.mrb[0].mxu0
        %v5747 = vadd.f32 %v5706, %v5746
        %v5748 = vpop.f32.mrb[0].mxu0
        %5749 = vdwg.mxu0
        %5750 = vmatprep.subr.bf16.mxu0 0
        %5751 = vmatpush1.bf16.msra.mxu0 %v5319
        %5752 = vmatprep.subr.bf16.mxu0 0
        %5753 = vmatpush1.bf16.msra.mxu0 %v5320
        %5754 = vmatprep.subr.bf16.mxu0 0
        %5755 = vmatpush1.bf16.msra.mxu0 %v5321
        %5756 = vmatprep.subr.bf16.mxu0 0
        %5757 = vmatpush1.bf16.msra.mxu0 %v5322
        %5758 = vmatprep.subr.bf16.mxu0 0
        %5759 = vmatpush1.bf16.msra.mxu0 %v5323
        %5760 = vmatprep.subr.bf16.mxu0 0
        %5761 = vmatpush1.bf16.msra.mxu0 %v5324
        %5762 = vmatprep.subr.bf16.mxu0 0
        %5763 = vmatpush1.bf16.msra.mxu0 %v5325
        %5764 = vmatprep.subr.bf16.mxu0 0
        %5765 = vmatpush1.bf16.msra.mxu0 %v5326
        %5766 = vmatprep.subr.bf16.mxu0 0
        %5767 = vmatpush1.bf16.msra.mxu0 %v5327
        %5768 = vmatprep.subr.bf16.mxu0 0
        %5769 = vmatpush1.bf16.msra.mxu0 %v5328
        %5770 = vmatprep.subr.bf16.mxu0 0
        %5771 = vmatpush1.bf16.msra.mxu0 %v5329
        %5772 = vmatprep.subr.bf16.mxu0 0
        %5773 = vmatpush1.bf16.msra.mxu0 %v5330
        %5774 = vmatprep.subr.bf16.mxu0 0
        %5775 = vmatpush1.bf16.msra.mxu0 %v5331
        %5776 = vmatprep.subr.bf16.mxu0 0
        %5777 = vmatpush1.bf16.msra.mxu0 %v5332
        %5778 = vmatprep.subr.bf16.mxu0 0
        %5779 = vmatpush1.bf16.msra.mxu0 %v5333
        %5780 = vmatprep.subr.bf16.mxu0 0
        %5781 = vmatpush1.bf16.msra.mxu0 %v5334
        %5782 = vmatprep.mubr.bf16.mxu0 %v4688
        %5783 = vmatmul.mubr.bf16.gmra.mrb[0].mxu0 %v4687
        %v5784 = vpop.f32.mrb[0].mxu0
        %v5785 = vadd.f32 %v5744, %v5784
        %v5786 = vpop.f32.mrb[0].mxu0
        %v5787 = vpop.f32.mrb[0].mxu0
        %v5788 = vadd.f32 %v5747, %v5787
        %v5789 = vpop.f32.mrb[0].mxu0
        %5790 = vdwg.mxu0
        %v5791 = vadd.f32 %v3658, %v5785
        %v5792 = vadd.f32 %v3659, %v5788
        %s5793 = scalar_lea.vmem %s11, 1
        %v5794 = vld [vmem:[%s5793] sm:$0x1]
        %s5795 = scalar_lea.vmem %s12, 1
        %v5796 = vld [vmem:[%s5795] sm:$0x1]
        %v5797 = vsel %vm545, %v5791, 0.0
        %5798 = vadd.xlane.f32.xlu0 %v5797
        %v5799 = vpop.xlane.xlu0 %5798
        %v5800 = vsel %vm545, %v5792, 0.0
        %5801 = vadd.xlane.f32.xlu0 %v5800
        %v5802 = vpop.xlane.xlu0 %5801
        %v5803 = vmul.f32 %v5799, %v964
        %v5804 = vmul.f32 %v5802, %v964
        %v5805 = vsub.f32 %v5791, %v5803
        %v5806 = vsub.f32 %v5792, %v5804
        %v5807 = vmul.f32 %v5805, %v5805
        %v5808 = vmul.f32 %v5806, %v5806
        %v5809 = vsel %vm545, %v5807, 0.0
        %5810 = vadd.xlane.f32.xlu0 %v5809
        %v5811 = vpop.xlane.xlu0 %5810
        %v5812 = vsel %vm545, %v5808, 0.0
        %5813 = vadd.xlane.f32.xlu0 %v5812
        %v5814 = vpop.xlane.xlu0 %5813
        %v5815 = vmul.f32 %v5811, %v964
        %v5816 = vmul.f32 %v5814, %v964
        %v5817 = vadd.f32 %v5815, 1e-05
        %v5818 = vadd.f32 %v5816, 1e-05
        %v5819 = vrsqrt.pop %v5817
        %v5820 = vrsqrt.pop %v5818
        %v5821 = vmul.f32 %v5805, %v5819
        %v5822 = vmul.f32 %v5806, %v5820
        %v5824 = vlaneseq
        %v5825 = vshrl.u32 %v5824, 7
        %v5826 = vsub.s32 0, %v5825
        %v5827 = vrot.slane %v5794, %v5826
        %v5829 = vmul.f32 %v5821, %v5827
        %v5830 = vmul.f32 %v5822, %v5827
        %v5832 = vlaneseq
        %v5833 = vshrl.u32 %v5832, 7
        %v5834 = vsub.s32 0, %v5833
        %v5835 = vrot.slane %v5796, %v5834
        %v5837 = vadd.f32 %v5829, %v5835
        %v5838 = vadd.f32 %v5830, %v5835
        %s5839 = scalar_lea.vmem %s1, 40
        %v5840 = vld [vmem:[%s5839] sm:$0xf]
        %v5841 = vld [vmem:[%s5839 + $0x4] sm:$0xf]
        %v5842 = vld [vmem:[%s5839 + $0x8] sm:$0xf]
        %v5843 = vld [vmem:[%s5839 + $0xc] sm:$0xf]
        %v5844 = vld [vmem:[%s5839 + $0x10] sm:$0xf]
        %s5845 = scalar_lea.vmem %s2, 2
        %v5846 = vld [vmem:[%s5845] sm:$0x1]
        %v5847 = vpack.c.bf16 %v5838, %v5837
        %v5849 = vlaneseq
        %v5850 = vshrl.u32 %v5849, 7
        %v5851 = vsub.s32 0, %v5850
        %v5852 = vrot.slane %v5846, %v5851
        %v5859 = vunpack.c.l.b16 %v5840
        %v5860 = vunpack.c.l.b16 %v5841
        %v5861 = vunpack.c.l.b16 %v5842
        %v5862 = vunpack.c.l.b16 %v5843
        %v5863 = vunpack.c.l.b16 %v5844
        %v5864 = vpack.c.b16 %v5860, %v5859
        %v5865 = vpack.c.b16 %v5862, %v5861
        %v5866 = vpack.c.b16 %v5863, %v5863
        %v5870 = vsel %vm545, %v5847, 0
        %v5873 = vsel %vm549, %v5866, 0
        %5875 = vmatprep.subr.bf16.mxu0 0
        %5876 = vmatpush1.bf16.msra.mxu0 %v5864
        %5877 = vmatprep.subr.bf16.mxu0 0
        %5878 = vmatpush1.bf16.msra.mxu0 %v5865
        %5879 = vmatprep.subr.bf16.mxu0 0
        %5880 = vmatpush1.bf16.msra.mxu0 %v5873
        %5881 = vmatprep.subr.bf16.mxu0 0
        %5882 = vmatpush1.bf16.msra.mxu0 0
        %5883 = vmatprep.subr.bf16.mxu0 0
        %5884 = vmatpush1.bf16.msra.mxu0 0
        %5885 = vmatprep.subr.bf16.mxu0 0
        %5886 = vmatpush1.bf16.msra.mxu0 0
        %5887 = vmatprep.subr.bf16.mxu0 0
        %5888 = vmatpush1.bf16.msra.mxu0 0
        %5889 = vmatprep.subr.bf16.mxu0 0
        %5890 = vmatpush1.bf16.msra.mxu0 0
        %5891 = vmatprep.subr.bf16.mxu0 0
        %5892 = vmatpush1.bf16.msra.mxu0 0
        %5893 = vmatprep.subr.bf16.mxu0 0
        %5894 = vmatpush1.bf16.msra.mxu0 0
        %5895 = vmatprep.subr.bf16.mxu0 0
        %5896 = vmatpush1.bf16.msra.mxu0 0
        %5897 = vmatprep.subr.bf16.mxu0 0
        %5898 = vmatpush1.bf16.msra.mxu0 0
        %5899 = vmatprep.subr.bf16.mxu0 0
        %5900 = vmatpush1.bf16.msra.mxu0 0
        %5901 = vmatprep.subr.bf16.mxu0 0
        %5902 = vmatpush1.bf16.msra.mxu0 0
        %5903 = vmatprep.subr.bf16.mxu0 0
        %5904 = vmatpush1.bf16.msra.mxu0 0
        %5905 = vmatprep.subr.bf16.mxu0 0
        %5906 = vmatpush1.bf16.msra.mxu0 0
        %5907 = vmatprep.mubr.bf16.mxu0 0
        %5908 = vmatmul.mubr.bf16.gmra.mrb[0].mxu0 %v5870
        %v5909 = vpop.f32.mrb[0].mxu0
        %v5910 = vadd.f32 %v5852, %v5909
        %v5911 = vpop.f32.mrb[0].mxu0
        %v5912 = vpop.f32.mrb[0].mxu0
        %v5913 = vadd.f32 %v5852, %v5912
        %v5914 = vpop.f32.mrb[0].mxu0
        %5915 = vdwg.mxu0
        %v5916 = vmul.f32 %v5910, %v501
        %v5917 = vmul.f32 %v5913, %v501
        %v5918 = vmul.f32 %v5910, %v506
        %v5919 = vmul.f32 %v5913, %v506
        %v5920 = vmul.f32 %v5910, %v511
        %v5921 = vmul.f32 %v5913, %v511
        %v5922 = vmul.f32 %v5910, %v516
        %v5923 = vmul.f32 %v5913, %v516
        %v5924 = vpack.c.bf16 %v5917, %v5916
        %v5925 = vpack.c.bf16 %v5919, %v5918
        %v5926 = vpack.c.bf16 %v5921, %v5920
        %v5927 = vpack.c.bf16 %v5923, %v5922
        %v5928 = vpack.c.bf16 %v5913, %v5910
        %5930 = vrot.lane.b32.xlu0 %v5928, 88
        %v5931 = vpop.permute.xlu0 %5930
        %v5933 = vsel %vm545, %v5924, 0
        %v5936 = vsel %vm545, %v5925, 0
        %v5939 = vsel %vm545, %v5926, 0
        %v5942 = vsel %vm545, %v5927, 0
        %v5945 = vsel %vm545, %v5931, 0
        %5947 = vmatprep.subr.bf16.mxu0 0
        %5948 = vmatpush1.bf16.xpose.msra.mxu0 %v5945
        %5949 = vmatprep.subr.bf16.mxu0 0
        %5950 = vmatpush1.bf16.xpose.msra.mxu0 0
        %5951 = vmatprep.subr.bf16.mxu0 0
        %5952 = vmatpush1.bf16.xpose.msra.mxu0 0
        %5953 = vmatprep.subr.bf16.mxu0 0
        %5954 = vmatpush1.bf16.xpose.msra.mxu0 0
        %5955 = vmatprep.subr.bf16.mxu0 0
        %5956 = vmatpush1.bf16.xpose.msra.mxu0 0
        %5957 = vmatprep.subr.bf16.mxu0 0
        %5958 = vmatpush1.bf16.xpose.msra.mxu0 0
        %5959 = vmatprep.subr.bf16.mxu0 0
        %5960 = vmatpush1.bf16.xpose.msra.mxu0 0
        %5961 = vmatprep.subr.bf16.mxu0 0
        %5962 = vmatpush1.bf16.xpose.msra.mxu0 0
        %5963 = vmatprep.subr.bf16.mxu0 0
        %5964 = vmatpush1.bf16.xpose.msra.mxu0 0
        %5965 = vmatprep.subr.bf16.mxu0 0
        %5966 = vmatpush1.bf16.xpose.msra.mxu0 0
        %5967 = vmatprep.subr.bf16.mxu0 0
        %5968 = vmatpush1.bf16.xpose.msra.mxu0 0
        %5969 = vmatprep.subr.bf16.mxu0 0
        %5970 = vmatpush1.bf16.xpose.msra.mxu0 0
        %5971 = vmatprep.subr.bf16.mxu0 0
        %5972 = vmatpush1.bf16.xpose.msra.mxu0 0
        %5973 = vmatprep.subr.bf16.mxu0 0
        %5974 = vmatpush1.bf16.xpose.msra.mxu0 0
        %5975 = vmatprep.subr.bf16.mxu0 0
        %5976 = vmatpush1.bf16.xpose.msra.mxu0 0
        %5977 = vmatprep.subr.bf16.mxu0 0
        %5978 = vmatpush1.bf16.xpose.msra.mxu0 0
        %5979 = vmatprep.mubr.bf16.mxu0 0
        %5980 = vmatmul.mubr.bf16.gmra.mrb[0].mxu0 %v5933
        %v5981 = vpop.f32.mrb[0].mxu0
        %v5982 = vadd.f32 0.0, %v5981
        %v5983 = vpop.f32.mrb[0].mxu0
        %v5984 = vpop.f32.mrb[0].mxu0
        %v5985 = vadd.f32 0.0, %v5984
        %v5986 = vpop.f32.mrb[0].mxu0
        %5987 = vmatprep.mubr.bf16.mxu0 0
        %5988 = vmatmul.mubr.bf16.gmra.mrb[0].mxu0 %v5936
        %v5989 = vpop.f32.mrb[0].mxu0
        %v5990 = vadd.f32 0.0, %v5989
        %v5991 = vpop.f32.mrb[0].mxu0
        %v5992 = vpop.f32.mrb[0].mxu0
        %v5993 = vadd.f32 0.0, %v5992
        %v5994 = vpop.f32.mrb[0].mxu0
        %5995 = vmatprep.mubr.bf16.mxu0 0
        %5996 = vmatmul.mubr.bf16.gmra.mrb[0].mxu0 %v5939
        %v5997 = vpop.f32.mrb[0].mxu0
        %v5998 = vadd.f32 0.0, %v5997
        %v5999 = vpop.f32.mrb[0].mxu0
        %v6000 = vpop.f32.mrb[0].mxu0
        %v6001 = vadd.f32 0.0, %v6000
        %v6002 = vpop.f32.mrb[0].mxu0
        %6003 = vmatprep.mubr.bf16.mxu0 0
        %6004 = vmatmul.mubr.bf16.gmra.mrb[0].mxu0 %v5942
        %v6005 = vpop.f32.mrb[0].mxu0
        %v6006 = vadd.f32 0.0, %v6005
        %v6007 = vpop.f32.mrb[0].mxu0
        %v6008 = vpop.f32.mrb[0].mxu0
        %v6009 = vadd.f32 0.0, %v6008
        %v6010 = vpop.f32.mrb[0].mxu0
        %6011 = vdwg.mxu0
        %v6012 = vsel %vm690, %v5982, -inf
        %6013 = vmax.xlane.f32.xlu0 %v6012
        %v6014 = vpop.xlane.xlu0 %6013
        %v6015 = vsel %vm690, %v5985, -inf
        %6016 = vmax.xlane.f32.xlu0 %v6015
        %v6017 = vpop.xlane.xlu0 %6016
        %v6018 = vsel %vm690, %v5990, -inf
        %6019 = vmax.xlane.f32.xlu0 %v6018
        %v6020 = vpop.xlane.xlu0 %6019
        %v6021 = vsel %vm690, %v5993, -inf
        %6022 = vmax.xlane.f32.xlu0 %v6021
        %v6023 = vpop.xlane.xlu0 %6022
        %v6024 = vsel %vm690, %v5998, -inf
        %6025 = vmax.xlane.f32.xlu0 %v6024
        %v6026 = vpop.xlane.xlu0 %6025
        %v6027 = vsel %vm690, %v6001, -inf
        %6028 = vmax.xlane.f32.xlu0 %v6027
        %v6029 = vpop.xlane.xlu0 %6028
        %v6030 = vsel %vm690, %v6006, -inf
        %6031 = vmax.xlane.f32.xlu0 %v6030
        %v6032 = vpop.xlane.xlu0 %6031
        %v6033 = vsel %vm690, %v6009, -inf
        %6034 = vmax.xlane.f32.xlu0 %v6033
        %v6035 = vpop.xlane.xlu0 %6034
        %v6036 = vsub.f32 %v5982, %v6014
        %v6037 = vsub.f32 %v5985, %v6017
        %v6038 = vsub.f32 %v5990, %v6020
        %v6039 = vsub.f32 %v5993, %v6023
        %v6040 = vsub.f32 %v5998, %v6026
        %v6041 = vsub.f32 %v6001, %v6029
        %v6042 = vsub.f32 %v6006, %v6032
        %v6043 = vsub.f32 %v6009, %v6035
        %v6044 = vmul.f32 %v6036, 1.442695
        %v6045 = vpow.pop %v6044
        %v6046 = vmul.f32 %v6037, 1.442695
        %v6047 = vpow.pop %v6046
        %v6048 = vmul.f32 %v6038, 1.442695
        %v6049 = vpow.pop %v6048
        %v6050 = vmul.f32 %v6039, 1.442695
        %v6051 = vpow.pop %v6050
        %v6052 = vmul.f32 %v6040, 1.442695
        %v6053 = vpow.pop %v6052
        %v6054 = vmul.f32 %v6041, 1.442695
        %v6055 = vpow.pop %v6054
        %v6056 = vmul.f32 %v6042, 1.442695
        %v6057 = vpow.pop %v6056
        %v6058 = vmul.f32 %v6043, 1.442695
        %v6059 = vpow.pop %v6058
        %v6060 = vsel %vm690, %v6045, 0.0
        %6061 = vadd.xlane.f32.xlu0 %v6060
        %v6062 = vpop.xlane.xlu0 %6061
        %v6063 = vsel %vm690, %v6047, 0.0
        %6064 = vadd.xlane.f32.xlu0 %v6063
        %v6065 = vpop.xlane.xlu0 %6064
        %v6066 = vsel %vm690, %v6049, 0.0
        %6067 = vadd.xlane.f32.xlu0 %v6066
        %v6068 = vpop.xlane.xlu0 %6067
        %v6069 = vsel %vm690, %v6051, 0.0
        %6070 = vadd.xlane.f32.xlu0 %v6069
        %v6071 = vpop.xlane.xlu0 %6070
        %v6072 = vsel %vm690, %v6053, 0.0
        %6073 = vadd.xlane.f32.xlu0 %v6072
        %v6074 = vpop.xlane.xlu0 %6073
        %v6075 = vsel %vm690, %v6055, 0.0
        %6076 = vadd.xlane.f32.xlu0 %v6075
        %v6077 = vpop.xlane.xlu0 %6076
        %v6078 = vsel %vm690, %v6057, 0.0
        %6079 = vadd.xlane.f32.xlu0 %v6078
        %v6080 = vpop.xlane.xlu0 %6079
        %v6081 = vsel %vm690, %v6059, 0.0
        %6082 = vadd.xlane.f32.xlu0 %v6081
        %v6083 = vpop.xlane.xlu0 %6082
        %v6084 = vrcp.pop %v6062
        %v6085 = vrcp.pop %v6065
        %v6086 = vrcp.pop %v6068
        %v6087 = vrcp.pop %v6071
        %v6088 = vrcp.pop %v6074
        %v6089 = vrcp.pop %v6077
        %v6090 = vrcp.pop %v6080
        %v6091 = vrcp.pop %v6083
        %v6092 = vmul.f32 %v6045, %v6084
        %v6093 = vmul.f32 %v6047, %v6085
        %v6094 = vmul.f32 %v6049, %v6086
        %v6095 = vmul.f32 %v6051, %v6087
        %v6096 = vmul.f32 %v6053, %v6088
        %v6097 = vmul.f32 %v6055, %v6089
        %v6098 = vmul.f32 %v6057, %v6090
        %v6099 = vmul.f32 %v6059, %v6091
        %v6100 = vpack.c.bf16 %v6093, %v6092
        %v6101 = vpack.c.bf16 %v6095, %v6094
        %v6102 = vpack.c.bf16 %v6097, %v6096
        %v6103 = vpack.c.bf16 %v6099, %v6098
        %6104 = vrot.lane.b32.xlu0 %v5928, 48
        %v6105 = vpop.permute.xlu0 %6104
        %v6108 = vsel %vm690, %v6100, 0
        %v6111 = vsel %vm690, %v6101, 0
        %v6114 = vsel %vm690, %v6102, 0
        %v6117 = vsel %vm690, %v6103, 0
        %6119 = vmatprep.subr.bf16.mxu0 0
        %6120 = vmatpush1.bf16.msra.mxu0 %v6105
        %6121 = vmatprep.subr.bf16.mxu0 0
        %6122 = vmatpush1.bf16.msra.mxu0 0
        %6123 = vmatprep.subr.bf16.mxu0 0
        %6124 = vmatpush1.bf16.msra.mxu0 0
        %6125 = vmatprep.subr.bf16.mxu0 0
        %6126 = vmatpush1.bf16.msra.mxu0 0
        %6127 = vmatprep.subr.bf16.mxu0 0
        %6128 = vmatpush1.bf16.msra.mxu0 0
        %6129 = vmatprep.subr.bf16.mxu0 0
        %6130 = vmatpush1.bf16.msra.mxu0 0
        %6131 = vmatprep.subr.bf16.mxu0 0
        %6132 = vmatpush1.bf16.msra.mxu0 0
        %6133 = vmatprep.subr.bf16.mxu0 0
        %6134 = vmatpush1.bf16.msra.mxu0 0
        %6135 = vmatprep.subr.bf16.mxu0 0
        %6136 = vmatpush1.bf16.msra.mxu0 0
        %6137 = vmatprep.subr.bf16.mxu0 0
        %6138 = vmatpush1.bf16.msra.mxu0 0
        %6139 = vmatprep.subr.bf16.mxu0 0
        %6140 = vmatpush1.bf16.msra.mxu0 0
        %6141 = vmatprep.subr.bf16.mxu0 0
        %6142 = vmatpush1.bf16.msra.mxu0 0
        %6143 = vmatprep.subr.bf16.mxu0 0
        %6144 = vmatpush1.bf16.msra.mxu0 0
        %6145 = vmatprep.subr.bf16.mxu0 0
        %6146 = vmatpush1.bf16.msra.mxu0 0
        %6147 = vmatprep.subr.bf16.mxu0 0
        %6148 = vmatpush1.bf16.msra.mxu0 0
        %6149 = vmatprep.subr.bf16.mxu0 0
        %6150 = vmatpush1.bf16.msra.mxu0 0
        %6151 = vmatprep.mubr.bf16.mxu0 0
        %6152 = vmatmul.mubr.bf16.gmra.mrb[0].mxu0 %v6108
        %v6153 = vpop.f32.mrb[0].mxu0
        %v6154 = vadd.f32 0.0, %v6153
        %v6155 = vpop.f32.mrb[0].mxu0
        %v6156 = vpop.f32.mrb[0].mxu0
        %v6157 = vadd.f32 0.0, %v6156
        %v6158 = vpop.f32.mrb[0].mxu0
        %6159 = vmatprep.mubr.bf16.mxu0 0
        %6160 = vmatmul.mubr.bf16.gmra.mrb[0].mxu0 %v6111
        %v6161 = vpop.f32.mrb[0].mxu0
        %v6162 = vadd.f32 0.0, %v6161
        %v6163 = vpop.f32.mrb[0].mxu0
        %v6164 = vpop.f32.mrb[0].mxu0
        %v6165 = vadd.f32 0.0, %v6164
        %v6166 = vpop.f32.mrb[0].mxu0
        %6167 = vmatprep.mubr.bf16.mxu0 0
        %6168 = vmatmul.mubr.bf16.gmra.mrb[0].mxu0 %v6114
        %v6169 = vpop.f32.mrb[0].mxu0
        %v6170 = vadd.f32 0.0, %v6169
        %v6171 = vpop.f32.mrb[0].mxu0
        %v6172 = vpop.f32.mrb[0].mxu0
        %v6173 = vadd.f32 0.0, %v6172
        %v6174 = vpop.f32.mrb[0].mxu0
        %6175 = vmatprep.mubr.bf16.mxu0 0
        %6176 = vmatmul.mubr.bf16.gmra.mrb[0].mxu0 %v6117
        %v6177 = vpop.f32.mrb[0].mxu0
        %v6178 = vadd.f32 0.0, %v6177
        %v6179 = vpop.f32.mrb[0].mxu0
        %v6180 = vpop.f32.mrb[0].mxu0
        %v6181 = vadd.f32 0.0, %v6180
        %v6182 = vpop.f32.mrb[0].mxu0
        %6183 = vdwg.mxu0
        %v6184 = vmul.f32 %v6154, %v501
        %v6185 = vmul.f32 %v6157, %v501
        %v6186 = vadd.f32 %v6184, 0.0
        %v6187 = vadd.f32 %v6185, 0.0
        %v6188 = vmul.f32 %v6162, %v506
        %v6189 = vmul.f32 %v6165, %v506
        %v6190 = vadd.f32 %v6186, %v6188
        %v6191 = vadd.f32 %v6187, %v6189
        %v6192 = vmul.f32 %v6170, %v511
        %v6193 = vmul.f32 %v6173, %v511
        %v6194 = vadd.f32 %v6190, %v6192
        %v6195 = vadd.f32 %v6191, %v6193
        %v6196 = vmul.f32 %v6178, %v516
        %v6197 = vmul.f32 %v6181, %v516
        %v6198 = vadd.f32 %v6194, %v6196
        %v6199 = vadd.f32 %v6195, %v6197
        %s6200 = scalar_lea.vmem %s3, 40
        %v6201 = vld [vmem:[%s6200] sm:$0xf]
        %v6202 = vld [vmem:[%s6200 + $0x4] sm:$0xf]
        %v6203 = vld [vmem:[%s6200 + $0x8] sm:$0xf]
        %v6204 = vld [vmem:[%s6200 + $0xc] sm:$0xf]
        %v6205 = vld [vmem:[%s6200 + $0x10] sm:$0xf]
        %s6206 = scalar_lea.vmem %s4, 2
        %v6207 = vld [vmem:[%s6206] sm:$0x1]
        %v6208 = vpack.c.bf16 %v6199, %v6198
        %v6210 = vlaneseq
        %v6211 = vshrl.u32 %v6210, 7
        %v6212 = vsub.s32 0, %v6211
        %v6213 = vrot.slane %v6207, %v6212
        %v6220 = vunpack.c.l.b16 %v6201
        %v6221 = vunpack.c.l.b16 %v6202
        %v6222 = vunpack.c.l.b16 %v6203
        %v6223 = vunpack.c.l.b16 %v6204
        %v6224 = vunpack.c.l.b16 %v6205
        %v6225 = vpack.c.b16 %v6221, %v6220
        %v6226 = vpack.c.b16 %v6223, %v6222
        %v6227 = vpack.c.b16 %v6224, %v6224
        %v6231 = vsel %vm545, %v6208, 0
        %v6234 = vsel %vm549, %v6227, 0
        %6236 = vmatprep.subr.bf16.mxu0 0
        %6237 = vmatpush1.bf16.msra.mxu0 %v6225
        %6238 = vmatprep.subr.bf16.mxu0 0
        %6239 = vmatpush1.bf16.msra.mxu0 %v6226
        %6240 = vmatprep.subr.bf16.mxu0 0
        %6241 = vmatpush1.bf16.msra.mxu0 %v6234
        %6242 = vmatprep.subr.bf16.mxu0 0
        %6243 = vmatpush1.bf16.msra.mxu0 0
        %6244 = vmatprep.subr.bf16.mxu0 0
        %6245 = vmatpush1.bf16.msra.mxu0 0
        %6246 = vmatprep.subr.bf16.mxu0 0
        %6247 = vmatpush1.bf16.msra.mxu0 0
        %6248 = vmatprep.subr.bf16.mxu0 0
        %6249 = vmatpush1.bf16.msra.mxu0 0
        %6250 = vmatprep.subr.bf16.mxu0 0
        %6251 = vmatpush1.bf16.msra.mxu0 0
        %6252 = vmatprep.subr.bf16.mxu0 0
        %6253 = vmatpush1.bf16.msra.mxu0 0
        %6254 = vmatprep.subr.bf16.mxu0 0
        %6255 = vmatpush1.bf16.msra.mxu0 0
        %6256 = vmatprep.subr.bf16.mxu0 0
        %6257 = vmatpush1.bf16.msra.mxu0 0
        %6258 = vmatprep.subr.bf16.mxu0 0
        %6259 = vmatpush1.bf16.msra.mxu0 0
        %6260 = vmatprep.subr.bf16.mxu0 0
        %6261 = vmatpush1.bf16.msra.mxu0 0
        %6262 = vmatprep.subr.bf16.mxu0 0
        %6263 = vmatpush1.bf16.msra.mxu0 0
        %6264 = vmatprep.subr.bf16.mxu0 0
        %6265 = vmatpush1.bf16.msra.mxu0 0
        %6266 = vmatprep.subr.bf16.mxu0 0
        %6267 = vmatpush1.bf16.msra.mxu0 0
        %6268 = vmatprep.mubr.bf16.mxu0 0
        %6269 = vmatmul.mubr.bf16.gmra.mrb[0].mxu0 %v6231
        %v6270 = vpop.f32.mrb[0].mxu0
        %v6271 = vadd.f32 %v6213, %v6270
        %v6272 = vpop.f32.mrb[0].mxu0
        %v6273 = vpop.f32.mrb[0].mxu0
        %v6274 = vadd.f32 %v6213, %v6273
        %v6275 = vpop.f32.mrb[0].mxu0
        %6276 = vdwg.mxu0
        %v6277 = vadd.f32 %v5837, %v6271
        %v6278 = vadd.f32 %v5838, %v6274
        %s6279 = scalar_lea.vmem %s5, 2
        %v6280 = vld [vmem:[%s6279] sm:$0x1]
        %s6281 = scalar_lea.vmem %s6, 2
        %v6282 = vld [vmem:[%s6281] sm:$0x1]
        %v6283 = vsel %vm545, %v6277, 0.0
        %6284 = vadd.xlane.f32.xlu0 %v6283
        %v6285 = vpop.xlane.xlu0 %6284
        %v6286 = vsel %vm545, %v6278, 0.0
        %6287 = vadd.xlane.f32.xlu0 %v6286
        %v6288 = vpop.xlane.xlu0 %6287
        %v6289 = vmul.f32 %v6285, %v964
        %v6290 = vmul.f32 %v6288, %v964
        %v6291 = vsub.f32 %v6277, %v6289
        %v6292 = vsub.f32 %v6278, %v6290
        %v6293 = vmul.f32 %v6291, %v6291
        %v6294 = vmul.f32 %v6292, %v6292
        %v6295 = vsel %vm545, %v6293, 0.0
        %6296 = vadd.xlane.f32.xlu0 %v6295
        %v6297 = vpop.xlane.xlu0 %6296
        %v6298 = vsel %vm545, %v6294, 0.0
        %6299 = vadd.xlane.f32.xlu0 %v6298
        %v6300 = vpop.xlane.xlu0 %6299
        %v6301 = vmul.f32 %v6297, %v964
        %v6302 = vmul.f32 %v6300, %v964
        %v6303 = vadd.f32 %v6301, 1e-05
        %v6304 = vadd.f32 %v6302, 1e-05
        %v6305 = vrsqrt.pop %v6303
        %v6306 = vrsqrt.pop %v6304
        %v6307 = vmul.f32 %v6291, %v6305
        %v6308 = vmul.f32 %v6292, %v6306
        %v6310 = vlaneseq
        %v6311 = vshrl.u32 %v6310, 7
        %v6312 = vsub.s32 0, %v6311
        %v6313 = vrot.slane %v6280, %v6312
        %v6315 = vmul.f32 %v6307, %v6313
        %v6316 = vmul.f32 %v6308, %v6313
        %v6318 = vlaneseq
        %v6319 = vshrl.u32 %v6318, 7
        %v6320 = vsub.s32 0, %v6319
        %v6321 = vrot.slane %v6282, %v6320
        %v6323 = vadd.f32 %v6315, %v6321
        %v6324 = vadd.f32 %v6316, %v6321
        %s6325 = scalar_lea.vmem %s7, 640
        %v6326 = vld [vmem:[%s6325] sm:$0xff]
        %v6327 = vld [vmem:[%s6325 + $0x8] sm:$0xff]
        %v6328 = vld [vmem:[%s6325 + $0x10] sm:$0xff]
        %v6329 = vld [vmem:[%s6325 + $0x18] sm:$0xff]
        %v6330 = vld [vmem:[%s6325 + $0x20] sm:$0xff]
        %v6331 = vld [vmem:[%s6325 + $0x28] sm:$0xff]
        %v6332 = vld [vmem:[%s6325 + $0x30] sm:$0xff]
        %v6333 = vld [vmem:[%s6325 + $0x38] sm:$0xff]
        %v6334 = vld [vmem:[%s6325 + $0x40] sm:$0xff]
        %v6335 = vld [vmem:[%s6325 + $0x48] sm:$0xff]
        %v6336 = vld [vmem:[%s6325 + $0x50] sm:$0xff]
        %v6337 = vld [vmem:[%s6325 + $0x58] sm:$0xff]
        %v6338 = vld [vmem:[%s6325 + $0x60] sm:$0xff]
        %v6339 = vld [vmem:[%s6325 + $0x68] sm:$0xff]
        %v6340 = vld [vmem:[%s6325 + $0x70] sm:$0xff]
        %v6341 = vld [vmem:[%s6325 + $0x78] sm:$0xff]
        %v6342 = vld [vmem:[%s6325 + $0x80] sm:$0xff]
        %v6343 = vld [vmem:[%s6325 + $0x88] sm:$0xff]
        %v6344 = vld [vmem:[%s6325 + $0x90] sm:$0xff]
        %v6345 = vld [vmem:[%s6325 + $0x98] sm:$0xff]
        %v6346 = vld [vmem:[%s6325 + $0xa0] sm:$0xff]
        %v6347 = vld [vmem:[%s6325 + $0xa8] sm:$0xff]
        %v6348 = vld [vmem:[%s6325 + $0xb0] sm:$0xff]
        %v6349 = vld [vmem:[%s6325 + $0xb8] sm:$0xff]
        %v6350 = vld [vmem:[%s6325 + $0xc0] sm:$0xff]
        %v6351 = vld [vmem:[%s6325 + $0xc8] sm:$0xff]
        %v6352 = vld [vmem:[%s6325 + $0xd0] sm:$0xff]
        %v6353 = vld [vmem:[%s6325 + $0xd8] sm:$0xff]
        %v6354 = vld [vmem:[%s6325 + $0xe0] sm:$0xff]
        %v6355 = vld [vmem:[%s6325 + $0xe8] sm:$0xff]
        %v6356 = vld [vmem:[%s6325 + $0xf0] sm:$0xff]
        %v6357 = vld [vmem:[%s6325 + $0xf8] sm:$0xff]
        %v6358 = vld [vmem:[%s6325 + $0x100] sm:$0xff]
        %v6359 = vld [vmem:[%s6325 + $0x108] sm:$0xff]
        %v6360 = vld [vmem:[%s6325 + $0x110] sm:$0xff]
        %v6361 = vld [vmem:[%s6325 + $0x118] sm:$0xff]
        %v6362 = vld [vmem:[%s6325 + $0x120] sm:$0xff]
        %v6363 = vld [vmem:[%s6325 + $0x128] sm:$0xff]
        %v6364 = vld [vmem:[%s6325 + $0x130] sm:$0xff]
        %v6365 = vld [vmem:[%s6325 + $0x138] sm:$0xff]
        %s6366 = scalar_lea.vmem %s8, 32
        %v6367 = vld [vmem:[%s6366] sm:$0xff]
        %v6368 = vld [vmem:[%s6366 + $0x8] sm:$0xff]
        %v6369 = vpack.c.bf16 %v6324, %v6323
        %v6372 = vlaneseq
        %v6373 = vshrl.u32 %v6372, 7
        %v6374 = vsub.s32 0, %v6373
        %v6375 = vrot.slane %v6367, %v6374
        %v6376 = vlaneseq
        %v6377 = vshrl.u32 %v6376, 7
        %v6378 = vsub.s32 1, %v6377
        %v6379 = vrot.slane %v6367, %v6378
        %v6380 = vlaneseq
        %v6381 = vshrl.u32 %v6380, 7
        %v6382 = vsub.s32 2, %v6381
        %v6383 = vrot.slane %v6367, %v6382
        %v6384 = vlaneseq
        %v6385 = vshrl.u32 %v6384, 7
        %v6386 = vsub.s32 3, %v6385
        %v6387 = vrot.slane %v6367, %v6386
        %v6388 = vlaneseq
        %v6389 = vshrl.u32 %v6388, 7
        %v6390 = vsub.s32 4, %v6389
        %v6391 = vrot.slane %v6367, %v6390
        %v6392 = vlaneseq
        %v6393 = vshrl.u32 %v6392, 7
        %v6394 = vsub.s32 5, %v6393
        %v6395 = vrot.slane %v6367, %v6394
        %v6396 = vlaneseq
        %v6397 = vshrl.u32 %v6396, 7
        %v6398 = vsub.s32 6, %v6397
        %v6399 = vrot.slane %v6367, %v6398
        %v6400 = vlaneseq
        %v6401 = vshrl.u32 %v6400, 7
        %v6402 = vsub.s32 7, %v6401
        %v6403 = vrot.slane %v6367, %v6402
        %v6404 = vlaneseq
        %v6405 = vshrl.u32 %v6404, 7
        %v6406 = vsub.s32 0, %v6405
        %v6407 = vrot.slane %v6368, %v6406
        %v6408 = vlaneseq
        %v6409 = vshrl.u32 %v6408, 7
        %v6410 = vsub.s32 1, %v6409
        %v6411 = vrot.slane %v6368, %v6410
        %v6412 = vlaneseq
        %v6413 = vshrl.u32 %v6412, 7
        %v6414 = vsub.s32 2, %v6413
        %v6415 = vrot.slane %v6368, %v6414
        %v6416 = vlaneseq
        %v6417 = vshrl.u32 %v6416, 7
        %v6418 = vsub.s32 3, %v6417
        %v6419 = vrot.slane %v6368, %v6418
        %v6420 = vlaneseq
        %v6421 = vshrl.u32 %v6420, 7
        %v6422 = vsub.s32 4, %v6421
        %v6423 = vrot.slane %v6368, %v6422
        %v6424 = vlaneseq
        %v6425 = vshrl.u32 %v6424, 7
        %v6426 = vsub.s32 5, %v6425
        %v6427 = vrot.slane %v6368, %v6426
        %v6428 = vlaneseq
        %v6429 = vshrl.u32 %v6428, 7
        %v6430 = vsub.s32 6, %v6429
        %v6431 = vrot.slane %v6368, %v6430
        %v6432 = vlaneseq
        %v6433 = vshrl.u32 %v6432, 7
        %v6434 = vsub.s32 7, %v6433
        %v6435 = vrot.slane %v6368, %v6434
        %v6492 = vunpack.c.l.b16 %v6326
        %v6493 = vunpack.c.h.b16 %v6326
        %v6494 = vunpack.c.l.b16 %v6327
        %v6495 = vunpack.c.h.b16 %v6327
        %v6496 = vunpack.c.l.b16 %v6328
        %v6497 = vunpack.c.h.b16 %v6328
        %v6498 = vunpack.c.l.b16 %v6329
        %v6499 = vunpack.c.h.b16 %v6329
        %v6500 = vunpack.c.l.b16 %v6330
        %v6501 = vunpack.c.h.b16 %v6330
        %v6502 = vunpack.c.l.b16 %v6331
        %v6503 = vunpack.c.h.b16 %v6331
        %v6504 = vunpack.c.l.b16 %v6332
        %v6505 = vunpack.c.h.b16 %v6332
        %v6506 = vunpack.c.l.b16 %v6333
        %v6507 = vunpack.c.h.b16 %v6333
        %v6508 = vunpack.c.l.b16 %v6334
        %v6509 = vunpack.c.h.b16 %v6334
        %v6510 = vunpack.c.l.b16 %v6335
        %v6511 = vunpack.c.h.b16 %v6335
        %v6512 = vunpack.c.l.b16 %v6336
        %v6513 = vunpack.c.h.b16 %v6336
        %v6514 = vunpack.c.l.b16 %v6337
        %v6515 = vunpack.c.h.b16 %v6337
        %v6516 = vunpack.c.l.b16 %v6338
        %v6517 = vunpack.c.h.b16 %v6338
        %v6518 = vunpack.c.l.b16 %v6339
        %v6519 = vunpack.c.h.b16 %v6339
        %v6520 = vunpack.c.l.b16 %v6340
        %v6521 = vunpack.c.h.b16 %v6340
        %v6522 = vunpack.c.l.b16 %v6341
        %v6523 = vunpack.c.h.b16 %v6341
        %v6524 = vunpack.c.l.b16 %v6342
        %v6525 = vunpack.c.h.b16 %v6342
        %v6526 = vunpack.c.l.b16 %v6343
        %v6527 = vunpack.c.h.b16 %v6343
        %v6528 = vunpack.c.l.b16 %v6344
        %v6529 = vunpack.c.h.b16 %v6344
        %v6530 = vunpack.c.l.b16 %v6345
        %v6531 = vunpack.c.h.b16 %v6345
        %v6532 = vunpack.c.l.b16 %v6346
        %v6533 = vunpack.c.h.b16 %v6346
        %v6534 = vunpack.c.l.b16 %v6347
        %v6535 = vunpack.c.h.b16 %v6347
        %v6536 = vunpack.c.l.b16 %v6348
        %v6537 = vunpack.c.h.b16 %v6348
        %v6538 = vunpack.c.l.b16 %v6349
        %v6539 = vunpack.c.h.b16 %v6349
        %v6540 = vunpack.c.l.b16 %v6350
        %v6541 = vunpack.c.h.b16 %v6350
        %v6542 = vunpack.c.l.b16 %v6351
        %v6543 = vunpack.c.h.b16 %v6351
        %v6544 = vunpack.c.l.b16 %v6352
        %v6545 = vunpack.c.h.b16 %v6352
        %v6546 = vunpack.c.l.b16 %v6353
        %v6547 = vunpack.c.h.b16 %v6353
        %v6548 = vunpack.c.l.b16 %v6354
        %v6549 = vunpack.c.h.b16 %v6354
        %v6550 = vunpack.c.l.b16 %v6355
        %v6551 = vunpack.c.h.b16 %v6355
        %v6552 = vunpack.c.l.b16 %v6356
        %v6553 = vunpack.c.h.b16 %v6356
        %v6554 = vunpack.c.l.b16 %v6357
        %v6555 = vunpack.c.h.b16 %v6357
        %v6556 = vunpack.c.l.b16 %v6358
        %v6557 = vunpack.c.h.b16 %v6358
        %v6558 = vunpack.c.l.b16 %v6359
        %v6559 = vunpack.c.h.b16 %v6359
        %v6560 = vunpack.c.l.b16 %v6360
        %v6561 = vunpack.c.h.b16 %v6360
        %v6562 = vunpack.c.l.b16 %v6361
        %v6563 = vunpack.c.h.b16 %v6361
        %v6564 = vunpack.c.l.b16 %v6362
        %v6565 = vunpack.c.h.b16 %v6362
        %v6566 = vunpack.c.l.b16 %v6363
        %v6567 = vunpack.c.h.b16 %v6363
        %v6568 = vunpack.c.l.b16 %v6364
        %v6569 = vunpack.c.h.b16 %v6364
        %v6570 = vunpack.c.l.b16 %v6365
        %v6571 = vunpack.c.h.b16 %v6365
        %v6572 = vpack.c.b16 %v6508, %v6492
        %v6573 = vpack.c.b16 %v6509, %v6493
        %v6574 = vpack.c.b16 %v6510, %v6494
        %v6575 = vpack.c.b16 %v6511, %v6495
        %v6576 = vpack.c.b16 %v6512, %v6496
        %v6577 = vpack.c.b16 %v6513, %v6497
        %v6578 = vpack.c.b16 %v6514, %v6498
        %v6579 = vpack.c.b16 %v6515, %v6499
        %v6580 = vpack.c.b16 %v6516, %v6500
        %v6581 = vpack.c.b16 %v6517, %v6501
        %v6582 = vpack.c.b16 %v6518, %v6502
        %v6583 = vpack.c.b16 %v6519, %v6503
        %v6584 = vpack.c.b16 %v6520, %v6504
        %v6585 = vpack.c.b16 %v6521, %v6505
        %v6586 = vpack.c.b16 %v6522, %v6506
        %v6587 = vpack.c.b16 %v6523, %v6507
        %v6588 = vpack.c.b16 %v6540, %v6524
        %v6589 = vpack.c.b16 %v6541, %v6525
        %v6590 = vpack.c.b16 %v6542, %v6526
        %v6591 = vpack.c.b16 %v6543, %v6527
        %v6592 = vpack.c.b16 %v6544, %v6528
        %v6593 = vpack.c.b16 %v6545, %v6529
        %v6594 = vpack.c.b16 %v6546, %v6530
        %v6595 = vpack.c.b16 %v6547, %v6531
        %v6596 = vpack.c.b16 %v6548, %v6532
        %v6597 = vpack.c.b16 %v6549, %v6533
        %v6598 = vpack.c.b16 %v6550, %v6534
        %v6599 = vpack.c.b16 %v6551, %v6535
        %v6600 = vpack.c.b16 %v6552, %v6536
        %v6601 = vpack.c.b16 %v6553, %v6537
        %v6602 = vpack.c.b16 %v6554, %v6538
        %v6603 = vpack.c.b16 %v6555, %v6539
        %v6604 = vpack.c.b16 %v6556, %v6556
        %v6605 = vpack.c.b16 %v6557, %v6557
        %v6606 = vpack.c.b16 %v6558, %v6558
        %v6607 = vpack.c.b16 %v6559, %v6559
        %v6608 = vpack.c.b16 %v6560, %v6560
        %v6609 = vpack.c.b16 %v6561, %v6561
        %v6610 = vpack.c.b16 %v6562, %v6562
        %v6611 = vpack.c.b16 %v6563, %v6563
        %v6612 = vpack.c.b16 %v6564, %v6564
        %v6613 = vpack.c.b16 %v6565, %v6565
        %v6614 = vpack.c.b16 %v6566, %v6566
        %v6615 = vpack.c.b16 %v6567, %v6567
        %v6616 = vpack.c.b16 %v6568, %v6568
        %v6617 = vpack.c.b16 %v6569, %v6569
        %v6618 = vpack.c.b16 %v6570, %v6570
        %v6619 = vpack.c.b16 %v6571, %v6571
        %v6653 = vsel %vm545, %v6369, 0
        %v6656 = vsel %vm549, %v6604, 0
        %v6659 = vsel %vm549, %v6605, 0
        %v6662 = vsel %vm549, %v6606, 0
        %v6665 = vsel %vm549, %v6607, 0
        %v6668 = vsel %vm549, %v6608, 0
        %v6671 = vsel %vm549, %v6609, 0
        %v6674 = vsel %vm549, %v6610, 0
        %v6677 = vsel %vm549, %v6611, 0
        %v6680 = vsel %vm549, %v6612, 0
        %v6683 = vsel %vm549, %v6613, 0
        %v6686 = vsel %vm549, %v6614, 0
        %v6689 = vsel %vm549, %v6615, 0
        %v6692 = vsel %vm549, %v6616, 0
        %v6695 = vsel %vm549, %v6617, 0
        %v6698 = vsel %vm549, %v6618, 0
        %v6701 = vsel %vm549, %v6619, 0
        %6703 = vmatprep.subr.bf16.mxu0 %v6573
        %6704 = vmatpush1.bf16.msra.mxu0 %v6572
        %6705 = vmatprep.subr.bf16.mxu0 %v6589
        %6706 = vmatpush1.bf16.msra.mxu0 %v6588
        %6707 = vmatprep.subr.bf16.mxu0 %v6659
        %6708 = vmatpush1.bf16.msra.mxu0 %v6656
        %6709 = vmatprep.subr.bf16.mxu0 0
        %6710 = vmatpush1.bf16.msra.mxu0 0
        %6711 = vmatprep.subr.bf16.mxu0 0
        %6712 = vmatpush1.bf16.msra.mxu0 0
        %6713 = vmatprep.subr.bf16.mxu0 0
        %6714 = vmatpush1.bf16.msra.mxu0 0
        %6715 = vmatprep.subr.bf16.mxu0 0
        %6716 = vmatpush1.bf16.msra.mxu0 0
        %6717 = vmatprep.subr.bf16.mxu0 0
        %6718 = vmatpush1.bf16.msra.mxu0 0
        %6719 = vmatprep.subr.bf16.mxu0 0
        %6720 = vmatpush1.bf16.msra.mxu0 0
        %6721 = vmatprep.subr.bf16.mxu0 0
        %6722 = vmatpush1.bf16.msra.mxu0 0
        %6723 = vmatprep.subr.bf16.mxu0 0
        %6724 = vmatpush1.bf16.msra.mxu0 0
        %6725 = vmatprep.subr.bf16.mxu0 0
        %6726 = vmatpush1.bf16.msra.mxu0 0
        %6727 = vmatprep.subr.bf16.mxu0 0
        %6728 = vmatpush1.bf16.msra.mxu0 0
        %6729 = vmatprep.subr.bf16.mxu0 0
        %6730 = vmatpush1.bf16.msra.mxu0 0
        %6731 = vmatprep.subr.bf16.mxu0 0
        %6732 = vmatpush1.bf16.msra.mxu0 0
        %6733 = vmatprep.subr.bf16.mxu0 0
        %6734 = vmatpush1.bf16.msra.mxu0 0
        %6735 = vmatprep.mubr.bf16.mxu0 0
        %6736 = vmatmul.mubr.bf16.gmra.mrb[0].mxu0 %v6653
        %v6737 = vpop.f32.mrb[0].mxu0
        %v6738 = vadd.f32 %v6375, %v6737
        %v6739 = vpop.f32.mrb[0].mxu0
        %v6740 = vadd.f32 %v6379, %v6739
        %v6741 = vpop.f32.mrb[0].mxu0
        %v6742 = vadd.f32 %v6375, %v6741
        %v6743 = vpop.f32.mrb[0].mxu0
        %v6744 = vadd.f32 %v6379, %v6743
        %6745 = vdwg.mxu0
        %6746 = vmatprep.subr.bf16.mxu0 %v6575
        %6747 = vmatpush1.bf16.msra.mxu0 %v6574
        %6748 = vmatprep.subr.bf16.mxu0 %v6591
        %6749 = vmatpush1.bf16.msra.mxu0 %v6590
        %6750 = vmatprep.subr.bf16.mxu0 %v6665
        %6751 = vmatpush1.bf16.msra.mxu0 %v6662
        %6752 = vmatprep.subr.bf16.mxu0 0
        %6753 = vmatpush1.bf16.msra.mxu0 0
        %6754 = vmatprep.subr.bf16.mxu0 0
        %6755 = vmatpush1.bf16.msra.mxu0 0
        %6756 = vmatprep.subr.bf16.mxu0 0
        %6757 = vmatpush1.bf16.msra.mxu0 0
        %6758 = vmatprep.subr.bf16.mxu0 0
        %6759 = vmatpush1.bf16.msra.mxu0 0
        %6760 = vmatprep.subr.bf16.mxu0 0
        %6761 = vmatpush1.bf16.msra.mxu0 0
        %6762 = vmatprep.subr.bf16.mxu0 0
        %6763 = vmatpush1.bf16.msra.mxu0 0
        %6764 = vmatprep.subr.bf16.mxu0 0
        %6765 = vmatpush1.bf16.msra.mxu0 0
        %6766 = vmatprep.subr.bf16.mxu0 0
        %6767 = vmatpush1.bf16.msra.mxu0 0
        %6768 = vmatprep.subr.bf16.mxu0 0
        %6769 = vmatpush1.bf16.msra.mxu0 0
        %6770 = vmatprep.subr.bf16.mxu0 0
        %6771 = vmatpush1.bf16.msra.mxu0 0
        %6772 = vmatprep.subr.bf16.mxu0 0
        %6773 = vmatpush1.bf16.msra.mxu0 0
        %6774 = vmatprep.subr.bf16.mxu0 0
        %6775 = vmatpush1.bf16.msra.mxu0 0
        %6776 = vmatprep.subr.bf16.mxu0 0
        %6777 = vmatpush1.bf16.msra.mxu0 0
        %6778 = vmatprep.mubr.bf16.mxu0 0
        %6779 = vmatmul.mubr.bf16.gmra.mrb[0].mxu0 %v6653
        %v6780 = vpop.f32.mrb[0].mxu0
        %v6781 = vadd.f32 %v6383, %v6780
        %v6782 = vpop.f32.mrb[0].mxu0
        %v6783 = vadd.f32 %v6387, %v6782
        %v6784 = vpop.f32.mrb[0].mxu0
        %v6785 = vadd.f32 %v6383, %v6784
        %v6786 = vpop.f32.mrb[0].mxu0
        %v6787 = vadd.f32 %v6387, %v6786
        %6788 = vdwg.mxu0
        %6789 = vmatprep.subr.bf16.mxu0 %v6577
        %6790 = vmatpush1.bf16.msra.mxu0 %v6576
        %6791 = vmatprep.subr.bf16.mxu0 %v6593
        %6792 = vmatpush1.bf16.msra.mxu0 %v6592
        %6793 = vmatprep.subr.bf16.mxu0 %v6671
        %6794 = vmatpush1.bf16.msra.mxu0 %v6668
        %6795 = vmatprep.subr.bf16.mxu0 0
        %6796 = vmatpush1.bf16.msra.mxu0 0
        %6797 = vmatprep.subr.bf16.mxu0 0
        %6798 = vmatpush1.bf16.msra.mxu0 0
        %6799 = vmatprep.subr.bf16.mxu0 0
        %6800 = vmatpush1.bf16.msra.mxu0 0
        %6801 = vmatprep.subr.bf16.mxu0 0
        %6802 = vmatpush1.bf16.msra.mxu0 0
        %6803 = vmatprep.subr.bf16.mxu0 0
        %6804 = vmatpush1.bf16.msra.mxu0 0
        %6805 = vmatprep.subr.bf16.mxu0 0
        %6806 = vmatpush1.bf16.msra.mxu0 0
        %6807 = vmatprep.subr.bf16.mxu0 0
        %6808 = vmatpush1.bf16.msra.mxu0 0
        %6809 = vmatprep.subr.bf16.mxu0 0
        %6810 = vmatpush1.bf16.msra.mxu0 0
        %6811 = vmatprep.subr.bf16.mxu0 0
        %6812 = vmatpush1.bf16.msra.mxu0 0
        %6813 = vmatprep.subr.bf16.mxu0 0
        %6814 = vmatpush1.bf16.msra.mxu0 0
        %6815 = vmatprep.subr.bf16.mxu0 0
        %6816 = vmatpush1.bf16.msra.mxu0 0
        %6817 = vmatprep.subr.bf16.mxu0 0
        %6818 = vmatpush1.bf16.msra.mxu0 0
        %6819 = vmatprep.subr.bf16.mxu0 0
        %6820 = vmatpush1.bf16.msra.mxu0 0
        %6821 = vmatprep.mubr.bf16.mxu0 0
        %6822 = vmatmul.mubr.bf16.gmra.mrb[0].mxu0 %v6653
        %v6823 = vpop.f32.mrb[0].mxu0
        %v6824 = vadd.f32 %v6391, %v6823
        %v6825 = vpop.f32.mrb[0].mxu0
        %v6826 = vadd.f32 %v6395, %v6825
        %v6827 = vpop.f32.mrb[0].mxu0
        %v6828 = vadd.f32 %v6391, %v6827
        %v6829 = vpop.f32.mrb[0].mxu0
        %v6830 = vadd.f32 %v6395, %v6829
        %6831 = vdwg.mxu0
        %6832 = vmatprep.subr.bf16.mxu0 %v6579
        %6833 = vmatpush1.bf16.msra.mxu0 %v6578
        %6834 = vmatprep.subr.bf16.mxu0 %v6595
        %6835 = vmatpush1.bf16.msra.mxu0 %v6594
        %6836 = vmatprep.subr.bf16.mxu0 %v6677
        %6837 = vmatpush1.bf16.msra.mxu0 %v6674
        %6838 = vmatprep.subr.bf16.mxu0 0
        %6839 = vmatpush1.bf16.msra.mxu0 0
        %6840 = vmatprep.subr.bf16.mxu0 0
        %6841 = vmatpush1.bf16.msra.mxu0 0
        %6842 = vmatprep.subr.bf16.mxu0 0
        %6843 = vmatpush1.bf16.msra.mxu0 0
        %6844 = vmatprep.subr.bf16.mxu0 0
        %6845 = vmatpush1.bf16.msra.mxu0 0
        %6846 = vmatprep.subr.bf16.mxu0 0
        %6847 = vmatpush1.bf16.msra.mxu0 0
        %6848 = vmatprep.subr.bf16.mxu0 0
        %6849 = vmatpush1.bf16.msra.mxu0 0
        %6850 = vmatprep.subr.bf16.mxu0 0
        %6851 = vmatpush1.bf16.msra.mxu0 0
        %6852 = vmatprep.subr.bf16.mxu0 0
        %6853 = vmatpush1.bf16.msra.mxu0 0
        %6854 = vmatprep.subr.bf16.mxu0 0
        %6855 = vmatpush1.bf16.msra.mxu0 0
        %6856 = vmatprep.subr.bf16.mxu0 0
        %6857 = vmatpush1.bf16.msra.mxu0 0
        %6858 = vmatprep.subr.bf16.mxu0 0
        %6859 = vmatpush1.bf16.msra.mxu0 0
        %6860 = vmatprep.subr.bf16.mxu0 0
        %6861 = vmatpush1.bf16.msra.mxu0 0
        %6862 = vmatprep.subr.bf16.mxu0 0
        %6863 = vmatpush1.bf16.msra.mxu0 0
        %6864 = vmatprep.mubr.bf16.mxu0 0
        %6865 = vmatmul.mubr.bf16.gmra.mrb[0].mxu0 %v6653
        %v6866 = vpop.f32.mrb[0].mxu0
        %v6867 = vadd.f32 %v6399, %v6866
        %v6868 = vpop.f32.mrb[0].mxu0
        %v6869 = vadd.f32 %v6403, %v6868
        %v6870 = vpop.f32.mrb[0].mxu0
        %v6871 = vadd.f32 %v6399, %v6870
        %v6872 = vpop.f32.mrb[0].mxu0
        %v6873 = vadd.f32 %v6403, %v6872
        %6874 = vdwg.mxu0
        %6875 = vmatprep.subr.bf16.mxu0 %v6581
        %6876 = vmatpush1.bf16.msra.mxu0 %v6580
        %6877 = vmatprep.subr.bf16.mxu0 %v6597
        %6878 = vmatpush1.bf16.msra.mxu0 %v6596
        %6879 = vmatprep.subr.bf16.mxu0 %v6683
        %6880 = vmatpush1.bf16.msra.mxu0 %v6680
        %6881 = vmatprep.subr.bf16.mxu0 0
        %6882 = vmatpush1.bf16.msra.mxu0 0
        %6883 = vmatprep.subr.bf16.mxu0 0
        %6884 = vmatpush1.bf16.msra.mxu0 0
        %6885 = vmatprep.subr.bf16.mxu0 0
        %6886 = vmatpush1.bf16.msra.mxu0 0
        %6887 = vmatprep.subr.bf16.mxu0 0
        %6888 = vmatpush1.bf16.msra.mxu0 0
        %6889 = vmatprep.subr.bf16.mxu0 0
        %6890 = vmatpush1.bf16.msra.mxu0 0
        %6891 = vmatprep.subr.bf16.mxu0 0
        %6892 = vmatpush1.bf16.msra.mxu0 0
        %6893 = vmatprep.subr.bf16.mxu0 0
        %6894 = vmatpush1.bf16.msra.mxu0 0
        %6895 = vmatprep.subr.bf16.mxu0 0
        %6896 = vmatpush1.bf16.msra.mxu0 0
        %6897 = vmatprep.subr.bf16.mxu0 0
        %6898 = vmatpush1.bf16.msra.mxu0 0
        %6899 = vmatprep.subr.bf16.mxu0 0
        %6900 = vmatpush1.bf16.msra.mxu0 0
        %6901 = vmatprep.subr.bf16.mxu0 0
        %6902 = vmatpush1.bf16.msra.mxu0 0
        %6903 = vmatprep.subr.bf16.mxu0 0
        %6904 = vmatpush1.bf16.msra.mxu0 0
        %6905 = vmatprep.subr.bf16.mxu0 0
        %6906 = vmatpush1.bf16.msra.mxu0 0
        %6907 = vmatprep.mubr.bf16.mxu0 0
        %6908 = vmatmul.mubr.bf16.gmra.mrb[0].mxu0 %v6653
        %v6909 = vpop.f32.mrb[0].mxu0
        %v6910 = vadd.f32 %v6407, %v6909
        %v6911 = vpop.f32.mrb[0].mxu0
        %v6912 = vadd.f32 %v6411, %v6911
        %v6913 = vpop.f32.mrb[0].mxu0
        %v6914 = vadd.f32 %v6407, %v6913
        %v6915 = vpop.f32.mrb[0].mxu0
        %v6916 = vadd.f32 %v6411, %v6915
        %6917 = vdwg.mxu0
        %6918 = vmatprep.subr.bf16.mxu0 %v6583
        %6919 = vmatpush1.bf16.msra.mxu0 %v6582
        %6920 = vmatprep.subr.bf16.mxu0 %v6599
        %6921 = vmatpush1.bf16.msra.mxu0 %v6598
        %6922 = vmatprep.subr.bf16.mxu0 %v6689
        %6923 = vmatpush1.bf16.msra.mxu0 %v6686
        %6924 = vmatprep.subr.bf16.mxu0 0
        %6925 = vmatpush1.bf16.msra.mxu0 0
        %6926 = vmatprep.subr.bf16.mxu0 0
        %6927 = vmatpush1.bf16.msra.mxu0 0
        %6928 = vmatprep.subr.bf16.mxu0 0
        %6929 = vmatpush1.bf16.msra.mxu0 0
        %6930 = vmatprep.subr.bf16.mxu0 0
        %6931 = vmatpush1.bf16.msra.mxu0 0
        %6932 = vmatprep.subr.bf16.mxu0 0
        %6933 = vmatpush1.bf16.msra.mxu0 0
        %6934 = vmatprep.subr.bf16.mxu0 0
        %6935 = vmatpush1.bf16.msra.mxu0 0
        %6936 = vmatprep.subr.bf16.mxu0 0
        %6937 = vmatpush1.bf16.msra.mxu0 0
        %6938 = vmatprep.subr.bf16.mxu0 0
        %6939 = vmatpush1.bf16.msra.mxu0 0
        %6940 = vmatprep.subr.bf16.mxu0 0
        %6941 = vmatpush1.bf16.msra.mxu0 0
        %6942 = vmatprep.subr.bf16.mxu0 0
        %6943 = vmatpush1.bf16.msra.mxu0 0
        %6944 = vmatprep.subr.bf16.mxu0 0
        %6945 = vmatpush1.bf16.msra.mxu0 0
        %6946 = vmatprep.subr.bf16.mxu0 0
        %6947 = vmatpush1.bf16.msra.mxu0 0
        %6948 = vmatprep.subr.bf16.mxu0 0
        %6949 = vmatpush1.bf16.msra.mxu0 0
        %6950 = vmatprep.mubr.bf16.mxu0 0
        %6951 = vmatmul.mubr.bf16.gmra.mrb[0].mxu0 %v6653
        %v6952 = vpop.f32.mrb[0].mxu0
        %v6953 = vadd.f32 %v6415, %v6952
        %v6954 = vpop.f32.mrb[0].mxu0
        %v6955 = vadd.f32 %v6419, %v6954
        %v6956 = vpop.f32.mrb[0].mxu0
        %v6957 = vadd.f32 %v6415, %v6956
        %v6958 = vpop.f32.mrb[0].mxu0
        %v6959 = vadd.f32 %v6419, %v6958
        %6960 = vdwg.mxu0
        %6961 = vmatprep.subr.bf16.mxu0 %v6585
        %6962 = vmatpush1.bf16.msra.mxu0 %v6584
        %6963 = vmatprep.subr.bf16.mxu0 %v6601
        %6964 = vmatpush1.bf16.msra.mxu0 %v6600
        %6965 = vmatprep.subr.bf16.mxu0 %v6695
        %6966 = vmatpush1.bf16.msra.mxu0 %v6692
        %6967 = vmatprep.subr.bf16.mxu0 0
        %6968 = vmatpush1.bf16.msra.mxu0 0
        %6969 = vmatprep.subr.bf16.mxu0 0
        %6970 = vmatpush1.bf16.msra.mxu0 0
        %6971 = vmatprep.subr.bf16.mxu0 0
        %6972 = vmatpush1.bf16.msra.mxu0 0
        %6973 = vmatprep.subr.bf16.mxu0 0
        %6974 = vmatpush1.bf16.msra.mxu0 0
        %6975 = vmatprep.subr.bf16.mxu0 0
        %6976 = vmatpush1.bf16.msra.mxu0 0
        %6977 = vmatprep.subr.bf16.mxu0 0
        %6978 = vmatpush1.bf16.msra.mxu0 0
        %6979 = vmatprep.subr.bf16.mxu0 0
        %6980 = vmatpush1.bf16.msra.mxu0 0
        %6981 = vmatprep.subr.bf16.mxu0 0
        %6982 = vmatpush1.bf16.msra.mxu0 0
        %6983 = vmatprep.subr.bf16.mxu0 0
        %6984 = vmatpush1.bf16.msra.mxu0 0
        %6985 = vmatprep.subr.bf16.mxu0 0
        %6986 = vmatpush1.bf16.msra.mxu0 0
        %6987 = vmatprep.subr.bf16.mxu0 0
        %6988 = vmatpush1.bf16.msra.mxu0 0
        %6989 = vmatprep.subr.bf16.mxu0 0
        %6990 = vmatpush1.bf16.msra.mxu0 0
        %6991 = vmatprep.subr.bf16.mxu0 0
        %6992 = vmatpush1.bf16.msra.mxu0 0
        %6993 = vmatprep.mubr.bf16.mxu0 0
        %6994 = vmatmul.mubr.bf16.gmra.mrb[0].mxu0 %v6653
        %v6995 = vpop.f32.mrb[0].mxu0
        %v6996 = vadd.f32 %v6423, %v6995
        %v6997 = vpop.f32.mrb[0].mxu0
        %v6998 = vadd.f32 %v6427, %v6997
        %v6999 = vpop.f32.mrb[0].mxu0
        %v7000 = vadd.f32 %v6423, %v6999
        %v7001 = vpop.f32.mrb[0].mxu0
        %v7002 = vadd.f32 %v6427, %v7001
        %7003 = vdwg.mxu0
        %7004 = vmatprep.subr.bf16.mxu0 %v6587
        %7005 = vmatpush1.bf16.msra.mxu0 %v6586
        %7006 = vmatprep.subr.bf16.mxu0 %v6603
        %7007 = vmatpush1.bf16.msra.mxu0 %v6602
        %7008 = vmatprep.subr.bf16.mxu0 %v6701
        %7009 = vmatpush1.bf16.msra.mxu0 %v6698
        %7010 = vmatprep.subr.bf16.mxu0 0
        %7011 = vmatpush1.bf16.msra.mxu0 0
        %7012 = vmatprep.subr.bf16.mxu0 0
        %7013 = vmatpush1.bf16.msra.mxu0 0
        %7014 = vmatprep.subr.bf16.mxu0 0
        %7015 = vmatpush1.bf16.msra.mxu0 0
        %7016 = vmatprep.subr.bf16.mxu0 0
        %7017 = vmatpush1.bf16.msra.mxu0 0
        %7018 = vmatprep.subr.bf16.mxu0 0
        %7019 = vmatpush1.bf16.msra.mxu0 0
        %7020 = vmatprep.subr.bf16.mxu0 0
        %7021 = vmatpush1.bf16.msra.mxu0 0
        %7022 = vmatprep.subr.bf16.mxu0 0
        %7023 = vmatpush1.bf16.msra.mxu0 0
        %7024 = vmatprep.subr.bf16.mxu0 0
        %7025 = vmatpush1.bf16.msra.mxu0 0
        %7026 = vmatprep.subr.bf16.mxu0 0
        %7027 = vmatpush1.bf16.msra.mxu0 0
        %7028 = vmatprep.subr.bf16.mxu0 0
        %7029 = vmatpush1.bf16.msra.mxu0 0
        %7030 = vmatprep.subr.bf16.mxu0 0
        %7031 = vmatpush1.bf16.msra.mxu0 0
        %7032 = vmatprep.subr.bf16.mxu0 0
        %7033 = vmatpush1.bf16.msra.mxu0 0
        %7034 = vmatprep.subr.bf16.mxu0 0
        %7035 = vmatpush1.bf16.msra.mxu0 0
        %7036 = vmatprep.mubr.bf16.mxu0 0
        %7037 = vmatmul.mubr.bf16.gmra.mrb[0].mxu0 %v6653
        %v7038 = vpop.f32.mrb[0].mxu0
        %v7039 = vadd.f32 %v6431, %v7038
        %v7040 = vpop.f32.mrb[0].mxu0
        %v7041 = vadd.f32 %v6435, %v7040
        %v7042 = vpop.f32.mrb[0].mxu0
        %v7043 = vadd.f32 %v6431, %v7042
        %v7044 = vpop.f32.mrb[0].mxu0
        %v7045 = vadd.f32 %v6435, %v7044
        %7046 = vdwg.mxu0
        %v7047 = vmax.f32 %v6738, 0.0
        %v7048 = vmax.f32 %v6740, 0.0
        %v7049 = vmax.f32 %v6781, 0.0
        %v7050 = vmax.f32 %v6783, 0.0
        %v7051 = vmax.f32 %v6824, 0.0
        %v7052 = vmax.f32 %v6826, 0.0
        %v7053 = vmax.f32 %v6867, 0.0
        %v7054 = vmax.f32 %v6869, 0.0
        %v7055 = vmax.f32 %v6910, 0.0
        %v7056 = vmax.f32 %v6912, 0.0
        %v7057 = vmax.f32 %v6953, 0.0
        %v7058 = vmax.f32 %v6955, 0.0
        %v7059 = vmax.f32 %v6996, 0.0
        %v7060 = vmax.f32 %v6998, 0.0
        %v7061 = vmax.f32 %v7039, 0.0
        %v7062 = vmax.f32 %v7041, 0.0
        %v7063 = vmax.f32 %v6742, 0.0
        %v7064 = vmax.f32 %v6744, 0.0
        %v7065 = vmax.f32 %v6785, 0.0
        %v7066 = vmax.f32 %v6787, 0.0
        %v7067 = vmax.f32 %v6828, 0.0
        %v7068 = vmax.f32 %v6830, 0.0
        %v7069 = vmax.f32 %v6871, 0.0
        %v7070 = vmax.f32 %v6873, 0.0
        %v7071 = vmax.f32 %v6914, 0.0
        %v7072 = vmax.f32 %v6916, 0.0
        %v7073 = vmax.f32 %v6957, 0.0
        %v7074 = vmax.f32 %v6959, 0.0
        %v7075 = vmax.f32 %v7000, 0.0
        %v7076 = vmax.f32 %v7002, 0.0
        %v7077 = vmax.f32 %v7043, 0.0
        %v7078 = vmax.f32 %v7045, 0.0
        %s7079 = scalar_lea.vmem %s9, 2048
        %v7080 = vld [vmem:[%s7079] sm:$0xf]
        %v7081 = vld [vmem:[%s7079 + $0x4] sm:$0xf]
        %v7082 = vld [vmem:[%s7079 + $0x8] sm:$0xf]
        %v7083 = vld [vmem:[%s7079 + $0xc] sm:$0xf]
        %v7084 = vld [vmem:[%s7079 + $0x10] sm:$0xf]
        %v7085 = vld [vmem:[%s7079 + $0x14] sm:$0xf]
        %v7086 = vld [vmem:[%s7079 + $0x18] sm:$0xf]
        %v7087 = vld [vmem:[%s7079 + $0x1c] sm:$0xf]
        %v7088 = vld [vmem:[%s7079 + $0x20] sm:$0xf]
        %v7089 = vld [vmem:[%s7079 + $0x24] sm:$0xf]
        %v7090 = vld [vmem:[%s7079 + $0x28] sm:$0xf]
        %v7091 = vld [vmem:[%s7079 + $0x2c] sm:$0xf]
        %v7092 = vld [vmem:[%s7079 + $0x30] sm:$0xf]
        %v7093 = vld [vmem:[%s7079 + $0x34] sm:$0xf]
        %v7094 = vld [vmem:[%s7079 + $0x38] sm:$0xf]
        %v7095 = vld [vmem:[%s7079 + $0x3c] sm:$0xf]
        %v7096 = vld [vmem:[%s7079 + $0x40] sm:$0xf]
        %v7097 = vld [vmem:[%s7079 + $0x44] sm:$0xf]
        %v7098 = vld [vmem:[%s7079 + $0x48] sm:$0xf]
        %v7099 = vld [vmem:[%s7079 + $0x4c] sm:$0xf]
        %v7100 = vld [vmem:[%s7079 + $0x50] sm:$0xf]
        %v7101 = vld [vmem:[%s7079 + $0x54] sm:$0xf]
        %v7102 = vld [vmem:[%s7079 + $0x58] sm:$0xf]
        %v7103 = vld [vmem:[%s7079 + $0x5c] sm:$0xf]
        %v7104 = vld [vmem:[%s7079 + $0x60] sm:$0xf]
        %v7105 = vld [vmem:[%s7079 + $0x64] sm:$0xf]
        %v7106 = vld [vmem:[%s7079 + $0x68] sm:$0xf]
        %v7107 = vld [vmem:[%s7079 + $0x6c] sm:$0xf]
        %v7108 = vld [vmem:[%s7079 + $0x70] sm:$0xf]
        %v7109 = vld [vmem:[%s7079 + $0x74] sm:$0xf]
        %v7110 = vld [vmem:[%s7079 + $0x78] sm:$0xf]
        %v7111 = vld [vmem:[%s7079 + $0x7c] sm:$0xf]
        %v7112 = vld [vmem:[%s7079 + $0x80] sm:$0xf]
        %v7113 = vld [vmem:[%s7079 + $0x84] sm:$0xf]
        %v7114 = vld [vmem:[%s7079 + $0x88] sm:$0xf]
        %v7115 = vld [vmem:[%s7079 + $0x8c] sm:$0xf]
        %v7116 = vld [vmem:[%s7079 + $0x90] sm:$0xf]
        %v7117 = vld [vmem:[%s7079 + $0x94] sm:$0xf]
        %v7118 = vld [vmem:[%s7079 + $0x98] sm:$0xf]
        %v7119 = vld [vmem:[%s7079 + $0x9c] sm:$0xf]
        %v7120 = vld [vmem:[%s7079 + $0xa0] sm:$0xf]
        %v7121 = vld [vmem:[%s7079 + $0xa4] sm:$0xf]
        %v7122 = vld [vmem:[%s7079 + $0xa8] sm:$0xf]
        %v7123 = vld [vmem:[%s7079 + $0xac] sm:$0xf]
        %v7124 = vld [vmem:[%s7079 + $0xb0] sm:$0xf]
        %v7125 = vld [vmem:[%s7079 + $0xb4] sm:$0xf]
        %v7126 = vld [vmem:[%s7079 + $0xb8] sm:$0xf]
        %v7127 = vld [vmem:[%s7079 + $0xbc] sm:$0xf]
        %v7128 = vld [vmem:[%s7079 + $0xc0] sm:$0xf]
        %v7129 = vld [vmem:[%s7079 + $0xc4] sm:$0xf]
        %v7130 = vld [vmem:[%s7079 + $0xc8] sm:$0xf]
        %v7131 = vld [vmem:[%s7079 + $0xcc] sm:$0xf]
        %v7132 = vld [vmem:[%s7079 + $0xd0] sm:$0xf]
        %v7133 = vld [vmem:[%s7079 + $0xd4] sm:$0xf]
        %v7134 = vld [vmem:[%s7079 + $0xd8] sm:$0xf]
        %v7135 = vld [vmem:[%s7079 + $0xdc] sm:$0xf]
        %v7136 = vld [vmem:[%s7079 + $0xe0] sm:$0xf]
        %v7137 = vld [vmem:[%s7079 + $0xe4] sm:$0xf]
        %v7138 = vld [vmem:[%s7079 + $0xe8] sm:$0xf]
        %v7139 = vld [vmem:[%s7079 + $0xec] sm:$0xf]
        %v7140 = vld [vmem:[%s7079 + $0xf0] sm:$0xf]
        %v7141 = vld [vmem:[%s7079 + $0xf4] sm:$0xf]
        %v7142 = vld [vmem:[%s7079 + $0xf8] sm:$0xf]
        %v7143 = vld [vmem:[%s7079 + $0xfc] sm:$0xf]
        %v7144 = vld [vmem:[%s7079 + $0x100] sm:$0xf]
        %v7145 = vld [vmem:[%s7079 + $0x104] sm:$0xf]
        %v7146 = vld [vmem:[%s7079 + $0x108] sm:$0xf]
        %v7147 = vld [vmem:[%s7079 + $0x10c] sm:$0xf]
        %v7148 = vld [vmem:[%s7079 + $0x110] sm:$0xf]
        %v7149 = vld [vmem:[%s7079 + $0x114] sm:$0xf]
        %v7150 = vld [vmem:[%s7079 + $0x118] sm:$0xf]
        %v7151 = vld [vmem:[%s7079 + $0x11c] sm:$0xf]
        %v7152 = vld [vmem:[%s7079 + $0x120] sm:$0xf]
        %v7153 = vld [vmem:[%s7079 + $0x124] sm:$0xf]
        %v7154 = vld [vmem:[%s7079 + $0x128] sm:$0xf]
        %v7155 = vld [vmem:[%s7079 + $0x12c] sm:$0xf]
        %v7156 = vld [vmem:[%s7079 + $0x130] sm:$0xf]
        %v7157 = vld [vmem:[%s7079 + $0x134] sm:$0xf]
        %v7158 = vld [vmem:[%s7079 + $0x138] sm:$0xf]
        %v7159 = vld [vmem:[%s7079 + $0x13c] sm:$0xf]
        %v7160 = vld [vmem:[%s7079 + $0x140] sm:$0xf]
        %v7161 = vld [vmem:[%s7079 + $0x144] sm:$0xf]
        %v7162 = vld [vmem:[%s7079 + $0x148] sm:$0xf]
        %v7163 = vld [vmem:[%s7079 + $0x14c] sm:$0xf]
        %v7164 = vld [vmem:[%s7079 + $0x150] sm:$0xf]
        %v7165 = vld [vmem:[%s7079 + $0x154] sm:$0xf]
        %v7166 = vld [vmem:[%s7079 + $0x158] sm:$0xf]
        %v7167 = vld [vmem:[%s7079 + $0x15c] sm:$0xf]
        %v7168 = vld [vmem:[%s7079 + $0x160] sm:$0xf]
        %v7169 = vld [vmem:[%s7079 + $0x164] sm:$0xf]
        %v7170 = vld [vmem:[%s7079 + $0x168] sm:$0xf]
        %v7171 = vld [vmem:[%s7079 + $0x16c] sm:$0xf]
        %v7172 = vld [vmem:[%s7079 + $0x170] sm:$0xf]
        %v7173 = vld [vmem:[%s7079 + $0x174] sm:$0xf]
        %v7174 = vld [vmem:[%s7079 + $0x178] sm:$0xf]
        %v7175 = vld [vmem:[%s7079 + $0x17c] sm:$0xf]
        %v7176 = vld [vmem:[%s7079 + $0x180] sm:$0xf]
        %v7177 = vld [vmem:[%s7079 + $0x184] sm:$0xf]
        %v7178 = vld [vmem:[%s7079 + $0x188] sm:$0xf]
        %v7179 = vld [vmem:[%s7079 + $0x18c] sm:$0xf]
        %v7180 = vld [vmem:[%s7079 + $0x190] sm:$0xf]
        %v7181 = vld [vmem:[%s7079 + $0x194] sm:$0xf]
        %v7182 = vld [vmem:[%s7079 + $0x198] sm:$0xf]
        %v7183 = vld [vmem:[%s7079 + $0x19c] sm:$0xf]
        %v7184 = vld [vmem:[%s7079 + $0x1a0] sm:$0xf]
        %v7185 = vld [vmem:[%s7079 + $0x1a4] sm:$0xf]
        %v7186 = vld [vmem:[%s7079 + $0x1a8] sm:$0xf]
        %v7187 = vld [vmem:[%s7079 + $0x1ac] sm:$0xf]
        %v7188 = vld [vmem:[%s7079 + $0x1b0] sm:$0xf]
        %v7189 = vld [vmem:[%s7079 + $0x1b4] sm:$0xf]
        %v7190 = vld [vmem:[%s7079 + $0x1b8] sm:$0xf]
        %v7191 = vld [vmem:[%s7079 + $0x1bc] sm:$0xf]
        %v7192 = vld [vmem:[%s7079 + $0x1c0] sm:$0xf]
        %v7193 = vld [vmem:[%s7079 + $0x1c4] sm:$0xf]
        %v7194 = vld [vmem:[%s7079 + $0x1c8] sm:$0xf]
        %v7195 = vld [vmem:[%s7079 + $0x1cc] sm:$0xf]
        %v7196 = vld [vmem:[%s7079 + $0x1d0] sm:$0xf]
        %v7197 = vld [vmem:[%s7079 + $0x1d4] sm:$0xf]
        %v7198 = vld [vmem:[%s7079 + $0x1d8] sm:$0xf]
        %v7199 = vld [vmem:[%s7079 + $0x1dc] sm:$0xf]
        %v7200 = vld [vmem:[%s7079 + $0x1e0] sm:$0xf]
        %v7201 = vld [vmem:[%s7079 + $0x1e4] sm:$0xf]
        %v7202 = vld [vmem:[%s7079 + $0x1e8] sm:$0xf]
        %v7203 = vld [vmem:[%s7079 + $0x1ec] sm:$0xf]
        %v7204 = vld [vmem:[%s7079 + $0x1f0] sm:$0xf]
        %v7205 = vld [vmem:[%s7079 + $0x1f4] sm:$0xf]
        %v7206 = vld [vmem:[%s7079 + $0x1f8] sm:$0xf]
        %v7207 = vld [vmem:[%s7079 + $0x1fc] sm:$0xf]
        %v7208 = vld [vmem:[%s7079 + $0x200] sm:$0xf]
        %v7209 = vld [vmem:[%s7079 + $0x204] sm:$0xf]
        %v7210 = vld [vmem:[%s7079 + $0x208] sm:$0xf]
        %v7211 = vld [vmem:[%s7079 + $0x20c] sm:$0xf]
        %v7212 = vld [vmem:[%s7079 + $0x210] sm:$0xf]
        %v7213 = vld [vmem:[%s7079 + $0x214] sm:$0xf]
        %v7214 = vld [vmem:[%s7079 + $0x218] sm:$0xf]
        %v7215 = vld [vmem:[%s7079 + $0x21c] sm:$0xf]
        %v7216 = vld [vmem:[%s7079 + $0x220] sm:$0xf]
        %v7217 = vld [vmem:[%s7079 + $0x224] sm:$0xf]
        %v7218 = vld [vmem:[%s7079 + $0x228] sm:$0xf]
        %v7219 = vld [vmem:[%s7079 + $0x22c] sm:$0xf]
        %v7220 = vld [vmem:[%s7079 + $0x230] sm:$0xf]
        %v7221 = vld [vmem:[%s7079 + $0x234] sm:$0xf]
        %v7222 = vld [vmem:[%s7079 + $0x238] sm:$0xf]
        %v7223 = vld [vmem:[%s7079 + $0x23c] sm:$0xf]
        %v7224 = vld [vmem:[%s7079 + $0x240] sm:$0xf]
        %v7225 = vld [vmem:[%s7079 + $0x244] sm:$0xf]
        %v7226 = vld [vmem:[%s7079 + $0x248] sm:$0xf]
        %v7227 = vld [vmem:[%s7079 + $0x24c] sm:$0xf]
        %v7228 = vld [vmem:[%s7079 + $0x250] sm:$0xf]
        %v7229 = vld [vmem:[%s7079 + $0x254] sm:$0xf]
        %v7230 = vld [vmem:[%s7079 + $0x258] sm:$0xf]
        %v7231 = vld [vmem:[%s7079 + $0x25c] sm:$0xf]
        %v7232 = vld [vmem:[%s7079 + $0x260] sm:$0xf]
        %v7233 = vld [vmem:[%s7079 + $0x264] sm:$0xf]
        %v7234 = vld [vmem:[%s7079 + $0x268] sm:$0xf]
        %v7235 = vld [vmem:[%s7079 + $0x26c] sm:$0xf]
        %v7236 = vld [vmem:[%s7079 + $0x270] sm:$0xf]
        %v7237 = vld [vmem:[%s7079 + $0x274] sm:$0xf]
        %v7238 = vld [vmem:[%s7079 + $0x278] sm:$0xf]
        %v7239 = vld [vmem:[%s7079 + $0x27c] sm:$0xf]
        %v7240 = vld [vmem:[%s7079 + $0x280] sm:$0xf]
        %v7241 = vld [vmem:[%s7079 + $0x284] sm:$0xf]
        %v7242 = vld [vmem:[%s7079 + $0x288] sm:$0xf]
        %v7243 = vld [vmem:[%s7079 + $0x28c] sm:$0xf]
        %v7244 = vld [vmem:[%s7079 + $0x290] sm:$0xf]
        %v7245 = vld [vmem:[%s7079 + $0x294] sm:$0xf]
        %v7246 = vld [vmem:[%s7079 + $0x298] sm:$0xf]
        %v7247 = vld [vmem:[%s7079 + $0x29c] sm:$0xf]
        %v7248 = vld [vmem:[%s7079 + $0x2a0] sm:$0xf]
        %v7249 = vld [vmem:[%s7079 + $0x2a4] sm:$0xf]
        %v7250 = vld [vmem:[%s7079 + $0x2a8] sm:$0xf]
        %v7251 = vld [vmem:[%s7079 + $0x2ac] sm:$0xf]
        %v7252 = vld [vmem:[%s7079 + $0x2b0] sm:$0xf]
        %v7253 = vld [vmem:[%s7079 + $0x2b4] sm:$0xf]
        %v7254 = vld [vmem:[%s7079 + $0x2b8] sm:$0xf]
        %v7255 = vld [vmem:[%s7079 + $0x2bc] sm:$0xf]
        %v7256 = vld [vmem:[%s7079 + $0x2c0] sm:$0xf]
        %v7257 = vld [vmem:[%s7079 + $0x2c4] sm:$0xf]
        %v7258 = vld [vmem:[%s7079 + $0x2c8] sm:$0xf]
        %v7259 = vld [vmem:[%s7079 + $0x2cc] sm:$0xf]
        %v7260 = vld [vmem:[%s7079 + $0x2d0] sm:$0xf]
        %v7261 = vld [vmem:[%s7079 + $0x2d4] sm:$0xf]
        %v7262 = vld [vmem:[%s7079 + $0x2d8] sm:$0xf]
        %v7263 = vld [vmem:[%s7079 + $0x2dc] sm:$0xf]
        %v7264 = vld [vmem:[%s7079 + $0x2e0] sm:$0xf]
        %v7265 = vld [vmem:[%s7079 + $0x2e4] sm:$0xf]
        %v7266 = vld [vmem:[%s7079 + $0x2e8] sm:$0xf]
        %v7267 = vld [vmem:[%s7079 + $0x2ec] sm:$0xf]
        %v7268 = vld [vmem:[%s7079 + $0x2f0] sm:$0xf]
        %v7269 = vld [vmem:[%s7079 + $0x2f4] sm:$0xf]
        %v7270 = vld [vmem:[%s7079 + $0x2f8] sm:$0xf]
        %v7271 = vld [vmem:[%s7079 + $0x2fc] sm:$0xf]
        %v7272 = vld [vmem:[%s7079 + $0x300] sm:$0xf]
        %v7273 = vld [vmem:[%s7079 + $0x304] sm:$0xf]
        %v7274 = vld [vmem:[%s7079 + $0x308] sm:$0xf]
        %v7275 = vld [vmem:[%s7079 + $0x30c] sm:$0xf]
        %v7276 = vld [vmem:[%s7079 + $0x310] sm:$0xf]
        %v7277 = vld [vmem:[%s7079 + $0x314] sm:$0xf]
        %v7278 = vld [vmem:[%s7079 + $0x318] sm:$0xf]
        %v7279 = vld [vmem:[%s7079 + $0x31c] sm:$0xf]
        %v7280 = vld [vmem:[%s7079 + $0x320] sm:$0xf]
        %v7281 = vld [vmem:[%s7079 + $0x324] sm:$0xf]
        %v7282 = vld [vmem:[%s7079 + $0x328] sm:$0xf]
        %v7283 = vld [vmem:[%s7079 + $0x32c] sm:$0xf]
        %v7284 = vld [vmem:[%s7079 + $0x330] sm:$0xf]
        %v7285 = vld [vmem:[%s7079 + $0x334] sm:$0xf]
        %v7286 = vld [vmem:[%s7079 + $0x338] sm:$0xf]
        %v7287 = vld [vmem:[%s7079 + $0x33c] sm:$0xf]
        %v7288 = vld [vmem:[%s7079 + $0x340] sm:$0xf]
        %v7289 = vld [vmem:[%s7079 + $0x344] sm:$0xf]
        %v7290 = vld [vmem:[%s7079 + $0x348] sm:$0xf]
        %v7291 = vld [vmem:[%s7079 + $0x34c] sm:$0xf]
        %v7292 = vld [vmem:[%s7079 + $0x350] sm:$0xf]
        %v7293 = vld [vmem:[%s7079 + $0x354] sm:$0xf]
        %v7294 = vld [vmem:[%s7079 + $0x358] sm:$0xf]
        %v7295 = vld [vmem:[%s7079 + $0x35c] sm:$0xf]
        %v7296 = vld [vmem:[%s7079 + $0x360] sm:$0xf]
        %v7297 = vld [vmem:[%s7079 + $0x364] sm:$0xf]
        %v7298 = vld [vmem:[%s7079 + $0x368] sm:$0xf]
        %v7299 = vld [vmem:[%s7079 + $0x36c] sm:$0xf]
        %v7300 = vld [vmem:[%s7079 + $0x370] sm:$0xf]
        %v7301 = vld [vmem:[%s7079 + $0x374] sm:$0xf]
        %v7302 = vld [vmem:[%s7079 + $0x378] sm:$0xf]
        %v7303 = vld [vmem:[%s7079 + $0x37c] sm:$0xf]
        %v7304 = vld [vmem:[%s7079 + $0x380] sm:$0xf]
        %v7305 = vld [vmem:[%s7079 + $0x384] sm:$0xf]
        %v7306 = vld [vmem:[%s7079 + $0x388] sm:$0xf]
        %v7307 = vld [vmem:[%s7079 + $0x38c] sm:$0xf]
        %v7308 = vld [vmem:[%s7079 + $0x390] sm:$0xf]
        %v7309 = vld [vmem:[%s7079 + $0x394] sm:$0xf]
        %v7310 = vld [vmem:[%s7079 + $0x398] sm:$0xf]
        %v7311 = vld [vmem:[%s7079 + $0x39c] sm:$0xf]
        %v7312 = vld [vmem:[%s7079 + $0x3a0] sm:$0xf]
        %v7313 = vld [vmem:[%s7079 + $0x3a4] sm:$0xf]
        %v7314 = vld [vmem:[%s7079 + $0x3a8] sm:$0xf]
        %v7315 = vld [vmem:[%s7079 + $0x3ac] sm:$0xf]
        %v7316 = vld [vmem:[%s7079 + $0x3b0] sm:$0xf]
        %v7317 = vld [vmem:[%s7079 + $0x3b4] sm:$0xf]
        %v7318 = vld [vmem:[%s7079 + $0x3b8] sm:$0xf]
        %v7319 = vld [vmem:[%s7079 + $0x3bc] sm:$0xf]
        %v7320 = vld [vmem:[%s7079 + $0x3c0] sm:$0xf]
        %v7321 = vld [vmem:[%s7079 + $0x3c4] sm:$0xf]
        %v7322 = vld [vmem:[%s7079 + $0x3c8] sm:$0xf]
        %v7323 = vld [vmem:[%s7079 + $0x3cc] sm:$0xf]
        %v7324 = vld [vmem:[%s7079 + $0x3d0] sm:$0xf]
        %v7325 = vld [vmem:[%s7079 + $0x3d4] sm:$0xf]
        %v7326 = vld [vmem:[%s7079 + $0x3d8] sm:$0xf]
        %v7327 = vld [vmem:[%s7079 + $0x3dc] sm:$0xf]
        %v7328 = vld [vmem:[%s7079 + $0x3e0] sm:$0xf]
        %v7329 = vld [vmem:[%s7079 + $0x3e4] sm:$0xf]
        %v7330 = vld [vmem:[%s7079 + $0x3e8] sm:$0xf]
        %v7331 = vld [vmem:[%s7079 + $0x3ec] sm:$0xf]
        %v7332 = vld [vmem:[%s7079 + $0x3f0] sm:$0xf]
        %v7333 = vld [vmem:[%s7079 + $0x3f4] sm:$0xf]
        %v7334 = vld [vmem:[%s7079 + $0x3f8] sm:$0xf]
        %v7335 = vld [vmem:[%s7079 + $0x3fc] sm:$0xf]
        %s7336 = scalar_lea.vmem %s10, 2
        %v7337 = vld [vmem:[%s7336] sm:$0x1]
        %v7338 = vpack.c.bf16 %v7063, %v7047
        %v7339 = vpack.c.bf16 %v7064, %v7048
        %v7340 = vpack.c.bf16 %v7065, %v7049
        %v7341 = vpack.c.bf16 %v7066, %v7050
        %v7342 = vpack.c.bf16 %v7067, %v7051
        %v7343 = vpack.c.bf16 %v7068, %v7052
        %v7344 = vpack.c.bf16 %v7069, %v7053
        %v7345 = vpack.c.bf16 %v7070, %v7054
        %v7346 = vpack.c.bf16 %v7071, %v7055
        %v7347 = vpack.c.bf16 %v7072, %v7056
        %v7348 = vpack.c.bf16 %v7073, %v7057
        %v7349 = vpack.c.bf16 %v7074, %v7058
        %v7350 = vpack.c.bf16 %v7075, %v7059
        %v7351 = vpack.c.bf16 %v7076, %v7060
        %v7352 = vpack.c.bf16 %v7077, %v7061
        %v7353 = vpack.c.bf16 %v7078, %v7062
        %v7355 = vlaneseq
        %v7356 = vshrl.u32 %v7355, 7
        %v7357 = vsub.s32 0, %v7356
        %v7358 = vrot.slane %v7337, %v7357
        %v7616 = vunpack.c.l.b16 %v7080
        %v7617 = vunpack.c.l.b16 %v7081
        %v7618 = vunpack.c.l.b16 %v7082
        %v7619 = vunpack.c.l.b16 %v7083
        %v7620 = vunpack.c.l.b16 %v7084
        %v7621 = vunpack.c.l.b16 %v7085
        %v7622 = vunpack.c.l.b16 %v7086
        %v7623 = vunpack.c.l.b16 %v7087
        %v7624 = vunpack.c.l.b16 %v7088
        %v7625 = vunpack.c.l.b16 %v7089
        %v7626 = vunpack.c.l.b16 %v7090
        %v7627 = vunpack.c.l.b16 %v7091
        %v7628 = vunpack.c.l.b16 %v7092
        %v7629 = vunpack.c.l.b16 %v7093
        %v7630 = vunpack.c.l.b16 %v7094
        %v7631 = vunpack.c.l.b16 %v7095
        %v7632 = vunpack.c.l.b16 %v7096
        %v7633 = vunpack.c.l.b16 %v7097
        %v7634 = vunpack.c.l.b16 %v7098
        %v7635 = vunpack.c.l.b16 %v7099
        %v7636 = vunpack.c.l.b16 %v7100
        %v7637 = vunpack.c.l.b16 %v7101
        %v7638 = vunpack.c.l.b16 %v7102
        %v7639 = vunpack.c.l.b16 %v7103
        %v7640 = vunpack.c.l.b16 %v7104
        %v7641 = vunpack.c.l.b16 %v7105
        %v7642 = vunpack.c.l.b16 %v7106
        %v7643 = vunpack.c.l.b16 %v7107
        %v7644 = vunpack.c.l.b16 %v7108
        %v7645 = vunpack.c.l.b16 %v7109
        %v7646 = vunpack.c.l.b16 %v7110
        %v7647 = vunpack.c.l.b16 %v7111
        %v7648 = vunpack.c.l.b16 %v7112
        %v7649 = vunpack.c.l.b16 %v7113
        %v7650 = vunpack.c.l.b16 %v7114
        %v7651 = vunpack.c.l.b16 %v7115
        %v7652 = vunpack.c.l.b16 %v7116
        %v7653 = vunpack.c.l.b16 %v7117
        %v7654 = vunpack.c.l.b16 %v7118
        %v7655 = vunpack.c.l.b16 %v7119
        %v7656 = vunpack.c.l.b16 %v7120
        %v7657 = vunpack.c.l.b16 %v7121
        %v7658 = vunpack.c.l.b16 %v7122
        %v7659 = vunpack.c.l.b16 %v7123
        %v7660 = vunpack.c.l.b16 %v7124
        %v7661 = vunpack.c.l.b16 %v7125
        %v7662 = vunpack.c.l.b16 %v7126
        %v7663 = vunpack.c.l.b16 %v7127
        %v7664 = vunpack.c.l.b16 %v7128
        %v7665 = vunpack.c.l.b16 %v7129
        %v7666 = vunpack.c.l.b16 %v7130
        %v7667 = vunpack.c.l.b16 %v7131
        %v7668 = vunpack.c.l.b16 %v7132
        %v7669 = vunpack.c.l.b16 %v7133
        %v7670 = vunpack.c.l.b16 %v7134
        %v7671 = vunpack.c.l.b16 %v7135
        %v7672 = vunpack.c.l.b16 %v7136
        %v7673 = vunpack.c.l.b16 %v7137
        %v7674 = vunpack.c.l.b16 %v7138
        %v7675 = vunpack.c.l.b16 %v7139
        %v7676 = vunpack.c.l.b16 %v7140
        %v7677 = vunpack.c.l.b16 %v7141
        %v7678 = vunpack.c.l.b16 %v7142
        %v7679 = vunpack.c.l.b16 %v7143
        %v7680 = vunpack.c.l.b16 %v7144
        %v7681 = vunpack.c.l.b16 %v7145
        %v7682 = vunpack.c.l.b16 %v7146
        %v7683 = vunpack.c.l.b16 %v7147
        %v7684 = vunpack.c.l.b16 %v7148
        %v7685 = vunpack.c.l.b16 %v7149
        %v7686 = vunpack.c.l.b16 %v7150
        %v7687 = vunpack.c.l.b16 %v7151
        %v7688 = vunpack.c.l.b16 %v7152
        %v7689 = vunpack.c.l.b16 %v7153
        %v7690 = vunpack.c.l.b16 %v7154
        %v7691 = vunpack.c.l.b16 %v7155
        %v7692 = vunpack.c.l.b16 %v7156
        %v7693 = vunpack.c.l.b16 %v7157
        %v7694 = vunpack.c.l.b16 %v7158
        %v7695 = vunpack.c.l.b16 %v7159
        %v7696 = vunpack.c.l.b16 %v7160
        %v7697 = vunpack.c.l.b16 %v7161
        %v7698 = vunpack.c.l.b16 %v7162
        %v7699 = vunpack.c.l.b16 %v7163
        %v7700 = vunpack.c.l.b16 %v7164
        %v7701 = vunpack.c.l.b16 %v7165
        %v7702 = vunpack.c.l.b16 %v7166
        %v7703 = vunpack.c.l.b16 %v7167
        %v7704 = vunpack.c.l.b16 %v7168
        %v7705 = vunpack.c.l.b16 %v7169
        %v7706 = vunpack.c.l.b16 %v7170
        %v7707 = vunpack.c.l.b16 %v7171
        %v7708 = vunpack.c.l.b16 %v7172
        %v7709 = vunpack.c.l.b16 %v7173
        %v7710 = vunpack.c.l.b16 %v7174
        %v7711 = vunpack.c.l.b16 %v7175
        %v7712 = vunpack.c.l.b16 %v7176
        %v7713 = vunpack.c.l.b16 %v7177
        %v7714 = vunpack.c.l.b16 %v7178
        %v7715 = vunpack.c.l.b16 %v7179
        %v7716 = vunpack.c.l.b16 %v7180
        %v7717 = vunpack.c.l.b16 %v7181
        %v7718 = vunpack.c.l.b16 %v7182
        %v7719 = vunpack.c.l.b16 %v7183
        %v7720 = vunpack.c.l.b16 %v7184
        %v7721 = vunpack.c.l.b16 %v7185
        %v7722 = vunpack.c.l.b16 %v7186
        %v7723 = vunpack.c.l.b16 %v7187
        %v7724 = vunpack.c.l.b16 %v7188
        %v7725 = vunpack.c.l.b16 %v7189
        %v7726 = vunpack.c.l.b16 %v7190
        %v7727 = vunpack.c.l.b16 %v7191
        %v7728 = vunpack.c.l.b16 %v7192
        %v7729 = vunpack.c.l.b16 %v7193
        %v7730 = vunpack.c.l.b16 %v7194
        %v7731 = vunpack.c.l.b16 %v7195
        %v7732 = vunpack.c.l.b16 %v7196
        %v7733 = vunpack.c.l.b16 %v7197
        %v7734 = vunpack.c.l.b16 %v7198
        %v7735 = vunpack.c.l.b16 %v7199
        %v7736 = vunpack.c.l.b16 %v7200
        %v7737 = vunpack.c.l.b16 %v7201
        %v7738 = vunpack.c.l.b16 %v7202
        %v7739 = vunpack.c.l.b16 %v7203
        %v7740 = vunpack.c.l.b16 %v7204
        %v7741 = vunpack.c.l.b16 %v7205
        %v7742 = vunpack.c.l.b16 %v7206
        %v7743 = vunpack.c.l.b16 %v7207
        %v7744 = vunpack.c.l.b16 %v7208
        %v7745 = vunpack.c.l.b16 %v7209
        %v7746 = vunpack.c.l.b16 %v7210
        %v7747 = vunpack.c.l.b16 %v7211
        %v7748 = vunpack.c.l.b16 %v7212
        %v7749 = vunpack.c.l.b16 %v7213
        %v7750 = vunpack.c.l.b16 %v7214
        %v7751 = vunpack.c.l.b16 %v7215
        %v7752 = vunpack.c.l.b16 %v7216
        %v7753 = vunpack.c.l.b16 %v7217
        %v7754 = vunpack.c.l.b16 %v7218
        %v7755 = vunpack.c.l.b16 %v7219
        %v7756 = vunpack.c.l.b16 %v7220
        %v7757 = vunpack.c.l.b16 %v7221
        %v7758 = vunpack.c.l.b16 %v7222
        %v7759 = vunpack.c.l.b16 %v7223
        %v7760 = vunpack.c.l.b16 %v7224
        %v7761 = vunpack.c.l.b16 %v7225
        %v7762 = vunpack.c.l.b16 %v7226
        %v7763 = vunpack.c.l.b16 %v7227
        %v7764 = vunpack.c.l.b16 %v7228
        %v7765 = vunpack.c.l.b16 %v7229
        %v7766 = vunpack.c.l.b16 %v7230
        %v7767 = vunpack.c.l.b16 %v7231
        %v7768 = vunpack.c.l.b16 %v7232
        %v7769 = vunpack.c.l.b16 %v7233
        %v7770 = vunpack.c.l.b16 %v7234
        %v7771 = vunpack.c.l.b16 %v7235
        %v7772 = vunpack.c.l.b16 %v7236
        %v7773 = vunpack.c.l.b16 %v7237
        %v7774 = vunpack.c.l.b16 %v7238
        %v7775 = vunpack.c.l.b16 %v7239
        %v7776 = vunpack.c.l.b16 %v7240
        %v7777 = vunpack.c.l.b16 %v7241
        %v7778 = vunpack.c.l.b16 %v7242
        %v7779 = vunpack.c.l.b16 %v7243
        %v7780 = vunpack.c.l.b16 %v7244
        %v7781 = vunpack.c.l.b16 %v7245
        %v7782 = vunpack.c.l.b16 %v7246
        %v7783 = vunpack.c.l.b16 %v7247
        %v7784 = vunpack.c.l.b16 %v7248
        %v7785 = vunpack.c.l.b16 %v7249
        %v7786 = vunpack.c.l.b16 %v7250
        %v7787 = vunpack.c.l.b16 %v7251
        %v7788 = vunpack.c.l.b16 %v7252
        %v7789 = vunpack.c.l.b16 %v7253
        %v7790 = vunpack.c.l.b16 %v7254
        %v7791 = vunpack.c.l.b16 %v7255
        %v7792 = vunpack.c.l.b16 %v7256
        %v7793 = vunpack.c.l.b16 %v7257
        %v7794 = vunpack.c.l.b16 %v7258
        %v7795 = vunpack.c.l.b16 %v7259
        %v7796 = vunpack.c.l.b16 %v7260
        %v7797 = vunpack.c.l.b16 %v7261
        %v7798 = vunpack.c.l.b16 %v7262
        %v7799 = vunpack.c.l.b16 %v7263
        %v7800 = vunpack.c.l.b16 %v7264
        %v7801 = vunpack.c.l.b16 %v7265
        %v7802 = vunpack.c.l.b16 %v7266
        %v7803 = vunpack.c.l.b16 %v7267
        %v7804 = vunpack.c.l.b16 %v7268
        %v7805 = vunpack.c.l.b16 %v7269
        %v7806 = vunpack.c.l.b16 %v7270
        %v7807 = vunpack.c.l.b16 %v7271
        %v7808 = vunpack.c.l.b16 %v7272
        %v7809 = vunpack.c.l.b16 %v7273
        %v7810 = vunpack.c.l.b16 %v7274
        %v7811 = vunpack.c.l.b16 %v7275
        %v7812 = vunpack.c.l.b16 %v7276
        %v7813 = vunpack.c.l.b16 %v7277
        %v7814 = vunpack.c.l.b16 %v7278
        %v7815 = vunpack.c.l.b16 %v7279
        %v7816 = vunpack.c.l.b16 %v7280
        %v7817 = vunpack.c.l.b16 %v7281
        %v7818 = vunpack.c.l.b16 %v7282
        %v7819 = vunpack.c.l.b16 %v7283
        %v7820 = vunpack.c.l.b16 %v7284
        %v7821 = vunpack.c.l.b16 %v7285
        %v7822 = vunpack.c.l.b16 %v7286
        %v7823 = vunpack.c.l.b16 %v7287
        %v7824 = vunpack.c.l.b16 %v7288
        %v7825 = vunpack.c.l.b16 %v7289
        %v7826 = vunpack.c.l.b16 %v7290
        %v7827 = vunpack.c.l.b16 %v7291
        %v7828 = vunpack.c.l.b16 %v7292
        %v7829 = vunpack.c.l.b16 %v7293
        %v7830 = vunpack.c.l.b16 %v7294
        %v7831 = vunpack.c.l.b16 %v7295
        %v7832 = vunpack.c.l.b16 %v7296
        %v7833 = vunpack.c.l.b16 %v7297
        %v7834 = vunpack.c.l.b16 %v7298
        %v7835 = vunpack.c.l.b16 %v7299
        %v7836 = vunpack.c.l.b16 %v7300
        %v7837 = vunpack.c.l.b16 %v7301
        %v7838 = vunpack.c.l.b16 %v7302
        %v7839 = vunpack.c.l.b16 %v7303
        %v7840 = vunpack.c.l.b16 %v7304
        %v7841 = vunpack.c.l.b16 %v7305
        %v7842 = vunpack.c.l.b16 %v7306
        %v7843 = vunpack.c.l.b16 %v7307
        %v7844 = vunpack.c.l.b16 %v7308
        %v7845 = vunpack.c.l.b16 %v7309
        %v7846 = vunpack.c.l.b16 %v7310
        %v7847 = vunpack.c.l.b16 %v7311
        %v7848 = vunpack.c.l.b16 %v7312
        %v7849 = vunpack.c.l.b16 %v7313
        %v7850 = vunpack.c.l.b16 %v7314
        %v7851 = vunpack.c.l.b16 %v7315
        %v7852 = vunpack.c.l.b16 %v7316
        %v7853 = vunpack.c.l.b16 %v7317
        %v7854 = vunpack.c.l.b16 %v7318
        %v7855 = vunpack.c.l.b16 %v7319
        %v7856 = vunpack.c.l.b16 %v7320
        %v7857 = vunpack.c.l.b16 %v7321
        %v7858 = vunpack.c.l.b16 %v7322
        %v7859 = vunpack.c.l.b16 %v7323
        %v7860 = vunpack.c.l.b16 %v7324
        %v7861 = vunpack.c.l.b16 %v7325
        %v7862 = vunpack.c.l.b16 %v7326
        %v7863 = vunpack.c.l.b16 %v7327
        %v7864 = vunpack.c.l.b16 %v7328
        %v7865 = vunpack.c.l.b16 %v7329
        %v7866 = vunpack.c.l.b16 %v7330
        %v7867 = vunpack.c.l.b16 %v7331
        %v7868 = vunpack.c.l.b16 %v7332
        %v7869 = vunpack.c.l.b16 %v7333
        %v7870 = vunpack.c.l.b16 %v7334
        %v7871 = vunpack.c.l.b16 %v7335
        %v7872 = vpack.c.b16 %v7617, %v7616
        %v7873 = vpack.c.b16 %v7619, %v7618
        %v7874 = vpack.c.b16 %v7621, %v7620
        %v7875 = vpack.c.b16 %v7623, %v7622
        %v7876 = vpack.c.b16 %v7625, %v7624
        %v7877 = vpack.c.b16 %v7627, %v7626
        %v7878 = vpack.c.b16 %v7629, %v7628
        %v7879 = vpack.c.b16 %v7631, %v7630
        %v7880 = vpack.c.b16 %v7633, %v7632
        %v7881 = vpack.c.b16 %v7635, %v7634
        %v7882 = vpack.c.b16 %v7637, %v7636
        %v7883 = vpack.c.b16 %v7639, %v7638
        %v7884 = vpack.c.b16 %v7641, %v7640
        %v7885 = vpack.c.b16 %v7643, %v7642
        %v7886 = vpack.c.b16 %v7645, %v7644
        %v7887 = vpack.c.b16 %v7647, %v7646
        %v7888 = vpack.c.b16 %v7649, %v7648
        %v7889 = vpack.c.b16 %v7651, %v7650
        %v7890 = vpack.c.b16 %v7653, %v7652
        %v7891 = vpack.c.b16 %v7655, %v7654
        %v7892 = vpack.c.b16 %v7657, %v7656
        %v7893 = vpack.c.b16 %v7659, %v7658
        %v7894 = vpack.c.b16 %v7661, %v7660
        %v7895 = vpack.c.b16 %v7663, %v7662
        %v7896 = vpack.c.b16 %v7665, %v7664
        %v7897 = vpack.c.b16 %v7667, %v7666
        %v7898 = vpack.c.b16 %v7669, %v7668
        %v7899 = vpack.c.b16 %v7671, %v7670
        %v7900 = vpack.c.b16 %v7673, %v7672
        %v7901 = vpack.c.b16 %v7675, %v7674
        %v7902 = vpack.c.b16 %v7677, %v7676
        %v7903 = vpack.c.b16 %v7679, %v7678
        %v7904 = vpack.c.b16 %v7681, %v7680
        %v7905 = vpack.c.b16 %v7683, %v7682
        %v7906 = vpack.c.b16 %v7685, %v7684
        %v7907 = vpack.c.b16 %v7687, %v7686
        %v7908 = vpack.c.b16 %v7689, %v7688
        %v7909 = vpack.c.b16 %v7691, %v7690
        %v7910 = vpack.c.b16 %v7693, %v7692
        %v7911 = vpack.c.b16 %v7695, %v7694
        %v7912 = vpack.c.b16 %v7697, %v7696
        %v7913 = vpack.c.b16 %v7699, %v7698
        %v7914 = vpack.c.b16 %v7701, %v7700
        %v7915 = vpack.c.b16 %v7703, %v7702
        %v7916 = vpack.c.b16 %v7705, %v7704
        %v7917 = vpack.c.b16 %v7707, %v7706
        %v7918 = vpack.c.b16 %v7709, %v7708
        %v7919 = vpack.c.b16 %v7711, %v7710
        %v7920 = vpack.c.b16 %v7713, %v7712
        %v7921 = vpack.c.b16 %v7715, %v7714
        %v7922 = vpack.c.b16 %v7717, %v7716
        %v7923 = vpack.c.b16 %v7719, %v7718
        %v7924 = vpack.c.b16 %v7721, %v7720
        %v7925 = vpack.c.b16 %v7723, %v7722
        %v7926 = vpack.c.b16 %v7725, %v7724
        %v7927 = vpack.c.b16 %v7727, %v7726
        %v7928 = vpack.c.b16 %v7729, %v7728
        %v7929 = vpack.c.b16 %v7731, %v7730
        %v7930 = vpack.c.b16 %v7733, %v7732
        %v7931 = vpack.c.b16 %v7735, %v7734
        %v7932 = vpack.c.b16 %v7737, %v7736
        %v7933 = vpack.c.b16 %v7739, %v7738
        %v7934 = vpack.c.b16 %v7741, %v7740
        %v7935 = vpack.c.b16 %v7743, %v7742
        %v7936 = vpack.c.b16 %v7745, %v7744
        %v7937 = vpack.c.b16 %v7747, %v7746
        %v7938 = vpack.c.b16 %v7749, %v7748
        %v7939 = vpack.c.b16 %v7751, %v7750
        %v7940 = vpack.c.b16 %v7753, %v7752
        %v7941 = vpack.c.b16 %v7755, %v7754
        %v7942 = vpack.c.b16 %v7757, %v7756
        %v7943 = vpack.c.b16 %v7759, %v7758
        %v7944 = vpack.c.b16 %v7761, %v7760
        %v7945 = vpack.c.b16 %v7763, %v7762
        %v7946 = vpack.c.b16 %v7765, %v7764
        %v7947 = vpack.c.b16 %v7767, %v7766
        %v7948 = vpack.c.b16 %v7769, %v7768
        %v7949 = vpack.c.b16 %v7771, %v7770
        %v7950 = vpack.c.b16 %v7773, %v7772
        %v7951 = vpack.c.b16 %v7775, %v7774
        %v7952 = vpack.c.b16 %v7777, %v7776
        %v7953 = vpack.c.b16 %v7779, %v7778
        %v7954 = vpack.c.b16 %v7781, %v7780
        %v7955 = vpack.c.b16 %v7783, %v7782
        %v7956 = vpack.c.b16 %v7785, %v7784
        %v7957 = vpack.c.b16 %v7787, %v7786
        %v7958 = vpack.c.b16 %v7789, %v7788
        %v7959 = vpack.c.b16 %v7791, %v7790
        %v7960 = vpack.c.b16 %v7793, %v7792
        %v7961 = vpack.c.b16 %v7795, %v7794
        %v7962 = vpack.c.b16 %v7797, %v7796
        %v7963 = vpack.c.b16 %v7799, %v7798
        %v7964 = vpack.c.b16 %v7801, %v7800
        %v7965 = vpack.c.b16 %v7803, %v7802
        %v7966 = vpack.c.b16 %v7805, %v7804
        %v7967 = vpack.c.b16 %v7807, %v7806
        %v7968 = vpack.c.b16 %v7809, %v7808
        %v7969 = vpack.c.b16 %v7811, %v7810
        %v7970 = vpack.c.b16 %v7813, %v7812
        %v7971 = vpack.c.b16 %v7815, %v7814
        %v7972 = vpack.c.b16 %v7817, %v7816
        %v7973 = vpack.c.b16 %v7819, %v7818
        %v7974 = vpack.c.b16 %v7821, %v7820
        %v7975 = vpack.c.b16 %v7823, %v7822
        %v7976 = vpack.c.b16 %v7825, %v7824
        %v7977 = vpack.c.b16 %v7827, %v7826
        %v7978 = vpack.c.b16 %v7829, %v7828
        %v7979 = vpack.c.b16 %v7831, %v7830
        %v7980 = vpack.c.b16 %v7833, %v7832
        %v7981 = vpack.c.b16 %v7835, %v7834
        %v7982 = vpack.c.b16 %v7837, %v7836
        %v7983 = vpack.c.b16 %v7839, %v7838
        %v7984 = vpack.c.b16 %v7841, %v7840
        %v7985 = vpack.c.b16 %v7843, %v7842
        %v7986 = vpack.c.b16 %v7845, %v7844
        %v7987 = vpack.c.b16 %v7847, %v7846
        %v7988 = vpack.c.b16 %v7849, %v7848
        %v7989 = vpack.c.b16 %v7851, %v7850
        %v7990 = vpack.c.b16 %v7853, %v7852
        %v7991 = vpack.c.b16 %v7855, %v7854
        %v7992 = vpack.c.b16 %v7857, %v7856
        %v7993 = vpack.c.b16 %v7859, %v7858
        %v7994 = vpack.c.b16 %v7861, %v7860
        %v7995 = vpack.c.b16 %v7863, %v7862
        %v7996 = vpack.c.b16 %v7865, %v7864
        %v7997 = vpack.c.b16 %v7867, %v7866
        %v7998 = vpack.c.b16 %v7869, %v7868
        %v7999 = vpack.c.b16 %v7871, %v7870
        %8128 = vmatprep.subr.bf16.mxu0 0
        %8129 = vmatpush1.bf16.msra.mxu0 %v7872
        %8130 = vmatprep.subr.bf16.mxu0 0
        %8131 = vmatpush1.bf16.msra.mxu0 %v7873
        %8132 = vmatprep.subr.bf16.mxu0 0
        %8133 = vmatpush1.bf16.msra.mxu0 %v7874
        %8134 = vmatprep.subr.bf16.mxu0 0
        %8135 = vmatpush1.bf16.msra.mxu0 %v7875
        %8136 = vmatprep.subr.bf16.mxu0 0
        %8137 = vmatpush1.bf16.msra.mxu0 %v7876
        %8138 = vmatprep.subr.bf16.mxu0 0
        %8139 = vmatpush1.bf16.msra.mxu0 %v7877
        %8140 = vmatprep.subr.bf16.mxu0 0
        %8141 = vmatpush1.bf16.msra.mxu0 %v7878
        %8142 = vmatprep.subr.bf16.mxu0 0
        %8143 = vmatpush1.bf16.msra.mxu0 %v7879
        %8144 = vmatprep.subr.bf16.mxu0 0
        %8145 = vmatpush1.bf16.msra.mxu0 %v7880
        %8146 = vmatprep.subr.bf16.mxu0 0
        %8147 = vmatpush1.bf16.msra.mxu0 %v7881
        %8148 = vmatprep.subr.bf16.mxu0 0
        %8149 = vmatpush1.bf16.msra.mxu0 %v7882
        %8150 = vmatprep.subr.bf16.mxu0 0
        %8151 = vmatpush1.bf16.msra.mxu0 %v7883
        %8152 = vmatprep.subr.bf16.mxu0 0
        %8153 = vmatpush1.bf16.msra.mxu0 %v7884
        %8154 = vmatprep.subr.bf16.mxu0 0
        %8155 = vmatpush1.bf16.msra.mxu0 %v7885
        %8156 = vmatprep.subr.bf16.mxu0 0
        %8157 = vmatpush1.bf16.msra.mxu0 %v7886
        %8158 = vmatprep.subr.bf16.mxu0 0
        %8159 = vmatpush1.bf16.msra.mxu0 %v7887
        %8160 = vmatprep.mubr.bf16.mxu0 %v7339
        %8161 = vmatmul.mubr.bf16.gmra.mrb[0].mxu0 %v7338
        %v8162 = vpop.f32.mrb[0].mxu0
        %v8163 = vadd.f32 %v7358, %v8162
        %v8164 = vpop.f32.mrb[0].mxu0
        %v8165 = vpop.f32.mrb[0].mxu0
        %v8166 = vadd.f32 %v7358, %v8165
        %v8167 = vpop.f32.mrb[0].mxu0
        %8168 = vdwg.mxu0
        %8169 = vmatprep.subr.bf16.mxu0 0
        %8170 = vmatpush1.bf16.msra.mxu0 %v7888
        %8171 = vmatprep.subr.bf16.mxu0 0
        %8172 = vmatpush1.bf16.msra.mxu0 %v7889
        %8173 = vmatprep.subr.bf16.mxu0 0
        %8174 = vmatpush1.bf16.msra.mxu0 %v7890
        %8175 = vmatprep.subr.bf16.mxu0 0
        %8176 = vmatpush1.bf16.msra.mxu0 %v7891
        %8177 = vmatprep.subr.bf16.mxu0 0
        %8178 = vmatpush1.bf16.msra.mxu0 %v7892
        %8179 = vmatprep.subr.bf16.mxu0 0
        %8180 = vmatpush1.bf16.msra.mxu0 %v7893
        %8181 = vmatprep.subr.bf16.mxu0 0
        %8182 = vmatpush1.bf16.msra.mxu0 %v7894
        %8183 = vmatprep.subr.bf16.mxu0 0
        %8184 = vmatpush1.bf16.msra.mxu0 %v7895
        %8185 = vmatprep.subr.bf16.mxu0 0
        %8186 = vmatpush1.bf16.msra.mxu0 %v7896
        %8187 = vmatprep.subr.bf16.mxu0 0
        %8188 = vmatpush1.bf16.msra.mxu0 %v7897
        %8189 = vmatprep.subr.bf16.mxu0 0
        %8190 = vmatpush1.bf16.msra.mxu0 %v7898
        %8191 = vmatprep.subr.bf16.mxu0 0
        %8192 = vmatpush1.bf16.msra.mxu0 %v7899
        %8193 = vmatprep.subr.bf16.mxu0 0
        %8194 = vmatpush1.bf16.msra.mxu0 %v7900
        %8195 = vmatprep.subr.bf16.mxu0 0
        %8196 = vmatpush1.bf16.msra.mxu0 %v7901
        %8197 = vmatprep.subr.bf16.mxu0 0
        %8198 = vmatpush1.bf16.msra.mxu0 %v7902
        %8199 = vmatprep.subr.bf16.mxu0 0
        %8200 = vmatpush1.bf16.msra.mxu0 %v7903
        %8201 = vmatprep.mubr.bf16.mxu0 %v7341
        %8202 = vmatmul.mubr.bf16.gmra.mrb[0].mxu0 %v7340
        %v8203 = vpop.f32.mrb[0].mxu0
        %v8204 = vadd.f32 %v8163, %v8203
        %v8205 = vpop.f32.mrb[0].mxu0
        %v8206 = vpop.f32.mrb[0].mxu0
        %v8207 = vadd.f32 %v8166, %v8206
        %v8208 = vpop.f32.mrb[0].mxu0
        %8209 = vdwg.mxu0
        %8210 = vmatprep.subr.bf16.mxu0 0
        %8211 = vmatpush1.bf16.msra.mxu0 %v7904
        %8212 = vmatprep.subr.bf16.mxu0 0
        %8213 = vmatpush1.bf16.msra.mxu0 %v7905
        %8214 = vmatprep.subr.bf16.mxu0 0
        %8215 = vmatpush1.bf16.msra.mxu0 %v7906
        %8216 = vmatprep.subr.bf16.mxu0 0
        %8217 = vmatpush1.bf16.msra.mxu0 %v7907
        %8218 = vmatprep.subr.bf16.mxu0 0
        %8219 = vmatpush1.bf16.msra.mxu0 %v7908
        %8220 = vmatprep.subr.bf16.mxu0 0
        %8221 = vmatpush1.bf16.msra.mxu0 %v7909
        %8222 = vmatprep.subr.bf16.mxu0 0
        %8223 = vmatpush1.bf16.msra.mxu0 %v7910
        %8224 = vmatprep.subr.bf16.mxu0 0
        %8225 = vmatpush1.bf16.msra.mxu0 %v7911
        %8226 = vmatprep.subr.bf16.mxu0 0
        %8227 = vmatpush1.bf16.msra.mxu0 %v7912
        %8228 = vmatprep.subr.bf16.mxu0 0
        %8229 = vmatpush1.bf16.msra.mxu0 %v7913
        %8230 = vmatprep.subr.bf16.mxu0 0
        %8231 = vmatpush1.bf16.msra.mxu0 %v7914
        %8232 = vmatprep.subr.bf16.mxu0 0
        %8233 = vmatpush1.bf16.msra.mxu0 %v7915
        %8234 = vmatprep.subr.bf16.mxu0 0
        %8235 = vmatpush1.bf16.msra.mxu0 %v7916
        %8236 = vmatprep.subr.bf16.mxu0 0
        %8237 = vmatpush1.bf16.msra.mxu0 %v7917
        %8238 = vmatprep.subr.bf16.mxu0 0
        %8239 = vmatpush1.bf16.msra.mxu0 %v7918
        %8240 = vmatprep.subr.bf16.mxu0 0
        %8241 = vmatpush1.bf16.msra.mxu0 %v7919
        %8242 = vmatprep.mubr.bf16.mxu0 %v7343
        %8243 = vmatmul.mubr.bf16.gmra.mrb[0].mxu0 %v7342
        %v8244 = vpop.f32.mrb[0].mxu0
        %v8245 = vadd.f32 %v8204, %v8244
        %v8246 = vpop.f32.mrb[0].mxu0
        %v8247 = vpop.f32.mrb[0].mxu0
        %v8248 = vadd.f32 %v8207, %v8247
        %v8249 = vpop.f32.mrb[0].mxu0
        %8250 = vdwg.mxu0
        %8251 = vmatprep.subr.bf16.mxu0 0
        %8252 = vmatpush1.bf16.msra.mxu0 %v7920
        %8253 = vmatprep.subr.bf16.mxu0 0
        %8254 = vmatpush1.bf16.msra.mxu0 %v7921
        %8255 = vmatprep.subr.bf16.mxu0 0
        %8256 = vmatpush1.bf16.msra.mxu0 %v7922
        %8257 = vmatprep.subr.bf16.mxu0 0
        %8258 = vmatpush1.bf16.msra.mxu0 %v7923
        %8259 = vmatprep.subr.bf16.mxu0 0
        %8260 = vmatpush1.bf16.msra.mxu0 %v7924
        %8261 = vmatprep.subr.bf16.mxu0 0
        %8262 = vmatpush1.bf16.msra.mxu0 %v7925
        %8263 = vmatprep.subr.bf16.mxu0 0
        %8264 = vmatpush1.bf16.msra.mxu0 %v7926
        %8265 = vmatprep.subr.bf16.mxu0 0
        %8266 = vmatpush1.bf16.msra.mxu0 %v7927
        %8267 = vmatprep.subr.bf16.mxu0 0
        %8268 = vmatpush1.bf16.msra.mxu0 %v7928
        %8269 = vmatprep.subr.bf16.mxu0 0
        %8270 = vmatpush1.bf16.msra.mxu0 %v7929
        %8271 = vmatprep.subr.bf16.mxu0 0
        %8272 = vmatpush1.bf16.msra.mxu0 %v7930
        %8273 = vmatprep.subr.bf16.mxu0 0
        %8274 = vmatpush1.bf16.msra.mxu0 %v7931
        %8275 = vmatprep.subr.bf16.mxu0 0
        %8276 = vmatpush1.bf16.msra.mxu0 %v7932
        %8277 = vmatprep.subr.bf16.mxu0 0
        %8278 = vmatpush1.bf16.msra.mxu0 %v7933
        %8279 = vmatprep.subr.bf16.mxu0 0
        %8280 = vmatpush1.bf16.msra.mxu0 %v7934
        %8281 = vmatprep.subr.bf16.mxu0 0
        %8282 = vmatpush1.bf16.msra.mxu0 %v7935
        %8283 = vmatprep.mubr.bf16.mxu0 %v7345
        %8284 = vmatmul.mubr.bf16.gmra.mrb[0].mxu0 %v7344
        %v8285 = vpop.f32.mrb[0].mxu0
        %v8286 = vadd.f32 %v8245, %v8285
        %v8287 = vpop.f32.mrb[0].mxu0
        %v8288 = vpop.f32.mrb[0].mxu0
        %v8289 = vadd.f32 %v8248, %v8288
        %v8290 = vpop.f32.mrb[0].mxu0
        %8291 = vdwg.mxu0
        %8292 = vmatprep.subr.bf16.mxu0 0
        %8293 = vmatpush1.bf16.msra.mxu0 %v7936
        %8294 = vmatprep.subr.bf16.mxu0 0
        %8295 = vmatpush1.bf16.msra.mxu0 %v7937
        %8296 = vmatprep.subr.bf16.mxu0 0
        %8297 = vmatpush1.bf16.msra.mxu0 %v7938
        %8298 = vmatprep.subr.bf16.mxu0 0
        %8299 = vmatpush1.bf16.msra.mxu0 %v7939
        %8300 = vmatprep.subr.bf16.mxu0 0
        %8301 = vmatpush1.bf16.msra.mxu0 %v7940
        %8302 = vmatprep.subr.bf16.mxu0 0
        %8303 = vmatpush1.bf16.msra.mxu0 %v7941
        %8304 = vmatprep.subr.bf16.mxu0 0
        %8305 = vmatpush1.bf16.msra.mxu0 %v7942
        %8306 = vmatprep.subr.bf16.mxu0 0
        %8307 = vmatpush1.bf16.msra.mxu0 %v7943
        %8308 = vmatprep.subr.bf16.mxu0 0
        %8309 = vmatpush1.bf16.msra.mxu0 %v7944
        %8310 = vmatprep.subr.bf16.mxu0 0
        %8311 = vmatpush1.bf16.msra.mxu0 %v7945
        %8312 = vmatprep.subr.bf16.mxu0 0
        %8313 = vmatpush1.bf16.msra.mxu0 %v7946
        %8314 = vmatprep.subr.bf16.mxu0 0
        %8315 = vmatpush1.bf16.msra.mxu0 %v7947
        %8316 = vmatprep.subr.bf16.mxu0 0
        %8317 = vmatpush1.bf16.msra.mxu0 %v7948
        %8318 = vmatprep.subr.bf16.mxu0 0
        %8319 = vmatpush1.bf16.msra.mxu0 %v7949
        %8320 = vmatprep.subr.bf16.mxu0 0
        %8321 = vmatpush1.bf16.msra.mxu0 %v7950
        %8322 = vmatprep.subr.bf16.mxu0 0
        %8323 = vmatpush1.bf16.msra.mxu0 %v7951
        %8324 = vmatprep.mubr.bf16.mxu0 %v7347
        %8325 = vmatmul.mubr.bf16.gmra.mrb[0].mxu0 %v7346
        %v8326 = vpop.f32.mrb[0].mxu0
        %v8327 = vadd.f32 %v8286, %v8326
        %v8328 = vpop.f32.mrb[0].mxu0
        %v8329 = vpop.f32.mrb[0].mxu0
        %v8330 = vadd.f32 %v8289, %v8329
        %v8331 = vpop.f32.mrb[0].mxu0
        %8332 = vdwg.mxu0
        %8333 = vmatprep.subr.bf16.mxu0 0
        %8334 = vmatpush1.bf16.msra.mxu0 %v7952
        %8335 = vmatprep.subr.bf16.mxu0 0
        %8336 = vmatpush1.bf16.msra.mxu0 %v7953
        %8337 = vmatprep.subr.bf16.mxu0 0
        %8338 = vmatpush1.bf16.msra.mxu0 %v7954
        %8339 = vmatprep.subr.bf16.mxu0 0
        %8340 = vmatpush1.bf16.msra.mxu0 %v7955
        %8341 = vmatprep.subr.bf16.mxu0 0
        %8342 = vmatpush1.bf16.msra.mxu0 %v7956
        %8343 = vmatprep.subr.bf16.mxu0 0
        %8344 = vmatpush1.bf16.msra.mxu0 %v7957
        %8345 = vmatprep.subr.bf16.mxu0 0
        %8346 = vmatpush1.bf16.msra.mxu0 %v7958
        %8347 = vmatprep.subr.bf16.mxu0 0
        %8348 = vmatpush1.bf16.msra.mxu0 %v7959
        %8349 = vmatprep.subr.bf16.mxu0 0
        %8350 = vmatpush1.bf16.msra.mxu0 %v7960
        %8351 = vmatprep.subr.bf16.mxu0 0
        %8352 = vmatpush1.bf16.msra.mxu0 %v7961
        %8353 = vmatprep.subr.bf16.mxu0 0
        %8354 = vmatpush1.bf16.msra.mxu0 %v7962
        %8355 = vmatprep.subr.bf16.mxu0 0
        %8356 = vmatpush1.bf16.msra.mxu0 %v7963
        %8357 = vmatprep.subr.bf16.mxu0 0
        %8358 = vmatpush1.bf16.msra.mxu0 %v7964
        %8359 = vmatprep.subr.bf16.mxu0 0
        %8360 = vmatpush1.bf16.msra.mxu0 %v7965
        %8361 = vmatprep.subr.bf16.mxu0 0
        %8362 = vmatpush1.bf16.msra.mxu0 %v7966
        %8363 = vmatprep.subr.bf16.mxu0 0
        %8364 = vmatpush1.bf16.msra.mxu0 %v7967
        %8365 = vmatprep.mubr.bf16.mxu0 %v7349
        %8366 = vmatmul.mubr.bf16.gmra.mrb[0].mxu0 %v7348
        %v8367 = vpop.f32.mrb[0].mxu0
        %v8368 = vadd.f32 %v8327, %v8367
        %v8369 = vpop.f32.mrb[0].mxu0
        %v8370 = vpop.f32.mrb[0].mxu0
        %v8371 = vadd.f32 %v8330, %v8370
        %v8372 = vpop.f32.mrb[0].mxu0
        %8373 = vdwg.mxu0
        %8374 = vmatprep.subr.bf16.mxu0 0
        %8375 = vmatpush1.bf16.msra.mxu0 %v7968
        %8376 = vmatprep.subr.bf16.mxu0 0
        %8377 = vmatpush1.bf16.msra.mxu0 %v7969
        %8378 = vmatprep.subr.bf16.mxu0 0
        %8379 = vmatpush1.bf16.msra.mxu0 %v7970
        %8380 = vmatprep.subr.bf16.mxu0 0
        %8381 = vmatpush1.bf16.msra.mxu0 %v7971
        %8382 = vmatprep.subr.bf16.mxu0 0
        %8383 = vmatpush1.bf16.msra.mxu0 %v7972
        %8384 = vmatprep.subr.bf16.mxu0 0
        %8385 = vmatpush1.bf16.msra.mxu0 %v7973
        %8386 = vmatprep.subr.bf16.mxu0 0
        %8387 = vmatpush1.bf16.msra.mxu0 %v7974
        %8388 = vmatprep.subr.bf16.mxu0 0
        %8389 = vmatpush1.bf16.msra.mxu0 %v7975
        %8390 = vmatprep.subr.bf16.mxu0 0
        %8391 = vmatpush1.bf16.msra.mxu0 %v7976
        %8392 = vmatprep.subr.bf16.mxu0 0
        %8393 = vmatpush1.bf16.msra.mxu0 %v7977
        %8394 = vmatprep.subr.bf16.mxu0 0
        %8395 = vmatpush1.bf16.msra.mxu0 %v7978
        %8396 = vmatprep.subr.bf16.mxu0 0
        %8397 = vmatpush1.bf16.msra.mxu0 %v7979
        %8398 = vmatprep.subr.bf16.mxu0 0
        %8399 = vmatpush1.bf16.msra.mxu0 %v7980
        %8400 = vmatprep.subr.bf16.mxu0 0
        %8401 = vmatpush1.bf16.msra.mxu0 %v7981
        %8402 = vmatprep.subr.bf16.mxu0 0
        %8403 = vmatpush1.bf16.msra.mxu0 %v7982
        %8404 = vmatprep.subr.bf16.mxu0 0
        %8405 = vmatpush1.bf16.msra.mxu0 %v7983
        %8406 = vmatprep.mubr.bf16.mxu0 %v7351
        %8407 = vmatmul.mubr.bf16.gmra.mrb[0].mxu0 %v7350
        %v8408 = vpop.f32.mrb[0].mxu0
        %v8409 = vadd.f32 %v8368, %v8408
        %v8410 = vpop.f32.mrb[0].mxu0
        %v8411 = vpop.f32.mrb[0].mxu0
        %v8412 = vadd.f32 %v8371, %v8411
        %v8413 = vpop.f32.mrb[0].mxu0
        %8414 = vdwg.mxu0
        %8415 = vmatprep.subr.bf16.mxu0 0
        %8416 = vmatpush1.bf16.msra.mxu0 %v7984
        %8417 = vmatprep.subr.bf16.mxu0 0
        %8418 = vmatpush1.bf16.msra.mxu0 %v7985
        %8419 = vmatprep.subr.bf16.mxu0 0
        %8420 = vmatpush1.bf16.msra.mxu0 %v7986
        %8421 = vmatprep.subr.bf16.mxu0 0
        %8422 = vmatpush1.bf16.msra.mxu0 %v7987
        %8423 = vmatprep.subr.bf16.mxu0 0
        %8424 = vmatpush1.bf16.msra.mxu0 %v7988
        %8425 = vmatprep.subr.bf16.mxu0 0
        %8426 = vmatpush1.bf16.msra.mxu0 %v7989
        %8427 = vmatprep.subr.bf16.mxu0 0
        %8428 = vmatpush1.bf16.msra.mxu0 %v7990
        %8429 = vmatprep.subr.bf16.mxu0 0
        %8430 = vmatpush1.bf16.msra.mxu0 %v7991
        %8431 = vmatprep.subr.bf16.mxu0 0
        %8432 = vmatpush1.bf16.msra.mxu0 %v7992
        %8433 = vmatprep.subr.bf16.mxu0 0
        %8434 = vmatpush1.bf16.msra.mxu0 %v7993
        %8435 = vmatprep.subr.bf16.mxu0 0
        %8436 = vmatpush1.bf16.msra.mxu0 %v7994
        %8437 = vmatprep.subr.bf16.mxu0 0
        %8438 = vmatpush1.bf16.msra.mxu0 %v7995
        %8439 = vmatprep.subr.bf16.mxu0 0
        %8440 = vmatpush1.bf16.msra.mxu0 %v7996
        %8441 = vmatprep.subr.bf16.mxu0 0
        %8442 = vmatpush1.bf16.msra.mxu0 %v7997
        %8443 = vmatprep.subr.bf16.mxu0 0
        %8444 = vmatpush1.bf16.msra.mxu0 %v7998
        %8445 = vmatprep.subr.bf16.mxu0 0
        %8446 = vmatpush1.bf16.msra.mxu0 %v7999
        %8447 = vmatprep.mubr.bf16.mxu0 %v7353
        %8448 = vmatmul.mubr.bf16.gmra.mrb[0].mxu0 %v7352
        %v8449 = vpop.f32.mrb[0].mxu0
        %v8450 = vadd.f32 %v8409, %v8449
        %v8451 = vpop.f32.mrb[0].mxu0
        %v8452 = vpop.f32.mrb[0].mxu0
        %v8453 = vadd.f32 %v8412, %v8452
        %v8454 = vpop.f32.mrb[0].mxu0
        %8455 = vdwg.mxu0
        %v8456 = vadd.f32 %v6323, %v8450
        %v8457 = vadd.f32 %v6324, %v8453
        %s8458 = scalar_lea.vmem %s11, 2
        %v8459 = vld [vmem:[%s8458] sm:$0x1]
        %s8460 = scalar_lea.vmem %s12, 2
        %v8461 = vld [vmem:[%s8460] sm:$0x1]
        %v8462 = vsel %vm545, %v8456, 0.0
        %8463 = vadd.xlane.f32.xlu0 %v8462
        %v8464 = vpop.xlane.xlu0 %8463
        %v8465 = vsel %vm545, %v8457, 0.0
        %8466 = vadd.xlane.f32.xlu0 %v8465
        %v8467 = vpop.xlane.xlu0 %8466
        %v8468 = vmul.f32 %v8464, %v964
        %v8469 = vmul.f32 %v8467, %v964
        %v8470 = vsub.f32 %v8456, %v8468
        %v8471 = vsub.f32 %v8457, %v8469
        %v8472 = vmul.f32 %v8470, %v8470
        %v8473 = vmul.f32 %v8471, %v8471
        %v8474 = vsel %vm545, %v8472, 0.0
        %8475 = vadd.xlane.f32.xlu0 %v8474
        %v8476 = vpop.xlane.xlu0 %8475
        %v8477 = vsel %vm545, %v8473, 0.0
        %8478 = vadd.xlane.f32.xlu0 %v8477
        %v8479 = vpop.xlane.xlu0 %8478
        %v8480 = vmul.f32 %v8476, %v964
        %v8481 = vmul.f32 %v8479, %v964
        %v8482 = vadd.f32 %v8480, 1e-05
        %v8483 = vadd.f32 %v8481, 1e-05
        %v8484 = vrsqrt.pop %v8482
        %v8485 = vrsqrt.pop %v8483
        %v8486 = vmul.f32 %v8470, %v8484
        %v8487 = vmul.f32 %v8471, %v8485
        %v8489 = vlaneseq
        %v8490 = vshrl.u32 %v8489, 7
        %v8491 = vsub.s32 0, %v8490
        %v8492 = vrot.slane %v8459, %v8491
        %v8494 = vmul.f32 %v8486, %v8492
        %v8495 = vmul.f32 %v8487, %v8492
        %v8497 = vlaneseq
        %v8498 = vshrl.u32 %v8497, 7
        %v8499 = vsub.s32 0, %v8498
        %v8500 = vrot.slane %v8461, %v8499
        %v8502 = vadd.f32 %v8494, %v8500
        %v8503 = vadd.f32 %v8495, %v8500
        %s8504 = scalar_lea.vmem %s1, 60
        %v8505 = vld [vmem:[%s8504] sm:$0xf]
        %v8506 = vld [vmem:[%s8504 + $0x4] sm:$0xf]
        %v8507 = vld [vmem:[%s8504 + $0x8] sm:$0xf]
        %v8508 = vld [vmem:[%s8504 + $0xc] sm:$0xf]
        %v8509 = vld [vmem:[%s8504 + $0x10] sm:$0xf]
        %s8510 = scalar_lea.vmem %s2, 3
        %v8511 = vld [vmem:[%s8510] sm:$0x1]
        %v8512 = vpack.c.bf16 %v8503, %v8502
        %v8514 = vlaneseq
        %v8515 = vshrl.u32 %v8514, 7
        %v8516 = vsub.s32 0, %v8515
        %v8517 = vrot.slane %v8511, %v8516
        %v8524 = vunpack.c.l.b16 %v8505
        %v8525 = vunpack.c.l.b16 %v8506
        %v8526 = vunpack.c.l.b16 %v8507
        %v8527 = vunpack.c.l.b16 %v8508
        %v8528 = vunpack.c.l.b16 %v8509
        %v8529 = vpack.c.b16 %v8525, %v8524
        %v8530 = vpack.c.b16 %v8527, %v8526
        %v8531 = vpack.c.b16 %v8528, %v8528
        %v8535 = vsel %vm545, %v8512, 0
        %v8538 = vsel %vm549, %v8531, 0
        %8540 = vmatprep.subr.bf16.mxu0 0
        %8541 = vmatpush1.bf16.msra.mxu0 %v8529
        %8542 = vmatprep.subr.bf16.mxu0 0
        %8543 = vmatpush1.bf16.msra.mxu0 %v8530
        %8544 = vmatprep.subr.bf16.mxu0 0
        %8545 = vmatpush1.bf16.msra.mxu0 %v8538
        %8546 = vmatprep.subr.bf16.mxu0 0
        %8547 = vmatpush1.bf16.msra.mxu0 0
        %8548 = vmatprep.subr.bf16.mxu0 0
        %8549 = vmatpush1.bf16.msra.mxu0 0
        %8550 = vmatprep.subr.bf16.mxu0 0
        %8551 = vmatpush1.bf16.msra.mxu0 0
        %8552 = vmatprep.subr.bf16.mxu0 0
        %8553 = vmatpush1.bf16.msra.mxu0 0
        %8554 = vmatprep.subr.bf16.mxu0 0
        %8555 = vmatpush1.bf16.msra.mxu0 0
        %8556 = vmatprep.subr.bf16.mxu0 0
        %8557 = vmatpush1.bf16.msra.mxu0 0
        %8558 = vmatprep.subr.bf16.mxu0 0
        %8559 = vmatpush1.bf16.msra.mxu0 0
        %8560 = vmatprep.subr.bf16.mxu0 0
        %8561 = vmatpush1.bf16.msra.mxu0 0
        %8562 = vmatprep.subr.bf16.mxu0 0
        %8563 = vmatpush1.bf16.msra.mxu0 0
        %8564 = vmatprep.subr.bf16.mxu0 0
        %8565 = vmatpush1.bf16.msra.mxu0 0
        %8566 = vmatprep.subr.bf16.mxu0 0
        %8567 = vmatpush1.bf16.msra.mxu0 0
        %8568 = vmatprep.subr.bf16.mxu0 0
        %8569 = vmatpush1.bf16.msra.mxu0 0
        %8570 = vmatprep.subr.bf16.mxu0 0
        %8571 = vmatpush1.bf16.msra.mxu0 0
        %8572 = vmatprep.mubr.bf16.mxu0 0
        %8573 = vmatmul.mubr.bf16.gmra.mrb[0].mxu0 %v8535
        %v8574 = vpop.f32.mrb[0].mxu0
        %v8575 = vadd.f32 %v8517, %v8574
        %v8576 = vpop.f32.mrb[0].mxu0
        %v8577 = vpop.f32.mrb[0].mxu0
        %v8578 = vadd.f32 %v8517, %v8577
        %v8579 = vpop.f32.mrb[0].mxu0
        %8580 = vdwg.mxu0
        %v8581 = vmul.f32 %v8575, %v501
        %v8582 = vmul.f32 %v8578, %v501
        %v8583 = vmul.f32 %v8575, %v506
        %v8584 = vmul.f32 %v8578, %v506
        %v8585 = vmul.f32 %v8575, %v511
        %v8586 = vmul.f32 %v8578, %v511
        %v8587 = vmul.f32 %v8575, %v516
        %v8588 = vmul.f32 %v8578, %v516
        %v8589 = vpack.c.bf16 %v8582, %v8581
        %v8590 = vpack.c.bf16 %v8584, %v8583
        %v8591 = vpack.c.bf16 %v8586, %v8585
        %v8592 = vpack.c.bf16 %v8588, %v8587
        %v8593 = vpack.c.bf16 %v8578, %v8575
        %8595 = vrot.lane.b32.xlu0 %v8593, 88
        %v8596 = vpop.permute.xlu0 %8595
        %v8598 = vsel %vm545, %v8589, 0
        %v8601 = vsel %vm545, %v8590, 0
        %v8604 = vsel %vm545, %v8591, 0
        %v8607 = vsel %vm545, %v8592, 0
        %v8610 = vsel %vm545, %v8596, 0
        %8612 = vmatprep.subr.bf16.mxu0 0
        %8613 = vmatpush1.bf16.xpose.msra.mxu0 %v8610
        %8614 = vmatprep.subr.bf16.mxu0 0
        %8615 = vmatpush1.bf16.xpose.msra.mxu0 0
        %8616 = vmatprep.subr.bf16.mxu0 0
        %8617 = vmatpush1.bf16.xpose.msra.mxu0 0
        %8618 = vmatprep.subr.bf16.mxu0 0
        %8619 = vmatpush1.bf16.xpose.msra.mxu0 0
        %8620 = vmatprep.subr.bf16.mxu0 0
        %8621 = vmatpush1.bf16.xpose.msra.mxu0 0
        %8622 = vmatprep.subr.bf16.mxu0 0
        %8623 = vmatpush1.bf16.xpose.msra.mxu0 0
        %8624 = vmatprep.subr.bf16.mxu0 0
        %8625 = vmatpush1.bf16.xpose.msra.mxu0 0
        %8626 = vmatprep.subr.bf16.mxu0 0
        %8627 = vmatpush1.bf16.xpose.msra.mxu0 0
        %8628 = vmatprep.subr.bf16.mxu0 0
        %8629 = vmatpush1.bf16.xpose.msra.mxu0 0
        %8630 = vmatprep.subr.bf16.mxu0 0
        %8631 = vmatpush1.bf16.xpose.msra.mxu0 0
        %8632 = vmatprep.subr.bf16.mxu0 0
        %8633 = vmatpush1.bf16.xpose.msra.mxu0 0
        %8634 = vmatprep.subr.bf16.mxu0 0
        %8635 = vmatpush1.bf16.xpose.msra.mxu0 0
        %8636 = vmatprep.subr.bf16.mxu0 0
        %8637 = vmatpush1.bf16.xpose.msra.mxu0 0
        %8638 = vmatprep.subr.bf16.mxu0 0
        %8639 = vmatpush1.bf16.xpose.msra.mxu0 0
        %8640 = vmatprep.subr.bf16.mxu0 0
        %8641 = vmatpush1.bf16.xpose.msra.mxu0 0
        %8642 = vmatprep.subr.bf16.mxu0 0
        %8643 = vmatpush1.bf16.xpose.msra.mxu0 0
        %8644 = vmatprep.mubr.bf16.mxu0 0
        %8645 = vmatmul.mubr.bf16.gmra.mrb[0].mxu0 %v8598
        %v8646 = vpop.f32.mrb[0].mxu0
        %v8647 = vadd.f32 0.0, %v8646
        %v8648 = vpop.f32.mrb[0].mxu0
        %v8649 = vpop.f32.mrb[0].mxu0
        %v8650 = vadd.f32 0.0, %v8649
        %v8651 = vpop.f32.mrb[0].mxu0
        %8652 = vmatprep.mubr.bf16.mxu0 0
        %8653 = vmatmul.mubr.bf16.gmra.mrb[0].mxu0 %v8601
        %v8654 = vpop.f32.mrb[0].mxu0
        %v8655 = vadd.f32 0.0, %v8654
        %v8656 = vpop.f32.mrb[0].mxu0
        %v8657 = vpop.f32.mrb[0].mxu0
        %v8658 = vadd.f32 0.0, %v8657
        %v8659 = vpop.f32.mrb[0].mxu0
        %8660 = vmatprep.mubr.bf16.mxu0 0
        %8661 = vmatmul.mubr.bf16.gmra.mrb[0].mxu0 %v8604
        %v8662 = vpop.f32.mrb[0].mxu0
        %v8663 = vadd.f32 0.0, %v8662
        %v8664 = vpop.f32.mrb[0].mxu0
        %v8665 = vpop.f32.mrb[0].mxu0
        %v8666 = vadd.f32 0.0, %v8665
        %v8667 = vpop.f32.mrb[0].mxu0
        %8668 = vmatprep.mubr.bf16.mxu0 0
        %8669 = vmatmul.mubr.bf16.gmra.mrb[0].mxu0 %v8607
        %v8670 = vpop.f32.mrb[0].mxu0
        %v8671 = vadd.f32 0.0, %v8670
        %v8672 = vpop.f32.mrb[0].mxu0
        %v8673 = vpop.f32.mrb[0].mxu0
        %v8674 = vadd.f32 0.0, %v8673
        %v8675 = vpop.f32.mrb[0].mxu0
        %8676 = vdwg.mxu0
        %v8677 = vsel %vm690, %v8647, -inf
        %8678 = vmax.xlane.f32.xlu0 %v8677
        %v8679 = vpop.xlane.xlu0 %8678
        %v8680 = vsel %vm690, %v8650, -inf
        %8681 = vmax.xlane.f32.xlu0 %v8680
        %v8682 = vpop.xlane.xlu0 %8681
        %v8683 = vsel %vm690, %v8655, -inf
        %8684 = vmax.xlane.f32.xlu0 %v8683
        %v8685 = vpop.xlane.xlu0 %8684
        %v8686 = vsel %vm690, %v8658, -inf
        %8687 = vmax.xlane.f32.xlu0 %v8686
        %v8688 = vpop.xlane.xlu0 %8687
        %v8689 = vsel %vm690, %v8663, -inf
        %8690 = vmax.xlane.f32.xlu0 %v8689
        %v8691 = vpop.xlane.xlu0 %8690
        %v8692 = vsel %vm690, %v8666, -inf
        %8693 = vmax.xlane.f32.xlu0 %v8692
        %v8694 = vpop.xlane.xlu0 %8693
        %v8695 = vsel %vm690, %v8671, -inf
        %8696 = vmax.xlane.f32.xlu0 %v8695
        %v8697 = vpop.xlane.xlu0 %8696
        %v8698 = vsel %vm690, %v8674, -inf
        %8699 = vmax.xlane.f32.xlu0 %v8698
        %v8700 = vpop.xlane.xlu0 %8699
        %v8701 = vsub.f32 %v8647, %v8679
        %v8702 = vsub.f32 %v8650, %v8682
        %v8703 = vsub.f32 %v8655, %v8685
        %v8704 = vsub.f32 %v8658, %v8688
        %v8705 = vsub.f32 %v8663, %v8691
        %v8706 = vsub.f32 %v8666, %v8694
        %v8707 = vsub.f32 %v8671, %v8697
        %v8708 = vsub.f32 %v8674, %v8700
        %v8709 = vmul.f32 %v8701, 1.442695
        %v8710 = vpow.pop %v8709
        %v8711 = vmul.f32 %v8702, 1.442695
        %v8712 = vpow.pop %v8711
        %v8713 = vmul.f32 %v8703, 1.442695
        %v8714 = vpow.pop %v8713
        %v8715 = vmul.f32 %v8704, 1.442695
        %v8716 = vpow.pop %v8715
        %v8717 = vmul.f32 %v8705, 1.442695
        %v8718 = vpow.pop %v8717
        %v8719 = vmul.f32 %v8706, 1.442695
        %v8720 = vpow.pop %v8719
        %v8721 = vmul.f32 %v8707, 1.442695
        %v8722 = vpow.pop %v8721
        %v8723 = vmul.f32 %v8708, 1.442695
        %v8724 = vpow.pop %v8723
        %v8725 = vsel %vm690, %v8710, 0.0
        %8726 = vadd.xlane.f32.xlu0 %v8725
        %v8727 = vpop.xlane.xlu0 %8726
        %v8728 = vsel %vm690, %v8712, 0.0
        %8729 = vadd.xlane.f32.xlu0 %v8728
        %v8730 = vpop.xlane.xlu0 %8729
        %v8731 = vsel %vm690, %v8714, 0.0
        %8732 = vadd.xlane.f32.xlu0 %v8731
        %v8733 = vpop.xlane.xlu0 %8732
        %v8734 = vsel %vm690, %v8716, 0.0
        %8735 = vadd.xlane.f32.xlu0 %v8734
        %v8736 = vpop.xlane.xlu0 %8735
        %v8737 = vsel %vm690, %v8718, 0.0
        %8738 = vadd.xlane.f32.xlu0 %v8737
        %v8739 = vpop.xlane.xlu0 %8738
        %v8740 = vsel %vm690, %v8720, 0.0
        %8741 = vadd.xlane.f32.xlu0 %v8740
        %v8742 = vpop.xlane.xlu0 %8741
        %v8743 = vsel %vm690, %v8722, 0.0
        %8744 = vadd.xlane.f32.xlu0 %v8743
        %v8745 = vpop.xlane.xlu0 %8744
        %v8746 = vsel %vm690, %v8724, 0.0
        %8747 = vadd.xlane.f32.xlu0 %v8746
        %v8748 = vpop.xlane.xlu0 %8747
        %v8749 = vrcp.pop %v8727
        %v8750 = vrcp.pop %v8730
        %v8751 = vrcp.pop %v8733
        %v8752 = vrcp.pop %v8736
        %v8753 = vrcp.pop %v8739
        %v8754 = vrcp.pop %v8742
        %v8755 = vrcp.pop %v8745
        %v8756 = vrcp.pop %v8748
        %v8757 = vmul.f32 %v8710, %v8749
        %v8758 = vmul.f32 %v8712, %v8750
        %v8759 = vmul.f32 %v8714, %v8751
        %v8760 = vmul.f32 %v8716, %v8752
        %v8761 = vmul.f32 %v8718, %v8753
        %v8762 = vmul.f32 %v8720, %v8754
        %v8763 = vmul.f32 %v8722, %v8755
        %v8764 = vmul.f32 %v8724, %v8756
        %v8765 = vpack.c.bf16 %v8758, %v8757
        %v8766 = vpack.c.bf16 %v8760, %v8759
        %v8767 = vpack.c.bf16 %v8762, %v8761
        %v8768 = vpack.c.bf16 %v8764, %v8763
        %8769 = vrot.lane.b32.xlu0 %v8593, 48
        %v8770 = vpop.permute.xlu0 %8769
        %v8773 = vsel %vm690, %v8765, 0
        %v8776 = vsel %vm690, %v8766, 0
        %v8779 = vsel %vm690, %v8767, 0
        %v8782 = vsel %vm690, %v8768, 0
        %8784 = vmatprep.subr.bf16.mxu0 0
        %8785 = vmatpush1.bf16.msra.mxu0 %v8770
        %8786 = vmatprep.subr.bf16.mxu0 0
        %8787 = vmatpush1.bf16.msra.mxu0 0
        %8788 = vmatprep.subr.bf16.mxu0 0
        %8789 = vmatpush1.bf16.msra.mxu0 0
        %8790 = vmatprep.subr.bf16.mxu0 0
        %8791 = vmatpush1.bf16.msra.mxu0 0
        %8792 = vmatprep.subr.bf16.mxu0 0
        %8793 = vmatpush1.bf16.msra.mxu0 0
        %8794 = vmatprep.subr.bf16.mxu0 0
        %8795 = vmatpush1.bf16.msra.mxu0 0
        %8796 = vmatprep.subr.bf16.mxu0 0
        %8797 = vmatpush1.bf16.msra.mxu0 0
        %8798 = vmatprep.subr.bf16.mxu0 0
        %8799 = vmatpush1.bf16.msra.mxu0 0
        %8800 = vmatprep.subr.bf16.mxu0 0
        %8801 = vmatpush1.bf16.msra.mxu0 0
        %8802 = vmatprep.subr.bf16.mxu0 0
        %8803 = vmatpush1.bf16.msra.mxu0 0
        %8804 = vmatprep.subr.bf16.mxu0 0
        %8805 = vmatpush1.bf16.msra.mxu0 0
        %8806 = vmatprep.subr.bf16.mxu0 0
        %8807 = vmatpush1.bf16.msra.mxu0 0
        %8808 = vmatprep.subr.bf16.mxu0 0
        %8809 = vmatpush1.bf16.msra.mxu0 0
        %8810 = vmatprep.subr.bf16.mxu0 0
        %8811 = vmatpush1.bf16.msra.mxu0 0
        %8812 = vmatprep.subr.bf16.mxu0 0
        %8813 = vmatpush1.bf16.msra.mxu0 0
        %8814 = vmatprep.subr.bf16.mxu0 0
        %8815 = vmatpush1.bf16.msra.mxu0 0
        %8816 = vmatprep.mubr.bf16.mxu0 0
        %8817 = vmatmul.mubr.bf16.gmra.mrb[0].mxu0 %v8773
        %v8818 = vpop.f32.mrb[0].mxu0
        %v8819 = vadd.f32 0.0, %v8818
        %v8820 = vpop.f32.mrb[0].mxu0
        %v8821 = vpop.f32.mrb[0].mxu0
        %v8822 = vadd.f32 0.0, %v8821
        %v8823 = vpop.f32.mrb[0].mxu0
        %8824 = vmatprep.mubr.bf16.mxu0 0
        %8825 = vmatmul.mubr.bf16.gmra.mrb[0].mxu0 %v8776
        %v8826 = vpop.f32.mrb[0].mxu0
        %v8827 = vadd.f32 0.0, %v8826
        %v8828 = vpop.f32.mrb[0].mxu0
        %v8829 = vpop.f32.mrb[0].mxu0
        %v8830 = vadd.f32 0.0, %v8829
        %v8831 = vpop.f32.mrb[0].mxu0
        %8832 = vmatprep.mubr.bf16.mxu0 0
        %8833 = vmatmul.mubr.bf16.gmra.mrb[0].mxu0 %v8779
        %v8834 = vpop.f32.mrb[0].mxu0
        %v8835 = vadd.f32 0.0, %v8834
        %v8836 = vpop.f32.mrb[0].mxu0
        %v8837 = vpop.f32.mrb[0].mxu0
        %v8838 = vadd.f32 0.0, %v8837
        %v8839 = vpop.f32.mrb[0].mxu0
        %8840 = vmatprep.mubr.bf16.mxu0 0
        %8841 = vmatmul.mubr.bf16.gmra.mrb[0].mxu0 %v8782
        %v8842 = vpop.f32.mrb[0].mxu0
        %v8843 = vadd.f32 0.0, %v8842
        %v8844 = vpop.f32.mrb[0].mxu0
        %v8845 = vpop.f32.mrb[0].mxu0
        %v8846 = vadd.f32 0.0, %v8845
        %v8847 = vpop.f32.mrb[0].mxu0
        %8848 = vdwg.mxu0
        %v8849 = vmul.f32 %v8819, %v501
        %v8850 = vmul.f32 %v8822, %v501
        %v8851 = vadd.f32 %v8849, 0.0
        %v8852 = vadd.f32 %v8850, 0.0
        %v8853 = vmul.f32 %v8827, %v506
        %v8854 = vmul.f32 %v8830, %v506
        %v8855 = vadd.f32 %v8851, %v8853
        %v8856 = vadd.f32 %v8852, %v8854
        %v8857 = vmul.f32 %v8835, %v511
        %v8858 = vmul.f32 %v8838, %v511
        %v8859 = vadd.f32 %v8855, %v8857
        %v8860 = vadd.f32 %v8856, %v8858
        %v8861 = vmul.f32 %v8843, %v516
        %v8862 = vmul.f32 %v8846, %v516
        %v8863 = vadd.f32 %v8859, %v8861
        %v8864 = vadd.f32 %v8860, %v8862
        %s8865 = scalar_lea.vmem %s3, 60
        %v8866 = vld [vmem:[%s8865] sm:$0xf]
        %v8867 = vld [vmem:[%s8865 + $0x4] sm:$0xf]
        %v8868 = vld [vmem:[%s8865 + $0x8] sm:$0xf]
        %v8869 = vld [vmem:[%s8865 + $0xc] sm:$0xf]
        %v8870 = vld [vmem:[%s8865 + $0x10] sm:$0xf]
        %s8871 = scalar_lea.vmem %s4, 3
        %v8872 = vld [vmem:[%s8871] sm:$0x1]
        %v8873 = vpack.c.bf16 %v8864, %v8863
        %v8875 = vlaneseq
        %v8876 = vshrl.u32 %v8875, 7
        %v8877 = vsub.s32 0, %v8876
        %v8878 = vrot.slane %v8872, %v8877
        %v8885 = vunpack.c.l.b16 %v8866
        %v8886 = vunpack.c.l.b16 %v8867
        %v8887 = vunpack.c.l.b16 %v8868
        %v8888 = vunpack.c.l.b16 %v8869
        %v8889 = vunpack.c.l.b16 %v8870
        %v8890 = vpack.c.b16 %v8886, %v8885
        %v8891 = vpack.c.b16 %v8888, %v8887
        %v8892 = vpack.c.b16 %v8889, %v8889
        %v8896 = vsel %vm545, %v8873, 0
        %v8899 = vsel %vm549, %v8892, 0
        %8901 = vmatprep.subr.bf16.mxu0 0
        %8902 = vmatpush1.bf16.msra.mxu0 %v8890
        %8903 = vmatprep.subr.bf16.mxu0 0
        %8904 = vmatpush1.bf16.msra.mxu0 %v8891
        %8905 = vmatprep.subr.bf16.mxu0 0
        %8906 = vmatpush1.bf16.msra.mxu0 %v8899
        %8907 = vmatprep.subr.bf16.mxu0 0
        %8908 = vmatpush1.bf16.msra.mxu0 0
        %8909 = vmatprep.subr.bf16.mxu0 0
        %8910 = vmatpush1.bf16.msra.mxu0 0
        %8911 = vmatprep.subr.bf16.mxu0 0
        %8912 = vmatpush1.bf16.msra.mxu0 0
        %8913 = vmatprep.subr.bf16.mxu0 0
        %8914 = vmatpush1.bf16.msra.mxu0 0
        %8915 = vmatprep.subr.bf16.mxu0 0
        %8916 = vmatpush1.bf16.msra.mxu0 0
        %8917 = vmatprep.subr.bf16.mxu0 0
        %8918 = vmatpush1.bf16.msra.mxu0 0
        %8919 = vmatprep.subr.bf16.mxu0 0
        %8920 = vmatpush1.bf16.msra.mxu0 0
        %8921 = vmatprep.subr.bf16.mxu0 0
        %8922 = vmatpush1.bf16.msra.mxu0 0
        %8923 = vmatprep.subr.bf16.mxu0 0
        %8924 = vmatpush1.bf16.msra.mxu0 0
        %8925 = vmatprep.subr.bf16.mxu0 0
        %8926 = vmatpush1.bf16.msra.mxu0 0
        %8927 = vmatprep.subr.bf16.mxu0 0
        %8928 = vmatpush1.bf16.msra.mxu0 0
        %8929 = vmatprep.subr.bf16.mxu0 0
        %8930 = vmatpush1.bf16.msra.mxu0 0
        %8931 = vmatprep.subr.bf16.mxu0 0
        %8932 = vmatpush1.bf16.msra.mxu0 0
        %8933 = vmatprep.mubr.bf16.mxu0 0
        %8934 = vmatmul.mubr.bf16.gmra.mrb[0].mxu0 %v8896
        %v8935 = vpop.f32.mrb[0].mxu0
        %v8936 = vadd.f32 %v8878, %v8935
        %v8937 = vpop.f32.mrb[0].mxu0
        %v8938 = vpop.f32.mrb[0].mxu0
        %v8939 = vadd.f32 %v8878, %v8938
        %v8940 = vpop.f32.mrb[0].mxu0
        %8941 = vdwg.mxu0
        %v8942 = vadd.f32 %v8502, %v8936
        %v8943 = vadd.f32 %v8503, %v8939
        %s8944 = scalar_lea.vmem %s5, 3
        %v8945 = vld [vmem:[%s8944] sm:$0x1]
        %s8946 = scalar_lea.vmem %s6, 3
        %v8947 = vld [vmem:[%s8946] sm:$0x1]
        %v8948 = vsel %vm545, %v8942, 0.0
        %8949 = vadd.xlane.f32.xlu0 %v8948
        %v8950 = vpop.xlane.xlu0 %8949
        %v8951 = vsel %vm545, %v8943, 0.0
        %8952 = vadd.xlane.f32.xlu0 %v8951
        %v8953 = vpop.xlane.xlu0 %8952
        %v8954 = vmul.f32 %v8950, %v964
        %v8955 = vmul.f32 %v8953, %v964
        %v8956 = vsub.f32 %v8942, %v8954
        %v8957 = vsub.f32 %v8943, %v8955
        %v8958 = vmul.f32 %v8956, %v8956
        %v8959 = vmul.f32 %v8957, %v8957
        %v8960 = vsel %vm545, %v8958, 0.0
        %8961 = vadd.xlane.f32.xlu0 %v8960
        %v8962 = vpop.xlane.xlu0 %8961
        %v8963 = vsel %vm545, %v8959, 0.0
        %8964 = vadd.xlane.f32.xlu0 %v8963
        %v8965 = vpop.xlane.xlu0 %8964
        %v8966 = vmul.f32 %v8962, %v964
        %v8967 = vmul.f32 %v8965, %v964
        %v8968 = vadd.f32 %v8966, 1e-05
        %v8969 = vadd.f32 %v8967, 1e-05
        %v8970 = vrsqrt.pop %v8968
        %v8971 = vrsqrt.pop %v8969
        %v8972 = vmul.f32 %v8956, %v8970
        %v8973 = vmul.f32 %v8957, %v8971
        %v8975 = vlaneseq
        %v8976 = vshrl.u32 %v8975, 7
        %v8977 = vsub.s32 0, %v8976
        %v8978 = vrot.slane %v8945, %v8977
        %v8980 = vmul.f32 %v8972, %v8978
        %v8981 = vmul.f32 %v8973, %v8978
        %v8983 = vlaneseq
        %v8984 = vshrl.u32 %v8983, 7
        %v8985 = vsub.s32 0, %v8984
        %v8986 = vrot.slane %v8947, %v8985
        %v8988 = vadd.f32 %v8980, %v8986
        %v8989 = vadd.f32 %v8981, %v8986
        %s8990 = scalar_lea.vmem %s7, 960
        %v8991 = vld [vmem:[%s8990] sm:$0xff]
        %v8992 = vld [vmem:[%s8990 + $0x8] sm:$0xff]
        %v8993 = vld [vmem:[%s8990 + $0x10] sm:$0xff]
        %v8994 = vld [vmem:[%s8990 + $0x18] sm:$0xff]
        %v8995 = vld [vmem:[%s8990 + $0x20] sm:$0xff]
        %v8996 = vld [vmem:[%s8990 + $0x28] sm:$0xff]
        %v8997 = vld [vmem:[%s8990 + $0x30] sm:$0xff]
        %v8998 = vld [vmem:[%s8990 + $0x38] sm:$0xff]
        %v8999 = vld [vmem:[%s8990 + $0x40] sm:$0xff]
        %v9000 = vld [vmem:[%s8990 + $0x48] sm:$0xff]
        %v9001 = vld [vmem:[%s8990 + $0x50] sm:$0xff]
        %v9002 = vld [vmem:[%s8990 + $0x58] sm:$0xff]
        %v9003 = vld [vmem:[%s8990 + $0x60] sm:$0xff]
        %v9004 = vld [vmem:[%s8990 + $0x68] sm:$0xff]
        %v9005 = vld [vmem:[%s8990 + $0x70] sm:$0xff]
        %v9006 = vld [vmem:[%s8990 + $0x78] sm:$0xff]
        %v9007 = vld [vmem:[%s8990 + $0x80] sm:$0xff]
        %v9008 = vld [vmem:[%s8990 + $0x88] sm:$0xff]
        %v9009 = vld [vmem:[%s8990 + $0x90] sm:$0xff]
        %v9010 = vld [vmem:[%s8990 + $0x98] sm:$0xff]
        %v9011 = vld [vmem:[%s8990 + $0xa0] sm:$0xff]
        %v9012 = vld [vmem:[%s8990 + $0xa8] sm:$0xff]
        %v9013 = vld [vmem:[%s8990 + $0xb0] sm:$0xff]
        %v9014 = vld [vmem:[%s8990 + $0xb8] sm:$0xff]
        %v9015 = vld [vmem:[%s8990 + $0xc0] sm:$0xff]
        %v9016 = vld [vmem:[%s8990 + $0xc8] sm:$0xff]
        %v9017 = vld [vmem:[%s8990 + $0xd0] sm:$0xff]
        %v9018 = vld [vmem:[%s8990 + $0xd8] sm:$0xff]
        %v9019 = vld [vmem:[%s8990 + $0xe0] sm:$0xff]
        %v9020 = vld [vmem:[%s8990 + $0xe8] sm:$0xff]
        %v9021 = vld [vmem:[%s8990 + $0xf0] sm:$0xff]
        %v9022 = vld [vmem:[%s8990 + $0xf8] sm:$0xff]
        %v9023 = vld [vmem:[%s8990 + $0x100] sm:$0xff]
        %v9024 = vld [vmem:[%s8990 + $0x108] sm:$0xff]
        %v9025 = vld [vmem:[%s8990 + $0x110] sm:$0xff]
        %v9026 = vld [vmem:[%s8990 + $0x118] sm:$0xff]
        %v9027 = vld [vmem:[%s8990 + $0x120] sm:$0xff]
        %v9028 = vld [vmem:[%s8990 + $0x128] sm:$0xff]
        %v9029 = vld [vmem:[%s8990 + $0x130] sm:$0xff]
        %v9030 = vld [vmem:[%s8990 + $0x138] sm:$0xff]
        %s9031 = scalar_lea.vmem %s8, 48
        %v9032 = vld [vmem:[%s9031] sm:$0xff]
        %v9033 = vld [vmem:[%s9031 + $0x8] sm:$0xff]
        %v9034 = vpack.c.bf16 %v8989, %v8988
        %v9037 = vlaneseq
        %v9038 = vshrl.u32 %v9037, 7
        %v9039 = vsub.s32 0, %v9038
        %v9040 = vrot.slane %v9032, %v9039
        %v9041 = vlaneseq
        %v9042 = vshrl.u32 %v9041, 7
        %v9043 = vsub.s32 1, %v9042
        %v9044 = vrot.slane %v9032, %v9043
        %v9045 = vlaneseq
        %v9046 = vshrl.u32 %v9045, 7
        %v9047 = vsub.s32 2, %v9046
        %v9048 = vrot.slane %v9032, %v9047
        %v9049 = vlaneseq
        %v9050 = vshrl.u32 %v9049, 7
        %v9051 = vsub.s32 3, %v9050
        %v9052 = vrot.slane %v9032, %v9051
        %v9053 = vlaneseq
        %v9054 = vshrl.u32 %v9053, 7
        %v9055 = vsub.s32 4, %v9054
        %v9056 = vrot.slane %v9032, %v9055
        %v9057 = vlaneseq
        %v9058 = vshrl.u32 %v9057, 7
        %v9059 = vsub.s32 5, %v9058
        %v9060 = vrot.slane %v9032, %v9059
        %v9061 = vlaneseq
        %v9062 = vshrl.u32 %v9061, 7
        %v9063 = vsub.s32 6, %v9062
        %v9064 = vrot.slane %v9032, %v9063
        %v9065 = vlaneseq
        %v9066 = vshrl.u32 %v9065, 7
        %v9067 = vsub.s32 7, %v9066
        %v9068 = vrot.slane %v9032, %v9067
        %v9069 = vlaneseq
        %v9070 = vshrl.u32 %v9069, 7
        %v9071 = vsub.s32 0, %v9070
        %v9072 = vrot.slane %v9033, %v9071
        %v9073 = vlaneseq
        %v9074 = vshrl.u32 %v9073, 7
        %v9075 = vsub.s32 1, %v9074
        %v9076 = vrot.slane %v9033, %v9075
        %v9077 = vlaneseq
        %v9078 = vshrl.u32 %v9077, 7
        %v9079 = vsub.s32 2, %v9078
        %v9080 = vrot.slane %v9033, %v9079
        %v9081 = vlaneseq
        %v9082 = vshrl.u32 %v9081, 7
        %v9083 = vsub.s32 3, %v9082
        %v9084 = vrot.slane %v9033, %v9083
        %v9085 = vlaneseq
        %v9086 = vshrl.u32 %v9085, 7
        %v9087 = vsub.s32 4, %v9086
        %v9088 = vrot.slane %v9033, %v9087
        %v9089 = vlaneseq
        %v9090 = vshrl.u32 %v9089, 7
        %v9091 = vsub.s32 5, %v9090
        %v9092 = vrot.slane %v9033, %v9091
        %v9093 = vlaneseq
        %v9094 = vshrl.u32 %v9093, 7
        %v9095 = vsub.s32 6, %v9094
        %v9096 = vrot.slane %v9033, %v9095
        %v9097 = vlaneseq
        %v9098 = vshrl.u32 %v9097, 7
        %v9099 = vsub.s32 7, %v9098
        %v9100 = vrot.slane %v9033, %v9099
        %v9157 = vunpack.c.l.b16 %v8991
        %v9158 = vunpack.c.h.b16 %v8991
        %v9159 = vunpack.c.l.b16 %v8992
        %v9160 = vunpack.c.h.b16 %v8992
        %v9161 = vunpack.c.l.b16 %v8993
        %v9162 = vunpack.c.h.b16 %v8993
        %v9163 = vunpack.c.l.b16 %v8994
        %v9164 = vunpack.c.h.b16 %v8994
        %v9165 = vunpack.c.l.b16 %v8995
        %v9166 = vunpack.c.h.b16 %v8995
        %v9167 = vunpack.c.l.b16 %v8996
        %v9168 = vunpack.c.h.b16 %v8996
        %v9169 = vunpack.c.l.b16 %v8997
        %v9170 = vunpack.c.h.b16 %v8997
        %v9171 = vunpack.c.l.b16 %v8998
        %v9172 = vunpack.c.h.b16 %v8998
        %v9173 = vunpack.c.l.b16 %v8999
        %v9174 = vunpack.c.h.b16 %v8999
        %v9175 = vunpack.c.l.b16 %v9000
        %v9176 = vunpack.c.h.b16 %v9000
        %v9177 = vunpack.c.l.b16 %v9001
        %v9178 = vunpack.c.h.b16 %v9001
        %v9179 = vunpack.c.l.b16 %v9002
        %v9180 = vunpack.c.h.b16 %v9002
        %v9181 = vunpack.c.l.b16 %v9003
        %v9182 = vunpack.c.h.b16 %v9003
        %v9183 = vunpack.c.l.b16 %v9004
        %v9184 = vunpack.c.h.b16 %v9004
        %v9185 = vunpack.c.l.b16 %v9005
        %v9186 = vunpack.c.h.b16 %v9005
        %v9187 = vunpack.c.l.b16 %v9006
        %v9188 = vunpack.c.h.b16 %v9006
        %v9189 = vunpack.c.l.b16 %v9007
        %v9190 = vunpack.c.h.b16 %v9007
        %v9191 = vunpack.c.l.b16 %v9008
        %v9192 = vunpack.c.h.b16 %v9008
        %v9193 = vunpack.c.l.b16 %v9009
        %v9194 = vunpack.c.h.b16 %v9009
        %v9195 = vunpack.c.l.b16 %v9010
        %v9196 = vunpack.c.h.b16 %v9010
        %v9197 = vunpack.c.l.b16 %v9011
        %v9198 = vunpack.c.h.b16 %v9011
        %v9199 = vunpack.c.l.b16 %v9012
        %v9200 = vunpack.c.h.b16 %v9012
        %v9201 = vunpack.c.l.b16 %v9013
        %v9202 = vunpack.c.h.b16 %v9013
        %v9203 = vunpack.c.l.b16 %v9014
        %v9204 = vunpack.c.h.b16 %v9014
        %v9205 = vunpack.c.l.b16 %v9015
        %v9206 = vunpack.c.h.b16 %v9015
        %v9207 = vunpack.c.l.b16 %v9016
        %v9208 = vunpack.c.h.b16 %v9016
        %v9209 = vunpack.c.l.b16 %v9017
        %v9210 = vunpack.c.h.b16 %v9017
        %v9211 = vunpack.c.l.b16 %v9018
        %v9212 = vunpack.c.h.b16 %v9018
        %v9213 = vunpack.c.l.b16 %v9019
        %v9214 = vunpack.c.h.b16 %v9019
        %v9215 = vunpack.c.l.b16 %v9020
        %v9216 = vunpack.c.h.b16 %v9020
        %v9217 = vunpack.c.l.b16 %v9021
        %v9218 = vunpack.c.h.b16 %v9021
        %v9219 = vunpack.c.l.b16 %v9022
        %v9220 = vunpack.c.h.b16 %v9022
        %v9221 = vunpack.c.l.b16 %v9023
        %v9222 = vunpack.c.h.b16 %v9023
        %v9223 = vunpack.c.l.b16 %v9024
        %v9224 = vunpack.c.h.b16 %v9024
        %v9225 = vunpack.c.l.b16 %v9025
        %v9226 = vunpack.c.h.b16 %v9025
        %v9227 = vunpack.c.l.b16 %v9026
        %v9228 = vunpack.c.h.b16 %v9026
        %v9229 = vunpack.c.l.b16 %v9027
        %v9230 = vunpack.c.h.b16 %v9027
        %v9231 = vunpack.c.l.b16 %v9028
        %v9232 = vunpack.c.h.b16 %v9028
        %v9233 = vunpack.c.l.b16 %v9029
        %v9234 = vunpack.c.h.b16 %v9029
        %v9235 = vunpack.c.l.b16 %v9030
        %v9236 = vunpack.c.h.b16 %v9030
        %v9237 = vpack.c.b16 %v9173, %v9157
        %v9238 = vpack.c.b16 %v9174, %v9158
        %v9239 = vpack.c.b16 %v9175, %v9159
        %v9240 = vpack.c.b16 %v9176, %v9160
        %v9241 = vpack.c.b16 %v9177, %v9161
        %v9242 = vpack.c.b16 %v9178, %v9162
        %v9243 = vpack.c.b16 %v9179, %v9163
        %v9244 = vpack.c.b16 %v9180, %v9164
        %v9245 = vpack.c.b16 %v9181, %v9165
        %v9246 = vpack.c.b16 %v9182, %v9166
        %v9247 = vpack.c.b16 %v9183, %v9167
        %v9248 = vpack.c.b16 %v9184, %v9168
        %v9249 = vpack.c.b16 %v9185, %v9169
        %v9250 = vpack.c.b16 %v9186, %v9170
        %v9251 = vpack.c.b16 %v9187, %v9171
        %v9252 = vpack.c.b16 %v9188, %v9172
        %v9253 = vpack.c.b16 %v9205, %v9189
        %v9254 = vpack.c.b16 %v9206, %v9190
        %v9255 = vpack.c.b16 %v9207, %v9191
        %v9256 = vpack.c.b16 %v9208, %v9192
        %v9257 = vpack.c.b16 %v9209, %v9193
        %v9258 = vpack.c.b16 %v9210, %v9194
        %v9259 = vpack.c.b16 %v9211, %v9195
        %v9260 = vpack.c.b16 %v9212, %v9196
        %v9261 = vpack.c.b16 %v9213, %v9197
        %v9262 = vpack.c.b16 %v9214, %v9198
        %v9263 = vpack.c.b16 %v9215, %v9199
        %v9264 = vpack.c.b16 %v9216, %v9200
        %v9265 = vpack.c.b16 %v9217, %v9201
        %v9266 = vpack.c.b16 %v9218, %v9202
        %v9267 = vpack.c.b16 %v9219, %v9203
        %v9268 = vpack.c.b16 %v9220, %v9204
        %v9269 = vpack.c.b16 %v9221, %v9221
        %v9270 = vpack.c.b16 %v9222, %v9222
        %v9271 = vpack.c.b16 %v9223, %v9223
        %v9272 = vpack.c.b16 %v9224, %v9224
        %v9273 = vpack.c.b16 %v9225, %v9225
        %v9274 = vpack.c.b16 %v9226, %v9226
        %v9275 = vpack.c.b16 %v9227, %v9227
        %v9276 = vpack.c.b16 %v9228, %v9228
        %v9277 = vpack.c.b16 %v9229, %v9229
        %v9278 = vpack.c.b16 %v9230, %v9230
        %v9279 = vpack.c.b16 %v9231, %v9231
        %v9280 = vpack.c.b16 %v9232, %v9232
        %v9281 = vpack.c.b16 %v9233, %v9233
        %v9282 = vpack.c.b16 %v9234, %v9234
        %v9283 = vpack.c.b16 %v9235, %v9235
        %v9284 = vpack.c.b16 %v9236, %v9236
        %v9318 = vsel %vm545, %v9034, 0
        %v9321 = vsel %vm549, %v9269, 0
        %v9324 = vsel %vm549, %v9270, 0
        %v9327 = vsel %vm549, %v9271, 0
        %v9330 = vsel %vm549, %v9272, 0
        %v9333 = vsel %vm549, %v9273, 0
        %v9336 = vsel %vm549, %v9274, 0
        %v9339 = vsel %vm549, %v9275, 0
        %v9342 = vsel %vm549, %v9276, 0
        %v9345 = vsel %vm549, %v9277, 0
        %v9348 = vsel %vm549, %v9278, 0
        %v9351 = vsel %vm549, %v9279, 0
        %v9354 = vsel %vm549, %v9280, 0
        %v9357 = vsel %vm549, %v9281, 0
        %v9360 = vsel %vm549, %v9282, 0
        %v9363 = vsel %vm549, %v9283, 0
        %v9366 = vsel %vm549, %v9284, 0
        %9368 = vmatprep.subr.bf16.mxu0 %v9238
        %9369 = vmatpush1.bf16.msra.mxu0 %v9237
        %9370 = vmatprep.subr.bf16.mxu0 %v9254
        %9371 = vmatpush1.bf16.msra.mxu0 %v9253
        %9372 = vmatprep.subr.bf16.mxu0 %v9324
        %9373 = vmatpush1.bf16.msra.mxu0 %v9321
        %9374 = vmatprep.subr.bf16.mxu0 0
        %9375 = vmatpush1.bf16.msra.mxu0 0
        %9376 = vmatprep.subr.bf16.mxu0 0
        %9377 = vmatpush1.bf16.msra.mxu0 0
        %9378 = vmatprep.subr.bf16.mxu0 0
        %9379 = vmatpush1.bf16.msra.mxu0 0
        %9380 = vmatprep.subr.bf16.mxu0 0
        %9381 = vmatpush1.bf16.msra.mxu0 0
        %9382 = vmatprep.subr.bf16.mxu0 0
        %9383 = vmatpush1.bf16.msra.mxu0 0
        %9384 = vmatprep.subr.bf16.mxu0 0
        %9385 = vmatpush1.bf16.msra.mxu0 0
        %9386 = vmatprep.subr.bf16.mxu0 0
        %9387 = vmatpush1.bf16.msra.mxu0 0
        %9388 = vmatprep.subr.bf16.mxu0 0
        %9389 = vmatpush1.bf16.msra.mxu0 0
        %9390 = vmatprep.subr.bf16.mxu0 0
        %9391 = vmatpush1.bf16.msra.mxu0 0
        %9392 = vmatprep.subr.bf16.mxu0 0
        %9393 = vmatpush1.bf16.msra.mxu0 0
        %9394 = vmatprep.subr.bf16.mxu0 0
        %9395 = vmatpush1.bf16.msra.mxu0 0
        %9396 = vmatprep.subr.bf16.mxu0 0
        %9397 = vmatpush1.bf16.msra.mxu0 0
        %9398 = vmatprep.subr.bf16.mxu0 0
        %9399 = vmatpush1.bf16.msra.mxu0 0
        %9400 = vmatprep.mubr.bf16.mxu0 0
        %9401 = vmatmul.mubr.bf16.gmra.mrb[0].mxu0 %v9318
        %v9402 = vpop.f32.mrb[0].mxu0
        %v9403 = vadd.f32 %v9040, %v9402
        %v9404 = vpop.f32.mrb[0].mxu0
        %v9405 = vadd.f32 %v9044, %v9404
        %v9406 = vpop.f32.mrb[0].mxu0
        %v9407 = vadd.f32 %v9040, %v9406
        %v9408 = vpop.f32.mrb[0].mxu0
        %v9409 = vadd.f32 %v9044, %v9408
        %9410 = vdwg.mxu0
        %9411 = vmatprep.subr.bf16.mxu0 %v9240
        %9412 = vmatpush1.bf16.msra.mxu0 %v9239
        %9413 = vmatprep.subr.bf16.mxu0 %v9256
        %9414 = vmatpush1.bf16.msra.mxu0 %v9255
        %9415 = vmatprep.subr.bf16.mxu0 %v9330
        %9416 = vmatpush1.bf16.msra.mxu0 %v9327
        %9417 = vmatprep.subr.bf16.mxu0 0
        %9418 = vmatpush1.bf16.msra.mxu0 0
        %9419 = vmatprep.subr.bf16.mxu0 0
        %9420 = vmatpush1.bf16.msra.mxu0 0
        %9421 = vmatprep.subr.bf16.mxu0 0
        %9422 = vmatpush1.bf16.msra.mxu0 0
        %9423 = vmatprep.subr.bf16.mxu0 0
        %9424 = vmatpush1.bf16.msra.mxu0 0
        %9425 = vmatprep.subr.bf16.mxu0 0
        %9426 = vmatpush1.bf16.msra.mxu0 0
        %9427 = vmatprep.subr.bf16.mxu0 0
        %9428 = vmatpush1.bf16.msra.mxu0 0
        %9429 = vmatprep.subr.bf16.mxu0 0
        %9430 = vmatpush1.bf16.msra.mxu0 0
        %9431 = vmatprep.subr.bf16.mxu0 0
        %9432 = vmatpush1.bf16.msra.mxu0 0
        %9433 = vmatprep.subr.bf16.mxu0 0
        %9434 = vmatpush1.bf16.msra.mxu0 0
        %9435 = vmatprep.subr.bf16.mxu0 0
        %9436 = vmatpush1.bf16.msra.mxu0 0
        %9437 = vmatprep.subr.bf16.mxu0 0
        %9438 = vmatpush1.bf16.msra.mxu0 0
        %9439 = vmatprep.subr.bf16.mxu0 0
        %9440 = vmatpush1.bf16.msra.mxu0 0
        %9441 = vmatprep.subr.bf16.mxu0 0
        %9442 = vmatpush1.bf16.msra.mxu0 0
        %9443 = vmatprep.mubr.bf16.mxu0 0
        %9444 = vmatmul.mubr.bf16.gmra.mrb[0].mxu0 %v9318
        %v9445 = vpop.f32.mrb[0].mxu0
        %v9446 = vadd.f32 %v9048, %v9445
        %v9447 = vpop.f32.mrb[0].mxu0
        %v9448 = vadd.f32 %v9052, %v9447
        %v9449 = vpop.f32.mrb[0].mxu0
        %v9450 = vadd.f32 %v9048, %v9449
        %v9451 = vpop.f32.mrb[0].mxu0
        %v9452 = vadd.f32 %v9052, %v9451
        %9453 = vdwg.mxu0
        %9454 = vmatprep.subr.bf16.mxu0 %v9242
        %9455 = vmatpush1.bf16.msra.mxu0 %v9241
        %9456 = vmatprep.subr.bf16.mxu0 %v9258
        %9457 = vmatpush1.bf16.msra.mxu0 %v9257
        %9458 = vmatprep.subr.bf16.mxu0 %v9336
        %9459 = vmatpush1.bf16.msra.mxu0 %v9333
        %9460 = vmatprep.subr.bf16.mxu0 0
        %9461 = vmatpush1.bf16.msra.mxu0 0
        %9462 = vmatprep.subr.bf16.mxu0 0
        %9463 = vmatpush1.bf16.msra.mxu0 0
        %9464 = vmatprep.subr.bf16.mxu0 0
        %9465 = vmatpush1.bf16.msra.mxu0 0
        %9466 = vmatprep.subr.bf16.mxu0 0
        %9467 = vmatpush1.bf16.msra.mxu0 0
        %9468 = vmatprep.subr.bf16.mxu0 0
        %9469 = vmatpush1.bf16.msra.mxu0 0
        %9470 = vmatprep.subr.bf16.mxu0 0
        %9471 = vmatpush1.bf16.msra.mxu0 0
        %9472 = vmatprep.subr.bf16.mxu0 0
        %9473 = vmatpush1.bf16.msra.mxu0 0
        %9474 = vmatprep.subr.bf16.mxu0 0
        %9475 = vmatpush1.bf16.msra.mxu0 0
        %9476 = vmatprep.subr.bf16.mxu0 0
        %9477 = vmatpush1.bf16.msra.mxu0 0
        %9478 = vmatprep.subr.bf16.mxu0 0
        %9479 = vmatpush1.bf16.msra.mxu0 0
        %9480 = vmatprep.subr.bf16.mxu0 0
        %9481 = vmatpush1.bf16.msra.mxu0 0
        %9482 = vmatprep.subr.bf16.mxu0 0
        %9483 = vmatpush1.bf16.msra.mxu0 0
        %9484 = vmatprep.subr.bf16.mxu0 0
        %9485 = vmatpush1.bf16.msra.mxu0 0
        %9486 = vmatprep.mubr.bf16.mxu0 0
        %9487 = vmatmul.mubr.bf16.gmra.mrb[0].mxu0 %v9318
        %v9488 = vpop.f32.mrb[0].mxu0
        %v9489 = vadd.f32 %v9056, %v9488
        %v9490 = vpop.f32.mrb[0].mxu0
        %v9491 = vadd.f32 %v9060, %v9490
        %v9492 = vpop.f32.mrb[0].mxu0
        %v9493 = vadd.f32 %v9056, %v9492
        %v9494 = vpop.f32.mrb[0].mxu0
        %v9495 = vadd.f32 %v9060, %v9494
        %9496 = vdwg.mxu0
        %9497 = vmatprep.subr.bf16.mxu0 %v9244
        %9498 = vmatpush1.bf16.msra.mxu0 %v9243
        %9499 = vmatprep.subr.bf16.mxu0 %v9260
        %9500 = vmatpush1.bf16.msra.mxu0 %v9259
        %9501 = vmatprep.subr.bf16.mxu0 %v9342
        %9502 = vmatpush1.bf16.msra.mxu0 %v9339
        %9503 = vmatprep.subr.bf16.mxu0 0
        %9504 = vmatpush1.bf16.msra.mxu0 0
        %9505 = vmatprep.subr.bf16.mxu0 0
        %9506 = vmatpush1.bf16.msra.mxu0 0
        %9507 = vmatprep.subr.bf16.mxu0 0
        %9508 = vmatpush1.bf16.msra.mxu0 0
        %9509 = vmatprep.subr.bf16.mxu0 0
        %9510 = vmatpush1.bf16.msra.mxu0 0
        %9511 = vmatprep.subr.bf16.mxu0 0
        %9512 = vmatpush1.bf16.msra.mxu0 0
        %9513 = vmatprep.subr.bf16.mxu0 0
        %9514 = vmatpush1.bf16.msra.mxu0 0
        %9515 = vmatprep.subr.bf16.mxu0 0
        %9516 = vmatpush1.bf16.msra.mxu0 0
        %9517 = vmatprep.subr.bf16.mxu0 0
        %9518 = vmatpush1.bf16.msra.mxu0 0
        %9519 = vmatprep.subr.bf16.mxu0 0
        %9520 = vmatpush1.bf16.msra.mxu0 0
        %9521 = vmatprep.subr.bf16.mxu0 0
        %9522 = vmatpush1.bf16.msra.mxu0 0
        %9523 = vmatprep.subr.bf16.mxu0 0
        %9524 = vmatpush1.bf16.msra.mxu0 0
        %9525 = vmatprep.subr.bf16.mxu0 0
        %9526 = vmatpush1.bf16.msra.mxu0 0
        %9527 = vmatprep.subr.bf16.mxu0 0
        %9528 = vmatpush1.bf16.msra.mxu0 0
        %9529 = vmatprep.mubr.bf16.mxu0 0
        %9530 = vmatmul.mubr.bf16.gmra.mrb[0].mxu0 %v9318
        %v9531 = vpop.f32.mrb[0].mxu0
        %v9532 = vadd.f32 %v9064, %v9531
        %v9533 = vpop.f32.mrb[0].mxu0
        %v9534 = vadd.f32 %v9068, %v9533
        %v9535 = vpop.f32.mrb[0].mxu0
        %v9536 = vadd.f32 %v9064, %v9535
        %v9537 = vpop.f32.mrb[0].mxu0
        %v9538 = vadd.f32 %v9068, %v9537
        %9539 = vdwg.mxu0
        %9540 = vmatprep.subr.bf16.mxu0 %v9246
        %9541 = vmatpush1.bf16.msra.mxu0 %v9245
        %9542 = vmatprep.subr.bf16.mxu0 %v9262
        %9543 = vmatpush1.bf16.msra.mxu0 %v9261
        %9544 = vmatprep.subr.bf16.mxu0 %v9348
        %9545 = vmatpush1.bf16.msra.mxu0 %v9345
        %9546 = vmatprep.subr.bf16.mxu0 0
        %9547 = vmatpush1.bf16.msra.mxu0 0
        %9548 = vmatprep.subr.bf16.mxu0 0
        %9549 = vmatpush1.bf16.msra.mxu0 0
        %9550 = vmatprep.subr.bf16.mxu0 0
        %9551 = vmatpush1.bf16.msra.mxu0 0
        %9552 = vmatprep.subr.bf16.mxu0 0
        %9553 = vmatpush1.bf16.msra.mxu0 0
        %9554 = vmatprep.subr.bf16.mxu0 0
        %9555 = vmatpush1.bf16.msra.mxu0 0
        %9556 = vmatprep.subr.bf16.mxu0 0
        %9557 = vmatpush1.bf16.msra.mxu0 0
        %9558 = vmatprep.subr.bf16.mxu0 0
        %9559 = vmatpush1.bf16.msra.mxu0 0
        %9560 = vmatprep.subr.bf16.mxu0 0
        %9561 = vmatpush1.bf16.msra.mxu0 0
        %9562 = vmatprep.subr.bf16.mxu0 0
        %9563 = vmatpush1.bf16.msra.mxu0 0
        %9564 = vmatprep.subr.bf16.mxu0 0
        %9565 = vmatpush1.bf16.msra.mxu0 0
        %9566 = vmatprep.subr.bf16.mxu0 0
        %9567 = vmatpush1.bf16.msra.mxu0 0
        %9568 = vmatprep.subr.bf16.mxu0 0
        %9569 = vmatpush1.bf16.msra.mxu0 0
        %9570 = vmatprep.subr.bf16.mxu0 0
        %9571 = vmatpush1.bf16.msra.mxu0 0
        %9572 = vmatprep.mubr.bf16.mxu0 0
        %9573 = vmatmul.mubr.bf16.gmra.mrb[0].mxu0 %v9318
        %v9574 = vpop.f32.mrb[0].mxu0
        %v9575 = vadd.f32 %v9072, %v9574
        %v9576 = vpop.f32.mrb[0].mxu0
        %v9577 = vadd.f32 %v9076, %v9576
        %v9578 = vpop.f32.mrb[0].mxu0
        %v9579 = vadd.f32 %v9072, %v9578
        %v9580 = vpop.f32.mrb[0].mxu0
        %v9581 = vadd.f32 %v9076, %v9580
        %9582 = vdwg.mxu0
        %9583 = vmatprep.subr.bf16.mxu0 %v9248
        %9584 = vmatpush1.bf16.msra.mxu0 %v9247
        %9585 = vmatprep.subr.bf16.mxu0 %v9264
        %9586 = vmatpush1.bf16.msra.mxu0 %v9263
        %9587 = vmatprep.subr.bf16.mxu0 %v9354
        %9588 = vmatpush1.bf16.msra.mxu0 %v9351
        %9589 = vmatprep.subr.bf16.mxu0 0
        %9590 = vmatpush1.bf16.msra.mxu0 0
        %9591 = vmatprep.subr.bf16.mxu0 0
        %9592 = vmatpush1.bf16.msra.mxu0 0
        %9593 = vmatprep.subr.bf16.mxu0 0
        %9594 = vmatpush1.bf16.msra.mxu0 0
        %9595 = vmatprep.subr.bf16.mxu0 0
        %9596 = vmatpush1.bf16.msra.mxu0 0
        %9597 = vmatprep.subr.bf16.mxu0 0
        %9598 = vmatpush1.bf16.msra.mxu0 0
        %9599 = vmatprep.subr.bf16.mxu0 0
        %9600 = vmatpush1.bf16.msra.mxu0 0
        %9601 = vmatprep.subr.bf16.mxu0 0
        %9602 = vmatpush1.bf16.msra.mxu0 0
        %9603 = vmatprep.subr.bf16.mxu0 0
        %9604 = vmatpush1.bf16.msra.mxu0 0
        %9605 = vmatprep.subr.bf16.mxu0 0
        %9606 = vmatpush1.bf16.msra.mxu0 0
        %9607 = vmatprep.subr.bf16.mxu0 0
        %9608 = vmatpush1.bf16.msra.mxu0 0
        %9609 = vmatprep.subr.bf16.mxu0 0
        %9610 = vmatpush1.bf16.msra.mxu0 0
        %9611 = vmatprep.subr.bf16.mxu0 0
        %9612 = vmatpush1.bf16.msra.mxu0 0
        %9613 = vmatprep.subr.bf16.mxu0 0
        %9614 = vmatpush1.bf16.msra.mxu0 0
        %9615 = vmatprep.mubr.bf16.mxu0 0
        %9616 = vmatmul.mubr.bf16.gmra.mrb[0].mxu0 %v9318
        %v9617 = vpop.f32.mrb[0].mxu0
        %v9618 = vadd.f32 %v9080, %v9617
        %v9619 = vpop.f32.mrb[0].mxu0
        %v9620 = vadd.f32 %v9084, %v9619
        %v9621 = vpop.f32.mrb[0].mxu0
        %v9622 = vadd.f32 %v9080, %v9621
        %v9623 = vpop.f32.mrb[0].mxu0
        %v9624 = vadd.f32 %v9084, %v9623
        %9625 = vdwg.mxu0
        %9626 = vmatprep.subr.bf16.mxu0 %v9250
        %9627 = vmatpush1.bf16.msra.mxu0 %v9249
        %9628 = vmatprep.subr.bf16.mxu0 %v9266
        %9629 = vmatpush1.bf16.msra.mxu0 %v9265
        %9630 = vmatprep.subr.bf16.mxu0 %v9360
        %9631 = vmatpush1.bf16.msra.mxu0 %v9357
        %9632 = vmatprep.subr.bf16.mxu0 0
        %9633 = vmatpush1.bf16.msra.mxu0 0
        %9634 = vmatprep.subr.bf16.mxu0 0
        %9635 = vmatpush1.bf16.msra.mxu0 0
        %9636 = vmatprep.subr.bf16.mxu0 0
        %9637 = vmatpush1.bf16.msra.mxu0 0
        %9638 = vmatprep.subr.bf16.mxu0 0
        %9639 = vmatpush1.bf16.msra.mxu0 0
        %9640 = vmatprep.subr.bf16.mxu0 0
        %9641 = vmatpush1.bf16.msra.mxu0 0
        %9642 = vmatprep.subr.bf16.mxu0 0
        %9643 = vmatpush1.bf16.msra.mxu0 0
        %9644 = vmatprep.subr.bf16.mxu0 0
        %9645 = vmatpush1.bf16.msra.mxu0 0
        %9646 = vmatprep.subr.bf16.mxu0 0
        %9647 = vmatpush1.bf16.msra.mxu0 0
        %9648 = vmatprep.subr.bf16.mxu0 0
        %9649 = vmatpush1.bf16.msra.mxu0 0
        %9650 = vmatprep.subr.bf16.mxu0 0
        %9651 = vmatpush1.bf16.msra.mxu0 0
        %9652 = vmatprep.subr.bf16.mxu0 0
        %9653 = vmatpush1.bf16.msra.mxu0 0
        %9654 = vmatprep.subr.bf16.mxu0 0
        %9655 = vmatpush1.bf16.msra.mxu0 0
        %9656 = vmatprep.subr.bf16.mxu0 0
        %9657 = vmatpush1.bf16.msra.mxu0 0
        %9658 = vmatprep.mubr.bf16.mxu0 0
        %9659 = vmatmul.mubr.bf16.gmra.mrb[0].mxu0 %v9318
        %v9660 = vpop.f32.mrb[0].mxu0
        %v9661 = vadd.f32 %v9088, %v9660
        %v9662 = vpop.f32.mrb[0].mxu0
        %v9663 = vadd.f32 %v9092, %v9662
        %v9664 = vpop.f32.mrb[0].mxu0
        %v9665 = vadd.f32 %v9088, %v9664
        %v9666 = vpop.f32.mrb[0].mxu0
        %v9667 = vadd.f32 %v9092, %v9666
        %9668 = vdwg.mxu0
        %9669 = vmatprep.subr.bf16.mxu0 %v9252
        %9670 = vmatpush1.bf16.msra.mxu0 %v9251
        %9671 = vmatprep.subr.bf16.mxu0 %v9268
        %9672 = vmatpush1.bf16.msra.mxu0 %v9267
        %9673 = vmatprep.subr.bf16.mxu0 %v9366
        %9674 = vmatpush1.bf16.msra.mxu0 %v9363
        %9675 = vmatprep.subr.bf16.mxu0 0
        %9676 = vmatpush1.bf16.msra.mxu0 0
        %9677 = vmatprep.subr.bf16.mxu0 0
        %9678 = vmatpush1.bf16.msra.mxu0 0
        %9679 = vmatprep.subr.bf16.mxu0 0
        %9680 = vmatpush1.bf16.msra.mxu0 0
        %9681 = vmatprep.subr.bf16.mxu0 0
        %9682 = vmatpush1.bf16.msra.mxu0 0
        %9683 = vmatprep.subr.bf16.mxu0 0
        %9684 = vmatpush1.bf16.msra.mxu0 0
        %9685 = vmatprep.subr.bf16.mxu0 0
        %9686 = vmatpush1.bf16.msra.mxu0 0
        %9687 = vmatprep.subr.bf16.mxu0 0
        %9688 = vmatpush1.bf16.msra.mxu0 0
        %9689 = vmatprep.subr.bf16.mxu0 0
        %9690 = vmatpush1.bf16.msra.mxu0 0
        %9691 = vmatprep.subr.bf16.mxu0 0
        %9692 = vmatpush1.bf16.msra.mxu0 0
        %9693 = vmatprep.subr.bf16.mxu0 0
        %9694 = vmatpush1.bf16.msra.mxu0 0
        %9695 = vmatprep.subr.bf16.mxu0 0
        %9696 = vmatpush1.bf16.msra.mxu0 0
        %9697 = vmatprep.subr.bf16.mxu0 0
        %9698 = vmatpush1.bf16.msra.mxu0 0
        %9699 = vmatprep.subr.bf16.mxu0 0
        %9700 = vmatpush1.bf16.msra.mxu0 0
        %9701 = vmatprep.mubr.bf16.mxu0 0
        %9702 = vmatmul.mubr.bf16.gmra.mrb[0].mxu0 %v9318
        %v9703 = vpop.f32.mrb[0].mxu0
        %v9704 = vadd.f32 %v9096, %v9703
        %v9705 = vpop.f32.mrb[0].mxu0
        %v9706 = vadd.f32 %v9100, %v9705
        %v9707 = vpop.f32.mrb[0].mxu0
        %v9708 = vadd.f32 %v9096, %v9707
        %v9709 = vpop.f32.mrb[0].mxu0
        %v9710 = vadd.f32 %v9100, %v9709
        %9711 = vdwg.mxu0
        %v9712 = vmax.f32 %v9403, 0.0
        %v9713 = vmax.f32 %v9405, 0.0
        %v9714 = vmax.f32 %v9446, 0.0
        %v9715 = vmax.f32 %v9448, 0.0
        %v9716 = vmax.f32 %v9489, 0.0
        %v9717 = vmax.f32 %v9491, 0.0
        %v9718 = vmax.f32 %v9532, 0.0
        %v9719 = vmax.f32 %v9534, 0.0
        %v9720 = vmax.f32 %v9575, 0.0
        %v9721 = vmax.f32 %v9577, 0.0
        %v9722 = vmax.f32 %v9618, 0.0
        %v9723 = vmax.f32 %v9620, 0.0
        %v9724 = vmax.f32 %v9661, 0.0
        %v9725 = vmax.f32 %v9663, 0.0
        %v9726 = vmax.f32 %v9704, 0.0
        %v9727 = vmax.f32 %v9706, 0.0
        %v9728 = vmax.f32 %v9407, 0.0
        %v9729 = vmax.f32 %v9409, 0.0
        %v9730 = vmax.f32 %v9450, 0.0
        %v9731 = vmax.f32 %v9452, 0.0
        %v9732 = vmax.f32 %v9493, 0.0
        %v9733 = vmax.f32 %v9495, 0.0
        %v9734 = vmax.f32 %v9536, 0.0
        %v9735 = vmax.f32 %v9538, 0.0
        %v9736 = vmax.f32 %v9579, 0.0
        %v9737 = vmax.f32 %v9581, 0.0
        %v9738 = vmax.f32 %v9622, 0.0
        %v9739 = vmax.f32 %v9624, 0.0
        %v9740 = vmax.f32 %v9665, 0.0
        %v9741 = vmax.f32 %v9667, 0.0
        %v9742 = vmax.f32 %v9708, 0.0
        %v9743 = vmax.f32 %v9710, 0.0
        %s9744 = scalar_lea.vmem %s9, 3072
        %v9745 = vld [vmem:[%s9744] sm:$0xf]
        %v9746 = vld [vmem:[%s9744 + $0x4] sm:$0xf]
        %v9747 = vld [vmem:[%s9744 + $0x8] sm:$0xf]
        %v9748 = vld [vmem:[%s9744 + $0xc] sm:$0xf]
        %v9749 = vld [vmem:[%s9744 + $0x10] sm:$0xf]
        %v9750 = vld [vmem:[%s9744 + $0x14] sm:$0xf]
        %v9751 = vld [vmem:[%s9744 + $0x18] sm:$0xf]
        %v9752 = vld [vmem:[%s9744 + $0x1c] sm:$0xf]
        %v9753 = vld [vmem:[%s9744 + $0x20] sm:$0xf]
        %v9754 = vld [vmem:[%s9744 + $0x24] sm:$0xf]
        %v9755 = vld [vmem:[%s9744 + $0x28] sm:$0xf]
        %v9756 = vld [vmem:[%s9744 + $0x2c] sm:$0xf]
        %v9757 = vld [vmem:[%s9744 + $0x30] sm:$0xf]
        %v9758 = vld [vmem:[%s9744 + $0x34] sm:$0xf]
        %v9759 = vld [vmem:[%s9744 + $0x38] sm:$0xf]
        %v9760 = vld [vmem:[%s9744 + $0x3c] sm:$0xf]
        %v9761 = vld [vmem:[%s9744 + $0x40] sm:$0xf]
        %v9762 = vld [vmem:[%s9744 + $0x44] sm:$0xf]
        %v9763 = vld [vmem:[%s9744 + $0x48] sm:$0xf]
        %v9764 = vld [vmem:[%s9744 + $0x4c] sm:$0xf]
        %v9765 = vld [vmem:[%s9744 + $0x50] sm:$0xf]
        %v9766 = vld [vmem:[%s9744 + $0x54] sm:$0xf]
        %v9767 = vld [vmem:[%s9744 + $0x58] sm:$0xf]
        %v9768 = vld [vmem:[%s9744 + $0x5c] sm:$0xf]
        %v9769 = vld [vmem:[%s9744 + $0x60] sm:$0xf]
        %v9770 = vld [vmem:[%s9744 + $0x64] sm:$0xf]
        %v9771 = vld [vmem:[%s9744 + $0x68] sm:$0xf]
        %v9772 = vld [vmem:[%s9744 + $0x6c] sm:$0xf]
        %v9773 = vld [vmem:[%s9744 + $0x70] sm:$0xf]
        %v9774 = vld [vmem:[%s9744 + $0x74] sm:$0xf]
        %v9775 = vld [vmem:[%s9744 + $0x78] sm:$0xf]
        %v9776 = vld [vmem:[%s9744 + $0x7c] sm:$0xf]
        %v9777 = vld [vmem:[%s9744 + $0x80] sm:$0xf]
        %v9778 = vld [vmem:[%s9744 + $0x84] sm:$0xf]
        %v9779 = vld [vmem:[%s9744 + $0x88] sm:$0xf]
        %v9780 = vld [vmem:[%s9744 + $0x8c] sm:$0xf]
        %v9781 = vld [vmem:[%s9744 + $0x90] sm:$0xf]
        %v9782 = vld [vmem:[%s9744 + $0x94] sm:$0xf]
        %v9783 = vld [vmem:[%s9744 + $0x98] sm:$0xf]
        %v9784 = vld [vmem:[%s9744 + $0x9c] sm:$0xf]
        %v9785 = vld [vmem:[%s9744 + $0xa0] sm:$0xf]
        %v9786 = vld [vmem:[%s9744 + $0xa4] sm:$0xf]
        %v9787 = vld [vmem:[%s9744 + $0xa8] sm:$0xf]
        %v9788 = vld [vmem:[%s9744 + $0xac] sm:$0xf]
        %v9789 = vld [vmem:[%s9744 + $0xb0] sm:$0xf]
        %v9790 = vld [vmem:[%s9744 + $0xb4] sm:$0xf]
        %v9791 = vld [vmem:[%s9744 + $0xb8] sm:$0xf]
        %v9792 = vld [vmem:[%s9744 + $0xbc] sm:$0xf]
        %v9793 = vld [vmem:[%s9744 + $0xc0] sm:$0xf]
        %v9794 = vld [vmem:[%s9744 + $0xc4] sm:$0xf]
        %v9795 = vld [vmem:[%s9744 + $0xc8] sm:$0xf]
        %v9796 = vld [vmem:[%s9744 + $0xcc] sm:$0xf]
        %v9797 = vld [vmem:[%s9744 + $0xd0] sm:$0xf]
        %v9798 = vld [vmem:[%s9744 + $0xd4] sm:$0xf]
        %v9799 = vld [vmem:[%s9744 + $0xd8] sm:$0xf]
        %v9800 = vld [vmem:[%s9744 + $0xdc] sm:$0xf]
        %v9801 = vld [vmem:[%s9744 + $0xe0] sm:$0xf]
        %v9802 = vld [vmem:[%s9744 + $0xe4] sm:$0xf]
        %v9803 = vld [vmem:[%s9744 + $0xe8] sm:$0xf]
        %v9804 = vld [vmem:[%s9744 + $0xec] sm:$0xf]
        %v9805 = vld [vmem:[%s9744 + $0xf0] sm:$0xf]
        %v9806 = vld [vmem:[%s9744 + $0xf4] sm:$0xf]
        %v9807 = vld [vmem:[%s9744 + $0xf8] sm:$0xf]
        %v9808 = vld [vmem:[%s9744 + $0xfc] sm:$0xf]
        %v9809 = vld [vmem:[%s9744 + $0x100] sm:$0xf]
        %v9810 = vld [vmem:[%s9744 + $0x104] sm:$0xf]
        %v9811 = vld [vmem:[%s9744 + $0x108] sm:$0xf]
        %v9812 = vld [vmem:[%s9744 + $0x10c] sm:$0xf]
        %v9813 = vld [vmem:[%s9744 + $0x110] sm:$0xf]
        %v9814 = vld [vmem:[%s9744 + $0x114] sm:$0xf]
        %v9815 = vld [vmem:[%s9744 + $0x118] sm:$0xf]
        %v9816 = vld [vmem:[%s9744 + $0x11c] sm:$0xf]
        %v9817 = vld [vmem:[%s9744 + $0x120] sm:$0xf]
        %v9818 = vld [vmem:[%s9744 + $0x124] sm:$0xf]
        %v9819 = vld [vmem:[%s9744 + $0x128] sm:$0xf]
        %v9820 = vld [vmem:[%s9744 + $0x12c] sm:$0xf]
        %v9821 = vld [vmem:[%s9744 + $0x130] sm:$0xf]
        %v9822 = vld [vmem:[%s9744 + $0x134] sm:$0xf]
        %v9823 = vld [vmem:[%s9744 + $0x138] sm:$0xf]
        %v9824 = vld [vmem:[%s9744 + $0x13c] sm:$0xf]
        %v9825 = vld [vmem:[%s9744 + $0x140] sm:$0xf]
        %v9826 = vld [vmem:[%s9744 + $0x144] sm:$0xf]
        %v9827 = vld [vmem:[%s9744 + $0x148] sm:$0xf]
        %v9828 = vld [vmem:[%s9744 + $0x14c] sm:$0xf]
        %v9829 = vld [vmem:[%s9744 + $0x150] sm:$0xf]
        %v9830 = vld [vmem:[%s9744 + $0x154] sm:$0xf]
        %v9831 = vld [vmem:[%s9744 + $0x158] sm:$0xf]
        %v9832 = vld [vmem:[%s9744 + $0x15c] sm:$0xf]
        %v9833 = vld [vmem:[%s9744 + $0x160] sm:$0xf]
        %v9834 = vld [vmem:[%s9744 + $0x164] sm:$0xf]
        %v9835 = vld [vmem:[%s9744 + $0x168] sm:$0xf]
        %v9836 = vld [vmem:[%s9744 + $0x16c] sm:$0xf]
        %v9837 = vld [vmem:[%s9744 + $0x170] sm:$0xf]
        %v9838 = vld [vmem:[%s9744 + $0x174] sm:$0xf]
        %v9839 = vld [vmem:[%s9744 + $0x178] sm:$0xf]
        %v9840 = vld [vmem:[%s9744 + $0x17c] sm:$0xf]
        %v9841 = vld [vmem:[%s9744 + $0x180] sm:$0xf]
        %v9842 = vld [vmem:[%s9744 + $0x184] sm:$0xf]
        %v9843 = vld [vmem:[%s9744 + $0x188] sm:$0xf]
        %v9844 = vld [vmem:[%s9744 + $0x18c] sm:$0xf]
        %v9845 = vld [vmem:[%s9744 + $0x190] sm:$0xf]
        %v9846 = vld [vmem:[%s9744 + $0x194] sm:$0xf]
        %v9847 = vld [vmem:[%s9744 + $0x198] sm:$0xf]
        %v9848 = vld [vmem:[%s9744 + $0x19c] sm:$0xf]
        %v9849 = vld [vmem:[%s9744 + $0x1a0] sm:$0xf]
        %v9850 = vld [vmem:[%s9744 + $0x1a4] sm:$0xf]
        %v9851 = vld [vmem:[%s9744 + $0x1a8] sm:$0xf]
        %v9852 = vld [vmem:[%s9744 + $0x1ac] sm:$0xf]
        %v9853 = vld [vmem:[%s9744 + $0x1b0] sm:$0xf]
        %v9854 = vld [vmem:[%s9744 + $0x1b4] sm:$0xf]
        %v9855 = vld [vmem:[%s9744 + $0x1b8] sm:$0xf]
        %v9856 = vld [vmem:[%s9744 + $0x1bc] sm:$0xf]
        %v9857 = vld [vmem:[%s9744 + $0x1c0] sm:$0xf]
        %v9858 = vld [vmem:[%s9744 + $0x1c4] sm:$0xf]
        %v9859 = vld [vmem:[%s9744 + $0x1c8] sm:$0xf]
        %v9860 = vld [vmem:[%s9744 + $0x1cc] sm:$0xf]
        %v9861 = vld [vmem:[%s9744 + $0x1d0] sm:$0xf]
        %v9862 = vld [vmem:[%s9744 + $0x1d4] sm:$0xf]
        %v9863 = vld [vmem:[%s9744 + $0x1d8] sm:$0xf]
        %v9864 = vld [vmem:[%s9744 + $0x1dc] sm:$0xf]
        %v9865 = vld [vmem:[%s9744 + $0x1e0] sm:$0xf]
        %v9866 = vld [vmem:[%s9744 + $0x1e4] sm:$0xf]
        %v9867 = vld [vmem:[%s9744 + $0x1e8] sm:$0xf]
        %v9868 = vld [vmem:[%s9744 + $0x1ec] sm:$0xf]
        %v9869 = vld [vmem:[%s9744 + $0x1f0] sm:$0xf]
        %v9870 = vld [vmem:[%s9744 + $0x1f4] sm:$0xf]
        %v9871 = vld [vmem:[%s9744 + $0x1f8] sm:$0xf]
        %v9872 = vld [vmem:[%s9744 + $0x1fc] sm:$0xf]
        %v9873 = vld [vmem:[%s9744 + $0x200] sm:$0xf]
        %v9874 = vld [vmem:[%s9744 + $0x204] sm:$0xf]
        %v9875 = vld [vmem:[%s9744 + $0x208] sm:$0xf]
        %v9876 = vld [vmem:[%s9744 + $0x20c] sm:$0xf]
        %v9877 = vld [vmem:[%s9744 + $0x210] sm:$0xf]
        %v9878 = vld [vmem:[%s9744 + $0x214] sm:$0xf]
        %v9879 = vld [vmem:[%s9744 + $0x218] sm:$0xf]
        %v9880 = vld [vmem:[%s9744 + $0x21c] sm:$0xf]
        %v9881 = vld [vmem:[%s9744 + $0x220] sm:$0xf]
        %v9882 = vld [vmem:[%s9744 + $0x224] sm:$0xf]
        %v9883 = vld [vmem:[%s9744 + $0x228] sm:$0xf]
        %v9884 = vld [vmem:[%s9744 + $0x22c] sm:$0xf]
        %v9885 = vld [vmem:[%s9744 + $0x230] sm:$0xf]
        %v9886 = vld [vmem:[%s9744 + $0x234] sm:$0xf]
        %v9887 = vld [vmem:[%s9744 + $0x238] sm:$0xf]
        %v9888 = vld [vmem:[%s9744 + $0x23c] sm:$0xf]
        %v9889 = vld [vmem:[%s9744 + $0x240] sm:$0xf]
        %v9890 = vld [vmem:[%s9744 + $0x244] sm:$0xf]
        %v9891 = vld [vmem:[%s9744 + $0x248] sm:$0xf]
        %v9892 = vld [vmem:[%s9744 + $0x24c] sm:$0xf]
        %v9893 = vld [vmem:[%s9744 + $0x250] sm:$0xf]
        %v9894 = vld [vmem:[%s9744 + $0x254] sm:$0xf]
        %v9895 = vld [vmem:[%s9744 + $0x258] sm:$0xf]
        %v9896 = vld [vmem:[%s9744 + $0x25c] sm:$0xf]
        %v9897 = vld [vmem:[%s9744 + $0x260] sm:$0xf]
        %v9898 = vld [vmem:[%s9744 + $0x264] sm:$0xf]
        %v9899 = vld [vmem:[%s9744 + $0x268] sm:$0xf]
        %v9900 = vld [vmem:[%s9744 + $0x26c] sm:$0xf]
        %v9901 = vld [vmem:[%s9744 + $0x270] sm:$0xf]
        %v9902 = vld [vmem:[%s9744 + $0x274] sm:$0xf]
        %v9903 = vld [vmem:[%s9744 + $0x278] sm:$0xf]
        %v9904 = vld [vmem:[%s9744 + $0x27c] sm:$0xf]
        %v9905 = vld [vmem:[%s9744 + $0x280] sm:$0xf]
        %v9906 = vld [vmem:[%s9744 + $0x284] sm:$0xf]
        %v9907 = vld [vmem:[%s9744 + $0x288] sm:$0xf]
        %v9908 = vld [vmem:[%s9744 + $0x28c] sm:$0xf]
        %v9909 = vld [vmem:[%s9744 + $0x290] sm:$0xf]
        %v9910 = vld [vmem:[%s9744 + $0x294] sm:$0xf]
        %v9911 = vld [vmem:[%s9744 + $0x298] sm:$0xf]
        %v9912 = vld [vmem:[%s9744 + $0x29c] sm:$0xf]
        %v9913 = vld [vmem:[%s9744 + $0x2a0] sm:$0xf]
        %v9914 = vld [vmem:[%s9744 + $0x2a4] sm:$0xf]
        %v9915 = vld [vmem:[%s9744 + $0x2a8] sm:$0xf]
        %v9916 = vld [vmem:[%s9744 + $0x2ac] sm:$0xf]
        %v9917 = vld [vmem:[%s9744 + $0x2b0] sm:$0xf]
        %v9918 = vld [vmem:[%s9744 + $0x2b4] sm:$0xf]
        %v9919 = vld [vmem:[%s9744 + $0x2b8] sm:$0xf]
        %v9920 = vld [vmem:[%s9744 + $0x2bc] sm:$0xf]
        %v9921 = vld [vmem:[%s9744 + $0x2c0] sm:$0xf]
        %v9922 = vld [vmem:[%s9744 + $0x2c4] sm:$0xf]
        %v9923 = vld [vmem:[%s9744 + $0x2c8] sm:$0xf]
        %v9924 = vld [vmem:[%s9744 + $0x2cc] sm:$0xf]
        %v9925 = vld [vmem:[%s9744 + $0x2d0] sm:$0xf]
        %v9926 = vld [vmem:[%s9744 + $0x2d4] sm:$0xf]
        %v9927 = vld [vmem:[%s9744 + $0x2d8] sm:$0xf]
        %v9928 = vld [vmem:[%s9744 + $0x2dc] sm:$0xf]
        %v9929 = vld [vmem:[%s9744 + $0x2e0] sm:$0xf]
        %v9930 = vld [vmem:[%s9744 + $0x2e4] sm:$0xf]
        %v9931 = vld [vmem:[%s9744 + $0x2e8] sm:$0xf]
        %v9932 = vld [vmem:[%s9744 + $0x2ec] sm:$0xf]
        %v9933 = vld [vmem:[%s9744 + $0x2f0] sm:$0xf]
        %v9934 = vld [vmem:[%s9744 + $0x2f4] sm:$0xf]
        %v9935 = vld [vmem:[%s9744 + $0x2f8] sm:$0xf]
        %v9936 = vld [vmem:[%s9744 + $0x2fc] sm:$0xf]
        %v9937 = vld [vmem:[%s9744 + $0x300] sm:$0xf]
        %v9938 = vld [vmem:[%s9744 + $0x304] sm:$0xf]
        %v9939 = vld [vmem:[%s9744 + $0x308] sm:$0xf]
        %v9940 = vld [vmem:[%s9744 + $0x30c] sm:$0xf]
        %v9941 = vld [vmem:[%s9744 + $0x310] sm:$0xf]
        %v9942 = vld [vmem:[%s9744 + $0x314] sm:$0xf]
        %v9943 = vld [vmem:[%s9744 + $0x318] sm:$0xf]
        %v9944 = vld [vmem:[%s9744 + $0x31c] sm:$0xf]
        %v9945 = vld [vmem:[%s9744 + $0x320] sm:$0xf]
        %v9946 = vld [vmem:[%s9744 + $0x324] sm:$0xf]
        %v9947 = vld [vmem:[%s9744 + $0x328] sm:$0xf]
        %v9948 = vld [vmem:[%s9744 + $0x32c] sm:$0xf]
        %v9949 = vld [vmem:[%s9744 + $0x330] sm:$0xf]
        %v9950 = vld [vmem:[%s9744 + $0x334] sm:$0xf]
        %v9951 = vld [vmem:[%s9744 + $0x338] sm:$0xf]
        %v9952 = vld [vmem:[%s9744 + $0x33c] sm:$0xf]
        %v9953 = vld [vmem:[%s9744 + $0x340] sm:$0xf]
        %v9954 = vld [vmem:[%s9744 + $0x344] sm:$0xf]
        %v9955 = vld [vmem:[%s9744 + $0x348] sm:$0xf]
        %v9956 = vld [vmem:[%s9744 + $0x34c] sm:$0xf]
        %v9957 = vld [vmem:[%s9744 + $0x350] sm:$0xf]
        %v9958 = vld [vmem:[%s9744 + $0x354] sm:$0xf]
        %v9959 = vld [vmem:[%s9744 + $0x358] sm:$0xf]
        %v9960 = vld [vmem:[%s9744 + $0x35c] sm:$0xf]
        %v9961 = vld [vmem:[%s9744 + $0x360] sm:$0xf]
        %v9962 = vld [vmem:[%s9744 + $0x364] sm:$0xf]
        %v9963 = vld [vmem:[%s9744 + $0x368] sm:$0xf]
        %v9964 = vld [vmem:[%s9744 + $0x36c] sm:$0xf]
        %v9965 = vld [vmem:[%s9744 + $0x370] sm:$0xf]
        %v9966 = vld [vmem:[%s9744 + $0x374] sm:$0xf]
        %v9967 = vld [vmem:[%s9744 + $0x378] sm:$0xf]
        %v9968 = vld [vmem:[%s9744 + $0x37c] sm:$0xf]
        %v9969 = vld [vmem:[%s9744 + $0x380] sm:$0xf]
        %v9970 = vld [vmem:[%s9744 + $0x384] sm:$0xf]
        %v9971 = vld [vmem:[%s9744 + $0x388] sm:$0xf]
        %v9972 = vld [vmem:[%s9744 + $0x38c] sm:$0xf]
        %v9973 = vld [vmem:[%s9744 + $0x390] sm:$0xf]
        %v9974 = vld [vmem:[%s9744 + $0x394] sm:$0xf]
        %v9975 = vld [vmem:[%s9744 + $0x398] sm:$0xf]
        %v9976 = vld [vmem:[%s9744 + $0x39c] sm:$0xf]
        %v9977 = vld [vmem:[%s9744 + $0x3a0] sm:$0xf]
        %v9978 = vld [vmem:[%s9744 + $0x3a4] sm:$0xf]
        %v9979 = vld [vmem:[%s9744 + $0x3a8] sm:$0xf]
        %v9980 = vld [vmem:[%s9744 + $0x3ac] sm:$0xf]
        %v9981 = vld [vmem:[%s9744 + $0x3b0] sm:$0xf]
        %v9982 = vld [vmem:[%s9744 + $0x3b4] sm:$0xf]
        %v9983 = vld [vmem:[%s9744 + $0x3b8] sm:$0xf]
        %v9984 = vld [vmem:[%s9744 + $0x3bc] sm:$0xf]
        %v9985 = vld [vmem:[%s9744 + $0x3c0] sm:$0xf]
        %v9986 = vld [vmem:[%s9744 + $0x3c4] sm:$0xf]
        %v9987 = vld [vmem:[%s9744 + $0x3c8] sm:$0xf]
        %v9988 = vld [vmem:[%s9744 + $0x3cc] sm:$0xf]
        %v9989 = vld [vmem:[%s9744 + $0x3d0] sm:$0xf]
        %v9990 = vld [vmem:[%s9744 + $0x3d4] sm:$0xf]
        %v9991 = vld [vmem:[%s9744 + $0x3d8] sm:$0xf]
        %v9992 = vld [vmem:[%s9744 + $0x3dc] sm:$0xf]
        %v9993 = vld [vmem:[%s9744 + $0x3e0] sm:$0xf]
        %v9994 = vld [vmem:[%s9744 + $0x3e4] sm:$0xf]
        %v9995 = vld [vmem:[%s9744 + $0x3e8] sm:$0xf]
        %v9996 = vld [vmem:[%s9744 + $0x3ec] sm:$0xf]
        %v9997 = vld [vmem:[%s9744 + $0x3f0] sm:$0xf]
        %v9998 = vld [vmem:[%s9744 + $0x3f4] sm:$0xf]
        %v9999 = vld [vmem:[%s9744 + $0x3f8] sm:$0xf]
        %v10000 = vld [vmem:[%s9744 + $0x3fc] sm:$0xf]
        %s10001 = scalar_lea.vmem %s10, 3
        %v10002 = vld [vmem:[%s10001] sm:$0x1]
        %v10003 = vpack.c.bf16 %v9728, %v9712
        %v10004 = vpack.c.bf16 %v9729, %v9713
        %v10005 = vpack.c.bf16 %v9730, %v9714
        %v10006 = vpack.c.bf16 %v9731, %v9715
        %v10007 = vpack.c.bf16 %v9732, %v9716
        %v10008 = vpack.c.bf16 %v9733, %v9717
        %v10009 = vpack.c.bf16 %v9734, %v9718
        %v10010 = vpack.c.bf16 %v9735, %v9719
        %v10011 = vpack.c.bf16 %v9736, %v9720
        %v10012 = vpack.c.bf16 %v9737, %v9721
        %v10013 = vpack.c.bf16 %v9738, %v9722
        %v10014 = vpack.c.bf16 %v9739, %v9723
        %v10015 = vpack.c.bf16 %v9740, %v9724
        %v10016 = vpack.c.bf16 %v9741, %v9725
        %v10017 = vpack.c.bf16 %v9742, %v9726
        %v10018 = vpack.c.bf16 %v9743, %v9727
        %v10020 = vlaneseq
        %v10021 = vshrl.u32 %v10020, 7
        %v10022 = vsub.s32 0, %v10021
        %v10023 = vrot.slane %v10002, %v10022
        %v10281 = vunpack.c.l.b16 %v9745
        %v10282 = vunpack.c.l.b16 %v9746
        %v10283 = vunpack.c.l.b16 %v9747
        %v10284 = vunpack.c.l.b16 %v9748
        %v10285 = vunpack.c.l.b16 %v9749
        %v10286 = vunpack.c.l.b16 %v9750
        %v10287 = vunpack.c.l.b16 %v9751
        %v10288 = vunpack.c.l.b16 %v9752
        %v10289 = vunpack.c.l.b16 %v9753
        %v10290 = vunpack.c.l.b16 %v9754
        %v10291 = vunpack.c.l.b16 %v9755
        %v10292 = vunpack.c.l.b16 %v9756
        %v10293 = vunpack.c.l.b16 %v9757
        %v10294 = vunpack.c.l.b16 %v9758
        %v10295 = vunpack.c.l.b16 %v9759
        %v10296 = vunpack.c.l.b16 %v9760
        %v10297 = vunpack.c.l.b16 %v9761
        %v10298 = vunpack.c.l.b16 %v9762
        %v10299 = vunpack.c.l.b16 %v9763
        %v10300 = vunpack.c.l.b16 %v9764
        %v10301 = vunpack.c.l.b16 %v9765
        %v10302 = vunpack.c.l.b16 %v9766
        %v10303 = vunpack.c.l.b16 %v9767
        %v10304 = vunpack.c.l.b16 %v9768
        %v10305 = vunpack.c.l.b16 %v9769
        %v10306 = vunpack.c.l.b16 %v9770
        %v10307 = vunpack.c.l.b16 %v9771
        %v10308 = vunpack.c.l.b16 %v9772
        %v10309 = vunpack.c.l.b16 %v9773
        %v10310 = vunpack.c.l.b16 %v9774
        %v10311 = vunpack.c.l.b16 %v9775
        %v10312 = vunpack.c.l.b16 %v9776
        %v10313 = vunpack.c.l.b16 %v9777
        %v10314 = vunpack.c.l.b16 %v9778
        %v10315 = vunpack.c.l.b16 %v9779
        %v10316 = vunpack.c.l.b16 %v9780
        %v10317 = vunpack.c.l.b16 %v9781
        %v10318 = vunpack.c.l.b16 %v9782
        %v10319 = vunpack.c.l.b16 %v9783
        %v10320 = vunpack.c.l.b16 %v9784
        %v10321 = vunpack.c.l.b16 %v9785
        %v10322 = vunpack.c.l.b16 %v9786
        %v10323 = vunpack.c.l.b16 %v9787
        %v10324 = vunpack.c.l.b16 %v9788
        %v10325 = vunpack.c.l.b16 %v9789
        %v10326 = vunpack.c.l.b16 %v9790
        %v10327 = vunpack.c.l.b16 %v9791
        %v10328 = vunpack.c.l.b16 %v9792
        %v10329 = vunpack.c.l.b16 %v9793
        %v10330 = vunpack.c.l.b16 %v9794
        %v10331 = vunpack.c.l.b16 %v9795
        %v10332 = vunpack.c.l.b16 %v9796
        %v10333 = vunpack.c.l.b16 %v9797
        %v10334 = vunpack.c.l.b16 %v9798
        %v10335 = vunpack.c.l.b16 %v9799
        %v10336 = vunpack.c.l.b16 %v9800
        %v10337 = vunpack.c.l.b16 %v9801
        %v10338 = vunpack.c.l.b16 %v9802
        %v10339 = vunpack.c.l.b16 %v9803
        %v10340 = vunpack.c.l.b16 %v9804
        %v10341 = vunpack.c.l.b16 %v9805
        %v10342 = vunpack.c.l.b16 %v9806
        %v10343 = vunpack.c.l.b16 %v9807
        %v10344 = vunpack.c.l.b16 %v9808
        %v10345 = vunpack.c.l.b16 %v9809
        %v10346 = vunpack.c.l.b16 %v9810
        %v10347 = vunpack.c.l.b16 %v9811
        %v10348 = vunpack.c.l.b16 %v9812
        %v10349 = vunpack.c.l.b16 %v9813
        %v10350 = vunpack.c.l.b16 %v9814
        %v10351 = vunpack.c.l.b16 %v9815
        %v10352 = vunpack.c.l.b16 %v9816
        %v10353 = vunpack.c.l.b16 %v9817
        %v10354 = vunpack.c.l.b16 %v9818
        %v10355 = vunpack.c.l.b16 %v9819
        %v10356 = vunpack.c.l.b16 %v9820
        %v10357 = vunpack.c.l.b16 %v9821
        %v10358 = vunpack.c.l.b16 %v9822
        %v10359 = vunpack.c.l.b16 %v9823
        %v10360 = vunpack.c.l.b16 %v9824
        %v10361 = vunpack.c.l.b16 %v9825
        %v10362 = vunpack.c.l.b16 %v9826
        %v10363 = vunpack.c.l.b16 %v9827
        %v10364 = vunpack.c.l.b16 %v9828
        %v10365 = vunpack.c.l.b16 %v9829
        %v10366 = vunpack.c.l.b16 %v9830
        %v10367 = vunpack.c.l.b16 %v9831
        %v10368 = vunpack.c.l.b16 %v9832
        %v10369 = vunpack.c.l.b16 %v9833
        %v10370 = vunpack.c.l.b16 %v9834
        %v10371 = vunpack.c.l.b16 %v9835
        %v10372 = vunpack.c.l.b16 %v9836
        %v10373 = vunpack.c.l.b16 %v9837
        %v10374 = vunpack.c.l.b16 %v9838
        %v10375 = vunpack.c.l.b16 %v9839
        %v10376 = vunpack.c.l.b16 %v9840
        %v10377 = vunpack.c.l.b16 %v9841
        %v10378 = vunpack.c.l.b16 %v9842
        %v10379 = vunpack.c.l.b16 %v9843
        %v10380 = vunpack.c.l.b16 %v9844
        %v10381 = vunpack.c.l.b16 %v9845
        %v10382 = vunpack.c.l.b16 %v9846
        %v10383 = vunpack.c.l.b16 %v9847
        %v10384 = vunpack.c.l.b16 %v9848
        %v10385 = vunpack.c.l.b16 %v9849
        %v10386 = vunpack.c.l.b16 %v9850
        %v10387 = vunpack.c.l.b16 %v9851
        %v10388 = vunpack.c.l.b16 %v9852
        %v10389 = vunpack.c.l.b16 %v9853
        %v10390 = vunpack.c.l.b16 %v9854
        %v10391 = vunpack.c.l.b16 %v9855
        %v10392 = vunpack.c.l.b16 %v9856
        %v10393 = vunpack.c.l.b16 %v9857
        %v10394 = vunpack.c.l.b16 %v9858
        %v10395 = vunpack.c.l.b16 %v9859
        %v10396 = vunpack.c.l.b16 %v9860
        %v10397 = vunpack.c.l.b16 %v9861
        %v10398 = vunpack.c.l.b16 %v9862
        %v10399 = vunpack.c.l.b16 %v9863
        %v10400 = vunpack.c.l.b16 %v9864
        %v10401 = vunpack.c.l.b16 %v9865
        %v10402 = vunpack.c.l.b16 %v9866
        %v10403 = vunpack.c.l.b16 %v9867
        %v10404 = vunpack.c.l.b16 %v9868
        %v10405 = vunpack.c.l.b16 %v9869
        %v10406 = vunpack.c.l.b16 %v9870
        %v10407 = vunpack.c.l.b16 %v9871
        %v10408 = vunpack.c.l.b16 %v9872
        %v10409 = vunpack.c.l.b16 %v9873
        %v10410 = vunpack.c.l.b16 %v9874
        %v10411 = vunpack.c.l.b16 %v9875
        %v10412 = vunpack.c.l.b16 %v9876
        %v10413 = vunpack.c.l.b16 %v9877
        %v10414 = vunpack.c.l.b16 %v9878
        %v10415 = vunpack.c.l.b16 %v9879
        %v10416 = vunpack.c.l.b16 %v9880
        %v10417 = vunpack.c.l.b16 %v9881
        %v10418 = vunpack.c.l.b16 %v9882
        %v10419 = vunpack.c.l.b16 %v9883
        %v10420 = vunpack.c.l.b16 %v9884
        %v10421 = vunpack.c.l.b16 %v9885
        %v10422 = vunpack.c.l.b16 %v9886
        %v10423 = vunpack.c.l.b16 %v9887
        %v10424 = vunpack.c.l.b16 %v9888
        %v10425 = vunpack.c.l.b16 %v9889
        %v10426 = vunpack.c.l.b16 %v9890
        %v10427 = vunpack.c.l.b16 %v9891
        %v10428 = vunpack.c.l.b16 %v9892
        %v10429 = vunpack.c.l.b16 %v9893
        %v10430 = vunpack.c.l.b16 %v9894
        %v10431 = vunpack.c.l.b16 %v9895
        %v10432 = vunpack.c.l.b16 %v9896
        %v10433 = vunpack.c.l.b16 %v9897
        %v10434 = vunpack.c.l.b16 %v9898
        %v10435 = vunpack.c.l.b16 %v9899
        %v10436 = vunpack.c.l.b16 %v9900
        %v10437 = vunpack.c.l.b16 %v9901
        %v10438 = vunpack.c.l.b16 %v9902
        %v10439 = vunpack.c.l.b16 %v9903
        %v10440 = vunpack.c.l.b16 %v9904
        %v10441 = vunpack.c.l.b16 %v9905
        %v10442 = vunpack.c.l.b16 %v9906
        %v10443 = vunpack.c.l.b16 %v9907
        %v10444 = vunpack.c.l.b16 %v9908
        %v10445 = vunpack.c.l.b16 %v9909
        %v10446 = vunpack.c.l.b16 %v9910
        %v10447 = vunpack.c.l.b16 %v9911
        %v10448 = vunpack.c.l.b16 %v9912
        %v10449 = vunpack.c.l.b16 %v9913
        %v10450 = vunpack.c.l.b16 %v9914
        %v10451 = vunpack.c.l.b16 %v9915
        %v10452 = vunpack.c.l.b16 %v9916
        %v10453 = vunpack.c.l.b16 %v9917
        %v10454 = vunpack.c.l.b16 %v9918
        %v10455 = vunpack.c.l.b16 %v9919
        %v10456 = vunpack.c.l.b16 %v9920
        %v10457 = vunpack.c.l.b16 %v9921
        %v10458 = vunpack.c.l.b16 %v9922
        %v10459 = vunpack.c.l.b16 %v9923
        %v10460 = vunpack.c.l.b16 %v9924
        %v10461 = vunpack.c.l.b16 %v9925
        %v10462 = vunpack.c.l.b16 %v9926
        %v10463 = vunpack.c.l.b16 %v9927
        %v10464 = vunpack.c.l.b16 %v9928
        %v10465 = vunpack.c.l.b16 %v9929
        %v10466 = vunpack.c.l.b16 %v9930
        %v10467 = vunpack.c.l.b16 %v9931
        %v10468 = vunpack.c.l.b16 %v9932
        %v10469 = vunpack.c.l.b16 %v9933
        %v10470 = vunpack.c.l.b16 %v9934
        %v10471 = vunpack.c.l.b16 %v9935
        %v10472 = vunpack.c.l.b16 %v9936
        %v10473 = vunpack.c.l.b16 %v9937
        %v10474 = vunpack.c.l.b16 %v9938
        %v10475 = vunpack.c.l.b16 %v9939
        %v10476 = vunpack.c.l.b16 %v9940
        %v10477 = vunpack.c.l.b16 %v9941
        %v10478 = vunpack.c.l.b16 %v9942
        %v10479 = vunpack.c.l.b16 %v9943
        %v10480 = vunpack.c.l.b16 %v9944
        %v10481 = vunpack.c.l.b16 %v9945
        %v10482 = vunpack.c.l.b16 %v9946
        %v10483 = vunpack.c.l.b16 %v9947
        %v10484 = vunpack.c.l.b16 %v9948
        %v10485 = vunpack.c.l.b16 %v9949
        %v10486 = vunpack.c.l.b16 %v9950
        %v10487 = vunpack.c.l.b16 %v9951
        %v10488 = vunpack.c.l.b16 %v9952
        %v10489 = vunpack.c.l.b16 %v9953
        %v10490 = vunpack.c.l.b16 %v9954
        %v10491 = vunpack.c.l.b16 %v9955
        %v10492 = vunpack.c.l.b16 %v9956
        %v10493 = vunpack.c.l.b16 %v9957
        %v10494 = vunpack.c.l.b16 %v9958
        %v10495 = vunpack.c.l.b16 %v9959
        %v10496 = vunpack.c.l.b16 %v9960
        %v10497 = vunpack.c.l.b16 %v9961
        %v10498 = vunpack.c.l.b16 %v9962
        %v10499 = vunpack.c.l.b16 %v9963
        %v10500 = vunpack.c.l.b16 %v9964
        %v10501 = vunpack.c.l.b16 %v9965
        %v10502 = vunpack.c.l.b16 %v9966
        %v10503 = vunpack.c.l.b16 %v9967
        %v10504 = vunpack.c.l.b16 %v9968
        %v10505 = vunpack.c.l.b16 %v9969
        %v10506 = vunpack.c.l.b16 %v9970
        %v10507 = vunpack.c.l.b16 %v9971
        %v10508 = vunpack.c.l.b16 %v9972
        %v10509 = vunpack.c.l.b16 %v9973
        %v10510 = vunpack.c.l.b16 %v9974
        %v10511 = vunpack.c.l.b16 %v9975
        %v10512 = vunpack.c.l.b16 %v9976
        %v10513 = vunpack.c.l.b16 %v9977
        %v10514 = vunpack.c.l.b16 %v9978
        %v10515 = vunpack.c.l.b16 %v9979
        %v10516 = vunpack.c.l.b16 %v9980
        %v10517 = vunpack.c.l.b16 %v9981
        %v10518 = vunpack.c.l.b16 %v9982
        %v10519 = vunpack.c.l.b16 %v9983
        %v10520 = vunpack.c.l.b16 %v9984
        %v10521 = vunpack.c.l.b16 %v9985
        %v10522 = vunpack.c.l.b16 %v9986
        %v10523 = vunpack.c.l.b16 %v9987
        %v10524 = vunpack.c.l.b16 %v9988
        %v10525 = vunpack.c.l.b16 %v9989
        %v10526 = vunpack.c.l.b16 %v9990
        %v10527 = vunpack.c.l.b16 %v9991
        %v10528 = vunpack.c.l.b16 %v9992
        %v10529 = vunpack.c.l.b16 %v9993
        %v10530 = vunpack.c.l.b16 %v9994
        %v10531 = vunpack.c.l.b16 %v9995
        %v10532 = vunpack.c.l.b16 %v9996
        %v10533 = vunpack.c.l.b16 %v9997
        %v10534 = vunpack.c.l.b16 %v9998
        %v10535 = vunpack.c.l.b16 %v9999
        %v10536 = vunpack.c.l.b16 %v10000
        %v10537 = vpack.c.b16 %v10282, %v10281
        %v10538 = vpack.c.b16 %v10284, %v10283
        %v10539 = vpack.c.b16 %v10286, %v10285
        %v10540 = vpack.c.b16 %v10288, %v10287
        %v10541 = vpack.c.b16 %v10290, %v10289
        %v10542 = vpack.c.b16 %v10292, %v10291
        %v10543 = vpack.c.b16 %v10294, %v10293
        %v10544 = vpack.c.b16 %v10296, %v10295
        %v10545 = vpack.c.b16 %v10298, %v10297
        %v10546 = vpack.c.b16 %v10300, %v10299
        %v10547 = vpack.c.b16 %v10302, %v10301
        %v10548 = vpack.c.b16 %v10304, %v10303
        %v10549 = vpack.c.b16 %v10306, %v10305
        %v10550 = vpack.c.b16 %v10308, %v10307
        %v10551 = vpack.c.b16 %v10310, %v10309
        %v10552 = vpack.c.b16 %v10312, %v10311
        %v10553 = vpack.c.b16 %v10314, %v10313
        %v10554 = vpack.c.b16 %v10316, %v10315
        %v10555 = vpack.c.b16 %v10318, %v10317
        %v10556 = vpack.c.b16 %v10320, %v10319
        %v10557 = vpack.c.b16 %v10322, %v10321
        %v10558 = vpack.c.b16 %v10324, %v10323
        %v10559 = vpack.c.b16 %v10326, %v10325
        %v10560 = vpack.c.b16 %v10328, %v10327
        %v10561 = vpack.c.b16 %v10330, %v10329
        %v10562 = vpack.c.b16 %v10332, %v10331
        %v10563 = vpack.c.b16 %v10334, %v10333
        %v10564 = vpack.c.b16 %v10336, %v10335
        %v10565 = vpack.c.b16 %v10338, %v10337
        %v10566 = vpack.c.b16 %v10340, %v10339
        %v10567 = vpack.c.b16 %v10342, %v10341
        %v10568 = vpack.c.b16 %v10344, %v10343
        %v10569 = vpack.c.b16 %v10346, %v10345
        %v10570 = vpack.c.b16 %v10348, %v10347
        %v10571 = vpack.c.b16 %v10350, %v10349
        %v10572 = vpack.c.b16 %v10352, %v10351
        %v10573 = vpack.c.b16 %v10354, %v10353
        %v10574 = vpack.c.b16 %v10356, %v10355
        %v10575 = vpack.c.b16 %v10358, %v10357
        %v10576 = vpack.c.b16 %v10360, %v10359
        %v10577 = vpack.c.b16 %v10362, %v10361
        %v10578 = vpack.c.b16 %v10364, %v10363
        %v10579 = vpack.c.b16 %v10366, %v10365
        %v10580 = vpack.c.b16 %v10368, %v10367
        %v10581 = vpack.c.b16 %v10370, %v10369
        %v10582 = vpack.c.b16 %v10372, %v10371
        %v10583 = vpack.c.b16 %v10374, %v10373
        %v10584 = vpack.c.b16 %v10376, %v10375
        %v10585 = vpack.c.b16 %v10378, %v10377
        %v10586 = vpack.c.b16 %v10380, %v10379
        %v10587 = vpack.c.b16 %v10382, %v10381
        %v10588 = vpack.c.b16 %v10384, %v10383
        %v10589 = vpack.c.b16 %v10386, %v10385
        %v10590 = vpack.c.b16 %v10388, %v10387
        %v10591 = vpack.c.b16 %v10390, %v10389
        %v10592 = vpack.c.b16 %v10392, %v10391
        %v10593 = vpack.c.b16 %v10394, %v10393
        %v10594 = vpack.c.b16 %v10396, %v10395
        %v10595 = vpack.c.b16 %v10398, %v10397
        %v10596 = vpack.c.b16 %v10400, %v10399
        %v10597 = vpack.c.b16 %v10402, %v10401
        %v10598 = vpack.c.b16 %v10404, %v10403
        %v10599 = vpack.c.b16 %v10406, %v10405
        %v10600 = vpack.c.b16 %v10408, %v10407
        %v10601 = vpack.c.b16 %v10410, %v10409
        %v10602 = vpack.c.b16 %v10412, %v10411
        %v10603 = vpack.c.b16 %v10414, %v10413
        %v10604 = vpack.c.b16 %v10416, %v10415
        %v10605 = vpack.c.b16 %v10418, %v10417
        %v10606 = vpack.c.b16 %v10420, %v10419
        %v10607 = vpack.c.b16 %v10422, %v10421
        %v10608 = vpack.c.b16 %v10424, %v10423
        %v10609 = vpack.c.b16 %v10426, %v10425
        %v10610 = vpack.c.b16 %v10428, %v10427
        %v10611 = vpack.c.b16 %v10430, %v10429
        %v10612 = vpack.c.b16 %v10432, %v10431
        %v10613 = vpack.c.b16 %v10434, %v10433
        %v10614 = vpack.c.b16 %v10436, %v10435
        %v10615 = vpack.c.b16 %v10438, %v10437
        %v10616 = vpack.c.b16 %v10440, %v10439
        %v10617 = vpack.c.b16 %v10442, %v10441
        %v10618 = vpack.c.b16 %v10444, %v10443
        %v10619 = vpack.c.b16 %v10446, %v10445
        %v10620 = vpack.c.b16 %v10448, %v10447
        %v10621 = vpack.c.b16 %v10450, %v10449
        %v10622 = vpack.c.b16 %v10452, %v10451
        %v10623 = vpack.c.b16 %v10454, %v10453
        %v10624 = vpack.c.b16 %v10456, %v10455
        %v10625 = vpack.c.b16 %v10458, %v10457
        %v10626 = vpack.c.b16 %v10460, %v10459
        %v10627 = vpack.c.b16 %v10462, %v10461
        %v10628 = vpack.c.b16 %v10464, %v10463
        %v10629 = vpack.c.b16 %v10466, %v10465
        %v10630 = vpack.c.b16 %v10468, %v10467
        %v10631 = vpack.c.b16 %v10470, %v10469
        %v10632 = vpack.c.b16 %v10472, %v10471
        %v10633 = vpack.c.b16 %v10474, %v10473
        %v10634 = vpack.c.b16 %v10476, %v10475
        %v10635 = vpack.c.b16 %v10478, %v10477
        %v10636 = vpack.c.b16 %v10480, %v10479
        %v10637 = vpack.c.b16 %v10482, %v10481
        %v10638 = vpack.c.b16 %v10484, %v10483
        %v10639 = vpack.c.b16 %v10486, %v10485
        %v10640 = vpack.c.b16 %v10488, %v10487
        %v10641 = vpack.c.b16 %v10490, %v10489
        %v10642 = vpack.c.b16 %v10492, %v10491
        %v10643 = vpack.c.b16 %v10494, %v10493
        %v10644 = vpack.c.b16 %v10496, %v10495
        %v10645 = vpack.c.b16 %v10498, %v10497
        %v10646 = vpack.c.b16 %v10500, %v10499
        %v10647 = vpack.c.b16 %v10502, %v10501
        %v10648 = vpack.c.b16 %v10504, %v10503
        %v10649 = vpack.c.b16 %v10506, %v10505
        %v10650 = vpack.c.b16 %v10508, %v10507
        %v10651 = vpack.c.b16 %v10510, %v10509
        %v10652 = vpack.c.b16 %v10512, %v10511
        %v10653 = vpack.c.b16 %v10514, %v10513
        %v10654 = vpack.c.b16 %v10516, %v10515
        %v10655 = vpack.c.b16 %v10518, %v10517
        %v10656 = vpack.c.b16 %v10520, %v10519
        %v10657 = vpack.c.b16 %v10522, %v10521
        %v10658 = vpack.c.b16 %v10524, %v10523
        %v10659 = vpack.c.b16 %v10526, %v10525
        %v10660 = vpack.c.b16 %v10528, %v10527
        %v10661 = vpack.c.b16 %v10530, %v10529
        %v10662 = vpack.c.b16 %v10532, %v10531
        %v10663 = vpack.c.b16 %v10534, %v10533
        %v10664 = vpack.c.b16 %v10536, %v10535
        %10793 = vmatprep.subr.bf16.mxu0 0
        %10794 = vmatpush1.bf16.msra.mxu0 %v10537
        %10795 = vmatprep.subr.bf16.mxu0 0
        %10796 = vmatpush1.bf16.msra.mxu0 %v10538
        %10797 = vmatprep.subr.bf16.mxu0 0
        %10798 = vmatpush1.bf16.msra.mxu0 %v10539
        %10799 = vmatprep.subr.bf16.mxu0 0
        %10800 = vmatpush1.bf16.msra.mxu0 %v10540
        %10801 = vmatprep.subr.bf16.mxu0 0
        %10802 = vmatpush1.bf16.msra.mxu0 %v10541
        %10803 = vmatprep.subr.bf16.mxu0 0
        %10804 = vmatpush1.bf16.msra.mxu0 %v10542
        %10805 = vmatprep.subr.bf16.mxu0 0
        %10806 = vmatpush1.bf16.msra.mxu0 %v10543
        %10807 = vmatprep.subr.bf16.mxu0 0
        %10808 = vmatpush1.bf16.msra.mxu0 %v10544
        %10809 = vmatprep.subr.bf16.mxu0 0
        %10810 = vmatpush1.bf16.msra.mxu0 %v10545
        %10811 = vmatprep.subr.bf16.mxu0 0
        %10812 = vmatpush1.bf16.msra.mxu0 %v10546
        %10813 = vmatprep.subr.bf16.mxu0 0
        %10814 = vmatpush1.bf16.msra.mxu0 %v10547
        %10815 = vmatprep.subr.bf16.mxu0 0
        %10816 = vmatpush1.bf16.msra.mxu0 %v10548
        %10817 = vmatprep.subr.bf16.mxu0 0
        %10818 = vmatpush1.bf16.msra.mxu0 %v10549
        %10819 = vmatprep.subr.bf16.mxu0 0
        %10820 = vmatpush1.bf16.msra.mxu0 %v10550
        %10821 = vmatprep.subr.bf16.mxu0 0
        %10822 = vmatpush1.bf16.msra.mxu0 %v10551
        %10823 = vmatprep.subr.bf16.mxu0 0
        %10824 = vmatpush1.bf16.msra.mxu0 %v10552
        %10825 = vmatprep.mubr.bf16.mxu0 %v10004
        %10826 = vmatmul.mubr.bf16.gmra.mrb[0].mxu0 %v10003
        %v10827 = vpop.f32.mrb[0].mxu0
        %v10828 = vadd.f32 %v10023, %v10827
        %v10829 = vpop.f32.mrb[0].mxu0
        %v10830 = vpop.f32.mrb[0].mxu0
        %v10831 = vadd.f32 %v10023, %v10830
        %v10832 = vpop.f32.mrb[0].mxu0
        %10833 = vdwg.mxu0
        %10834 = vmatprep.subr.bf16.mxu0 0
        %10835 = vmatpush1.bf16.msra.mxu0 %v10553
        %10836 = vmatprep.subr.bf16.mxu0 0
        %10837 = vmatpush1.bf16.msra.mxu0 %v10554
        %10838 = vmatprep.subr.bf16.mxu0 0
        %10839 = vmatpush1.bf16.msra.mxu0 %v10555
        %10840 = vmatprep.subr.bf16.mxu0 0
        %10841 = vmatpush1.bf16.msra.mxu0 %v10556
        %10842 = vmatprep.subr.bf16.mxu0 0
        %10843 = vmatpush1.bf16.msra.mxu0 %v10557
        %10844 = vmatprep.subr.bf16.mxu0 0
        %10845 = vmatpush1.bf16.msra.mxu0 %v10558
        %10846 = vmatprep.subr.bf16.mxu0 0
        %10847 = vmatpush1.bf16.msra.mxu0 %v10559
        %10848 = vmatprep.subr.bf16.mxu0 0
        %10849 = vmatpush1.bf16.msra.mxu0 %v10560
        %10850 = vmatprep.subr.bf16.mxu0 0
        %10851 = vmatpush1.bf16.msra.mxu0 %v10561
        %10852 = vmatprep.subr.bf16.mxu0 0
        %10853 = vmatpush1.bf16.msra.mxu0 %v10562
        %10854 = vmatprep.subr.bf16.mxu0 0
        %10855 = vmatpush1.bf16.msra.mxu0 %v10563
        %10856 = vmatprep.subr.bf16.mxu0 0
        %10857 = vmatpush1.bf16.msra.mxu0 %v10564
        %10858 = vmatprep.subr.bf16.mxu0 0
        %10859 = vmatpush1.bf16.msra.mxu0 %v10565
        %10860 = vmatprep.subr.bf16.mxu0 0
        %10861 = vmatpush1.bf16.msra.mxu0 %v10566
        %10862 = vmatprep.subr.bf16.mxu0 0
        %10863 = vmatpush1.bf16.msra.mxu0 %v10567
        %10864 = vmatprep.subr.bf16.mxu0 0
        %10865 = vmatpush1.bf16.msra.mxu0 %v10568
        %10866 = vmatprep.mubr.bf16.mxu0 %v10006
        %10867 = vmatmul.mubr.bf16.gmra.mrb[0].mxu0 %v10005
        %v10868 = vpop.f32.mrb[0].mxu0
        %v10869 = vadd.f32 %v10828, %v10868
        %v10870 = vpop.f32.mrb[0].mxu0
        %v10871 = vpop.f32.mrb[0].mxu0
        %v10872 = vadd.f32 %v10831, %v10871
        %v10873 = vpop.f32.mrb[0].mxu0
        %10874 = vdwg.mxu0
        %10875 = vmatprep.subr.bf16.mxu0 0
        %10876 = vmatpush1.bf16.msra.mxu0 %v10569
        %10877 = vmatprep.subr.bf16.mxu0 0
        %10878 = vmatpush1.bf16.msra.mxu0 %v10570
        %10879 = vmatprep.subr.bf16.mxu0 0
        %10880 = vmatpush1.bf16.msra.mxu0 %v10571
        %10881 = vmatprep.subr.bf16.mxu0 0
        %10882 = vmatpush1.bf16.msra.mxu0 %v10572
        %10883 = vmatprep.subr.bf16.mxu0 0
        %10884 = vmatpush1.bf16.msra.mxu0 %v10573
        %10885 = vmatprep.subr.bf16.mxu0 0
        %10886 = vmatpush1.bf16.msra.mxu0 %v10574
        %10887 = vmatprep.subr.bf16.mxu0 0
        %10888 = vmatpush1.bf16.msra.mxu0 %v10575
        %10889 = vmatprep.subr.bf16.mxu0 0
        %10890 = vmatpush1.bf16.msra.mxu0 %v10576
        %10891 = vmatprep.subr.bf16.mxu0 0
        %10892 = vmatpush1.bf16.msra.mxu0 %v10577
        %10893 = vmatprep.subr.bf16.mxu0 0
        %10894 = vmatpush1.bf16.msra.mxu0 %v10578
        %10895 = vmatprep.subr.bf16.mxu0 0
        %10896 = vmatpush1.bf16.msra.mxu0 %v10579
        %10897 = vmatprep.subr.bf16.mxu0 0
        %10898 = vmatpush1.bf16.msra.mxu0 %v10580
        %10899 = vmatprep.subr.bf16.mxu0 0
        %10900 = vmatpush1.bf16.msra.mxu0 %v10581
        %10901 = vmatprep.subr.bf16.mxu0 0
        %10902 = vmatpush1.bf16.msra.mxu0 %v10582
        %10903 = vmatprep.subr.bf16.mxu0 0
        %10904 = vmatpush1.bf16.msra.mxu0 %v10583
        %10905 = vmatprep.subr.bf16.mxu0 0
        %10906 = vmatpush1.bf16.msra.mxu0 %v10584
        %10907 = vmatprep.mubr.bf16.mxu0 %v10008
        %10908 = vmatmul.mubr.bf16.gmra.mrb[0].mxu0 %v10007
        %v10909 = vpop.f32.mrb[0].mxu0
        %v10910 = vadd.f32 %v10869, %v10909
        %v10911 = vpop.f32.mrb[0].mxu0
        %v10912 = vpop.f32.mrb[0].mxu0
        %v10913 = vadd.f32 %v10872, %v10912
        %v10914 = vpop.f32.mrb[0].mxu0
        %10915 = vdwg.mxu0
        %10916 = vmatprep.subr.bf16.mxu0 0
        %10917 = vmatpush1.bf16.msra.mxu0 %v10585
        %10918 = vmatprep.subr.bf16.mxu0 0
        %10919 = vmatpush1.bf16.msra.mxu0 %v10586
        %10920 = vmatprep.subr.bf16.mxu0 0
        %10921 = vmatpush1.bf16.msra.mxu0 %v10587
        %10922 = vmatprep.subr.bf16.mxu0 0
        %10923 = vmatpush1.bf16.msra.mxu0 %v10588
        %10924 = vmatprep.subr.bf16.mxu0 0
        %10925 = vmatpush1.bf16.msra.mxu0 %v10589
        %10926 = vmatprep.subr.bf16.mxu0 0
        %10927 = vmatpush1.bf16.msra.mxu0 %v10590
        %10928 = vmatprep.subr.bf16.mxu0 0
        %10929 = vmatpush1.bf16.msra.mxu0 %v10591
        %10930 = vmatprep.subr.bf16.mxu0 0
        %10931 = vmatpush1.bf16.msra.mxu0 %v10592
        %10932 = vmatprep.subr.bf16.mxu0 0
        %10933 = vmatpush1.bf16.msra.mxu0 %v10593
        %10934 = vmatprep.subr.bf16.mxu0 0
        %10935 = vmatpush1.bf16.msra.mxu0 %v10594
        %10936 = vmatprep.subr.bf16.mxu0 0
        %10937 = vmatpush1.bf16.msra.mxu0 %v10595
        %10938 = vmatprep.subr.bf16.mxu0 0
        %10939 = vmatpush1.bf16.msra.mxu0 %v10596
        %10940 = vmatprep.subr.bf16.mxu0 0
        %10941 = vmatpush1.bf16.msra.mxu0 %v10597
        %10942 = vmatprep.subr.bf16.mxu0 0
        %10943 = vmatpush1.bf16.msra.mxu0 %v10598
        %10944 = vmatprep.subr.bf16.mxu0 0
        %10945 = vmatpush1.bf16.msra.mxu0 %v10599
        %10946 = vmatprep.subr.bf16.mxu0 0
        %10947 = vmatpush1.bf16.msra.mxu0 %v10600
        %10948 = vmatprep.mubr.bf16.mxu0 %v10010
        %10949 = vmatmul.mubr.bf16.gmra.mrb[0].mxu0 %v10009
        %v10950 = vpop.f32.mrb[0].mxu0
        %v10951 = vadd.f32 %v10910, %v10950
        %v10952 = vpop.f32.mrb[0].mxu0
        %v10953 = vpop.f32.mrb[0].mxu0
        %v10954 = vadd.f32 %v10913, %v10953
        %v10955 = vpop.f32.mrb[0].mxu0
        %10956 = vdwg.mxu0
        %10957 = vmatprep.subr.bf16.mxu0 0
        %10958 = vmatpush1.bf16.msra.mxu0 %v10601
        %10959 = vmatprep.subr.bf16.mxu0 0
        %10960 = vmatpush1.bf16.msra.mxu0 %v10602
        %10961 = vmatprep.subr.bf16.mxu0 0
        %10962 = vmatpush1.bf16.msra.mxu0 %v10603
        %10963 = vmatprep.subr.bf16.mxu0 0
        %10964 = vmatpush1.bf16.msra.mxu0 %v10604
        %10965 = vmatprep.subr.bf16.mxu0 0
        %10966 = vmatpush1.bf16.msra.mxu0 %v10605
        %10967 = vmatprep.subr.bf16.mxu0 0
        %10968 = vmatpush1.bf16.msra.mxu0 %v10606
        %10969 = vmatprep.subr.bf16.mxu0 0
        %10970 = vmatpush1.bf16.msra.mxu0 %v10607
        %10971 = vmatprep.subr.bf16.mxu0 0
        %10972 = vmatpush1.bf16.msra.mxu0 %v10608
        %10973 = vmatprep.subr.bf16.mxu0 0
        %10974 = vmatpush1.bf16.msra.mxu0 %v10609
        %10975 = vmatprep.subr.bf16.mxu0 0
        %10976 = vmatpush1.bf16.msra.mxu0 %v10610
        %10977 = vmatprep.subr.bf16.mxu0 0
        %10978 = vmatpush1.bf16.msra.mxu0 %v10611
        %10979 = vmatprep.subr.bf16.mxu0 0
        %10980 = vmatpush1.bf16.msra.mxu0 %v10612
        %10981 = vmatprep.subr.bf16.mxu0 0
        %10982 = vmatpush1.bf16.msra.mxu0 %v10613
        %10983 = vmatprep.subr.bf16.mxu0 0
        %10984 = vmatpush1.bf16.msra.mxu0 %v10614
        %10985 = vmatprep.subr.bf16.mxu0 0
        %10986 = vmatpush1.bf16.msra.mxu0 %v10615
        %10987 = vmatprep.subr.bf16.mxu0 0
        %10988 = vmatpush1.bf16.msra.mxu0 %v10616
        %10989 = vmatprep.mubr.bf16.mxu0 %v10012
        %10990 = vmatmul.mubr.bf16.gmra.mrb[0].mxu0 %v10011
        %v10991 = vpop.f32.mrb[0].mxu0
        %v10992 = vadd.f32 %v10951, %v10991
        %v10993 = vpop.f32.mrb[0].mxu0
        %v10994 = vpop.f32.mrb[0].mxu0
        %v10995 = vadd.f32 %v10954, %v10994
        %v10996 = vpop.f32.mrb[0].mxu0
        %10997 = vdwg.mxu0
        %10998 = vmatprep.subr.bf16.mxu0 0
        %10999 = vmatpush1.bf16.msra.mxu0 %v10617
        %11000 = vmatprep.subr.bf16.mxu0 0
        %11001 = vmatpush1.bf16.msra.mxu0 %v10618
        %11002 = vmatprep.subr.bf16.mxu0 0
        %11003 = vmatpush1.bf16.msra.mxu0 %v10619
        %11004 = vmatprep.subr.bf16.mxu0 0
        %11005 = vmatpush1.bf16.msra.mxu0 %v10620
        %11006 = vmatprep.subr.bf16.mxu0 0
        %11007 = vmatpush1.bf16.msra.mxu0 %v10621
        %11008 = vmatprep.subr.bf16.mxu0 0
        %11009 = vmatpush1.bf16.msra.mxu0 %v10622
        %11010 = vmatprep.subr.bf16.mxu0 0
        %11011 = vmatpush1.bf16.msra.mxu0 %v10623
        %11012 = vmatprep.subr.bf16.mxu0 0
        %11013 = vmatpush1.bf16.msra.mxu0 %v10624
        %11014 = vmatprep.subr.bf16.mxu0 0
        %11015 = vmatpush1.bf16.msra.mxu0 %v10625
        %11016 = vmatprep.subr.bf16.mxu0 0
        %11017 = vmatpush1.bf16.msra.mxu0 %v10626
        %11018 = vmatprep.subr.bf16.mxu0 0
        %11019 = vmatpush1.bf16.msra.mxu0 %v10627
        %11020 = vmatprep.subr.bf16.mxu0 0
        %11021 = vmatpush1.bf16.msra.mxu0 %v10628
        %11022 = vmatprep.subr.bf16.mxu0 0
        %11023 = vmatpush1.bf16.msra.mxu0 %v10629
        %11024 = vmatprep.subr.bf16.mxu0 0
        %11025 = vmatpush1.bf16.msra.mxu0 %v10630
        %11026 = vmatprep.subr.bf16.mxu0 0
        %11027 = vmatpush1.bf16.msra.mxu0 %v10631
        %11028 = vmatprep.subr.bf16.mxu0 0
        %11029 = vmatpush1.bf16.msra.mxu0 %v10632
        %11030 = vmatprep.mubr.bf16.mxu0 %v10014
        %11031 = vmatmul.mubr.bf16.gmra.mrb[0].mxu0 %v10013
        %v11032 = vpop.f32.mrb[0].mxu0
        %v11033 = vadd.f32 %v10992, %v11032
        %v11034 = vpop.f32.mrb[0].mxu0
        %v11035 = vpop.f32.mrb[0].mxu0
        %v11036 = vadd.f32 %v10995, %v11035
        %v11037 = vpop.f32.mrb[0].mxu0
        %11038 = vdwg.mxu0
        %11039 = vmatprep.subr.bf16.mxu0 0
        %11040 = vmatpush1.bf16.msra.mxu0 %v10633
        %11041 = vmatprep.subr.bf16.mxu0 0
        %11042 = vmatpush1.bf16.msra.mxu0 %v10634
        %11043 = vmatprep.subr.bf16.mxu0 0
        %11044 = vmatpush1.bf16.msra.mxu0 %v10635
        %11045 = vmatprep.subr.bf16.mxu0 0
        %11046 = vmatpush1.bf16.msra.mxu0 %v10636
        %11047 = vmatprep.subr.bf16.mxu0 0
        %11048 = vmatpush1.bf16.msra.mxu0 %v10637
        %11049 = vmatprep.subr.bf16.mxu0 0
        %11050 = vmatpush1.bf16.msra.mxu0 %v10638
        %11051 = vmatprep.subr.bf16.mxu0 0
        %11052 = vmatpush1.bf16.msra.mxu0 %v10639
        %11053 = vmatprep.subr.bf16.mxu0 0
        %11054 = vmatpush1.bf16.msra.mxu0 %v10640
        %11055 = vmatprep.subr.bf16.mxu0 0
        %11056 = vmatpush1.bf16.msra.mxu0 %v10641
        %11057 = vmatprep.subr.bf16.mxu0 0
        %11058 = vmatpush1.bf16.msra.mxu0 %v10642
        %11059 = vmatprep.subr.bf16.mxu0 0
        %11060 = vmatpush1.bf16.msra.mxu0 %v10643
        %11061 = vmatprep.subr.bf16.mxu0 0
        %11062 = vmatpush1.bf16.msra.mxu0 %v10644
        %11063 = vmatprep.subr.bf16.mxu0 0
        %11064 = vmatpush1.bf16.msra.mxu0 %v10645
        %11065 = vmatprep.subr.bf16.mxu0 0
        %11066 = vmatpush1.bf16.msra.mxu0 %v10646
        %11067 = vmatprep.subr.bf16.mxu0 0
        %11068 = vmatpush1.bf16.msra.mxu0 %v10647
        %11069 = vmatprep.subr.bf16.mxu0 0
        %11070 = vmatpush1.bf16.msra.mxu0 %v10648
        %11071 = vmatprep.mubr.bf16.mxu0 %v10016
        %11072 = vmatmul.mubr.bf16.gmra.mrb[0].mxu0 %v10015
        %v11073 = vpop.f32.mrb[0].mxu0
        %v11074 = vadd.f32 %v11033, %v11073
        %v11075 = vpop.f32.mrb[0].mxu0
        %v11076 = vpop.f32.mrb[0].mxu0
        %v11077 = vadd.f32 %v11036, %v11076
        %v11078 = vpop.f32.mrb[0].mxu0
        %11079 = vdwg.mxu0
        %11080 = vmatprep.subr.bf16.mxu0 0
        %11081 = vmatpush1.bf16.msra.mxu0 %v10649
        %11082 = vmatprep.subr.bf16.mxu0 0
        %11083 = vmatpush1.bf16.msra.mxu0 %v10650
        %11084 = vmatprep.subr.bf16.mxu0 0
        %11085 = vmatpush1.bf16.msra.mxu0 %v10651
        %11086 = vmatprep.subr.bf16.mxu0 0
        %11087 = vmatpush1.bf16.msra.mxu0 %v10652
        %11088 = vmatprep.subr.bf16.mxu0 0
        %11089 = vmatpush1.bf16.msra.mxu0 %v10653
        %11090 = vmatprep.subr.bf16.mxu0 0
        %11091 = vmatpush1.bf16.msra.mxu0 %v10654
        %11092 = vmatprep.subr.bf16.mxu0 0
        %11093 = vmatpush1.bf16.msra.mxu0 %v10655
        %11094 = vmatprep.subr.bf16.mxu0 0
        %11095 = vmatpush1.bf16.msra.mxu0 %v10656
        %11096 = vmatprep.subr.bf16.mxu0 0
        %11097 = vmatpush1.bf16.msra.mxu0 %v10657
        %11098 = vmatprep.subr.bf16.mxu0 0
        %11099 = vmatpush1.bf16.msra.mxu0 %v10658
        %11100 = vmatprep.subr.bf16.mxu0 0
        %11101 = vmatpush1.bf16.msra.mxu0 %v10659
        %11102 = vmatprep.subr.bf16.mxu0 0
        %11103 = vmatpush1.bf16.msra.mxu0 %v10660
        %11104 = vmatprep.subr.bf16.mxu0 0
        %11105 = vmatpush1.bf16.msra.mxu0 %v10661
        %11106 = vmatprep.subr.bf16.mxu0 0
        %11107 = vmatpush1.bf16.msra.mxu0 %v10662
        %11108 = vmatprep.subr.bf16.mxu0 0
        %11109 = vmatpush1.bf16.msra.mxu0 %v10663
        %11110 = vmatprep.subr.bf16.mxu0 0
        %11111 = vmatpush1.bf16.msra.mxu0 %v10664
        %11112 = vmatprep.mubr.bf16.mxu0 %v10018
        %11113 = vmatmul.mubr.bf16.gmra.mrb[0].mxu0 %v10017
        %v11114 = vpop.f32.mrb[0].mxu0
        %v11115 = vadd.f32 %v11074, %v11114
        %v11116 = vpop.f32.mrb[0].mxu0
        %v11117 = vpop.f32.mrb[0].mxu0
        %v11118 = vadd.f32 %v11077, %v11117
        %v11119 = vpop.f32.mrb[0].mxu0
        %11120 = vdwg.mxu0
        %v11121 = vadd.f32 %v8988, %v11115
        %v11122 = vadd.f32 %v8989, %v11118
        %s11123 = scalar_lea.vmem %s11, 3
        %v11124 = vld [vmem:[%s11123] sm:$0x1]
        %s11125 = scalar_lea.vmem %s12, 3
        %v11126 = vld [vmem:[%s11125] sm:$0x1]
        %v11127 = vsel %vm545, %v11121, 0.0
        %11128 = vadd.xlane.f32.xlu0 %v11127
        %v11129 = vpop.xlane.xlu0 %11128
        %v11130 = vsel %vm545, %v11122, 0.0
        %11131 = vadd.xlane.f32.xlu0 %v11130
        %v11132 = vpop.xlane.xlu0 %11131
        %v11133 = vmul.f32 %v11129, %v964
        %v11134 = vmul.f32 %v11132, %v964
        %v11135 = vsub.f32 %v11121, %v11133
        %v11136 = vsub.f32 %v11122, %v11134
        %v11137 = vmul.f32 %v11135, %v11135
        %v11138 = vmul.f32 %v11136, %v11136
        %v11139 = vsel %vm545, %v11137, 0.0
        %11140 = vadd.xlane.f32.xlu0 %v11139
        %v11141 = vpop.xlane.xlu0 %11140
        %v11142 = vsel %vm545, %v11138, 0.0
        %11143 = vadd.xlane.f32.xlu0 %v11142
        %v11144 = vpop.xlane.xlu0 %11143
        %v11145 = vmul.f32 %v11141, %v964
        %v11146 = vmul.f32 %v11144, %v964
        %v11147 = vadd.f32 %v11145, 1e-05
        %v11148 = vadd.f32 %v11146, 1e-05
        %v11149 = vrsqrt.pop %v11147
        %v11150 = vrsqrt.pop %v11148
        %v11151 = vmul.f32 %v11135, %v11149
        %v11152 = vmul.f32 %v11136, %v11150
        %v11154 = vlaneseq
        %v11155 = vshrl.u32 %v11154, 7
        %v11156 = vsub.s32 0, %v11155
        %v11157 = vrot.slane %v11124, %v11156
        %v11159 = vmul.f32 %v11151, %v11157
        %v11160 = vmul.f32 %v11152, %v11157
        %v11162 = vlaneseq
        %v11163 = vshrl.u32 %v11162, 7
        %v11164 = vsub.s32 0, %v11163
        %v11165 = vrot.slane %v11126, %v11164
        %v11167 = vadd.f32 %v11159, %v11165
        %v11168 = vadd.f32 %v11160, %v11165
        %v11169 = vsel %vm545, %v11167, 0.0
        %v11170 = vsel %vm545, %v11168, 0.0
        %v11171 = vadd.f32 %v11169, %v11170
        %v11172 = vrot.slane %v11171, 4
        %v11173 = vadd.f32 %v11171, %v11172
        %v11174 = vrot.slane %v11173, 2
        %v11175 = vadd.f32 %v11173, %v11174
        %v11176 = vrot.slane %v11175, 1
        %v11177 = vadd.f32 %v11175, %v11176
        %v11178 = vrcp.pop 16.0
        %v11179 = vmul.f32 %v11177, %v11178
        %v11180 = vld [vmem:[%s13] sm:$0xff]
        %v11181 = vld [vmem:[%s13 + $0x8] sm:$0xff]
        %v11182 = vld [vmem:[%s13 + $0x10] sm:$0xff]
        %v11183 = vld [vmem:[%s13 + $0x18] sm:$0xff]
        %v11184 = vld [vmem:[%s13 + $0x20] sm:$0xff]
        %v11185 = vld [vmem:[%s14] sm:$0x1]
        %v11187 = vsel %vm545, %v11179, 0
        %11189 = vmatprep.subr.mxu0 0.0
        %11190 = vmatpush1.msra.mxu0 %v11180
        %11191 = vmatprep.subr.mxu0 0.0
        %11192 = vmatpush1.msra.mxu0 %v11181
        %11193 = vmatprep.subr.mxu0 0.0
        %11194 = vmatpush1.msra.mxu0 %v11182
        %11195 = vmatprep.subr.mxu0 0.0
        %11196 = vmatpush1.msra.mxu0 %v11183
        %11197 = vmatprep.subr.mxu0 0.0
        %11198 = vmatpush1.msra.mxu0 %v11184
        %11199 = vmatprep.subr.mxu0 0.0
        %11200 = vmatpush1.msra.mxu0 0.0
        %11201 = vmatprep.subr.mxu0 0.0
        %11202 = vmatpush1.msra.mxu0 0.0
        %11203 = vmatprep.subr.mxu0 0.0
        %11204 = vmatpush1.msra.mxu0 0.0
        %11205 = vmatprep.subr.mxu0 0.0
        %11206 = vmatpush1.msra.mxu0 0.0
        %11207 = vmatprep.subr.mxu0 0.0
        %11208 = vmatpush1.msra.mxu0 0.0
        %11209 = vmatprep.subr.mxu0 0.0
        %11210 = vmatpush1.msra.mxu0 0.0
        %11211 = vmatprep.subr.mxu0 0.0
        %11212 = vmatpush1.msra.mxu0 0.0
        %11213 = vmatprep.subr.mxu0 0.0
        %11214 = vmatpush1.msra.mxu0 0.0
        %11215 = vmatprep.subr.mxu0 0.0
        %11216 = vmatpush1.msra.mxu0 0.0
        %11217 = vmatprep.subr.mxu0 0.0
        %11218 = vmatpush1.msra.mxu0 0.0
        %11219 = vmatprep.subr.mxu0 0.0
        %11220 = vmatpush1.msra.mxu0 0.0
        %11221 = vmatprep.subr.mxu0 0.0
        %11222 = vmatpush1.msra.mxu0 0.0
        %11223 = vmatprep.subr.mxu0 0.0
        %11224 = vmatpush1.msra.mxu0 0.0
        %11225 = vmatprep.subr.mxu0 0.0
        %11226 = vmatpush1.msra.mxu0 0.0
        %11227 = vmatprep.subr.mxu0 0.0
        %11228 = vmatpush1.msra.mxu0 0.0
        %11229 = vmatprep.subr.mxu0 0.0
        %11230 = vmatpush1.msra.mxu0 0.0
        %11231 = vmatprep.subr.mxu0 0.0
        %11232 = vmatpush1.msra.mxu0 0.0
        %11233 = vmatprep.subr.mxu0 0.0
        %11234 = vmatpush1.msra.mxu0 0.0
        %11235 = vmatprep.subr.mxu0 0.0
        %11236 = vmatpush1.msra.mxu0 0.0
        %11237 = vmatprep.subr.mxu0 0.0
        %11238 = vmatpush1.msra.mxu0 0.0
        %11239 = vmatprep.subr.mxu0 0.0
        %11240 = vmatpush1.msra.mxu0 0.0
        %11241 = vmatprep.subr.mxu0 0.0
        %11242 = vmatpush1.msra.mxu0 0.0
        %11243 = vmatprep.subr.mxu0 0.0
        %11244 = vmatpush1.msra.mxu0 0.0
        %11245 = vmatprep.subr.mxu0 0.0
        %11246 = vmatpush1.msra.mxu0 0.0
        %11247 = vmatprep.subr.mxu0 0.0
        %11248 = vmatpush1.msra.mxu0 0.0
        %11249 = vmatprep.subr.mxu0 0.0
        %11250 = vmatpush1.msra.mxu0 0.0
        %11251 = vmatprep.subr.mxu0 0.0
        %11252 = vmatpush1.msra.mxu0 0.0
        %11253 = vmatprep.mubr.f32.mxu0 0.0
        %11254 = vmatmul.mubr.f32.gmra.mrb[0].mxu0 %v11187
        %v11255 = vpop.f32.mrb[0].mxu0
        %v11256 = vadd.f32 %v11185, %v11255
        %v11257 = vpop.f32.mrb[0].mxu0
        %11258 = vdwg.mxu0
        %vm11259 = vcmask 24576
        %11260 = vst.msk [vmem:[%s486] sm:$0x1] %vm11259, %v11256
        %s11261 = sand.u32 %s357, 1
        %s11262 = scalar_lea.sflag [#allocation3], %s11261
        %s11263 = sand.u32 %s357, 1
        %s11264 = scalar_lea.vmem [#allocation2], %s11263
        // Predicated region
        $region81: #{tpu_custom_call.1} parent=79 // pred_check
          %p11265 = pneg %p367
        $region82: #{tpu_custom_call.1} parent=79 // pred_check_branch
          %11267 = sbr.rel (%p11265) target = $region84
        $region83: #{tpu_custom_call.1} parent=79 // pred_region
          %s11269 = ssub.s32 16, 16
          %11270 = vsyncadd %s11262, %s11269
          %s11271 = smul.addr %s29, 16
          %s11272 = scalar_lea.hbm %s15, %s11271
          %s11274 = sshll.u32 %s11264, 4
          %s11275 = int_to_ptr.vmem [resolvable:$true] %s11274
          %11277 = dma.vmem_to_hbm [thread:$0]  %s11275, 16, %s11272, %s11262
        $region84: #{tpu_custom_call.1} parent=79 // pred_fallthru
          _
      $region80: #{tpu_custom_call.1} parent=5 // pred_fallthru
        _
      %p11278 = scmp.le.s32.totalorder 2, %s24
      // Predicated region
      $region85: #{tpu_custom_call.1} parent=5 // pred_check
        %p11279 = pneg %p11278
      $region86: #{tpu_custom_call.1} parent=5 // pred_check_branch
        %11281 = sbr.rel (%p11279) target = $region88
      $region87: #{tpu_custom_call.1} parent=5 // pred_region
        %s11282 = ssub.s32 %s24, 2
        // Predicated region
        $region89: #{tpu_custom_call.1} parent=87 // pred_check
          %p11283 = pneg %p373
        $region90: #{tpu_custom_call.1} parent=87 // pred_check_branch
          %11285 = sbr.rel (%p11283) target = $region92
        $region91: #{tpu_custom_call.1} parent=87 // pred_region
          %s11286 = sand.u32 %s358, 1
          %s11287 = scalar_lea.sflag [#allocation3], %s11286
          %s11288 = sand.u32 %s358, 1
          %s11289 = scalar_lea.vmem [#allocation2], %s11288
          %11290 = dma.done %s11287, 16
        $region92: #{tpu_custom_call.1} parent=87 // pred_fallthru
          _
      $region88: #{tpu_custom_call.1} parent=5 // pred_fallthru
        _
    $region6: #{tpu_custom_call.1} parent=1 // loop_footer
      %s28 = sadd.s32 1, %s24
    $region7: #{tpu_custom_call.1} parent=1 // loop_footer_branch
      %23 = sbr.rel target = $region3
    $region8: #{tpu_custom_call.1} parent=1 // loop_exit
      _
    %11291 = vsyncpa [#allocation3], 1
    %s11292 = scalar_lea.sflag [#allocation3], 1
    %11293 = vsyncpa %s11292, 1

</llo_original>
